<compile_context>
chip_gen: v6e
topology: v6e:2x2x1
jax: 0.10.0
libtpu: 0.0.40
codegen_flags: <defaults>
</compile_context>

<pallas_src>
import functools

import jax
import jax.numpy as jnp
from jax.experimental import pallas as pl
from jax.experimental.pallas import tpu as pltpu


# ----------------------------- Pallas kernel ------------------------------ #
def _fused_cnn_kernel(x_ref, w1_ref, w2_ref, w3_ref, wh_ref,
                      a1_ref, a2_ref, a3_ref, bh_ref,
                      o_ref, pad1, pad2, pad3, *, H, W, c1, c2, c3):
    """One grid step == one image.  Everything stays in VMEM."""

    def stage(pad_ref, value_hwc):
        # Zero the halo, write the interior (borders stay zero => "same" pad).
        pad_ref[...] = jnp.zeros_like(pad_ref)
        pad_ref[1:H + 1, 1:W + 1, :] = value_hwc

    def conv3x3_bn_relu(pad_ref, w_ref, aff_ref, cout):
        # 3x3 conv as 9 accumulating matmuls over shifted windows.
        acc = jnp.zeros((H * W, cout), jnp.float32)
        for ky in range(3):
            for kx in range(3):
                win = pad_ref[ky:ky + H, kx:kx + W, :]
                win = win.reshape(H * W, win.shape[-1]).astype(jnp.bfloat16)
                acc = acc + jnp.dot(win, w_ref[ky, kx],
                                    preferred_element_type=jnp.float32)
        # Fused (conv-bias + BN) affine + ReLU, all in f32.
        return jnp.maximum(acc * aff_ref[0:1, :] + aff_ref[1:2, :], 0.0)

    stage(pad1, x_ref[0])
    y1 = conv3x3_bn_relu(pad1, w1_ref, a1_ref, c1)

    stage(pad2, y1.reshape(H, W, c1))
    y2 = conv3x3_bn_relu(pad2, w2_ref, a2_ref, c2)

    stage(pad3, y2.reshape(H, W, c2))
    y3 = conv3x3_bn_relu(pad3, w3_ref, a3_ref, c3)

    # Dropout(0.4): identity in eval mode.
    # 1x1 head; Cout padded to a multiple of 128 -> lane-dense output store.
    head = jnp.dot(y3.astype(jnp.bfloat16), wh_ref[...],
                   preferred_element_type=jnp.float32) + bh_ref[...]
    o_ref[0] = head.reshape(H, W, -1).astype(o_ref.dtype)


# ------------------------------ JAX wrapper -------------------------------- #
def module_placement_cnn_forward(x_nchw, params):
    N, Cin, H, W = x_nchw.shape
    x = jnp.transpose(x_nchw, (0, 2, 3, 1)).astype(jnp.float32)  # -> NHWC

    def conv_w(w_oihw):  # (Cout,Cin,3,3) -> (3,3,Cin,Cout), bf16 for the MXU
        return jnp.transpose(w_oihw, (2, 3, 1, 0)).astype(jnp.bfloat16)

    def affine(p):  # fold conv bias into BN(eval) affine -> (2, C) f32
        scale = p["gamma"] * jax.lax.rsqrt(p["var"] + 1e-5)
        shift = (p["b"] - p["mean"]) * scale + p["beta"]
        return jnp.stack([scale, shift]).astype(jnp.float32)

    p1, p2, p3, po = params["conv1"], params["conv2"], params["conv3"], params["out"]
    c1, c2, c3 = p1["w"].shape[0], p2["w"].shape[0], p3["w"].shape[0]
    ncls = po["w"].shape[0]
    cout_pad = ((ncls + 127) // 128) * 128          # lane-dense head output

    w1, w2, w3 = conv_w(p1["w"]), conv_w(p2["w"]), conv_w(p3["w"])
    a1, a2, a3 = affine(p1), affine(p2), affine(p3)
    wh = jnp.transpose(po["w"][:, :, 0, 0], (1, 0))              # (c3, ncls)
    wh = jnp.pad(wh, ((0, 0), (0, cout_pad - ncls))).astype(jnp.bfloat16)
    bh = jnp.pad(po["b"], (0, cout_pad - ncls)).reshape(1, cout_pad)
    bh = bh.astype(jnp.float32)

    kernel = functools.partial(_fused_cnn_kernel, H=H, W=W, c1=c1, c2=c2, c3=c3)

    out = pl.pallas_call(
        kernel,
        out_shape=jax.ShapeDtypeStruct((N, H, W, cout_pad), jnp.float32),
        grid=(N,),
        in_specs=[
            pl.BlockSpec((1, H, W, Cin), lambda n: (n, 0, 0, 0)),   # image
            pl.BlockSpec((3, 3, Cin, c1), lambda n: (0, 0, 0, 0)),  # conv1 w
            pl.BlockSpec((3, 3, c1, c2), lambda n: (0, 0, 0, 0)),   # conv2 w
            pl.BlockSpec((3, 3, c2, c3), lambda n: (0, 0, 0, 0)),   # conv3 w
            pl.BlockSpec((c3, cout_pad), lambda n: (0, 0)),         # head w
            pl.BlockSpec((2, c1), lambda n: (0, 0)),                # bn1 affine
            pl.BlockSpec((2, c2), lambda n: (0, 0)),                # bn2 affine
            pl.BlockSpec((2, c3), lambda n: (0, 0)),                # bn3 affine
            pl.BlockSpec((1, cout_pad), lambda n: (0, 0)),          # head bias
        ],
        out_specs=pl.BlockSpec((1, H, W, cout_pad), lambda n: (n, 0, 0, 0)),
        scratch_shapes=[
            pltpu.VMEM((H + 2, W + 2, Cin), jnp.float32),  # padded input
            pltpu.VMEM((H + 2, W + 2, c1), jnp.float32),   # padded act 1
            pltpu.VMEM((H + 2, W + 2, c2), jnp.float32),   # padded act 2
        ],
        compiler_params=pltpu.CompilerParams(
            dimension_semantics=("parallel",)),
    )(x, w1, w2, w3, wh, a1, a2, a3, bh)

    out = out[..., :ncls]                         # drop lane padding
    return jnp.transpose(out, (0, 3, 1, 2))       # NHWC -> NCHW


# --------------------------- pure-XLA reference ---------------------------- #
def _reference_forward(x_nchw, params):
    """Mirrors the kernel numerics (bf16 matmul operands, f32 accumulation)."""
    dn = ("NHWC", "HWIO", "NHWC")
    x = jnp.transpose(x_nchw, (0, 2, 3, 1)).astype(jnp.float32)
    for name in ("conv1", "conv2", "conv3"):
        p = params[name]
        scale = p["gamma"] * jax.lax.rsqrt(p["var"] + 1e-5)
        shift = (p["b"] - p["mean"]) * scale + p["beta"]
        w = jnp.transpose(p["w"], (2, 3, 1, 0)).astype(jnp.bfloat16)
        acc = jax.lax.conv_general_dilated(
            x.astype(jnp.bfloat16), w, (1, 1), "SAME",
            dimension_numbers=dn, preferred_element_type=jnp.float32)
        x = jnp.maximum(acc * scale + shift, 0.0)
    p = params["out"]
    w = jnp.transpose(p["w"], (2, 3, 1, 0)).astype(jnp.bfloat16)
    y = jax.lax.conv_general_dilated(
        x.astype(jnp.bfloat16), w, (1, 1), "SAME",
        dimension_numbers=dn, preferred_element_type=jnp.float32) + p["b"]
    return jnp.transpose(y, (0, 3, 1, 2))


# --------------------------- parameter setup ------------------------------ #
def init_params(key, input_channels, num_output_classes):
    def conv_bn(key, cin, cout):
        k = jax.random.split(key, 6)
        fan_in = cin * 9
        return {
            "w": jax.random.normal(k[0], (cout, cin, 3, 3), jnp.float32)
                 * (1.0 / jnp.sqrt(fan_in)),
            "b": jax.random.normal(k[1], (cout,), jnp.float32) * 0.01,
            "gamma": 1.0 + 0.1 * jax.random.normal(k[2], (cout,), jnp.float32),
            "beta": 0.1 * jax.random.normal(k[3], (cout,), jnp.float32),
            "mean": 0.1 * jax.random.normal(k[4], (cout,), jnp.float32),
            "var": 0.5 + jax.random.uniform(k[5], (cout,), jnp.float32),
        }

    k1, k2, k3, k4 = jax.random.split(key, 4)
    ko = jax.random.split(k4, 2)
    return {
        "conv1": conv_bn(k1, input_channels, 64),
        "conv2": conv_bn(k2, 64, 128),
        "conv3": conv_bn(k3, 128, 128),
        "out": {
            "w": jax.random.normal(ko[0], (num_output_classes, 128, 1, 1),
                                   jnp.float32) * (1.0 / jnp.sqrt(128.0)),
            "b": jax.random.normal(ko[1], (num_output_classes,),
                                   jnp.float32) * 0.01,
        },
    }


# --------------------------------- main ------------------------------------ #
if __name__ == "__main__":
    key = jax.random.PRNGKey(0)
    k_x, k_p = jax.random.split(key)

    batch, in_ch, H, W = 2, 4, 16, 16
    num_classes = 3

    x = jax.random.normal(k_x, (batch, in_ch, H, W), jnp.float32)  # NCHW
    params = init_params(k_p, in_ch, num_classes)

    fwd = jax.jit(module_placement_cnn_forward)
    out = fwd(x, params)
    jax.block_until_ready(out)
    assert out.shape == (batch, num_classes, H, W)

    ref = jax.jit(_reference_forward)(x, params)
    err = float(jnp.max(jnp.abs(out - ref)))
    assert err < 5e-3, f"max |kernel - reference| = {err}"

    print("KERNEL_OK")
</pallas_src>

<mosaic_0001>
module attributes {stable_mosaic.version = 11 : i64} {
  func.func @_fused_cnn_kernel(%arg0: i32, %arg1: memref<1x16x16x4xf32, #tpu.memory_space<vmem>>, %arg2: memref<3x3x4x64xbf16, #tpu.memory_space<vmem>>, %arg3: memref<3x3x64x128xbf16, #tpu.memory_space<vmem>>, %arg4: memref<3x3x128x128xbf16, #tpu.memory_space<vmem>>, %arg5: memref<128x128xbf16, #tpu.memory_space<vmem>>, %arg6: memref<2x64xf32, #tpu.memory_space<vmem>>, %arg7: memref<2x128xf32, #tpu.memory_space<vmem>>, %arg8: memref<2x128xf32, #tpu.memory_space<vmem>>, %arg9: memref<1x128xf32, #tpu.memory_space<vmem>>, %arg10: memref<1x16x16x128xf32, #tpu.memory_space<vmem>>, %arg11: memref<18x18x4xf32, #tpu.memory_space<vmem>>, %arg12: memref<18x18x64xf32, #tpu.memory_space<vmem>>, %arg13: memref<18x18x128xf32, #tpu.memory_space<vmem>>) attributes {dimension_semantics = [#tpu.dimension_semantics<parallel>], iteration_bounds = array<i64: 2>, scalar_prefetch = 0 : i64, scratch_operands = 3 : i64, tpu.core_type = #tpu.core_type<tc>, window_params = [{transform_indices = @transform_0, window_bounds = array<i64: 1, 16, 16, 4>}, {pipeline_mode = #tpu.pipeline_mode<synchronous>, transform_indices = @transform_1, window_bounds = array<i64: 3, 3, 4, 64>}, {pipeline_mode = #tpu.pipeline_mode<synchronous>, transform_indices = @transform_2, window_bounds = array<i64: 3, 3, 64, 128>}, {pipeline_mode = #tpu.pipeline_mode<synchronous>, transform_indices = @transform_3, window_bounds = array<i64: 3, 3, 128, 128>}, {pipeline_mode = #tpu.pipeline_mode<synchronous>, transform_indices = @transform_4, window_bounds = array<i64: 128, 128>}, {pipeline_mode = #tpu.pipeline_mode<synchronous>, transform_indices = @transform_5, window_bounds = array<i64: 2, 64>}, {pipeline_mode = #tpu.pipeline_mode<synchronous>, transform_indices = @transform_6, window_bounds = array<i64: 2, 128>}, {pipeline_mode = #tpu.pipeline_mode<synchronous>, transform_indices = @transform_7, window_bounds = array<i64: 2, 128>}, {pipeline_mode = #tpu.pipeline_mode<synchronous>, transform_indices = @transform_8, window_bounds = array<i64: 1, 128>}, {transform_indices = @transform_9, window_bounds = array<i64: 1, 16, 16, 128>}]} {
    %c0 = arith.constant 0 : index
    %c0_0 = arith.constant 0 : index
    %c0_1 = arith.constant 0 : index
    %c0_2 = arith.constant 0 : index
    %0 = vector.load %arg1[%c0, %c0_0, %c0_1, %c0_2] : memref<1x16x16x4xf32, #tpu.memory_space<vmem>>, vector<1x16x16x4xf32>
    %1 = vector.shape_cast %0 : vector<1x16x16x4xf32> to vector<16x16x4xf32>
    %cst = arith.constant 0.000000e+00 : f32
    %2 = vector.broadcast %cst : f32 to vector<18x18x4xf32>
    %c0_3 = arith.constant 0 : index
    %c0_4 = arith.constant 0 : index
    %c0_5 = arith.constant 0 : index
    %3 = vector.load %arg11[%c0_3, %c0_4, %c0_5] : memref<18x18x4xf32, #tpu.memory_space<vmem>>, vector<18x18x4xf32>
    tpu.vector_store %arg11[%c0_3, %c0_4, %c0_5], %2 {strides = array<i32>} : memref<18x18x4xf32, #tpu.memory_space<vmem>>, vector<18x18x4xf32>,
    %c1 = arith.constant 1 : index
    %c1_6 = arith.constant 1 : index
    %c0_7 = arith.constant 0 : index
    %4 = vector.load %arg11[%c1, %c1_6, %c0_7] : memref<18x18x4xf32, #tpu.memory_space<vmem>>, vector<16x16x4xf32>
    tpu.vector_store %arg11[%c1, %c1_6, %c0_7], %1 {strides = array<i32>} : memref<18x18x4xf32, #tpu.memory_space<vmem>>, vector<16x16x4xf32>,
    %cst_8 = arith.constant 0.000000e+00 : f32
    %5 = vector.broadcast %cst_8 : f32 to vector<256x64xf32>
    %c0_9 = arith.constant 0 : index
    %c0_10 = arith.constant 0 : index
    %c0_11 = arith.constant 0 : index
    %6 = vector.load %arg11[%c0_9, %c0_10, %c0_11] : memref<18x18x4xf32, #tpu.memory_space<vmem>>, vector<16x16x4xf32>
    %7 = vector.shape_cast %6 : vector<16x16x4xf32> to vector<256x4xf32>
    %8 = arith.truncf %7 : vector<256x4xf32> to vector<256x4xbf16>
    %c0_12 = arith.constant 0 : index
    %c0_13 = arith.constant 0 : index
    %c0_14 = arith.constant 0 : index
    %c0_15 = arith.constant 0 : index
    %9 = vector.load %arg2[%c0_12, %c0_13, %c0_14, %c0_15] : memref<3x3x4x64xbf16, #tpu.memory_space<vmem>>, vector<1x1x4x64xbf16>
    %10 = vector.shape_cast %9 : vector<1x1x4x64xbf16> to vector<4x64xbf16>
    %cst_16 = arith.constant dense<0.000000e+00> : vector<256x64xf32>
    %11 = tpu.matmul %8, %10, %cst_16 {dimension_numbers = #tpu.dot_dimension_numbers<[1], [0], [0], [1], [0, 0, 1, 1], [], []>} : vector<256x4xbf16>, vector<4x64xbf16>, vector<256x64xf32> -> vector<256x64xf32>
    %12 = arith.addf %5, %11 : vector<256x64xf32>
    %c0_17 = arith.constant 0 : index
    %c1_18 = arith.constant 1 : index
    %c0_19 = arith.constant 0 : index
    %13 = vector.load %arg11[%c0_17, %c1_18, %c0_19] : memref<18x18x4xf32, #tpu.memory_space<vmem>>, vector<16x16x4xf32>
    %14 = vector.shape_cast %13 : vector<16x16x4xf32> to vector<256x4xf32>
    %15 = arith.truncf %14 : vector<256x4xf32> to vector<256x4xbf16>
    %c0_20 = arith.constant 0 : index
    %c1_21 = arith.constant 1 : index
    %c0_22 = arith.constant 0 : index
    %c0_23 = arith.constant 0 : index
    %16 = vector.load %arg2[%c0_20, %c1_21, %c0_22, %c0_23] : memref<3x3x4x64xbf16, #tpu.memory_space<vmem>>, vector<1x1x4x64xbf16>
    %17 = vector.shape_cast %16 : vector<1x1x4x64xbf16> to vector<4x64xbf16>
    %cst_24 = arith.constant dense<0.000000e+00> : vector<256x64xf32>
    %18 = tpu.matmul %15, %17, %cst_24 {dimension_numbers = #tpu.dot_dimension_numbers<[1], [0], [0], [1], [0, 0, 1, 1], [], []>} : vector<256x4xbf16>, vector<4x64xbf16>, vector<256x64xf32> -> vector<256x64xf32>
    %19 = arith.addf %12, %18 : vector<256x64xf32>
    %c0_25 = arith.constant 0 : index
    %c2 = arith.constant 2 : index
    %c0_26 = arith.constant 0 : index
    %20 = vector.load %arg11[%c0_25, %c2, %c0_26] : memref<18x18x4xf32, #tpu.memory_space<vmem>>, vector<16x16x4xf32>
    %21 = vector.shape_cast %20 : vector<16x16x4xf32> to vector<256x4xf32>
    %22 = arith.truncf %21 : vector<256x4xf32> to vector<256x4xbf16>
    %c0_27 = arith.constant 0 : index
    %c2_28 = arith.constant 2 : index
    %c0_29 = arith.constant 0 : index
    %c0_30 = arith.constant 0 : index
    %23 = vector.load %arg2[%c0_27, %c2_28, %c0_29, %c0_30] : memref<3x3x4x64xbf16, #tpu.memory_space<vmem>>, vector<1x1x4x64xbf16>
    %24 = vector.shape_cast %23 : vector<1x1x4x64xbf16> to vector<4x64xbf16>
    %cst_31 = arith.constant dense<0.000000e+00> : vector<256x64xf32>
    %25 = tpu.matmul %22, %24, %cst_31 {dimension_numbers = #tpu.dot_dimension_numbers<[1], [0], [0], [1], [0, 0, 1, 1], [], []>} : vector<256x4xbf16>, vector<4x64xbf16>, vector<256x64xf32> -> vector<256x64xf32>
    %26 = arith.addf %19, %25 : vector<256x64xf32>
    %c1_32 = arith.constant 1 : index
    %c0_33 = arith.constant 0 : index
    %c0_34 = arith.constant 0 : index
    %27 = vector.load %arg11[%c1_32, %c0_33, %c0_34] : memref<18x18x4xf32, #tpu.memory_space<vmem>>, vector<16x16x4xf32>
    %28 = vector.shape_cast %27 : vector<16x16x4xf32> to vector<256x4xf32>
    %29 = arith.truncf %28 : vector<256x4xf32> to vector<256x4xbf16>
    %c1_35 = arith.constant 1 : index
    %c0_36 = arith.constant 0 : index
    %c0_37 = arith.constant 0 : index
    %c0_38 = arith.constant 0 : index
    %30 = vector.load %arg2[%c1_35, %c0_36, %c0_37, %c0_38] : memref<3x3x4x64xbf16, #tpu.memory_space<vmem>>, vector<1x1x4x64xbf16>
    %31 = vector.shape_cast %30 : vector<1x1x4x64xbf16> to vector<4x64xbf16>
    %cst_39 = arith.constant dense<0.000000e+00> : vector<256x64xf32>
    %32 = tpu.matmul %29, %31, %cst_39 {dimension_numbers = #tpu.dot_dimension_numbers<[1], [0], [0], [1], [0, 0, 1, 1], [], []>} : vector<256x4xbf16>, vector<4x64xbf16>, vector<256x64xf32> -> vector<256x64xf32>
    %33 = arith.addf %26, %32 : vector<256x64xf32>
    %c1_40 = arith.constant 1 : index
    %c1_41 = arith.constant 1 : index
    %c0_42 = arith.constant 0 : index
    %34 = vector.load %arg11[%c1_40, %c1_41, %c0_42] : memref<18x18x4xf32, #tpu.memory_space<vmem>>, vector<16x16x4xf32>
    %35 = vector.shape_cast %34 : vector<16x16x4xf32> to vector<256x4xf32>
    %36 = arith.truncf %35 : vector<256x4xf32> to vector<256x4xbf16>
    %c1_43 = arith.constant 1 : index
    %c1_44 = arith.constant 1 : index
    %c0_45 = arith.constant 0 : index
    %c0_46 = arith.constant 0 : index
    %37 = vector.load %arg2[%c1_43, %c1_44, %c0_45, %c0_46] : memref<3x3x4x64xbf16, #tpu.memory_space<vmem>>, vector<1x1x4x64xbf16>
    %38 = vector.shape_cast %37 : vector<1x1x4x64xbf16> to vector<4x64xbf16>
    %cst_47 = arith.constant dense<0.000000e+00> : vector<256x64xf32>
    %39 = tpu.matmul %36, %38, %cst_47 {dimension_numbers = #tpu.dot_dimension_numbers<[1], [0], [0], [1], [0, 0, 1, 1], [], []>} : vector<256x4xbf16>, vector<4x64xbf16>, vector<256x64xf32> -> vector<256x64xf32>
    %40 = arith.addf %33, %39 : vector<256x64xf32>
    %c1_48 = arith.constant 1 : index
    %c2_49 = arith.constant 2 : index
    %c0_50 = arith.constant 0 : index
    %41 = vector.load %arg11[%c1_48, %c2_49, %c0_50] : memref<18x18x4xf32, #tpu.memory_space<vmem>>, vector<16x16x4xf32>
    %42 = vector.shape_cast %41 : vector<16x16x4xf32> to vector<256x4xf32>
    %43 = arith.truncf %42 : vector<256x4xf32> to vector<256x4xbf16>
    %c1_51 = arith.constant 1 : index
    %c2_52 = arith.constant 2 : index
    %c0_53 = arith.constant 0 : index
    %c0_54 = arith.constant 0 : index
    %44 = vector.load %arg2[%c1_51, %c2_52, %c0_53, %c0_54] : memref<3x3x4x64xbf16, #tpu.memory_space<vmem>>, vector<1x1x4x64xbf16>
    %45 = vector.shape_cast %44 : vector<1x1x4x64xbf16> to vector<4x64xbf16>
    %cst_55 = arith.constant dense<0.000000e+00> : vector<256x64xf32>
    %46 = tpu.matmul %43, %45, %cst_55 {dimension_numbers = #tpu.dot_dimension_numbers<[1], [0], [0], [1], [0, 0, 1, 1], [], []>} : vector<256x4xbf16>, vector<4x64xbf16>, vector<256x64xf32> -> vector<256x64xf32>
    %47 = arith.addf %40, %46 : vector<256x64xf32>
    %c2_56 = arith.constant 2 : index
    %c0_57 = arith.constant 0 : index
    %c0_58 = arith.constant 0 : index
    %48 = vector.load %arg11[%c2_56, %c0_57, %c0_58] : memref<18x18x4xf32, #tpu.memory_space<vmem>>, vector<16x16x4xf32>
    %49 = vector.shape_cast %48 : vector<16x16x4xf32> to vector<256x4xf32>
    %50 = arith.truncf %49 : vector<256x4xf32> to vector<256x4xbf16>
    %c2_59 = arith.constant 2 : index
    %c0_60 = arith.constant 0 : index
    %c0_61 = arith.constant 0 : index
    %c0_62 = arith.constant 0 : index
    %51 = vector.load %arg2[%c2_59, %c0_60, %c0_61, %c0_62] : memref<3x3x4x64xbf16, #tpu.memory_space<vmem>>, vector<1x1x4x64xbf16>
    %52 = vector.shape_cast %51 : vector<1x1x4x64xbf16> to vector<4x64xbf16>
    %cst_63 = arith.constant dense<0.000000e+00> : vector<256x64xf32>
    %53 = tpu.matmul %50, %52, %cst_63 {dimension_numbers = #tpu.dot_dimension_numbers<[1], [0], [0], [1], [0, 0, 1, 1], [], []>} : vector<256x4xbf16>, vector<4x64xbf16>, vector<256x64xf32> -> vector<256x64xf32>
    %54 = arith.addf %47, %53 : vector<256x64xf32>
    %c2_64 = arith.constant 2 : index
    %c1_65 = arith.constant 1 : index
    %c0_66 = arith.constant 0 : index
    %55 = vector.load %arg11[%c2_64, %c1_65, %c0_66] : memref<18x18x4xf32, #tpu.memory_space<vmem>>, vector<16x16x4xf32>
    %56 = vector.shape_cast %55 : vector<16x16x4xf32> to vector<256x4xf32>
    %57 = arith.truncf %56 : vector<256x4xf32> to vector<256x4xbf16>
    %c2_67 = arith.constant 2 : index
    %c1_68 = arith.constant 1 : index
    %c0_69 = arith.constant 0 : index
    %c0_70 = arith.constant 0 : index
    %58 = vector.load %arg2[%c2_67, %c1_68, %c0_69, %c0_70] : memref<3x3x4x64xbf16, #tpu.memory_space<vmem>>, vector<1x1x4x64xbf16>
    %59 = vector.shape_cast %58 : vector<1x1x4x64xbf16> to vector<4x64xbf16>
    %cst_71 = arith.constant dense<0.000000e+00> : vector<256x64xf32>
    %60 = tpu.matmul %57, %59, %cst_71 {dimension_numbers = #tpu.dot_dimension_numbers<[1], [0], [0], [1], [0, 0, 1, 1], [], []>} : vector<256x4xbf16>, vector<4x64xbf16>, vector<256x64xf32> -> vector<256x64xf32>
    %61 = arith.addf %54, %60 : vector<256x64xf32>
    %c2_72 = arith.constant 2 : index
    %c2_73 = arith.constant 2 : index
    %c0_74 = arith.constant 0 : index
    %62 = vector.load %arg11[%c2_72, %c2_73, %c0_74] : memref<18x18x4xf32, #tpu.memory_space<vmem>>, vector<16x16x4xf32>
    %63 = vector.shape_cast %62 : vector<16x16x4xf32> to vector<256x4xf32>
    %64 = arith.truncf %63 : vector<256x4xf32> to vector<256x4xbf16>
    %c2_75 = arith.constant 2 : index
    %c2_76 = arith.constant 2 : index
    %c0_77 = arith.constant 0 : index
    %c0_78 = arith.constant 0 : index
    %65 = vector.load %arg2[%c2_75, %c2_76, %c0_77, %c0_78] : memref<3x3x4x64xbf16, #tpu.memory_space<vmem>>, vector<1x1x4x64xbf16>
    %66 = vector.shape_cast %65 : vector<1x1x4x64xbf16> to vector<4x64xbf16>
    %cst_79 = arith.constant dense<0.000000e+00> : vector<256x64xf32>
    %67 = tpu.matmul %64, %66, %cst_79 {dimension_numbers = #tpu.dot_dimension_numbers<[1], [0], [0], [1], [0, 0, 1, 1], [], []>} : vector<256x4xbf16>, vector<4x64xbf16>, vector<256x64xf32> -> vector<256x64xf32>
    %68 = arith.addf %61, %67 : vector<256x64xf32>
    %c0_80 = arith.constant 0 : index
    %c0_81 = arith.constant 0 : index
    %69 = vector.load %arg6[%c0_80, %c0_81] : memref<2x64xf32, #tpu.memory_space<vmem>>, vector<1x64xf32>
    %70 = vector.broadcast %69 : vector<1x64xf32> to vector<256x64xf32>
    %71 = arith.mulf %68, %70 : vector<256x64xf32>
    %c1_82 = arith.constant 1 : index
    %c0_83 = arith.constant 0 : index
    %72 = vector.load %arg6[%c1_82, %c0_83] : memref<2x64xf32, #tpu.memory_space<vmem>>, vector<1x64xf32>
    %73 = vector.broadcast %72 : vector<1x64xf32> to vector<256x64xf32>
    %74 = arith.addf %71, %73 : vector<256x64xf32>
    %cst_84 = arith.constant 0.000000e+00 : f32
    %75 = vector.broadcast %cst_84 : f32 to vector<256x64xf32>
    %76 = arith.maximumf %74, %75 : vector<256x64xf32>
    %77 = vector.shape_cast %76 : vector<256x64xf32> to vector<16x16x64xf32>
    %cst_85 = arith.constant 0.000000e+00 : f32
    %78 = vector.broadcast %cst_85 : f32 to vector<18x18x64xf32>
    %c0_86 = arith.constant 0 : index
    %c0_87 = arith.constant 0 : index
    %c0_88 = arith.constant 0 : index
    %79 = vector.load %arg12[%c0_86, %c0_87, %c0_88] : memref<18x18x64xf32, #tpu.memory_space<vmem>>, vector<18x18x64xf32>
    tpu.vector_store %arg12[%c0_86, %c0_87, %c0_88], %78 {strides = array<i32>} : memref<18x18x64xf32, #tpu.memory_space<vmem>>, vector<18x18x64xf32>,
    %c1_89 = arith.constant 1 : index
    %c1_90 = arith.constant 1 : index
    %c0_91 = arith.constant 0 : index
    %80 = vector.load %arg12[%c1_89, %c1_90, %c0_91] : memref<18x18x64xf32, #tpu.memory_space<vmem>>, vector<16x16x64xf32>
    tpu.vector_store %arg12[%c1_89, %c1_90, %c0_91], %77 {strides = array<i32>} : memref<18x18x64xf32, #tpu.memory_space<vmem>>, vector<16x16x64xf32>,
    %cst_92 = arith.constant 0.000000e+00 : f32
    %81 = vector.broadcast %cst_92 : f32 to vector<256x128xf32>
    %c0_93 = arith.constant 0 : index
    %c0_94 = arith.constant 0 : index
    %c0_95 = arith.constant 0 : index
    %82 = vector.load %arg12[%c0_93, %c0_94, %c0_95] : memref<18x18x64xf32, #tpu.memory_space<vmem>>, vector<16x16x64xf32>
    %83 = vector.shape_cast %82 : vector<16x16x64xf32> to vector<256x64xf32>
    %84 = arith.truncf %83 : vector<256x64xf32> to vector<256x64xbf16>
    %c0_96 = arith.constant 0 : index
    %c0_97 = arith.constant 0 : index
    %c0_98 = arith.constant 0 : index
    %c0_99 = arith.constant 0 : index
    %85 = vector.load %arg3[%c0_96, %c0_97, %c0_98, %c0_99] : memref<3x3x64x128xbf16, #tpu.memory_space<vmem>>, vector<1x1x64x128xbf16>
    %86 = vector.shape_cast %85 : vector<1x1x64x128xbf16> to vector<64x128xbf16>
    %cst_100 = arith.constant dense<0.000000e+00> : vector<256x128xf32>
    %87 = tpu.matmul %84, %86, %cst_100 {dimension_numbers = #tpu.dot_dimension_numbers<[1], [0], [0], [1], [0, 0, 1, 1], [], []>} : vector<256x64xbf16>, vector<64x128xbf16>, vector<256x128xf32> -> vector<256x128xf32>
    %88 = arith.addf %81, %87 : vector<256x128xf32>
    %c0_101 = arith.constant 0 : index
    %c1_102 = arith.constant 1 : index
    %c0_103 = arith.constant 0 : index
    %89 = vector.load %arg12[%c0_101, %c1_102, %c0_103] : memref<18x18x64xf32, #tpu.memory_space<vmem>>, vector<16x16x64xf32>
    %90 = vector.shape_cast %89 : vector<16x16x64xf32> to vector<256x64xf32>
    %91 = arith.truncf %90 : vector<256x64xf32> to vector<256x64xbf16>
    %c0_104 = arith.constant 0 : index
    %c1_105 = arith.constant 1 : index
    %c0_106 = arith.constant 0 : index
    %c0_107 = arith.constant 0 : index
    %92 = vector.load %arg3[%c0_104, %c1_105, %c0_106, %c0_107] : memref<3x3x64x128xbf16, #tpu.memory_space<vmem>>, vector<1x1x64x128xbf16>
    %93 = vector.shape_cast %92 : vector<1x1x64x128xbf16> to vector<64x128xbf16>
    %cst_108 = arith.constant dense<0.000000e+00> : vector<256x128xf32>
    %94 = tpu.matmul %91, %93, %cst_108 {dimension_numbers = #tpu.dot_dimension_numbers<[1], [0], [0], [1], [0, 0, 1, 1], [], []>} : vector<256x64xbf16>, vector<64x128xbf16>, vector<256x128xf32> -> vector<256x128xf32>
    %95 = arith.addf %88, %94 : vector<256x128xf32>
    %c0_109 = arith.constant 0 : index
    %c2_110 = arith.constant 2 : index
    %c0_111 = arith.constant 0 : index
    %96 = vector.load %arg12[%c0_109, %c2_110, %c0_111] : memref<18x18x64xf32, #tpu.memory_space<vmem>>, vector<16x16x64xf32>
    %97 = vector.shape_cast %96 : vector<16x16x64xf32> to vector<256x64xf32>
    %98 = arith.truncf %97 : vector<256x64xf32> to vector<256x64xbf16>
    %c0_112 = arith.constant 0 : index
    %c2_113 = arith.constant 2 : index
    %c0_114 = arith.constant 0 : index
    %c0_115 = arith.constant 0 : index
    %99 = vector.load %arg3[%c0_112, %c2_113, %c0_114, %c0_115] : memref<3x3x64x128xbf16, #tpu.memory_space<vmem>>, vector<1x1x64x128xbf16>
    %100 = vector.shape_cast %99 : vector<1x1x64x128xbf16> to vector<64x128xbf16>
    %cst_116 = arith.constant dense<0.000000e+00> : vector<256x128xf32>
    %101 = tpu.matmul %98, %100, %cst_116 {dimension_numbers = #tpu.dot_dimension_numbers<[1], [0], [0], [1], [0, 0, 1, 1], [], []>} : vector<256x64xbf16>, vector<64x128xbf16>, vector<256x128xf32> -> vector<256x128xf32>
    %102 = arith.addf %95, %101 : vector<256x128xf32>
    %c1_117 = arith.constant 1 : index
    %c0_118 = arith.constant 0 : index
    %c0_119 = arith.constant 0 : index
    %103 = vector.load %arg12[%c1_117, %c0_118, %c0_119] : memref<18x18x64xf32, #tpu.memory_space<vmem>>, vector<16x16x64xf32>
    %104 = vector.shape_cast %103 : vector<16x16x64xf32> to vector<256x64xf32>
    %105 = arith.truncf %104 : vector<256x64xf32> to vector<256x64xbf16>
    %c1_120 = arith.constant 1 : index
    %c0_121 = arith.constant 0 : index
    %c0_122 = arith.constant 0 : index
    %c0_123 = arith.constant 0 : index
    %106 = vector.load %arg3[%c1_120, %c0_121, %c0_122, %c0_123] : memref<3x3x64x128xbf16, #tpu.memory_space<vmem>>, vector<1x1x64x128xbf16>
    %107 = vector.shape_cast %106 : vector<1x1x64x128xbf16> to vector<64x128xbf16>
    %cst_124 = arith.constant dense<0.000000e+00> : vector<256x128xf32>
    %108 = tpu.matmul %105, %107, %cst_124 {dimension_numbers = #tpu.dot_dimension_numbers<[1], [0], [0], [1], [0, 0, 1, 1], [], []>} : vector<256x64xbf16>, vector<64x128xbf16>, vector<256x128xf32> -> vector<256x128xf32>
    %109 = arith.addf %102, %108 : vector<256x128xf32>
    %c1_125 = arith.constant 1 : index
    %c1_126 = arith.constant 1 : index
    %c0_127 = arith.constant 0 : index
    %110 = vector.load %arg12[%c1_125, %c1_126, %c0_127] : memref<18x18x64xf32, #tpu.memory_space<vmem>>, vector<16x16x64xf32>
    %111 = vector.shape_cast %110 : vector<16x16x64xf32> to vector<256x64xf32>
    %112 = arith.truncf %111 : vector<256x64xf32> to vector<256x64xbf16>
    %c1_128 = arith.constant 1 : index
    %c1_129 = arith.constant 1 : index
    %c0_130 = arith.constant 0 : index
    %c0_131 = arith.constant 0 : index
    %113 = vector.load %arg3[%c1_128, %c1_129, %c0_130, %c0_131] : memref<3x3x64x128xbf16, #tpu.memory_space<vmem>>, vector<1x1x64x128xbf16>
    %114 = vector.shape_cast %113 : vector<1x1x64x128xbf16> to vector<64x128xbf16>
    %cst_132 = arith.constant dense<0.000000e+00> : vector<256x128xf32>
    %115 = tpu.matmul %112, %114, %cst_132 {dimension_numbers = #tpu.dot_dimension_numbers<[1], [0], [0], [1], [0, 0, 1, 1], [], []>} : vector<256x64xbf16>, vector<64x128xbf16>, vector<256x128xf32> -> vector<256x128xf32>
    %116 = arith.addf %109, %115 : vector<256x128xf32>
    %c1_133 = arith.constant 1 : index
    %c2_134 = arith.constant 2 : index
    %c0_135 = arith.constant 0 : index
    %117 = vector.load %arg12[%c1_133, %c2_134, %c0_135] : memref<18x18x64xf32, #tpu.memory_space<vmem>>, vector<16x16x64xf32>
    %118 = vector.shape_cast %117 : vector<16x16x64xf32> to vector<256x64xf32>
    %119 = arith.truncf %118 : vector<256x64xf32> to vector<256x64xbf16>
    %c1_136 = arith.constant 1 : index
    %c2_137 = arith.constant 2 : index
    %c0_138 = arith.constant 0 : index
    %c0_139 = arith.constant 0 : index
    %120 = vector.load %arg3[%c1_136, %c2_137, %c0_138, %c0_139] : memref<3x3x64x128xbf16, #tpu.memory_space<vmem>>, vector<1x1x64x128xbf16>
    %121 = vector.shape_cast %120 : vector<1x1x64x128xbf16> to vector<64x128xbf16>
    %cst_140 = arith.constant dense<0.000000e+00> : vector<256x128xf32>
    %122 = tpu.matmul %119, %121, %cst_140 {dimension_numbers = #tpu.dot_dimension_numbers<[1], [0], [0], [1], [0, 0, 1, 1], [], []>} : vector<256x64xbf16>, vector<64x128xbf16>, vector<256x128xf32> -> vector<256x128xf32>
    %123 = arith.addf %116, %122 : vector<256x128xf32>
    %c2_141 = arith.constant 2 : index
    %c0_142 = arith.constant 0 : index
    %c0_143 = arith.constant 0 : index
    %124 = vector.load %arg12[%c2_141, %c0_142, %c0_143] : memref<18x18x64xf32, #tpu.memory_space<vmem>>, vector<16x16x64xf32>
    %125 = vector.shape_cast %124 : vector<16x16x64xf32> to vector<256x64xf32>
    %126 = arith.truncf %125 : vector<256x64xf32> to vector<256x64xbf16>
    %c2_144 = arith.constant 2 : index
    %c0_145 = arith.constant 0 : index
    %c0_146 = arith.constant 0 : index
    %c0_147 = arith.constant 0 : index
    %127 = vector.load %arg3[%c2_144, %c0_145, %c0_146, %c0_147] : memref<3x3x64x128xbf16, #tpu.memory_space<vmem>>, vector<1x1x64x128xbf16>
    %128 = vector.shape_cast %127 : vector<1x1x64x128xbf16> to vector<64x128xbf16>
    %cst_148 = arith.constant dense<0.000000e+00> : vector<256x128xf32>
    %129 = tpu.matmul %126, %128, %cst_148 {dimension_numbers = #tpu.dot_dimension_numbers<[1], [0], [0], [1], [0, 0, 1, 1], [], []>} : vector<256x64xbf16>, vector<64x128xbf16>, vector<256x128xf32> -> vector<256x128xf32>
    %130 = arith.addf %123, %129 : vector<256x128xf32>
    %c2_149 = arith.constant 2 : index
    %c1_150 = arith.constant 1 : index
    %c0_151 = arith.constant 0 : index
    %131 = vector.load %arg12[%c2_149, %c1_150, %c0_151] : memref<18x18x64xf32, #tpu.memory_space<vmem>>, vector<16x16x64xf32>
    %132 = vector.shape_cast %131 : vector<16x16x64xf32> to vector<256x64xf32>
    %133 = arith.truncf %132 : vector<256x64xf32> to vector<256x64xbf16>
    %c2_152 = arith.constant 2 : index
    %c1_153 = arith.constant 1 : index
    %c0_154 = arith.constant 0 : index
    %c0_155 = arith.constant 0 : index
    %134 = vector.load %arg3[%c2_152, %c1_153, %c0_154, %c0_155] : memref<3x3x64x128xbf16, #tpu.memory_space<vmem>>, vector<1x1x64x128xbf16>
    %135 = vector.shape_cast %134 : vector<1x1x64x128xbf16> to vector<64x128xbf16>
    %cst_156 = arith.constant dense<0.000000e+00> : vector<256x128xf32>
    %136 = tpu.matmul %133, %135, %cst_156 {dimension_numbers = #tpu.dot_dimension_numbers<[1], [0], [0], [1], [0, 0, 1, 1], [], []>} : vector<256x64xbf16>, vector<64x128xbf16>, vector<256x128xf32> -> vector<256x128xf32>
    %137 = arith.addf %130, %136 : vector<256x128xf32>
    %c2_157 = arith.constant 2 : index
    %c2_158 = arith.constant 2 : index
    %c0_159 = arith.constant 0 : index
    %138 = vector.load %arg12[%c2_157, %c2_158, %c0_159] : memref<18x18x64xf32, #tpu.memory_space<vmem>>, vector<16x16x64xf32>
    %139 = vector.shape_cast %138 : vector<16x16x64xf32> to vector<256x64xf32>
    %140 = arith.truncf %139 : vector<256x64xf32> to vector<256x64xbf16>
    %c2_160 = arith.constant 2 : index
    %c2_161 = arith.constant 2 : index
    %c0_162 = arith.constant 0 : index
    %c0_163 = arith.constant 0 : index
    %141 = vector.load %arg3[%c2_160, %c2_161, %c0_162, %c0_163] : memref<3x3x64x128xbf16, #tpu.memory_space<vmem>>, vector<1x1x64x128xbf16>
    %142 = vector.shape_cast %141 : vector<1x1x64x128xbf16> to vector<64x128xbf16>
    %cst_164 = arith.constant dense<0.000000e+00> : vector<256x128xf32>
    %143 = tpu.matmul %140, %142, %cst_164 {dimension_numbers = #tpu.dot_dimension_numbers<[1], [0], [0], [1], [0, 0, 1, 1], [], []>} : vector<256x64xbf16>, vector<64x128xbf16>, vector<256x128xf32> -> vector<256x128xf32>
    %144 = arith.addf %137, %143 : vector<256x128xf32>
    %c0_165 = arith.constant 0 : index
    %c0_166 = arith.constant 0 : index
    %145 = vector.load %arg7[%c0_165, %c0_166] : memref<2x128xf32, #tpu.memory_space<vmem>>, vector<1x128xf32>
    %146 = vector.broadcast %145 : vector<1x128xf32> to vector<256x128xf32>
    %147 = arith.mulf %144, %146 : vector<256x128xf32>
    %c1_167 = arith.constant 1 : index
    %c0_168 = arith.constant 0 : index
    %148 = vector.load %arg7[%c1_167, %c0_168] : memref<2x128xf32, #tpu.memory_space<vmem>>, vector<1x128xf32>
    %149 = vector.broadcast %148 : vector<1x128xf32> to vector<256x128xf32>
    %150 = arith.addf %147, %149 : vector<256x128xf32>
    %cst_169 = arith.constant 0.000000e+00 : f32
    %151 = vector.broadcast %cst_169 : f32 to vector<256x128xf32>
    %152 = arith.maximumf %150, %151 : vector<256x128xf32>
    %153 = vector.shape_cast %152 : vector<256x128xf32> to vector<16x16x128xf32>
    %cst_170 = arith.constant 0.000000e+00 : f32
    %154 = vector.broadcast %cst_170 : f32 to vector<18x18x128xf32>
    %c0_171 = arith.constant 0 : index
    %c0_172 = arith.constant 0 : index
    %c0_173 = arith.constant 0 : index
    %155 = vector.load %arg13[%c0_171, %c0_172, %c0_173] : memref<18x18x128xf32, #tpu.memory_space<vmem>>, vector<18x18x128xf32>
    tpu.vector_store %arg13[%c0_171, %c0_172, %c0_173], %154 {strides = array<i32>} : memref<18x18x128xf32, #tpu.memory_space<vmem>>, vector<18x18x128xf32>,
    %c1_174 = arith.constant 1 : index
    %c1_175 = arith.constant 1 : index
    %c0_176 = arith.constant 0 : index
    %156 = vector.load %arg13[%c1_174, %c1_175, %c0_176] : memref<18x18x128xf32, #tpu.memory_space<vmem>>, vector<16x16x128xf32>
    tpu.vector_store %arg13[%c1_174, %c1_175, %c0_176], %153 {strides = array<i32>} : memref<18x18x128xf32, #tpu.memory_space<vmem>>, vector<16x16x128xf32>,
    %cst_177 = arith.constant 0.000000e+00 : f32
    %157 = vector.broadcast %cst_177 : f32 to vector<256x128xf32>
    %c0_178 = arith.constant 0 : index
    %c0_179 = arith.constant 0 : index
    %c0_180 = arith.constant 0 : index
    %158 = vector.load %arg13[%c0_178, %c0_179, %c0_180] : memref<18x18x128xf32, #tpu.memory_space<vmem>>, vector<16x16x128xf32>
    %159 = vector.shape_cast %158 : vector<16x16x128xf32> to vector<256x128xf32>
    %160 = arith.truncf %159 : vector<256x128xf32> to vector<256x128xbf16>
    %c0_181 = arith.constant 0 : index
    %c0_182 = arith.constant 0 : index
    %c0_183 = arith.constant 0 : index
    %c0_184 = arith.constant 0 : index
    %161 = vector.load %arg4[%c0_181, %c0_182, %c0_183, %c0_184] : memref<3x3x128x128xbf16, #tpu.memory_space<vmem>>, vector<1x1x128x128xbf16>
    %162 = vector.shape_cast %161 : vector<1x1x128x128xbf16> to vector<128x128xbf16>
    %cst_185 = arith.constant dense<0.000000e+00> : vector<256x128xf32>
    %163 = tpu.matmul %160, %162, %cst_185 {dimension_numbers = #tpu.dot_dimension_numbers<[1], [0], [0], [1], [0, 0, 1, 1], [], []>} : vector<256x128xbf16>, vector<128x128xbf16>, vector<256x128xf32> -> vector<256x128xf32>
    %164 = arith.addf %157, %163 : vector<256x128xf32>
    %c0_186 = arith.constant 0 : index
    %c1_187 = arith.constant 1 : index
    %c0_188 = arith.constant 0 : index
    %165 = vector.load %arg13[%c0_186, %c1_187, %c0_188] : memref<18x18x128xf32, #tpu.memory_space<vmem>>, vector<16x16x128xf32>
    %166 = vector.shape_cast %165 : vector<16x16x128xf32> to vector<256x128xf32>
    %167 = arith.truncf %166 : vector<256x128xf32> to vector<256x128xbf16>
    %c0_189 = arith.constant 0 : index
    %c1_190 = arith.constant 1 : index
    %c0_191 = arith.constant 0 : index
    %c0_192 = arith.constant 0 : index
    %168 = vector.load %arg4[%c0_189, %c1_190, %c0_191, %c0_192] : memref<3x3x128x128xbf16, #tpu.memory_space<vmem>>, vector<1x1x128x128xbf16>
    %169 = vector.shape_cast %168 : vector<1x1x128x128xbf16> to vector<128x128xbf16>
    %cst_193 = arith.constant dense<0.000000e+00> : vector<256x128xf32>
    %170 = tpu.matmul %167, %169, %cst_193 {dimension_numbers = #tpu.dot_dimension_numbers<[1], [0], [0], [1], [0, 0, 1, 1], [], []>} : vector<256x128xbf16>, vector<128x128xbf16>, vector<256x128xf32> -> vector<256x128xf32>
    %171 = arith.addf %164, %170 : vector<256x128xf32>
    %c0_194 = arith.constant 0 : index
    %c2_195 = arith.constant 2 : index
    %c0_196 = arith.constant 0 : index
    %172 = vector.load %arg13[%c0_194, %c2_195, %c0_196] : memref<18x18x128xf32, #tpu.memory_space<vmem>>, vector<16x16x128xf32>
    %173 = vector.shape_cast %172 : vector<16x16x128xf32> to vector<256x128xf32>
    %174 = arith.truncf %173 : vector<256x128xf32> to vector<256x128xbf16>
    %c0_197 = arith.constant 0 : index
    %c2_198 = arith.constant 2 : index
    %c0_199 = arith.constant 0 : index
    %c0_200 = arith.constant 0 : index
    %175 = vector.load %arg4[%c0_197, %c2_198, %c0_199, %c0_200] : memref<3x3x128x128xbf16, #tpu.memory_space<vmem>>, vector<1x1x128x128xbf16>
    %176 = vector.shape_cast %175 : vector<1x1x128x128xbf16> to vector<128x128xbf16>
    %cst_201 = arith.constant dense<0.000000e+00> : vector<256x128xf32>
    %177 = tpu.matmul %174, %176, %cst_201 {dimension_numbers = #tpu.dot_dimension_numbers<[1], [0], [0], [1], [0, 0, 1, 1], [], []>} : vector<256x128xbf16>, vector<128x128xbf16>, vector<256x128xf32> -> vector<256x128xf32>
    %178 = arith.addf %171, %177 : vector<256x128xf32>
    %c1_202 = arith.constant 1 : index
    %c0_203 = arith.constant 0 : index
    %c0_204 = arith.constant 0 : index
    %179 = vector.load %arg13[%c1_202, %c0_203, %c0_204] : memref<18x18x128xf32, #tpu.memory_space<vmem>>, vector<16x16x128xf32>
    %180 = vector.shape_cast %179 : vector<16x16x128xf32> to vector<256x128xf32>
    %181 = arith.truncf %180 : vector<256x128xf32> to vector<256x128xbf16>
    %c1_205 = arith.constant 1 : index
    %c0_206 = arith.constant 0 : index
    %c0_207 = arith.constant 0 : index
    %c0_208 = arith.constant 0 : index
    %182 = vector.load %arg4[%c1_205, %c0_206, %c0_207, %c0_208] : memref<3x3x128x128xbf16, #tpu.memory_space<vmem>>, vector<1x1x128x128xbf16>
    %183 = vector.shape_cast %182 : vector<1x1x128x128xbf16> to vector<128x128xbf16>
    %cst_209 = arith.constant dense<0.000000e+00> : vector<256x128xf32>
    %184 = tpu.matmul %181, %183, %cst_209 {dimension_numbers = #tpu.dot_dimension_numbers<[1], [0], [0], [1], [0, 0, 1, 1], [], []>} : vector<256x128xbf16>, vector<128x128xbf16>, vector<256x128xf32> -> vector<256x128xf32>
    %185 = arith.addf %178, %184 : vector<256x128xf32>
    %c1_210 = arith.constant 1 : index
    %c1_211 = arith.constant 1 : index
    %c0_212 = arith.constant 0 : index
    %186 = vector.load %arg13[%c1_210, %c1_211, %c0_212] : memref<18x18x128xf32, #tpu.memory_space<vmem>>, vector<16x16x128xf32>
    %187 = vector.shape_cast %186 : vector<16x16x128xf32> to vector<256x128xf32>
    %188 = arith.truncf %187 : vector<256x128xf32> to vector<256x128xbf16>
    %c1_213 = arith.constant 1 : index
    %c1_214 = arith.constant 1 : index
    %c0_215 = arith.constant 0 : index
    %c0_216 = arith.constant 0 : index
    %189 = vector.load %arg4[%c1_213, %c1_214, %c0_215, %c0_216] : memref<3x3x128x128xbf16, #tpu.memory_space<vmem>>, vector<1x1x128x128xbf16>
    %190 = vector.shape_cast %189 : vector<1x1x128x128xbf16> to vector<128x128xbf16>
    %cst_217 = arith.constant dense<0.000000e+00> : vector<256x128xf32>
    %191 = tpu.matmul %188, %190, %cst_217 {dimension_numbers = #tpu.dot_dimension_numbers<[1], [0], [0], [1], [0, 0, 1, 1], [], []>} : vector<256x128xbf16>, vector<128x128xbf16>, vector<256x128xf32> -> vector<256x128xf32>
    %192 = arith.addf %185, %191 : vector<256x128xf32>
    %c1_218 = arith.constant 1 : index
    %c2_219 = arith.constant 2 : index
    %c0_220 = arith.constant 0 : index
    %193 = vector.load %arg13[%c1_218, %c2_219, %c0_220] : memref<18x18x128xf32, #tpu.memory_space<vmem>>, vector<16x16x128xf32>
    %194 = vector.shape_cast %193 : vector<16x16x128xf32> to vector<256x128xf32>
    %195 = arith.truncf %194 : vector<256x128xf32> to vector<256x128xbf16>
    %c1_221 = arith.constant 1 : index
    %c2_222 = arith.constant 2 : index
    %c0_223 = arith.constant 0 : index
    %c0_224 = arith.constant 0 : index
    %196 = vector.load %arg4[%c1_221, %c2_222, %c0_223, %c0_224] : memref<3x3x128x128xbf16, #tpu.memory_space<vmem>>, vector<1x1x128x128xbf16>
    %197 = vector.shape_cast %196 : vector<1x1x128x128xbf16> to vector<128x128xbf16>
    %cst_225 = arith.constant dense<0.000000e+00> : vector<256x128xf32>
    %198 = tpu.matmul %195, %197, %cst_225 {dimension_numbers = #tpu.dot_dimension_numbers<[1], [0], [0], [1], [0, 0, 1, 1], [], []>} : vector<256x128xbf16>, vector<128x128xbf16>, vector<256x128xf32> -> vector<256x128xf32>
    %199 = arith.addf %192, %198 : vector<256x128xf32>
    %c2_226 = arith.constant 2 : index
    %c0_227 = arith.constant 0 : index
    %c0_228 = arith.constant 0 : index
    %200 = vector.load %arg13[%c2_226, %c0_227, %c0_228] : memref<18x18x128xf32, #tpu.memory_space<vmem>>, vector<16x16x128xf32>
    %201 = vector.shape_cast %200 : vector<16x16x128xf32> to vector<256x128xf32>
    %202 = arith.truncf %201 : vector<256x128xf32> to vector<256x128xbf16>
    %c2_229 = arith.constant 2 : index
    %c0_230 = arith.constant 0 : index
    %c0_231 = arith.constant 0 : index
    %c0_232 = arith.constant 0 : index
    %203 = vector.load %arg4[%c2_229, %c0_230, %c0_231, %c0_232] : memref<3x3x128x128xbf16, #tpu.memory_space<vmem>>, vector<1x1x128x128xbf16>
    %204 = vector.shape_cast %203 : vector<1x1x128x128xbf16> to vector<128x128xbf16>
    %cst_233 = arith.constant dense<0.000000e+00> : vector<256x128xf32>
    %205 = tpu.matmul %202, %204, %cst_233 {dimension_numbers = #tpu.dot_dimension_numbers<[1], [0], [0], [1], [0, 0, 1, 1], [], []>} : vector<256x128xbf16>, vector<128x128xbf16>, vector<256x128xf32> -> vector<256x128xf32>
    %206 = arith.addf %199, %205 : vector<256x128xf32>
    %c2_234 = arith.constant 2 : index
    %c1_235 = arith.constant 1 : index
    %c0_236 = arith.constant 0 : index
    %207 = vector.load %arg13[%c2_234, %c1_235, %c0_236] : memref<18x18x128xf32, #tpu.memory_space<vmem>>, vector<16x16x128xf32>
    %208 = vector.shape_cast %207 : vector<16x16x128xf32> to vector<256x128xf32>
    %209 = arith.truncf %208 : vector<256x128xf32> to vector<256x128xbf16>
    %c2_237 = arith.constant 2 : index
    %c1_238 = arith.constant 1 : index
    %c0_239 = arith.constant 0 : index
    %c0_240 = arith.constant 0 : index
    %210 = vector.load %arg4[%c2_237, %c1_238, %c0_239, %c0_240] : memref<3x3x128x128xbf16, #tpu.memory_space<vmem>>, vector<1x1x128x128xbf16>
    %211 = vector.shape_cast %210 : vector<1x1x128x128xbf16> to vector<128x128xbf16>
    %cst_241 = arith.constant dense<0.000000e+00> : vector<256x128xf32>
    %212 = tpu.matmul %209, %211, %cst_241 {dimension_numbers = #tpu.dot_dimension_numbers<[1], [0], [0], [1], [0, 0, 1, 1], [], []>} : vector<256x128xbf16>, vector<128x128xbf16>, vector<256x128xf32> -> vector<256x128xf32>
    %213 = arith.addf %206, %212 : vector<256x128xf32>
    %c2_242 = arith.constant 2 : index
    %c2_243 = arith.constant 2 : index
    %c0_244 = arith.constant 0 : index
    %214 = vector.load %arg13[%c2_242, %c2_243, %c0_244] : memref<18x18x128xf32, #tpu.memory_space<vmem>>, vector<16x16x128xf32>
    %215 = vector.shape_cast %214 : vector<16x16x128xf32> to vector<256x128xf32>
    %216 = arith.truncf %215 : vector<256x128xf32> to vector<256x128xbf16>
    %c2_245 = arith.constant 2 : index
    %c2_246 = arith.constant 2 : index
    %c0_247 = arith.constant 0 : index
    %c0_248 = arith.constant 0 : index
    %217 = vector.load %arg4[%c2_245, %c2_246, %c0_247, %c0_248] : memref<3x3x128x128xbf16, #tpu.memory_space<vmem>>, vector<1x1x128x128xbf16>
    %218 = vector.shape_cast %217 : vector<1x1x128x128xbf16> to vector<128x128xbf16>
    %cst_249 = arith.constant dense<0.000000e+00> : vector<256x128xf32>
    %219 = tpu.matmul %216, %218, %cst_249 {dimension_numbers = #tpu.dot_dimension_numbers<[1], [0], [0], [1], [0, 0, 1, 1], [], []>} : vector<256x128xbf16>, vector<128x128xbf16>, vector<256x128xf32> -> vector<256x128xf32>
    %220 = arith.addf %213, %219 : vector<256x128xf32>
    %c0_250 = arith.constant 0 : index
    %c0_251 = arith.constant 0 : index
    %221 = vector.load %arg8[%c0_250, %c0_251] : memref<2x128xf32, #tpu.memory_space<vmem>>, vector<1x128xf32>
    %222 = vector.broadcast %221 : vector<1x128xf32> to vector<256x128xf32>
    %223 = arith.mulf %220, %222 : vector<256x128xf32>
    %c1_252 = arith.constant 1 : index
    %c0_253 = arith.constant 0 : index
    %224 = vector.load %arg8[%c1_252, %c0_253] : memref<2x128xf32, #tpu.memory_space<vmem>>, vector<1x128xf32>
    %225 = vector.broadcast %224 : vector<1x128xf32> to vector<256x128xf32>
    %226 = arith.addf %223, %225 : vector<256x128xf32>
    %cst_254 = arith.constant 0.000000e+00 : f32
    %227 = vector.broadcast %cst_254 : f32 to vector<256x128xf32>
    %228 = arith.maximumf %226, %227 : vector<256x128xf32>
    %229 = arith.truncf %228 : vector<256x128xf32> to vector<256x128xbf16>
    %c0_255 = arith.constant 0 : index
    %c0_256 = arith.constant 0 : index
    %230 = vector.load %arg5[%c0_255, %c0_256] : memref<128x128xbf16, #tpu.memory_space<vmem>>, vector<128x128xbf16>
    %cst_257 = arith.constant dense<0.000000e+00> : vector<256x128xf32>
    %231 = tpu.matmul %229, %230, %cst_257 {dimension_numbers = #tpu.dot_dimension_numbers<[1], [0], [0], [1], [0, 0, 1, 1], [], []>} : vector<256x128xbf16>, vector<128x128xbf16>, vector<256x128xf32> -> vector<256x128xf32>
    %c0_258 = arith.constant 0 : index
    %c0_259 = arith.constant 0 : index
    %232 = vector.load %arg9[%c0_258, %c0_259] : memref<1x128xf32, #tpu.memory_space<vmem>>, vector<1x128xf32>
    %233 = vector.broadcast %232 : vector<1x128xf32> to vector<256x128xf32>
    %234 = arith.addf %231, %233 : vector<256x128xf32>
    %235 = vector.shape_cast %234 : vector<256x128xf32> to vector<16x16x128xf32>
    %c0_260 = arith.constant 0 : index
    %c0_261 = arith.constant 0 : index
    %c0_262 = arith.constant 0 : index
    %c0_263 = arith.constant 0 : index
    %236 = vector.load %arg10[%c0_260, %c0_261, %c0_262, %c0_263] : memref<1x16x16x128xf32, #tpu.memory_space<vmem>>, vector<1x16x16x128xf32>
    %237 = vector.shape_cast %236 : vector<1x16x16x128xf32> to vector<16x16x128xf32>
    %238 = vector.shape_cast %235 : vector<16x16x128xf32> to vector<1x16x16x128xf32>
    tpu.vector_store %arg10[%c0_260, %c0_261, %c0_262, %c0_263], %238 {strides = array<i32>} : memref<1x16x16x128xf32, #tpu.memory_space<vmem>>, vector<1x16x16x128xf32>,
    return
  }
  func.func @transform_0(%arg0: i32) -> (i32, i32, i32, i32) {
    %c0_i32 = arith.constant 0 : i32
    %c0_i32_0 = arith.constant 0 : i32
    %c0_i32_1 = arith.constant 0 : i32
    %c0_i32_2 = arith.constant 0 : i32
    return %arg0, %c0_i32, %c0_i32_0, %c0_i32_1 : i32, i32, i32, i32
  }
  func.func @transform_1(%arg0: i32) -> (i32, i32, i32, i32) {
    %c0_i32 = arith.constant 0 : i32
    %c0_i32_0 = arith.constant 0 : i32
    %c0_i32_1 = arith.constant 0 : i32
    %c0_i32_2 = arith.constant 0 : i32
    %c0_i32_3 = arith.constant 0 : i32
    return %c0_i32, %c0_i32_0, %c0_i32_1, %c0_i32_2 : i32, i32, i32, i32
  }
  func.func @transform_2(%arg0: i32) -> (i32, i32, i32, i32) {
    %c0_i32 = arith.constant 0 : i32
    %c0_i32_0 = arith.constant 0 : i32
    %c0_i32_1 = arith.constant 0 : i32
    %c0_i32_2 = arith.constant 0 : i32
    %c0_i32_3 = arith.constant 0 : i32
    return %c0_i32, %c0_i32_0, %c0_i32_1, %c0_i32_2 : i32, i32, i32, i32
  }
  func.func @transform_3(%arg0: i32) -> (i32, i32, i32, i32) {
    %c0_i32 = arith.constant 0 : i32
    %c0_i32_0 = arith.constant 0 : i32
    %c0_i32_1 = arith.constant 0 : i32
    %c0_i32_2 = arith.constant 0 : i32
    %c0_i32_3 = arith.constant 0 : i32
    return %c0_i32, %c0_i32_0, %c0_i32_1, %c0_i32_2 : i32, i32, i32, i32
  }
  func.func @transform_4(%arg0: i32) -> (i32, i32) {
    %c0_i32 = arith.constant 0 : i32
    %c0_i32_0 = arith.constant 0 : i32
    %c0_i32_1 = arith.constant 0 : i32
    return %c0_i32, %c0_i32_0 : i32, i32
  }
  func.func @transform_5(%arg0: i32) -> (i32, i32) {
    %c0_i32 = arith.constant 0 : i32
    %c0_i32_0 = arith.constant 0 : i32
    %c0_i32_1 = arith.constant 0 : i32
    return %c0_i32, %c0_i32_0 : i32, i32
  }
  func.func @transform_6(%arg0: i32) -> (i32, i32) {
    %c0_i32 = arith.constant 0 : i32
    %c0_i32_0 = arith.constant 0 : i32
    %c0_i32_1 = arith.constant 0 : i32
    return %c0_i32, %c0_i32_0 : i32, i32
  }
  func.func @transform_7(%arg0: i32) -> (i32, i32) {
    %c0_i32 = arith.constant 0 : i32
    %c0_i32_0 = arith.constant 0 : i32
    %c0_i32_1 = arith.constant 0 : i32
    return %c0_i32, %c0_i32_0 : i32, i32
  }
  func.func @transform_8(%arg0: i32) -> (i32, i32) {
    %c0_i32 = arith.constant 0 : i32
    %c0_i32_0 = arith.constant 0 : i32
    %c0_i32_1 = arith.constant 0 : i32
    return %c0_i32, %c0_i32_0 : i32, i32
  }
  func.func @transform_9(%arg0: i32) -> (i32, i32, i32, i32) {
    %c0_i32 = arith.constant 0 : i32
    %c0_i32_0 = arith.constant 0 : i32
    %c0_i32_1 = arith.constant 0 : i32
    %c0_i32_2 = arith.constant 0 : i32
    return %arg0, %c0_i32, %c0_i32_0, %c0_i32_1 : i32, i32, i32, i32
  }
}

</mosaic_0001>

<llo_original>
// kernel: module_placement_cnn_forward.1
$region0: #{module_placement_cnn_forward.1}
  #allocation0 [shape = 'u32[]', space=smem, size = 0x4, offset = 0x4, fixed_abs, tag = 'smem constant byte address 0x4 - core index']
  #allocation1 [shape = 'u32[144,128]{1,0:T(1,128)}', space=vmem, size = 0x12000, scoped, tag = 'internal scratch']
  #allocation2 [shape = 'f32[18,18,4]{2,1,0:T(8,128)}', space=vmem, size = 0x36000, scoped, tag = 'scratch operand']
  #allocation3 [shape = 'f32[18,18,64]{2,1,0:T(8,128)}', space=vmem, size = 0x36000, scoped, tag = 'scratch operand']
  #allocation4 [shape = 'f32[18,18,128]{2,1,0:T(8,128)}', space=vmem, size = 0x36000, scoped, tag = 'scratch operand']
  %s0 = inlined_call_operand.vmem [shape: f32[2,16,16,4], index: 0, kind: input, shape index: {}]
  %s1 = inlined_call_operand.vmem [shape: bf16[3,3,4,64], index: 1, kind: input, shape index: {}]
  %s2 = inlined_call_operand.vmem [shape: bf16[3,3,64,128], index: 2, kind: input, shape index: {}]
  %s3 = inlined_call_operand.vmem [shape: bf16[3,3,128,128], index: 3, kind: input, shape index: {}]
  %s4 = inlined_call_operand.vmem [shape: bf16[128,128], index: 4, kind: input, shape index: {}]
  %s5 = inlined_call_operand.vmem [shape: f32[2,64], index: 5, kind: input, shape index: {}]
  %s6 = inlined_call_operand.vmem [shape: f32[2,128], index: 6, kind: input, shape index: {}]
  %s7 = inlined_call_operand.vmem [shape: f32[2,128], index: 7, kind: input, shape index: {}]
  %s8 = inlined_call_operand.vmem [shape: f32[1,128], index: 8, kind: input, shape index: {}]
  %s9 = inlined_call_operand.vmem [shape: f32[2,16,16,128], index: 9, kind: output, shape index: {}]
  %s10 = sld [smem:[#allocation0]]
  $region69: #{module_placement_cnn_forward.1} parent=0
    _
  %s12 = ssub.s32 1, %s10
  %s13 = scalar_select 0, %s12, %s10
  loop: start=0, step=1, limit=4
  $region2: #{module_placement_cnn_forward.1} parent=0 // loop_pre_header
    _
  $region3: #{module_placement_cnn_forward.1} parent=0 // loop_header
    %s15 = sphi 0, %s19
    %p16 = scmp.ge.s32.totalorder %s15, 4
    %s25 = sphi 0, %s27
    %s28 = sphi 0, %s25
    %s29 = sphi 0, %s28
    %s45 = sphi 0, %s29
    %s49 = sphi 0, %s49
    %s51 = sphi 0, %s49
    %s52 = sphi 0, %s51
    %s66 = sphi 0, %s52
    %s70 = sphi 0, %s70
    %s72 = sphi 0, %s70
    %s73 = sphi 0, %s72
    %s87 = sphi 0, %s73
    %s91 = sphi 0, %s91
    %s93 = sphi 0, %s91
    %s94 = sphi 0, %s93
    %s108 = sphi 0, %s94
    %s112 = sphi 0, %s112
    %s114 = sphi 0, %s112
    %s115 = sphi 0, %s114
    %s129 = sphi 0, %s115
    %s133 = sphi 0, %s133
    %s135 = sphi 0, %s133
    %s136 = sphi 0, %s135
    %s150 = sphi 0, %s136
    %s154 = sphi 0, %s154
    %s156 = sphi 0, %s154
    %s157 = sphi 0, %s156
    %s171 = sphi 0, %s157
    %s175 = sphi 0, %s175
    %s177 = sphi 0, %s175
    %s178 = sphi 0, %s177
    %s192 = sphi 0, %s178
    %s196 = sphi 0, %s196
    %s198 = sphi 0, %s196
    %s199 = sphi 0, %s198
    %s213 = sphi 0, %s199
    %s219 = sphi 0, %s221
    %s222 = sphi 0, %s219
    %s223 = sphi 0, %s222
    %s239 = sphi 0, %s223
  $region4: #{module_placement_cnn_forward.1} parent=0 // loop_header_branch
    %18 = sbr.rel (%p16) target = $region8
  $region5: #{module_placement_cnn_forward.1} parent=0 // loop_body
    %s20 = ssub.s32 %s15, 1
    %s21 = ssub.s32 %s15, 2
    %s22 = sadd.s32 %s15, 1
    %s23 = ssub.s32 %s15, %s22
    %p24 = scmp.eq.s32.totalorder %s23, 0
    %s26 = sadd.s32 %s25, 1
    %s27 = scalar_select %p24, %s25, %s26
    %p30 = pneg %p24
    %p31 = scmp.eq.s32.totalorder %s15, 1
    %p32 = por %p30, %p31
    %p33 = scmp.ne.s32.totalorder %s25, %s28
    %p34 = scmp.eq.s32.totalorder %s15, 0
    %p35 = por %p33, %p34
    %p36 = scmp.ne.s32.totalorder %s25, %s28
    %p37 = scmp.eq.s32.totalorder %s20, 1
    %p38 = por %p36, %p37
    %p39 = scmp.ne.s32.totalorder %s28, %s29
    %p40 = scmp.eq.s32.totalorder %s20, 0
    %p41 = por %p39, %p40
    %p42 = scmp.ne.s32.totalorder %s28, %s29
    %p43 = scmp.eq.s32.totalorder %s21, 1
    %p44 = por %p42, %p43
    %p46 = scmp.ne.s32.totalorder %s29, %s45
    %p47 = scmp.eq.s32.totalorder %s21, 0
    %p48 = por %p46, %p47
    %s50 = sadd.s32 %s49, 1
    %p53 = scmp.eq.s32.totalorder %s15, 1
    %p54 = scmp.ne.s32.totalorder %s49, %s51
    %p55 = scmp.eq.s32.totalorder %s15, 0
    %p56 = por %p54, %p55
    %p57 = scmp.ne.s32.totalorder %s49, %s51
    %p58 = scmp.eq.s32.totalorder %s20, 1
    %p59 = por %p57, %p58
    %p60 = scmp.ne.s32.totalorder %s51, %s52
    %p61 = scmp.eq.s32.totalorder %s20, 0
    %p62 = por %p60, %p61
    %p63 = scmp.ne.s32.totalorder %s51, %s52
    %p64 = scmp.eq.s32.totalorder %s21, 1
    %p65 = por %p63, %p64
    %p67 = scmp.ne.s32.totalorder %s52, %s66
    %p68 = scmp.eq.s32.totalorder %s21, 0
    %p69 = por %p67, %p68
    %s71 = sadd.s32 %s70, 1
    %p74 = scmp.eq.s32.totalorder %s15, 1
    %p75 = scmp.ne.s32.totalorder %s70, %s72
    %p76 = scmp.eq.s32.totalorder %s15, 0
    %p77 = por %p75, %p76
    %p78 = scmp.ne.s32.totalorder %s70, %s72
    %p79 = scmp.eq.s32.totalorder %s20, 1
    %p80 = por %p78, %p79
    %p81 = scmp.ne.s32.totalorder %s72, %s73
    %p82 = scmp.eq.s32.totalorder %s20, 0
    %p83 = por %p81, %p82
    %p84 = scmp.ne.s32.totalorder %s72, %s73
    %p85 = scmp.eq.s32.totalorder %s21, 1
    %p86 = por %p84, %p85
    %p88 = scmp.ne.s32.totalorder %s73, %s87
    %p89 = scmp.eq.s32.totalorder %s21, 0
    %p90 = por %p88, %p89
    %s92 = sadd.s32 %s91, 1
    %p95 = scmp.eq.s32.totalorder %s15, 1
    %p96 = scmp.ne.s32.totalorder %s91, %s93
    %p97 = scmp.eq.s32.totalorder %s15, 0
    %p98 = por %p96, %p97
    %p99 = scmp.ne.s32.totalorder %s91, %s93
    %p100 = scmp.eq.s32.totalorder %s20, 1
    %p101 = por %p99, %p100
    %p102 = scmp.ne.s32.totalorder %s93, %s94
    %p103 = scmp.eq.s32.totalorder %s20, 0
    %p104 = por %p102, %p103
    %p105 = scmp.ne.s32.totalorder %s93, %s94
    %p106 = scmp.eq.s32.totalorder %s21, 1
    %p107 = por %p105, %p106
    %p109 = scmp.ne.s32.totalorder %s94, %s108
    %p110 = scmp.eq.s32.totalorder %s21, 0
    %p111 = por %p109, %p110
    %s113 = sadd.s32 %s112, 1
    %p116 = scmp.eq.s32.totalorder %s15, 1
    %p117 = scmp.ne.s32.totalorder %s112, %s114
    %p118 = scmp.eq.s32.totalorder %s15, 0
    %p119 = por %p117, %p118
    %p120 = scmp.ne.s32.totalorder %s112, %s114
    %p121 = scmp.eq.s32.totalorder %s20, 1
    %p122 = por %p120, %p121
    %p123 = scmp.ne.s32.totalorder %s114, %s115
    %p124 = scmp.eq.s32.totalorder %s20, 0
    %p125 = por %p123, %p124
    %p126 = scmp.ne.s32.totalorder %s114, %s115
    %p127 = scmp.eq.s32.totalorder %s21, 1
    %p128 = por %p126, %p127
    %p130 = scmp.ne.s32.totalorder %s115, %s129
    %p131 = scmp.eq.s32.totalorder %s21, 0
    %p132 = por %p130, %p131
    %s134 = sadd.s32 %s133, 1
    %p137 = scmp.eq.s32.totalorder %s15, 1
    %p138 = scmp.ne.s32.totalorder %s133, %s135
    %p139 = scmp.eq.s32.totalorder %s15, 0
    %p140 = por %p138, %p139
    %p141 = scmp.ne.s32.totalorder %s133, %s135
    %p142 = scmp.eq.s32.totalorder %s20, 1
    %p143 = por %p141, %p142
    %p144 = scmp.ne.s32.totalorder %s135, %s136
    %p145 = scmp.eq.s32.totalorder %s20, 0
    %p146 = por %p144, %p145
    %p147 = scmp.ne.s32.totalorder %s135, %s136
    %p148 = scmp.eq.s32.totalorder %s21, 1
    %p149 = por %p147, %p148
    %p151 = scmp.ne.s32.totalorder %s136, %s150
    %p152 = scmp.eq.s32.totalorder %s21, 0
    %p153 = por %p151, %p152
    %s155 = sadd.s32 %s154, 1
    %p158 = scmp.eq.s32.totalorder %s15, 1
    %p159 = scmp.ne.s32.totalorder %s154, %s156
    %p160 = scmp.eq.s32.totalorder %s15, 0
    %p161 = por %p159, %p160
    %p162 = scmp.ne.s32.totalorder %s154, %s156
    %p163 = scmp.eq.s32.totalorder %s20, 1
    %p164 = por %p162, %p163
    %p165 = scmp.ne.s32.totalorder %s156, %s157
    %p166 = scmp.eq.s32.totalorder %s20, 0
    %p167 = por %p165, %p166
    %p168 = scmp.ne.s32.totalorder %s156, %s157
    %p169 = scmp.eq.s32.totalorder %s21, 1
    %p170 = por %p168, %p169
    %p172 = scmp.ne.s32.totalorder %s157, %s171
    %p173 = scmp.eq.s32.totalorder %s21, 0
    %p174 = por %p172, %p173
    %s176 = sadd.s32 %s175, 1
    %p179 = scmp.eq.s32.totalorder %s15, 1
    %p180 = scmp.ne.s32.totalorder %s175, %s177
    %p181 = scmp.eq.s32.totalorder %s15, 0
    %p182 = por %p180, %p181
    %p183 = scmp.ne.s32.totalorder %s175, %s177
    %p184 = scmp.eq.s32.totalorder %s20, 1
    %p185 = por %p183, %p184
    %p186 = scmp.ne.s32.totalorder %s177, %s178
    %p187 = scmp.eq.s32.totalorder %s20, 0
    %p188 = por %p186, %p187
    %p189 = scmp.ne.s32.totalorder %s177, %s178
    %p190 = scmp.eq.s32.totalorder %s21, 1
    %p191 = por %p189, %p190
    %p193 = scmp.ne.s32.totalorder %s178, %s192
    %p194 = scmp.eq.s32.totalorder %s21, 0
    %p195 = por %p193, %p194
    %s197 = sadd.s32 %s196, 1
    %p200 = scmp.eq.s32.totalorder %s15, 1
    %p201 = scmp.ne.s32.totalorder %s196, %s198
    %p202 = scmp.eq.s32.totalorder %s15, 0
    %p203 = por %p201, %p202
    %p204 = scmp.ne.s32.totalorder %s196, %s198
    %p205 = scmp.eq.s32.totalorder %s20, 1
    %p206 = por %p204, %p205
    %p207 = scmp.ne.s32.totalorder %s198, %s199
    %p208 = scmp.eq.s32.totalorder %s20, 0
    %p209 = por %p207, %p208
    %p210 = scmp.ne.s32.totalorder %s198, %s199
    %p211 = scmp.eq.s32.totalorder %s21, 1
    %p212 = por %p210, %p211
    %p214 = scmp.ne.s32.totalorder %s199, %s213
    %p215 = scmp.eq.s32.totalorder %s21, 0
    %p216 = por %p214, %p215
    %s217 = ssub.s32 %s15, %s22
    %p218 = scmp.eq.s32.totalorder %s217, 0
    %s220 = sadd.s32 %s219, 1
    %s221 = scalar_select %p218, %s219, %s220
    %p224 = pneg %p218
    %p225 = scmp.eq.s32.totalorder %s15, 1
    %p226 = por %p224, %p225
    %p227 = scmp.ne.s32.totalorder %s219, %s222
    %p228 = scmp.eq.s32.totalorder %s15, 0
    %p229 = por %p227, %p228
    %p230 = scmp.ne.s32.totalorder %s219, %s222
    %p231 = scmp.eq.s32.totalorder %s20, 1
    %p232 = por %p230, %p231
    %p233 = scmp.ne.s32.totalorder %s222, %s223
    %p234 = scmp.eq.s32.totalorder %s20, 0
    %p235 = por %p233, %p234
    %p236 = scmp.ne.s32.totalorder %s222, %s223
    %p237 = scmp.eq.s32.totalorder %s21, 1
    %p238 = por %p236, %p237
    %p240 = scmp.ne.s32.totalorder %s223, %s239
    %p241 = scmp.eq.s32.totalorder %s21, 0
    %p242 = por %p240, %p241
    %p243 = scmp.le.s32.totalorder 1, %s15
    %p244 = scmp.lt.s32.totalorder %s15, 3
    %p245 = pnand %p243, %p244
    %p246 = pneg %p245
    // Predicated region
    $region9: #{module_placement_cnn_forward.1} parent=5 // pred_check
      _
    $region10: #{module_placement_cnn_forward.1} parent=5 // pred_check_branch
      %248 = sbr.rel (%p245) target = $region12
    $region11: #{module_placement_cnn_forward.1} parent=5 // pred_region
      %s249 = ssub.s32 %s15, 1
      // Predicated region
      $region13: #{module_placement_cnn_forward.1} parent=11 // pred_check
        %p250 = pneg %p62
      $region14: #{module_placement_cnn_forward.1} parent=11 // pred_check_branch
        %252 = sbr.rel (%p250) target = $region16
      $region15: #{module_placement_cnn_forward.1} parent=11 // pred_region
        _
      $region16: #{module_placement_cnn_forward.1} parent=11 // pred_fallthru
        _
      // Predicated region
      $region17: #{module_placement_cnn_forward.1} parent=11 // pred_check
        %p253 = pneg %p83
      $region18: #{module_placement_cnn_forward.1} parent=11 // pred_check_branch
        %255 = sbr.rel (%p253) target = $region20
      $region19: #{module_placement_cnn_forward.1} parent=11 // pred_region
        _
      $region20: #{module_placement_cnn_forward.1} parent=11 // pred_fallthru
        _
      // Predicated region
      $region21: #{module_placement_cnn_forward.1} parent=11 // pred_check
        %p256 = pneg %p104
      $region22: #{module_placement_cnn_forward.1} parent=11 // pred_check_branch
        %258 = sbr.rel (%p256) target = $region24
      $region23: #{module_placement_cnn_forward.1} parent=11 // pred_region
        _
      $region24: #{module_placement_cnn_forward.1} parent=11 // pred_fallthru
        _
      // Predicated region
      $region25: #{module_placement_cnn_forward.1} parent=11 // pred_check
        %p259 = pneg %p125
      $region26: #{module_placement_cnn_forward.1} parent=11 // pred_check_branch
        %261 = sbr.rel (%p259) target = $region28
      $region27: #{module_placement_cnn_forward.1} parent=11 // pred_region
        _
      $region28: #{module_placement_cnn_forward.1} parent=11 // pred_fallthru
        _
      // Predicated region
      $region29: #{module_placement_cnn_forward.1} parent=11 // pred_check
        %p262 = pneg %p146
      $region30: #{module_placement_cnn_forward.1} parent=11 // pred_check_branch
        %264 = sbr.rel (%p262) target = $region32
      $region31: #{module_placement_cnn_forward.1} parent=11 // pred_region
        _
      $region32: #{module_placement_cnn_forward.1} parent=11 // pred_fallthru
        _
      // Predicated region
      $region33: #{module_placement_cnn_forward.1} parent=11 // pred_check
        %p265 = pneg %p167
      $region34: #{module_placement_cnn_forward.1} parent=11 // pred_check_branch
        %267 = sbr.rel (%p265) target = $region36
      $region35: #{module_placement_cnn_forward.1} parent=11 // pred_region
        _
      $region36: #{module_placement_cnn_forward.1} parent=11 // pred_fallthru
        _
      // Predicated region
      $region37: #{module_placement_cnn_forward.1} parent=11 // pred_check
        %p268 = pneg %p188
      $region38: #{module_placement_cnn_forward.1} parent=11 // pred_check_branch
        %270 = sbr.rel (%p268) target = $region40
      $region39: #{module_placement_cnn_forward.1} parent=11 // pred_region
        _
      $region40: #{module_placement_cnn_forward.1} parent=11 // pred_fallthru
        _
      // Predicated region
      $region41: #{module_placement_cnn_forward.1} parent=11 // pred_check
        %p271 = pneg %p209
      $region42: #{module_placement_cnn_forward.1} parent=11 // pred_check_branch
        %273 = sbr.rel (%p271) target = $region44
      $region43: #{module_placement_cnn_forward.1} parent=11 // pred_region
        _
      $region44: #{module_placement_cnn_forward.1} parent=11 // pred_fallthru
        _
    $region12: #{module_placement_cnn_forward.1} parent=5 // pred_fallthru
      _
    %p274 = scmp.lt.s32.totalorder %s15, 2
    // Predicated region
    $region45: #{module_placement_cnn_forward.1} parent=5 // pred_check
      %p275 = pneg %p274
    $region46: #{module_placement_cnn_forward.1} parent=5 // pred_check_branch
      %277 = sbr.rel (%p275) target = $region48
    $region47: #{module_placement_cnn_forward.1} parent=5 // pred_region
      // Predicated region
      $region49: #{module_placement_cnn_forward.1} parent=47 // pred_check
        %p278 = pneg %p35
      $region50: #{module_placement_cnn_forward.1} parent=47 // pred_check_branch
        %280 = sbr.rel (%p278) target = $region52
      $region51: #{module_placement_cnn_forward.1} parent=47 // pred_region
        %p281 = scmp.lt.s32.totalorder %s15, 1
        %s282 = scalar_select %p281, %s15, 1
        %s283 = smul.addr %s282, 32
        %s284 = smul.addr %s283, 8
        %s285 = scalar_lea.vmem %s0, %s284
      $region52: #{module_placement_cnn_forward.1} parent=47 // pred_fallthru
        _
    $region48: #{module_placement_cnn_forward.1} parent=5 // pred_fallthru
      _
    %p286 = scmp.le.s32.totalorder 1, %s15
    %p287 = scmp.lt.s32.totalorder %s15, 3
    %p288 = pnand %p286, %p287
    %p289 = pneg %p288
    // Predicated region
    $region53: #{module_placement_cnn_forward.1} parent=5 // pred_check
      _
    $region54: #{module_placement_cnn_forward.1} parent=5 // pred_check_branch
      %291 = sbr.rel (%p288) target = $region56
    $region55: #{module_placement_cnn_forward.1} parent=5 // pred_region
      %s292 = ssub.s32 %s15, 1
      %p293 = scmp.lt.s32.totalorder %s20, 1
      %s294 = scalar_select %p293, %s20, 1
      %s295 = smul.addr %s294, 32
      %s296 = smul.addr %s295, 8
      %s297 = scalar_lea.vmem %s0, %s296
      %p298 = pneg %p41
      %p299 = pneg %p38
      %p300 = pneg %p62
      %p301 = pneg %p59
      %p302 = pneg %p83
      %p303 = pneg %p80
      %p304 = pneg %p104
      %p305 = pneg %p101
      %p306 = pneg %p125
      %p307 = pneg %p122
      %p308 = pneg %p146
      %p309 = pneg %p143
      %p310 = pneg %p167
      %p311 = pneg %p164
      %p312 = pneg %p188
      %p313 = pneg %p185
      %p314 = pneg %p209
      %p315 = pneg %p206
      %p316 = pneg %p235
      %p317 = pneg %p232
      %p318 = scmp.lt.s32.totalorder %s20, 1
      %s319 = scalar_select %p318, %s20, 1
      %s320 = smul.addr %s319, 32
      %s321 = smul.addr %s320, 8
      %s322 = scalar_lea.vmem %s9, %s321
      %p323 = scmp.lt.s32.totalorder %s20, 1
      %s324 = scalar_select %p323, %s20, 1
      %s325 = smul.addr %s324, 32
      %s326 = smul.addr %s325, 8
      %s327 = scalar_lea.vmem %s0, %s326
      %p328 = scmp.lt.s32.totalorder %s20, 1
      %s329 = scalar_select %p328, %s20, 1
      %s330 = smul.addr %s329, 32
      %s331 = smul.addr %s330, 8
      %s332 = scalar_lea.vmem %s9, %s331
      %v334 = vld [vmem:[%s327] sm:$0xff]
      %v335 = vld [vmem:[%s327 + $0x8] sm:$0xff]
      %v336 = vld [vmem:[%s327 + $0x10] sm:$0xff]
      %v337 = vld [vmem:[%s327 + $0x18] sm:$0xff]
      %v338 = vld [vmem:[%s327 + $0x20] sm:$0xff]
      %v339 = vld [vmem:[%s327 + $0x28] sm:$0xff]
      %v340 = vld [vmem:[%s327 + $0x30] sm:$0xff]
      %v341 = vld [vmem:[%s327 + $0x38] sm:$0xff]
      %v342 = vld [vmem:[%s327 + $0x40] sm:$0xff]
      %v343 = vld [vmem:[%s327 + $0x48] sm:$0xff]
      %v344 = vld [vmem:[%s327 + $0x50] sm:$0xff]
      %v345 = vld [vmem:[%s327 + $0x58] sm:$0xff]
      %v346 = vld [vmem:[%s327 + $0x60] sm:$0xff]
      %v347 = vld [vmem:[%s327 + $0x68] sm:$0xff]
      %v348 = vld [vmem:[%s327 + $0x70] sm:$0xff]
      %v349 = vld [vmem:[%s327 + $0x78] sm:$0xff]
      %v350 = vld [vmem:[%s327 + $0x80] sm:$0xff]
      %v351 = vld [vmem:[%s327 + $0x88] sm:$0xff]
      %v352 = vld [vmem:[%s327 + $0x90] sm:$0xff]
      %v353 = vld [vmem:[%s327 + $0x98] sm:$0xff]
      %v354 = vld [vmem:[%s327 + $0xa0] sm:$0xff]
      %v355 = vld [vmem:[%s327 + $0xa8] sm:$0xff]
      %v356 = vld [vmem:[%s327 + $0xb0] sm:$0xff]
      %v357 = vld [vmem:[%s327 + $0xb8] sm:$0xff]
      %v358 = vld [vmem:[%s327 + $0xc0] sm:$0xff]
      %v359 = vld [vmem:[%s327 + $0xc8] sm:$0xff]
      %v360 = vld [vmem:[%s327 + $0xd0] sm:$0xff]
      %v361 = vld [vmem:[%s327 + $0xd8] sm:$0xff]
      %v362 = vld [vmem:[%s327 + $0xe0] sm:$0xff]
      %v363 = vld [vmem:[%s327 + $0xe8] sm:$0xff]
      %v364 = vld [vmem:[%s327 + $0xf0] sm:$0xff]
      %v365 = vld [vmem:[%s327 + $0xf8] sm:$0xff]
      %vm366 = vcmask 31744
      %367 = vst.msk [vmem:[#allocation2] sm:$0xff] %vm366, 0.0
      %368 = vst.msk [vmem:[#allocation2 + $0x8] sm:$0xff] %vm366, 0.0
      %vm369 = vcmask 25600
      %370 = vst.msk [vmem:[#allocation2 + $0x10] sm:$0x3] %vm369, 0.0
      %371 = vst.msk [vmem:[#allocation2 + $0x18] sm:$0xff] %vm366, 0.0
      %372 = vst.msk [vmem:[#allocation2 + $0x20] sm:$0xff] %vm366, 0.0
      %373 = vst.msk [vmem:[#allocation2 + $0x28] sm:$0x3] %vm369, 0.0
      %374 = vst.msk [vmem:[#allocation2 + $0x30] sm:$0xff] %vm366, 0.0
      %375 = vst.msk [vmem:[#allocation2 + $0x38] sm:$0xff] %vm366, 0.0
      %376 = vst.msk [vmem:[#allocation2 + $0x40] sm:$0x3] %vm369, 0.0
      %377 = vst.msk [vmem:[#allocation2 + $0x48] sm:$0xff] %vm366, 0.0
      %378 = vst.msk [vmem:[#allocation2 + $0x50] sm:$0xff] %vm366, 0.0
      %379 = vst.msk [vmem:[#allocation2 + $0x58] sm:$0x3] %vm369, 0.0
      %380 = vst.msk [vmem:[#allocation2 + $0x60] sm:$0xff] %vm366, 0.0
      %381 = vst.msk [vmem:[#allocation2 + $0x68] sm:$0xff] %vm366, 0.0
      %382 = vst.msk [vmem:[#allocation2 + $0x70] sm:$0x3] %vm369, 0.0
      %383 = vst.msk [vmem:[#allocation2 + $0x78] sm:$0xff] %vm366, 0.0
      %384 = vst.msk [vmem:[#allocation2 + $0x80] sm:$0xff] %vm366, 0.0
      %385 = vst.msk [vmem:[#allocation2 + $0x88] sm:$0x3] %vm369, 0.0
      %386 = vst.msk [vmem:[#allocation2 + $0x90] sm:$0xff] %vm366, 0.0
      %387 = vst.msk [vmem:[#allocation2 + $0x98] sm:$0xff] %vm366, 0.0
      %388 = vst.msk [vmem:[#allocation2 + $0xa0] sm:$0x3] %vm369, 0.0
      %389 = vst.msk [vmem:[#allocation2 + $0xa8] sm:$0xff] %vm366, 0.0
      %390 = vst.msk [vmem:[#allocation2 + $0xb0] sm:$0xff] %vm366, 0.0
      %391 = vst.msk [vmem:[#allocation2 + $0xb8] sm:$0x3] %vm369, 0.0
      %392 = vst.msk [vmem:[#allocation2 + $0xc0] sm:$0xff] %vm366, 0.0
      %393 = vst.msk [vmem:[#allocation2 + $0xc8] sm:$0xff] %vm366, 0.0
      %394 = vst.msk [vmem:[#allocation2 + $0xd0] sm:$0x3] %vm369, 0.0
      %395 = vst.msk [vmem:[#allocation2 + $0xd8] sm:$0xff] %vm366, 0.0
      %396 = vst.msk [vmem:[#allocation2 + $0xe0] sm:$0xff] %vm366, 0.0
      %397 = vst.msk [vmem:[#allocation2 + $0xe8] sm:$0x3] %vm369, 0.0
      %398 = vst.msk [vmem:[#allocation2 + $0xf0] sm:$0xff] %vm366, 0.0
      %399 = vst.msk [vmem:[#allocation2 + $0xf8] sm:$0xff] %vm366, 0.0
      %400 = vst.msk [vmem:[#allocation2 + $0x100] sm:$0x3] %vm369, 0.0
      %401 = vst.msk [vmem:[#allocation2 + $0x108] sm:$0xff] %vm366, 0.0
      %402 = vst.msk [vmem:[#allocation2 + $0x110] sm:$0xff] %vm366, 0.0
      %403 = vst.msk [vmem:[#allocation2 + $0x118] sm:$0x3] %vm369, 0.0
      %404 = vst.msk [vmem:[#allocation2 + $0x120] sm:$0xff] %vm366, 0.0
      %405 = vst.msk [vmem:[#allocation2 + $0x128] sm:$0xff] %vm366, 0.0
      %406 = vst.msk [vmem:[#allocation2 + $0x130] sm:$0x3] %vm369, 0.0
      %407 = vst.msk [vmem:[#allocation2 + $0x138] sm:$0xff] %vm366, 0.0
      %408 = vst.msk [vmem:[#allocation2 + $0x140] sm:$0xff] %vm366, 0.0
      %409 = vst.msk [vmem:[#allocation2 + $0x148] sm:$0x3] %vm369, 0.0
      %410 = vst.msk [vmem:[#allocation2 + $0x150] sm:$0xff] %vm366, 0.0
      %411 = vst.msk [vmem:[#allocation2 + $0x158] sm:$0xff] %vm366, 0.0
      %412 = vst.msk [vmem:[#allocation2 + $0x160] sm:$0x3] %vm369, 0.0
      %413 = vst.msk [vmem:[#allocation2 + $0x168] sm:$0xff] %vm366, 0.0
      %414 = vst.msk [vmem:[#allocation2 + $0x170] sm:$0xff] %vm366, 0.0
      %415 = vst.msk [vmem:[#allocation2 + $0x178] sm:$0x3] %vm369, 0.0
      %416 = vst.msk [vmem:[#allocation2 + $0x180] sm:$0xff] %vm366, 0.0
      %417 = vst.msk [vmem:[#allocation2 + $0x188] sm:$0xff] %vm366, 0.0
      %418 = vst.msk [vmem:[#allocation2 + $0x190] sm:$0x3] %vm369, 0.0
      %419 = vst.msk [vmem:[#allocation2 + $0x198] sm:$0xff] %vm366, 0.0
      %420 = vst.msk [vmem:[#allocation2 + $0x1a0] sm:$0xff] %vm366, 0.0
      %421 = vst.msk [vmem:[#allocation2 + $0x1a8] sm:$0x3] %vm369, 0.0
      %s422 = scalar_lea.vmem [#allocation2], 24
      %423 = vst.msk [vmem:[%s422 + $0x1] sm:$0xff] %vm366, %v334
      %424 = vst.msk [vmem:[%s422 + $0x9] sm:$0xff] %vm366, %v335
      %425 = vst.msk [vmem:[%s422 + $0x19] sm:$0xff] %vm366, %v336
      %426 = vst.msk [vmem:[%s422 + $0x21] sm:$0xff] %vm366, %v337
      %427 = vst.msk [vmem:[%s422 + $0x31] sm:$0xff] %vm366, %v338
      %428 = vst.msk [vmem:[%s422 + $0x39] sm:$0xff] %vm366, %v339
      %429 = vst.msk [vmem:[%s422 + $0x49] sm:$0xff] %vm366, %v340
      %430 = vst.msk [vmem:[%s422 + $0x51] sm:$0xff] %vm366, %v341
      %431 = vst.msk [vmem:[%s422 + $0x61] sm:$0xff] %vm366, %v342
      %432 = vst.msk [vmem:[%s422 + $0x69] sm:$0xff] %vm366, %v343
      %433 = vst.msk [vmem:[%s422 + $0x79] sm:$0xff] %vm366, %v344
      %434 = vst.msk [vmem:[%s422 + $0x81] sm:$0xff] %vm366, %v345
      %435 = vst.msk [vmem:[%s422 + $0x91] sm:$0xff] %vm366, %v346
      %436 = vst.msk [vmem:[%s422 + $0x99] sm:$0xff] %vm366, %v347
      %437 = vst.msk [vmem:[%s422 + $0xa9] sm:$0xff] %vm366, %v348
      %438 = vst.msk [vmem:[%s422 + $0xb1] sm:$0xff] %vm366, %v349
      %439 = vst.msk [vmem:[%s422 + $0xc1] sm:$0xff] %vm366, %v350
      %440 = vst.msk [vmem:[%s422 + $0xc9] sm:$0xff] %vm366, %v351
      %441 = vst.msk [vmem:[%s422 + $0xd9] sm:$0xff] %vm366, %v352
      %442 = vst.msk [vmem:[%s422 + $0xe1] sm:$0xff] %vm366, %v353
      %443 = vst.msk [vmem:[%s422 + $0xf1] sm:$0xff] %vm366, %v354
      %444 = vst.msk [vmem:[%s422 + $0xf9] sm:$0xff] %vm366, %v355
      %445 = vst.msk [vmem:[%s422 + $0x109] sm:$0xff] %vm366, %v356
      %446 = vst.msk [vmem:[%s422 + $0x111] sm:$0xff] %vm366, %v357
      %447 = vst.msk [vmem:[%s422 + $0x121] sm:$0xff] %vm366, %v358
      %448 = vst.msk [vmem:[%s422 + $0x129] sm:$0xff] %vm366, %v359
      %449 = vst.msk [vmem:[%s422 + $0x139] sm:$0xff] %vm366, %v360
      %450 = vst.msk [vmem:[%s422 + $0x141] sm:$0xff] %vm366, %v361
      %451 = vst.msk [vmem:[%s422 + $0x151] sm:$0xff] %vm366, %v362
      %452 = vst.msk [vmem:[%s422 + $0x159] sm:$0xff] %vm366, %v363
      %453 = vst.msk [vmem:[%s422 + $0x169] sm:$0xff] %vm366, %v364
      %454 = vst.msk [vmem:[%s422 + $0x171] sm:$0xff] %vm366, %v365
      %v455 = vld [vmem:[#allocation2] sm:$0xff]
      %v456 = vld [vmem:[#allocation2 + $0x8] sm:$0xff]
      %v457 = vld [vmem:[#allocation2 + $0x18] sm:$0xff]
      %v458 = vld [vmem:[#allocation2 + $0x20] sm:$0xff]
      %v459 = vld [vmem:[#allocation2 + $0x30] sm:$0xff]
      %v460 = vld [vmem:[#allocation2 + $0x38] sm:$0xff]
      %v461 = vld [vmem:[#allocation2 + $0x48] sm:$0xff]
      %v462 = vld [vmem:[#allocation2 + $0x50] sm:$0xff]
      %v463 = vld [vmem:[#allocation2 + $0x60] sm:$0xff]
      %v464 = vld [vmem:[#allocation2 + $0x68] sm:$0xff]
      %v465 = vld [vmem:[#allocation2 + $0x78] sm:$0xff]
      %v466 = vld [vmem:[#allocation2 + $0x80] sm:$0xff]
      %v467 = vld [vmem:[#allocation2 + $0x90] sm:$0xff]
      %v468 = vld [vmem:[#allocation2 + $0x98] sm:$0xff]
      %v469 = vld [vmem:[#allocation2 + $0xa8] sm:$0xff]
      %v470 = vld [vmem:[#allocation2 + $0xb0] sm:$0xff]
      %v471 = vld [vmem:[#allocation2 + $0xc0] sm:$0xff]
      %v472 = vld [vmem:[#allocation2 + $0xc8] sm:$0xff]
      %v473 = vld [vmem:[#allocation2 + $0xd8] sm:$0xff]
      %v474 = vld [vmem:[#allocation2 + $0xe0] sm:$0xff]
      %v475 = vld [vmem:[#allocation2 + $0xf0] sm:$0xff]
      %v476 = vld [vmem:[#allocation2 + $0xf8] sm:$0xff]
      %v477 = vld [vmem:[#allocation2 + $0x108] sm:$0xff]
      %v478 = vld [vmem:[#allocation2 + $0x110] sm:$0xff]
      %v479 = vld [vmem:[#allocation2 + $0x120] sm:$0xff]
      %v480 = vld [vmem:[#allocation2 + $0x128] sm:$0xff]
      %v481 = vld [vmem:[#allocation2 + $0x138] sm:$0xff]
      %v482 = vld [vmem:[#allocation2 + $0x140] sm:$0xff]
      %v483 = vld [vmem:[#allocation2 + $0x150] sm:$0xff]
      %v484 = vld [vmem:[#allocation2 + $0x158] sm:$0xff]
      %v485 = vld [vmem:[#allocation2 + $0x168] sm:$0xff]
      %v486 = vld [vmem:[#allocation2 + $0x170] sm:$0xff]
      %v487 = vpack.c.bf16 %v456, %v455
      %v488 = vpack.c.bf16 %v458, %v457
      %v489 = vpack.c.bf16 %v460, %v459
      %v490 = vpack.c.bf16 %v462, %v461
      %v491 = vpack.c.bf16 %v464, %v463
      %v492 = vpack.c.bf16 %v466, %v465
      %v493 = vpack.c.bf16 %v468, %v467
      %v494 = vpack.c.bf16 %v470, %v469
      %v495 = vpack.c.bf16 %v472, %v471
      %v496 = vpack.c.bf16 %v474, %v473
      %v497 = vpack.c.bf16 %v476, %v475
      %v498 = vpack.c.bf16 %v478, %v477
      %v499 = vpack.c.bf16 %v480, %v479
      %v500 = vpack.c.bf16 %v482, %v481
      %v501 = vpack.c.bf16 %v484, %v483
      %v502 = vpack.c.bf16 %v486, %v485
      %v503 = vld [vmem:[%s1] sm:$0x3]
      %v504 = vld [vmem:[#allocation2 + $0x1] sm:$0xff]
      %v505 = vld [vmem:[#allocation2 + $0x9] sm:$0xff]
      %v506 = vld [vmem:[#allocation2 + $0x19] sm:$0xff]
      %v507 = vld [vmem:[#allocation2 + $0x21] sm:$0xff]
      %v508 = vld [vmem:[#allocation2 + $0x31] sm:$0xff]
      %v509 = vld [vmem:[#allocation2 + $0x39] sm:$0xff]
      %v510 = vld [vmem:[#allocation2 + $0x49] sm:$0xff]
      %v511 = vld [vmem:[#allocation2 + $0x51] sm:$0xff]
      %v512 = vld [vmem:[#allocation2 + $0x61] sm:$0xff]
      %v513 = vld [vmem:[#allocation2 + $0x69] sm:$0xff]
      %v514 = vld [vmem:[#allocation2 + $0x79] sm:$0xff]
      %v515 = vld [vmem:[#allocation2 + $0x81] sm:$0xff]
      %v516 = vld [vmem:[#allocation2 + $0x91] sm:$0xff]
      %v517 = vld [vmem:[#allocation2 + $0x99] sm:$0xff]
      %v518 = vld [vmem:[#allocation2 + $0xa9] sm:$0xff]
      %v519 = vld [vmem:[#allocation2 + $0xb1] sm:$0xff]
      %v520 = vld [vmem:[#allocation2 + $0xc1] sm:$0xff]
      %v521 = vld [vmem:[#allocation2 + $0xc9] sm:$0xff]
      %v522 = vld [vmem:[#allocation2 + $0xd9] sm:$0xff]
      %v523 = vld [vmem:[#allocation2 + $0xe1] sm:$0xff]
      %v524 = vld [vmem:[#allocation2 + $0xf1] sm:$0xff]
      %v525 = vld [vmem:[#allocation2 + $0xf9] sm:$0xff]
      %v526 = vld [vmem:[#allocation2 + $0x109] sm:$0xff]
      %v527 = vld [vmem:[#allocation2 + $0x111] sm:$0xff]
      %v528 = vld [vmem:[#allocation2 + $0x121] sm:$0xff]
      %v529 = vld [vmem:[#allocation2 + $0x129] sm:$0xff]
      %v530 = vld [vmem:[#allocation2 + $0x139] sm:$0xff]
      %v531 = vld [vmem:[#allocation2 + $0x141] sm:$0xff]
      %v532 = vld [vmem:[#allocation2 + $0x151] sm:$0xff]
      %v533 = vld [vmem:[#allocation2 + $0x159] sm:$0xff]
      %v534 = vld [vmem:[#allocation2 + $0x169] sm:$0xff]
      %v535 = vld [vmem:[#allocation2 + $0x171] sm:$0xff]
      %v536 = vpack.c.bf16 %v505, %v504
      %v537 = vpack.c.bf16 %v507, %v506
      %v538 = vpack.c.bf16 %v509, %v508
      %v539 = vpack.c.bf16 %v511, %v510
      %v540 = vpack.c.bf16 %v513, %v512
      %v541 = vpack.c.bf16 %v515, %v514
      %v542 = vpack.c.bf16 %v517, %v516
      %v543 = vpack.c.bf16 %v519, %v518
      %v544 = vpack.c.bf16 %v521, %v520
      %v545 = vpack.c.bf16 %v523, %v522
      %v546 = vpack.c.bf16 %v525, %v524
      %v547 = vpack.c.bf16 %v527, %v526
      %v548 = vpack.c.bf16 %v529, %v528
      %v549 = vpack.c.bf16 %v531, %v530
      %v550 = vpack.c.bf16 %v533, %v532
      %v551 = vpack.c.bf16 %v535, %v534
      %s552 = scalar_lea.vmem %s1, 2
      %v553 = vld [vmem:[%s552] sm:$0x3]
      %v555 = vsel %vm366, %v536, 0
      %v558 = vsel %vm366, %v537, 0
      %v561 = vsel %vm366, %v538, 0
      %v564 = vsel %vm366, %v539, 0
      %v567 = vsel %vm366, %v540, 0
      %v570 = vsel %vm366, %v541, 0
      %v573 = vsel %vm366, %v542, 0
      %v576 = vsel %vm366, %v543, 0
      %v579 = vsel %vm366, %v544, 0
      %v582 = vsel %vm366, %v545, 0
      %v585 = vsel %vm366, %v546, 0
      %v588 = vsel %vm366, %v547, 0
      %v591 = vsel %vm366, %v548, 0
      %v594 = vsel %vm366, %v549, 0
      %v597 = vsel %vm366, %v550, 0
      %v600 = vsel %vm366, %v551, 0
      %vm602 = vcmask 1041408
      %v604 = vsel %vm602, %v553, 0
      %606 = vmatprep.subr.bf16.mxu0 0
      %607 = vmatpush1.bf16.msra.mxu0 0
      %608 = vmatprep.subr.bf16.mxu0 0
      %609 = vmatpush1.bf16.msra.mxu0 0
      %610 = vmatprep.subr.bf16.mxu0 0
      %611 = vmatpush1.bf16.msra.mxu0 0
      %612 = vmatprep.subr.bf16.mxu0 0
      %613 = vmatpush1.bf16.msra.mxu0 0
      %614 = vmatprep.subr.bf16.mxu0 0
      %615 = vmatpush1.bf16.msra.mxu0 0
      %616 = vmatprep.subr.bf16.mxu0 0
      %617 = vmatpush1.bf16.msra.mxu0 0
      %618 = vmatprep.subr.bf16.mxu0 0
      %619 = vmatpush1.bf16.msra.mxu0 0
      %620 = vmatprep.subr.bf16.mxu0 0
      %621 = vmatpush1.bf16.msra.mxu0 %v604
      %622 = vmatprep.subr.bf16.mxu0 0
      %623 = vmatpush2.bf16.msra.mxu0 0
      %624 = vmatprep.subr.bf16.mxu0 0
      %625 = vmatpush2.bf16.msra.mxu0 0
      %626 = vmatprep.subr.bf16.mxu0 0
      %627 = vmatpush2.bf16.msra.mxu0 0
      %628 = vmatprep.subr.bf16.mxu0 0
      %629 = vmatpush2.bf16.msra.mxu0 0
      %630 = vmatprep.subr.bf16.mxu0 0
      %631 = vmatpush2.bf16.msra.mxu0 0
      %632 = vmatprep.subr.bf16.mxu0 0
      %633 = vmatpush2.bf16.msra.mxu0 0
      %634 = vmatprep.subr.bf16.mxu0 0
      %635 = vmatpush2.bf16.msra.mxu0 0
      %636 = vmatprep.subr.bf16.mxu0 0
      %637 = vmatpush2.bf16.msra.mxu0 0
      %638 = vmatprep.mubr.bf16.mxu0 0
      %639 = vmatmul.mubr.bf16.gmra.mxu0 %v555
      %v640 = vpop.f32.mrf.mxu0
      %v641 = vadd.f32 0.0, %v640
      %v642 = vpop.f32.mrf.mxu0
      %v643 = vpop.f32.mrf.mxu0
      %v644 = vadd.f32 0.0, %v643
      %v645 = vpop.f32.mrf.mxu0
      %646 = vmatprep.mubr.bf16.mxu0 0
      %647 = vmatmul.mubr.bf16.gmra.mxu0 %v558
      %v648 = vpop.f32.mrf.mxu0
      %v649 = vadd.f32 0.0, %v648
      %v650 = vpop.f32.mrf.mxu0
      %v651 = vpop.f32.mrf.mxu0
      %v652 = vadd.f32 0.0, %v651
      %v653 = vpop.f32.mrf.mxu0
      %654 = vmatprep.mubr.bf16.mxu0 0
      %655 = vmatmul.mubr.bf16.gmra.mxu0 %v561
      %v656 = vpop.f32.mrf.mxu0
      %v657 = vadd.f32 0.0, %v656
      %v658 = vpop.f32.mrf.mxu0
      %v659 = vpop.f32.mrf.mxu0
      %v660 = vadd.f32 0.0, %v659
      %v661 = vpop.f32.mrf.mxu0
      %662 = vmatprep.mubr.bf16.mxu0 0
      %663 = vmatmul.mubr.bf16.gmra.mxu0 %v564
      %v664 = vpop.f32.mrf.mxu0
      %v665 = vadd.f32 0.0, %v664
      %v666 = vpop.f32.mrf.mxu0
      %v667 = vpop.f32.mrf.mxu0
      %v668 = vadd.f32 0.0, %v667
      %v669 = vpop.f32.mrf.mxu0
      %670 = vmatprep.mubr.bf16.mxu0 0
      %671 = vmatmul.mubr.bf16.gmra.mxu0 %v567
      %v672 = vpop.f32.mrf.mxu0
      %v673 = vadd.f32 0.0, %v672
      %v674 = vpop.f32.mrf.mxu0
      %v675 = vpop.f32.mrf.mxu0
      %v676 = vadd.f32 0.0, %v675
      %v677 = vpop.f32.mrf.mxu0
      %678 = vmatprep.mubr.bf16.mxu0 0
      %679 = vmatmul.mubr.bf16.gmra.mxu0 %v570
      %v680 = vpop.f32.mrf.mxu0
      %v681 = vadd.f32 0.0, %v680
      %v682 = vpop.f32.mrf.mxu0
      %v683 = vpop.f32.mrf.mxu0
      %v684 = vadd.f32 0.0, %v683
      %v685 = vpop.f32.mrf.mxu0
      %686 = vmatprep.mubr.bf16.mxu0 0
      %687 = vmatmul.mubr.bf16.gmra.mxu0 %v573
      %v688 = vpop.f32.mrf.mxu0
      %v689 = vadd.f32 0.0, %v688
      %v690 = vpop.f32.mrf.mxu0
      %v691 = vpop.f32.mrf.mxu0
      %v692 = vadd.f32 0.0, %v691
      %v693 = vpop.f32.mrf.mxu0
      %694 = vmatprep.mubr.bf16.mxu0 0
      %695 = vmatmul.mubr.bf16.gmra.mxu0 %v576
      %v696 = vpop.f32.mrf.mxu0
      %v697 = vadd.f32 0.0, %v696
      %v698 = vpop.f32.mrf.mxu0
      %v699 = vpop.f32.mrf.mxu0
      %v700 = vadd.f32 0.0, %v699
      %v701 = vpop.f32.mrf.mxu0
      %702 = vmatprep.mubr.bf16.mxu0 0
      %703 = vmatmul.mubr.bf16.gmra.mxu0 %v579
      %v704 = vpop.f32.mrf.mxu0
      %v705 = vadd.f32 0.0, %v704
      %v706 = vpop.f32.mrf.mxu0
      %v707 = vpop.f32.mrf.mxu0
      %v708 = vadd.f32 0.0, %v707
      %v709 = vpop.f32.mrf.mxu0
      %710 = vmatprep.mubr.bf16.mxu0 0
      %711 = vmatmul.mubr.bf16.gmra.mxu0 %v582
      %v712 = vpop.f32.mrf.mxu0
      %v713 = vadd.f32 0.0, %v712
      %v714 = vpop.f32.mrf.mxu0
      %v715 = vpop.f32.mrf.mxu0
      %v716 = vadd.f32 0.0, %v715
      %v717 = vpop.f32.mrf.mxu0
      %718 = vmatprep.mubr.bf16.mxu0 0
      %719 = vmatmul.mubr.bf16.gmra.mxu0 %v585
      %v720 = vpop.f32.mrf.mxu0
      %v721 = vadd.f32 0.0, %v720
      %v722 = vpop.f32.mrf.mxu0
      %v723 = vpop.f32.mrf.mxu0
      %v724 = vadd.f32 0.0, %v723
      %v725 = vpop.f32.mrf.mxu0
      %726 = vmatprep.mubr.bf16.mxu0 0
      %727 = vmatmul.mubr.bf16.gmra.mxu0 %v588
      %v728 = vpop.f32.mrf.mxu0
      %v729 = vadd.f32 0.0, %v728
      %v730 = vpop.f32.mrf.mxu0
      %v731 = vpop.f32.mrf.mxu0
      %v732 = vadd.f32 0.0, %v731
      %v733 = vpop.f32.mrf.mxu0
      %734 = vmatprep.mubr.bf16.mxu0 0
      %735 = vmatmul.mubr.bf16.gmra.mxu0 %v591
      %v736 = vpop.f32.mrf.mxu0
      %v737 = vadd.f32 0.0, %v736
      %v738 = vpop.f32.mrf.mxu0
      %v739 = vpop.f32.mrf.mxu0
      %v740 = vadd.f32 0.0, %v739
      %v741 = vpop.f32.mrf.mxu0
      %742 = vmatprep.mubr.bf16.mxu0 0
      %743 = vmatmul.mubr.bf16.gmra.mxu0 %v594
      %v744 = vpop.f32.mrf.mxu0
      %v745 = vadd.f32 0.0, %v744
      %v746 = vpop.f32.mrf.mxu0
      %v747 = vpop.f32.mrf.mxu0
      %v748 = vadd.f32 0.0, %v747
      %v749 = vpop.f32.mrf.mxu0
      %750 = vmatprep.mubr.bf16.mxu0 0
      %751 = vmatmul.mubr.bf16.gmra.mxu0 %v597
      %v752 = vpop.f32.mrf.mxu0
      %v753 = vadd.f32 0.0, %v752
      %v754 = vpop.f32.mrf.mxu0
      %v755 = vpop.f32.mrf.mxu0
      %v756 = vadd.f32 0.0, %v755
      %v757 = vpop.f32.mrf.mxu0
      %758 = vmatprep.mubr.bf16.mxu0 0
      %759 = vmatmul.mubr.bf16.gmra.mxu0 %v600
      %v760 = vpop.f32.mrf.mxu0
      %v761 = vadd.f32 0.0, %v760
      %v762 = vpop.f32.mrf.mxu0
      %v763 = vpop.f32.mrf.mxu0
      %v764 = vadd.f32 0.0, %v763
      %v765 = vpop.f32.mrf.mxu0
      %766 = vdwg.mxu0
      %v768 = vsel %vm366, %v487, 0
      %v771 = vsel %vm366, %v488, 0
      %v774 = vsel %vm366, %v489, 0
      %v777 = vsel %vm366, %v490, 0
      %v780 = vsel %vm366, %v491, 0
      %v783 = vsel %vm366, %v492, 0
      %v786 = vsel %vm366, %v493, 0
      %v789 = vsel %vm366, %v494, 0
      %v792 = vsel %vm366, %v495, 0
      %v795 = vsel %vm366, %v496, 0
      %v798 = vsel %vm366, %v497, 0
      %v801 = vsel %vm366, %v498, 0
      %v804 = vsel %vm366, %v499, 0
      %v807 = vsel %vm366, %v500, 0
      %v810 = vsel %vm366, %v501, 0
      %v813 = vsel %vm366, %v502, 0
      %v816 = vsel %vm602, %v503, 0
      %818 = vmatprep.subr.bf16.mxu0 0
      %819 = vmatpush1.bf16.msra.mxu0 0
      %820 = vmatprep.subr.bf16.mxu0 0
      %821 = vmatpush1.bf16.msra.mxu0 0
      %822 = vmatprep.subr.bf16.mxu0 0
      %823 = vmatpush1.bf16.msra.mxu0 0
      %824 = vmatprep.subr.bf16.mxu0 0
      %825 = vmatpush1.bf16.msra.mxu0 0
      %826 = vmatprep.subr.bf16.mxu0 0
      %827 = vmatpush1.bf16.msra.mxu0 0
      %828 = vmatprep.subr.bf16.mxu0 0
      %829 = vmatpush1.bf16.msra.mxu0 0
      %830 = vmatprep.subr.bf16.mxu0 0
      %831 = vmatpush1.bf16.msra.mxu0 0
      %832 = vmatprep.subr.bf16.mxu0 0
      %833 = vmatpush1.bf16.msra.mxu0 %v816
      %834 = vmatprep.subr.bf16.mxu0 0
      %835 = vmatpush2.bf16.msra.mxu0 0
      %836 = vmatprep.subr.bf16.mxu0 0
      %837 = vmatpush2.bf16.msra.mxu0 0
      %838 = vmatprep.subr.bf16.mxu0 0
      %839 = vmatpush2.bf16.msra.mxu0 0
      %840 = vmatprep.subr.bf16.mxu0 0
      %841 = vmatpush2.bf16.msra.mxu0 0
      %842 = vmatprep.subr.bf16.mxu0 0
      %843 = vmatpush2.bf16.msra.mxu0 0
      %844 = vmatprep.subr.bf16.mxu0 0
      %845 = vmatpush2.bf16.msra.mxu0 0
      %846 = vmatprep.subr.bf16.mxu0 0
      %847 = vmatpush2.bf16.msra.mxu0 0
      %848 = vmatprep.subr.bf16.mxu0 0
      %849 = vmatpush2.bf16.msra.mxu0 0
      %850 = vmatprep.mubr.bf16.mxu0 0
      %851 = vmatmul.mubr.bf16.gmra.mxu0 %v768
      %v852 = vpop.f32.mrf.mxu0
      %v853 = vadd.f32 %v641, %v852
      %v854 = vpop.f32.mrf.mxu0
      %v855 = vpop.f32.mrf.mxu0
      %v856 = vadd.f32 %v644, %v855
      %v857 = vpop.f32.mrf.mxu0
      %858 = vmatprep.mubr.bf16.mxu0 0
      %859 = vmatmul.mubr.bf16.gmra.mxu0 %v771
      %v860 = vpop.f32.mrf.mxu0
      %v861 = vadd.f32 %v649, %v860
      %v862 = vpop.f32.mrf.mxu0
      %v863 = vpop.f32.mrf.mxu0
      %v864 = vadd.f32 %v652, %v863
      %v865 = vpop.f32.mrf.mxu0
      %866 = vmatprep.mubr.bf16.mxu0 0
      %867 = vmatmul.mubr.bf16.gmra.mxu0 %v774
      %v868 = vpop.f32.mrf.mxu0
      %v869 = vadd.f32 %v657, %v868
      %v870 = vpop.f32.mrf.mxu0
      %v871 = vpop.f32.mrf.mxu0
      %v872 = vadd.f32 %v660, %v871
      %v873 = vpop.f32.mrf.mxu0
      %874 = vmatprep.mubr.bf16.mxu0 0
      %875 = vmatmul.mubr.bf16.gmra.mxu0 %v777
      %v876 = vpop.f32.mrf.mxu0
      %v877 = vadd.f32 %v665, %v876
      %v878 = vpop.f32.mrf.mxu0
      %v879 = vpop.f32.mrf.mxu0
      %v880 = vadd.f32 %v668, %v879
      %v881 = vpop.f32.mrf.mxu0
      %882 = vmatprep.mubr.bf16.mxu0 0
      %883 = vmatmul.mubr.bf16.gmra.mxu0 %v780
      %v884 = vpop.f32.mrf.mxu0
      %v885 = vadd.f32 %v673, %v884
      %v886 = vpop.f32.mrf.mxu0
      %v887 = vpop.f32.mrf.mxu0
      %v888 = vadd.f32 %v676, %v887
      %v889 = vpop.f32.mrf.mxu0
      %890 = vmatprep.mubr.bf16.mxu0 0
      %891 = vmatmul.mubr.bf16.gmra.mxu0 %v783
      %v892 = vpop.f32.mrf.mxu0
      %v893 = vadd.f32 %v681, %v892
      %v894 = vpop.f32.mrf.mxu0
      %v895 = vpop.f32.mrf.mxu0
      %v896 = vadd.f32 %v684, %v895
      %v897 = vpop.f32.mrf.mxu0
      %898 = vmatprep.mubr.bf16.mxu0 0
      %899 = vmatmul.mubr.bf16.gmra.mxu0 %v786
      %v900 = vpop.f32.mrf.mxu0
      %v901 = vadd.f32 %v689, %v900
      %v902 = vpop.f32.mrf.mxu0
      %v903 = vpop.f32.mrf.mxu0
      %v904 = vadd.f32 %v692, %v903
      %v905 = vpop.f32.mrf.mxu0
      %906 = vmatprep.mubr.bf16.mxu0 0
      %907 = vmatmul.mubr.bf16.gmra.mxu0 %v789
      %v908 = vpop.f32.mrf.mxu0
      %v909 = vadd.f32 %v697, %v908
      %v910 = vpop.f32.mrf.mxu0
      %v911 = vpop.f32.mrf.mxu0
      %v912 = vadd.f32 %v700, %v911
      %v913 = vpop.f32.mrf.mxu0
      %914 = vmatprep.mubr.bf16.mxu0 0
      %915 = vmatmul.mubr.bf16.gmra.mxu0 %v792
      %v916 = vpop.f32.mrf.mxu0
      %v917 = vadd.f32 %v705, %v916
      %v918 = vpop.f32.mrf.mxu0
      %v919 = vpop.f32.mrf.mxu0
      %v920 = vadd.f32 %v708, %v919
      %v921 = vpop.f32.mrf.mxu0
      %922 = vmatprep.mubr.bf16.mxu0 0
      %923 = vmatmul.mubr.bf16.gmra.mxu0 %v795
      %v924 = vpop.f32.mrf.mxu0
      %v925 = vadd.f32 %v713, %v924
      %v926 = vpop.f32.mrf.mxu0
      %v927 = vpop.f32.mrf.mxu0
      %v928 = vadd.f32 %v716, %v927
      %v929 = vpop.f32.mrf.mxu0
      %930 = vmatprep.mubr.bf16.mxu0 0
      %931 = vmatmul.mubr.bf16.gmra.mxu0 %v798
      %v932 = vpop.f32.mrf.mxu0
      %v933 = vadd.f32 %v721, %v932
      %v934 = vpop.f32.mrf.mxu0
      %v935 = vpop.f32.mrf.mxu0
      %v936 = vadd.f32 %v724, %v935
      %v937 = vpop.f32.mrf.mxu0
      %938 = vmatprep.mubr.bf16.mxu0 0
      %939 = vmatmul.mubr.bf16.gmra.mxu0 %v801
      %v940 = vpop.f32.mrf.mxu0
      %v941 = vadd.f32 %v729, %v940
      %v942 = vpop.f32.mrf.mxu0
      %v943 = vpop.f32.mrf.mxu0
      %v944 = vadd.f32 %v732, %v943
      %v945 = vpop.f32.mrf.mxu0
      %946 = vmatprep.mubr.bf16.mxu0 0
      %947 = vmatmul.mubr.bf16.gmra.mxu0 %v804
      %v948 = vpop.f32.mrf.mxu0
      %v949 = vadd.f32 %v737, %v948
      %v950 = vpop.f32.mrf.mxu0
      %v951 = vpop.f32.mrf.mxu0
      %v952 = vadd.f32 %v740, %v951
      %v953 = vpop.f32.mrf.mxu0
      %954 = vmatprep.mubr.bf16.mxu0 0
      %955 = vmatmul.mubr.bf16.gmra.mxu0 %v807
      %v956 = vpop.f32.mrf.mxu0
      %v957 = vadd.f32 %v745, %v956
      %v958 = vpop.f32.mrf.mxu0
      %v959 = vpop.f32.mrf.mxu0
      %v960 = vadd.f32 %v748, %v959
      %v961 = vpop.f32.mrf.mxu0
      %962 = vmatprep.mubr.bf16.mxu0 0
      %963 = vmatmul.mubr.bf16.gmra.mxu0 %v810
      %v964 = vpop.f32.mrf.mxu0
      %v965 = vadd.f32 %v753, %v964
      %v966 = vpop.f32.mrf.mxu0
      %v967 = vpop.f32.mrf.mxu0
      %v968 = vadd.f32 %v756, %v967
      %v969 = vpop.f32.mrf.mxu0
      %970 = vmatprep.mubr.bf16.mxu0 0
      %971 = vmatmul.mubr.bf16.gmra.mxu0 %v813
      %v972 = vpop.f32.mrf.mxu0
      %v973 = vadd.f32 %v761, %v972
      %v974 = vpop.f32.mrf.mxu0
      %v975 = vpop.f32.mrf.mxu0
      %v976 = vadd.f32 %v764, %v975
      %v977 = vpop.f32.mrf.mxu0
      %978 = vdwg.mxu0
      %v979 = vld [vmem:[#allocation2 + $0x2] sm:$0xff]
      %v980 = vld [vmem:[#allocation2 + $0xa] sm:$0xff]
      %v981 = vld [vmem:[#allocation2 + $0x1a] sm:$0xff]
      %v982 = vld [vmem:[#allocation2 + $0x22] sm:$0xff]
      %v983 = vld [vmem:[#allocation2 + $0x32] sm:$0xff]
      %v984 = vld [vmem:[#allocation2 + $0x3a] sm:$0xff]
      %v985 = vld [vmem:[#allocation2 + $0x4a] sm:$0xff]
      %v986 = vld [vmem:[#allocation2 + $0x52] sm:$0xff]
      %v987 = vld [vmem:[#allocation2 + $0x62] sm:$0xff]
      %v988 = vld [vmem:[#allocation2 + $0x6a] sm:$0xff]
      %v989 = vld [vmem:[#allocation2 + $0x7a] sm:$0xff]
      %v990 = vld [vmem:[#allocation2 + $0x82] sm:$0xff]
      %v991 = vld [vmem:[#allocation2 + $0x92] sm:$0xff]
      %v992 = vld [vmem:[#allocation2 + $0x9a] sm:$0xff]
      %v993 = vld [vmem:[#allocation2 + $0xaa] sm:$0xff]
      %v994 = vld [vmem:[#allocation2 + $0xb2] sm:$0xff]
      %v995 = vld [vmem:[#allocation2 + $0xc2] sm:$0xff]
      %v996 = vld [vmem:[#allocation2 + $0xca] sm:$0xff]
      %v997 = vld [vmem:[#allocation2 + $0xda] sm:$0xff]
      %v998 = vld [vmem:[#allocation2 + $0xe2] sm:$0xff]
      %v999 = vld [vmem:[#allocation2 + $0xf2] sm:$0xff]
      %v1000 = vld [vmem:[#allocation2 + $0xfa] sm:$0xff]
      %v1001 = vld [vmem:[#allocation2 + $0x10a] sm:$0xff]
      %v1002 = vld [vmem:[#allocation2 + $0x112] sm:$0xff]
      %v1003 = vld [vmem:[#allocation2 + $0x122] sm:$0xff]
      %v1004 = vld [vmem:[#allocation2 + $0x12a] sm:$0xff]
      %v1005 = vld [vmem:[#allocation2 + $0x13a] sm:$0xff]
      %v1006 = vld [vmem:[#allocation2 + $0x142] sm:$0xff]
      %v1007 = vld [vmem:[#allocation2 + $0x152] sm:$0xff]
      %v1008 = vld [vmem:[#allocation2 + $0x15a] sm:$0xff]
      %v1009 = vld [vmem:[#allocation2 + $0x16a] sm:$0xff]
      %v1010 = vld [vmem:[#allocation2 + $0x172] sm:$0xff]
      %v1011 = vpack.c.bf16 %v980, %v979
      %v1012 = vpack.c.bf16 %v982, %v981
      %v1013 = vpack.c.bf16 %v984, %v983
      %v1014 = vpack.c.bf16 %v986, %v985
      %v1015 = vpack.c.bf16 %v988, %v987
      %v1016 = vpack.c.bf16 %v990, %v989
      %v1017 = vpack.c.bf16 %v992, %v991
      %v1018 = vpack.c.bf16 %v994, %v993
      %v1019 = vpack.c.bf16 %v996, %v995
      %v1020 = vpack.c.bf16 %v998, %v997
      %v1021 = vpack.c.bf16 %v1000, %v999
      %v1022 = vpack.c.bf16 %v1002, %v1001
      %v1023 = vpack.c.bf16 %v1004, %v1003
      %v1024 = vpack.c.bf16 %v1006, %v1005
      %v1025 = vpack.c.bf16 %v1008, %v1007
      %v1026 = vpack.c.bf16 %v1010, %v1009
      %s1027 = scalar_lea.vmem %s1, 4
      %v1028 = vld [vmem:[%s1027] sm:$0x3]
      %v1030 = vsel %vm366, %v1011, 0
      %v1033 = vsel %vm366, %v1012, 0
      %v1036 = vsel %vm366, %v1013, 0
      %v1039 = vsel %vm366, %v1014, 0
      %v1042 = vsel %vm366, %v1015, 0
      %v1045 = vsel %vm366, %v1016, 0
      %v1048 = vsel %vm366, %v1017, 0
      %v1051 = vsel %vm366, %v1018, 0
      %v1054 = vsel %vm366, %v1019, 0
      %v1057 = vsel %vm366, %v1020, 0
      %v1060 = vsel %vm366, %v1021, 0
      %v1063 = vsel %vm366, %v1022, 0
      %v1066 = vsel %vm366, %v1023, 0
      %v1069 = vsel %vm366, %v1024, 0
      %v1072 = vsel %vm366, %v1025, 0
      %v1075 = vsel %vm366, %v1026, 0
      %v1078 = vsel %vm602, %v1028, 0
      %1080 = vmatprep.subr.bf16.mxu0 0
      %1081 = vmatpush1.bf16.msra.mxu0 0
      %1082 = vmatprep.subr.bf16.mxu0 0
      %1083 = vmatpush1.bf16.msra.mxu0 0
      %1084 = vmatprep.subr.bf16.mxu0 0
      %1085 = vmatpush1.bf16.msra.mxu0 0
      %1086 = vmatprep.subr.bf16.mxu0 0
      %1087 = vmatpush1.bf16.msra.mxu0 0
      %1088 = vmatprep.subr.bf16.mxu0 0
      %1089 = vmatpush1.bf16.msra.mxu0 0
      %1090 = vmatprep.subr.bf16.mxu0 0
      %1091 = vmatpush1.bf16.msra.mxu0 0
      %1092 = vmatprep.subr.bf16.mxu0 0
      %1093 = vmatpush1.bf16.msra.mxu0 0
      %1094 = vmatprep.subr.bf16.mxu0 0
      %1095 = vmatpush1.bf16.msra.mxu0 %v1078
      %1096 = vmatprep.subr.bf16.mxu0 0
      %1097 = vmatpush2.bf16.msra.mxu0 0
      %1098 = vmatprep.subr.bf16.mxu0 0
      %1099 = vmatpush2.bf16.msra.mxu0 0
      %1100 = vmatprep.subr.bf16.mxu0 0
      %1101 = vmatpush2.bf16.msra.mxu0 0
      %1102 = vmatprep.subr.bf16.mxu0 0
      %1103 = vmatpush2.bf16.msra.mxu0 0
      %1104 = vmatprep.subr.bf16.mxu0 0
      %1105 = vmatpush2.bf16.msra.mxu0 0
      %1106 = vmatprep.subr.bf16.mxu0 0
      %1107 = vmatpush2.bf16.msra.mxu0 0
      %1108 = vmatprep.subr.bf16.mxu0 0
      %1109 = vmatpush2.bf16.msra.mxu0 0
      %1110 = vmatprep.subr.bf16.mxu0 0
      %1111 = vmatpush2.bf16.msra.mxu0 0
      %1112 = vmatprep.mubr.bf16.mxu0 0
      %1113 = vmatmul.mubr.bf16.gmra.mxu0 %v1030
      %v1114 = vpop.f32.mrf.mxu0
      %v1115 = vadd.f32 0.0, %v1114
      %v1116 = vpop.f32.mrf.mxu0
      %v1117 = vpop.f32.mrf.mxu0
      %v1118 = vadd.f32 0.0, %v1117
      %v1119 = vpop.f32.mrf.mxu0
      %1120 = vmatprep.mubr.bf16.mxu0 0
      %1121 = vmatmul.mubr.bf16.gmra.mxu0 %v1033
      %v1122 = vpop.f32.mrf.mxu0
      %v1123 = vadd.f32 0.0, %v1122
      %v1124 = vpop.f32.mrf.mxu0
      %v1125 = vpop.f32.mrf.mxu0
      %v1126 = vadd.f32 0.0, %v1125
      %v1127 = vpop.f32.mrf.mxu0
      %1128 = vmatprep.mubr.bf16.mxu0 0
      %1129 = vmatmul.mubr.bf16.gmra.mxu0 %v1036
      %v1130 = vpop.f32.mrf.mxu0
      %v1131 = vadd.f32 0.0, %v1130
      %v1132 = vpop.f32.mrf.mxu0
      %v1133 = vpop.f32.mrf.mxu0
      %v1134 = vadd.f32 0.0, %v1133
      %v1135 = vpop.f32.mrf.mxu0
      %1136 = vmatprep.mubr.bf16.mxu0 0
      %1137 = vmatmul.mubr.bf16.gmra.mxu0 %v1039
      %v1138 = vpop.f32.mrf.mxu0
      %v1139 = vadd.f32 0.0, %v1138
      %v1140 = vpop.f32.mrf.mxu0
      %v1141 = vpop.f32.mrf.mxu0
      %v1142 = vadd.f32 0.0, %v1141
      %v1143 = vpop.f32.mrf.mxu0
      %1144 = vmatprep.mubr.bf16.mxu0 0
      %1145 = vmatmul.mubr.bf16.gmra.mxu0 %v1042
      %v1146 = vpop.f32.mrf.mxu0
      %v1147 = vadd.f32 0.0, %v1146
      %v1148 = vpop.f32.mrf.mxu0
      %v1149 = vpop.f32.mrf.mxu0
      %v1150 = vadd.f32 0.0, %v1149
      %v1151 = vpop.f32.mrf.mxu0
      %1152 = vmatprep.mubr.bf16.mxu0 0
      %1153 = vmatmul.mubr.bf16.gmra.mxu0 %v1045
      %v1154 = vpop.f32.mrf.mxu0
      %v1155 = vadd.f32 0.0, %v1154
      %v1156 = vpop.f32.mrf.mxu0
      %v1157 = vpop.f32.mrf.mxu0
      %v1158 = vadd.f32 0.0, %v1157
      %v1159 = vpop.f32.mrf.mxu0
      %1160 = vmatprep.mubr.bf16.mxu0 0
      %1161 = vmatmul.mubr.bf16.gmra.mxu0 %v1048
      %v1162 = vpop.f32.mrf.mxu0
      %v1163 = vadd.f32 0.0, %v1162
      %v1164 = vpop.f32.mrf.mxu0
      %v1165 = vpop.f32.mrf.mxu0
      %v1166 = vadd.f32 0.0, %v1165
      %v1167 = vpop.f32.mrf.mxu0
      %1168 = vmatprep.mubr.bf16.mxu0 0
      %1169 = vmatmul.mubr.bf16.gmra.mxu0 %v1051
      %v1170 = vpop.f32.mrf.mxu0
      %v1171 = vadd.f32 0.0, %v1170
      %v1172 = vpop.f32.mrf.mxu0
      %v1173 = vpop.f32.mrf.mxu0
      %v1174 = vadd.f32 0.0, %v1173
      %v1175 = vpop.f32.mrf.mxu0
      %1176 = vmatprep.mubr.bf16.mxu0 0
      %1177 = vmatmul.mubr.bf16.gmra.mxu0 %v1054
      %v1178 = vpop.f32.mrf.mxu0
      %v1179 = vadd.f32 0.0, %v1178
      %v1180 = vpop.f32.mrf.mxu0
      %v1181 = vpop.f32.mrf.mxu0
      %v1182 = vadd.f32 0.0, %v1181
      %v1183 = vpop.f32.mrf.mxu0
      %1184 = vmatprep.mubr.bf16.mxu0 0
      %1185 = vmatmul.mubr.bf16.gmra.mxu0 %v1057
      %v1186 = vpop.f32.mrf.mxu0
      %v1187 = vadd.f32 0.0, %v1186
      %v1188 = vpop.f32.mrf.mxu0
      %v1189 = vpop.f32.mrf.mxu0
      %v1190 = vadd.f32 0.0, %v1189
      %v1191 = vpop.f32.mrf.mxu0
      %1192 = vmatprep.mubr.bf16.mxu0 0
      %1193 = vmatmul.mubr.bf16.gmra.mxu0 %v1060
      %v1194 = vpop.f32.mrf.mxu0
      %v1195 = vadd.f32 0.0, %v1194
      %v1196 = vpop.f32.mrf.mxu0
      %v1197 = vpop.f32.mrf.mxu0
      %v1198 = vadd.f32 0.0, %v1197
      %v1199 = vpop.f32.mrf.mxu0
      %1200 = vmatprep.mubr.bf16.mxu0 0
      %1201 = vmatmul.mubr.bf16.gmra.mxu0 %v1063
      %v1202 = vpop.f32.mrf.mxu0
      %v1203 = vadd.f32 0.0, %v1202
      %v1204 = vpop.f32.mrf.mxu0
      %v1205 = vpop.f32.mrf.mxu0
      %v1206 = vadd.f32 0.0, %v1205
      %v1207 = vpop.f32.mrf.mxu0
      %1208 = vmatprep.mubr.bf16.mxu0 0
      %1209 = vmatmul.mubr.bf16.gmra.mxu0 %v1066
      %v1210 = vpop.f32.mrf.mxu0
      %v1211 = vadd.f32 0.0, %v1210
      %v1212 = vpop.f32.mrf.mxu0
      %v1213 = vpop.f32.mrf.mxu0
      %v1214 = vadd.f32 0.0, %v1213
      %v1215 = vpop.f32.mrf.mxu0
      %1216 = vmatprep.mubr.bf16.mxu0 0
      %1217 = vmatmul.mubr.bf16.gmra.mxu0 %v1069
      %v1218 = vpop.f32.mrf.mxu0
      %v1219 = vadd.f32 0.0, %v1218
      %v1220 = vpop.f32.mrf.mxu0
      %v1221 = vpop.f32.mrf.mxu0
      %v1222 = vadd.f32 0.0, %v1221
      %v1223 = vpop.f32.mrf.mxu0
      %1224 = vmatprep.mubr.bf16.mxu0 0
      %1225 = vmatmul.mubr.bf16.gmra.mxu0 %v1072
      %v1226 = vpop.f32.mrf.mxu0
      %v1227 = vadd.f32 0.0, %v1226
      %v1228 = vpop.f32.mrf.mxu0
      %v1229 = vpop.f32.mrf.mxu0
      %v1230 = vadd.f32 0.0, %v1229
      %v1231 = vpop.f32.mrf.mxu0
      %1232 = vmatprep.mubr.bf16.mxu0 0
      %1233 = vmatmul.mubr.bf16.gmra.mxu0 %v1075
      %v1234 = vpop.f32.mrf.mxu0
      %v1235 = vadd.f32 0.0, %v1234
      %v1236 = vpop.f32.mrf.mxu0
      %v1237 = vpop.f32.mrf.mxu0
      %v1238 = vadd.f32 0.0, %v1237
      %v1239 = vpop.f32.mrf.mxu0
      %1240 = vdwg.mxu0
      %v1241 = vadd.f32 %v853, %v1115
      %v1242 = vadd.f32 %v856, %v1118
      %v1243 = vadd.f32 %v861, %v1123
      %v1244 = vadd.f32 %v864, %v1126
      %v1245 = vadd.f32 %v869, %v1131
      %v1246 = vadd.f32 %v872, %v1134
      %v1247 = vadd.f32 %v877, %v1139
      %v1248 = vadd.f32 %v880, %v1142
      %v1249 = vadd.f32 %v885, %v1147
      %v1250 = vadd.f32 %v888, %v1150
      %v1251 = vadd.f32 %v893, %v1155
      %v1252 = vadd.f32 %v896, %v1158
      %v1253 = vadd.f32 %v901, %v1163
      %v1254 = vadd.f32 %v904, %v1166
      %v1255 = vadd.f32 %v909, %v1171
      %v1256 = vadd.f32 %v912, %v1174
      %v1257 = vadd.f32 %v917, %v1179
      %v1258 = vadd.f32 %v920, %v1182
      %v1259 = vadd.f32 %v925, %v1187
      %v1260 = vadd.f32 %v928, %v1190
      %v1261 = vadd.f32 %v933, %v1195
      %v1262 = vadd.f32 %v936, %v1198
      %v1263 = vadd.f32 %v941, %v1203
      %v1264 = vadd.f32 %v944, %v1206
      %v1265 = vadd.f32 %v949, %v1211
      %v1266 = vadd.f32 %v952, %v1214
      %v1267 = vadd.f32 %v957, %v1219
      %v1268 = vadd.f32 %v960, %v1222
      %v1269 = vadd.f32 %v965, %v1227
      %v1270 = vadd.f32 %v968, %v1230
      %v1271 = vadd.f32 %v973, %v1235
      %v1272 = vadd.f32 %v976, %v1238
      %v1273 = vld [vmem:[%s422] sm:$0xff]
      %v1274 = vld [vmem:[%s422 + $0x8] sm:$0xff]
      %v1275 = vld [vmem:[%s422 + $0x18] sm:$0xff]
      %v1276 = vld [vmem:[%s422 + $0x20] sm:$0xff]
      %v1277 = vld [vmem:[%s422 + $0x30] sm:$0xff]
      %v1278 = vld [vmem:[%s422 + $0x38] sm:$0xff]
      %v1279 = vld [vmem:[%s422 + $0x48] sm:$0xff]
      %v1280 = vld [vmem:[%s422 + $0x50] sm:$0xff]
      %v1281 = vld [vmem:[%s422 + $0x60] sm:$0xff]
      %v1282 = vld [vmem:[%s422 + $0x68] sm:$0xff]
      %v1283 = vld [vmem:[%s422 + $0x78] sm:$0xff]
      %v1284 = vld [vmem:[%s422 + $0x80] sm:$0xff]
      %v1285 = vld [vmem:[%s422 + $0x90] sm:$0xff]
      %v1286 = vld [vmem:[%s422 + $0x98] sm:$0xff]
      %v1287 = vld [vmem:[%s422 + $0xa8] sm:$0xff]
      %v1288 = vld [vmem:[%s422 + $0xb0] sm:$0xff]
      %v1289 = vld [vmem:[%s422 + $0xc0] sm:$0xff]
      %v1290 = vld [vmem:[%s422 + $0xc8] sm:$0xff]
      %v1291 = vld [vmem:[%s422 + $0xd8] sm:$0xff]
      %v1292 = vld [vmem:[%s422 + $0xe0] sm:$0xff]
      %v1293 = vld [vmem:[%s422 + $0xf0] sm:$0xff]
      %v1294 = vld [vmem:[%s422 + $0xf8] sm:$0xff]
      %v1295 = vld [vmem:[%s422 + $0x108] sm:$0xff]
      %v1296 = vld [vmem:[%s422 + $0x110] sm:$0xff]
      %v1297 = vld [vmem:[%s422 + $0x120] sm:$0xff]
      %v1298 = vld [vmem:[%s422 + $0x128] sm:$0xff]
      %v1299 = vld [vmem:[%s422 + $0x138] sm:$0xff]
      %v1300 = vld [vmem:[%s422 + $0x140] sm:$0xff]
      %v1301 = vld [vmem:[%s422 + $0x150] sm:$0xff]
      %v1302 = vld [vmem:[%s422 + $0x158] sm:$0xff]
      %v1303 = vld [vmem:[%s422 + $0x168] sm:$0xff]
      %v1304 = vld [vmem:[%s422 + $0x170] sm:$0xff]
      %v1305 = vpack.c.bf16 %v1274, %v1273
      %v1306 = vpack.c.bf16 %v1276, %v1275
      %v1307 = vpack.c.bf16 %v1278, %v1277
      %v1308 = vpack.c.bf16 %v1280, %v1279
      %v1309 = vpack.c.bf16 %v1282, %v1281
      %v1310 = vpack.c.bf16 %v1284, %v1283
      %v1311 = vpack.c.bf16 %v1286, %v1285
      %v1312 = vpack.c.bf16 %v1288, %v1287
      %v1313 = vpack.c.bf16 %v1290, %v1289
      %v1314 = vpack.c.bf16 %v1292, %v1291
      %v1315 = vpack.c.bf16 %v1294, %v1293
      %v1316 = vpack.c.bf16 %v1296, %v1295
      %v1317 = vpack.c.bf16 %v1298, %v1297
      %v1318 = vpack.c.bf16 %v1300, %v1299
      %v1319 = vpack.c.bf16 %v1302, %v1301
      %v1320 = vpack.c.bf16 %v1304, %v1303
      %s1321 = scalar_lea.vmem %s1, 6
      %v1322 = vld [vmem:[%s1321] sm:$0x3]
      %v1324 = vsel %vm366, %v1305, 0
      %v1327 = vsel %vm366, %v1306, 0
      %v1330 = vsel %vm366, %v1307, 0
      %v1333 = vsel %vm366, %v1308, 0
      %v1336 = vsel %vm366, %v1309, 0
      %v1339 = vsel %vm366, %v1310, 0
      %v1342 = vsel %vm366, %v1311, 0
      %v1345 = vsel %vm366, %v1312, 0
      %v1348 = vsel %vm366, %v1313, 0
      %v1351 = vsel %vm366, %v1314, 0
      %v1354 = vsel %vm366, %v1315, 0
      %v1357 = vsel %vm366, %v1316, 0
      %v1360 = vsel %vm366, %v1317, 0
      %v1363 = vsel %vm366, %v1318, 0
      %v1366 = vsel %vm366, %v1319, 0
      %v1369 = vsel %vm366, %v1320, 0
      %v1372 = vsel %vm602, %v1322, 0
      %1374 = vmatprep.subr.bf16.mxu0 0
      %1375 = vmatpush1.bf16.msra.mxu0 0
      %1376 = vmatprep.subr.bf16.mxu0 0
      %1377 = vmatpush1.bf16.msra.mxu0 0
      %1378 = vmatprep.subr.bf16.mxu0 0
      %1379 = vmatpush1.bf16.msra.mxu0 0
      %1380 = vmatprep.subr.bf16.mxu0 0
      %1381 = vmatpush1.bf16.msra.mxu0 0
      %1382 = vmatprep.subr.bf16.mxu0 0
      %1383 = vmatpush1.bf16.msra.mxu0 0
      %1384 = vmatprep.subr.bf16.mxu0 0
      %1385 = vmatpush1.bf16.msra.mxu0 0
      %1386 = vmatprep.subr.bf16.mxu0 0
      %1387 = vmatpush1.bf16.msra.mxu0 0
      %1388 = vmatprep.subr.bf16.mxu0 0
      %1389 = vmatpush1.bf16.msra.mxu0 %v1372
      %1390 = vmatprep.subr.bf16.mxu0 0
      %1391 = vmatpush2.bf16.msra.mxu0 0
      %1392 = vmatprep.subr.bf16.mxu0 0
      %1393 = vmatpush2.bf16.msra.mxu0 0
      %1394 = vmatprep.subr.bf16.mxu0 0
      %1395 = vmatpush2.bf16.msra.mxu0 0
      %1396 = vmatprep.subr.bf16.mxu0 0
      %1397 = vmatpush2.bf16.msra.mxu0 0
      %1398 = vmatprep.subr.bf16.mxu0 0
      %1399 = vmatpush2.bf16.msra.mxu0 0
      %1400 = vmatprep.subr.bf16.mxu0 0
      %1401 = vmatpush2.bf16.msra.mxu0 0
      %1402 = vmatprep.subr.bf16.mxu0 0
      %1403 = vmatpush2.bf16.msra.mxu0 0
      %1404 = vmatprep.subr.bf16.mxu0 0
      %1405 = vmatpush2.bf16.msra.mxu0 0
      %1406 = vmatprep.mubr.bf16.mxu0 0
      %1407 = vmatmul.mubr.bf16.gmra.mxu0 %v1324
      %v1408 = vpop.f32.mrf.mxu0
      %v1409 = vadd.f32 0.0, %v1408
      %v1410 = vpop.f32.mrf.mxu0
      %v1411 = vpop.f32.mrf.mxu0
      %v1412 = vadd.f32 0.0, %v1411
      %v1413 = vpop.f32.mrf.mxu0
      %1414 = vmatprep.mubr.bf16.mxu0 0
      %1415 = vmatmul.mubr.bf16.gmra.mxu0 %v1327
      %v1416 = vpop.f32.mrf.mxu0
      %v1417 = vadd.f32 0.0, %v1416
      %v1418 = vpop.f32.mrf.mxu0
      %v1419 = vpop.f32.mrf.mxu0
      %v1420 = vadd.f32 0.0, %v1419
      %v1421 = vpop.f32.mrf.mxu0
      %1422 = vmatprep.mubr.bf16.mxu0 0
      %1423 = vmatmul.mubr.bf16.gmra.mxu0 %v1330
      %v1424 = vpop.f32.mrf.mxu0
      %v1425 = vadd.f32 0.0, %v1424
      %v1426 = vpop.f32.mrf.mxu0
      %v1427 = vpop.f32.mrf.mxu0
      %v1428 = vadd.f32 0.0, %v1427
      %v1429 = vpop.f32.mrf.mxu0
      %1430 = vmatprep.mubr.bf16.mxu0 0
      %1431 = vmatmul.mubr.bf16.gmra.mxu0 %v1333
      %v1432 = vpop.f32.mrf.mxu0
      %v1433 = vadd.f32 0.0, %v1432
      %v1434 = vpop.f32.mrf.mxu0
      %v1435 = vpop.f32.mrf.mxu0
      %v1436 = vadd.f32 0.0, %v1435
      %v1437 = vpop.f32.mrf.mxu0
      %1438 = vmatprep.mubr.bf16.mxu0 0
      %1439 = vmatmul.mubr.bf16.gmra.mxu0 %v1336
      %v1440 = vpop.f32.mrf.mxu0
      %v1441 = vadd.f32 0.0, %v1440
      %v1442 = vpop.f32.mrf.mxu0
      %v1443 = vpop.f32.mrf.mxu0
      %v1444 = vadd.f32 0.0, %v1443
      %v1445 = vpop.f32.mrf.mxu0
      %1446 = vmatprep.mubr.bf16.mxu0 0
      %1447 = vmatmul.mubr.bf16.gmra.mxu0 %v1339
      %v1448 = vpop.f32.mrf.mxu0
      %v1449 = vadd.f32 0.0, %v1448
      %v1450 = vpop.f32.mrf.mxu0
      %v1451 = vpop.f32.mrf.mxu0
      %v1452 = vadd.f32 0.0, %v1451
      %v1453 = vpop.f32.mrf.mxu0
      %1454 = vmatprep.mubr.bf16.mxu0 0
      %1455 = vmatmul.mubr.bf16.gmra.mxu0 %v1342
      %v1456 = vpop.f32.mrf.mxu0
      %v1457 = vadd.f32 0.0, %v1456
      %v1458 = vpop.f32.mrf.mxu0
      %v1459 = vpop.f32.mrf.mxu0
      %v1460 = vadd.f32 0.0, %v1459
      %v1461 = vpop.f32.mrf.mxu0
      %1462 = vmatprep.mubr.bf16.mxu0 0
      %1463 = vmatmul.mubr.bf16.gmra.mxu0 %v1345
      %v1464 = vpop.f32.mrf.mxu0
      %v1465 = vadd.f32 0.0, %v1464
      %v1466 = vpop.f32.mrf.mxu0
      %v1467 = vpop.f32.mrf.mxu0
      %v1468 = vadd.f32 0.0, %v1467
      %v1469 = vpop.f32.mrf.mxu0
      %1470 = vmatprep.mubr.bf16.mxu0 0
      %1471 = vmatmul.mubr.bf16.gmra.mxu0 %v1348
      %v1472 = vpop.f32.mrf.mxu0
      %v1473 = vadd.f32 0.0, %v1472
      %v1474 = vpop.f32.mrf.mxu0
      %v1475 = vpop.f32.mrf.mxu0
      %v1476 = vadd.f32 0.0, %v1475
      %v1477 = vpop.f32.mrf.mxu0
      %1478 = vmatprep.mubr.bf16.mxu0 0
      %1479 = vmatmul.mubr.bf16.gmra.mxu0 %v1351
      %v1480 = vpop.f32.mrf.mxu0
      %v1481 = vadd.f32 0.0, %v1480
      %v1482 = vpop.f32.mrf.mxu0
      %v1483 = vpop.f32.mrf.mxu0
      %v1484 = vadd.f32 0.0, %v1483
      %v1485 = vpop.f32.mrf.mxu0
      %1486 = vmatprep.mubr.bf16.mxu0 0
      %1487 = vmatmul.mubr.bf16.gmra.mxu0 %v1354
      %v1488 = vpop.f32.mrf.mxu0
      %v1489 = vadd.f32 0.0, %v1488
      %v1490 = vpop.f32.mrf.mxu0
      %v1491 = vpop.f32.mrf.mxu0
      %v1492 = vadd.f32 0.0, %v1491
      %v1493 = vpop.f32.mrf.mxu0
      %1494 = vmatprep.mubr.bf16.mxu0 0
      %1495 = vmatmul.mubr.bf16.gmra.mxu0 %v1357
      %v1496 = vpop.f32.mrf.mxu0
      %v1497 = vadd.f32 0.0, %v1496
      %v1498 = vpop.f32.mrf.mxu0
      %v1499 = vpop.f32.mrf.mxu0
      %v1500 = vadd.f32 0.0, %v1499
      %v1501 = vpop.f32.mrf.mxu0
      %1502 = vmatprep.mubr.bf16.mxu0 0
      %1503 = vmatmul.mubr.bf16.gmra.mxu0 %v1360
      %v1504 = vpop.f32.mrf.mxu0
      %v1505 = vadd.f32 0.0, %v1504
      %v1506 = vpop.f32.mrf.mxu0
      %v1507 = vpop.f32.mrf.mxu0
      %v1508 = vadd.f32 0.0, %v1507
      %v1509 = vpop.f32.mrf.mxu0
      %1510 = vmatprep.mubr.bf16.mxu0 0
      %1511 = vmatmul.mubr.bf16.gmra.mxu0 %v1363
      %v1512 = vpop.f32.mrf.mxu0
      %v1513 = vadd.f32 0.0, %v1512
      %v1514 = vpop.f32.mrf.mxu0
      %v1515 = vpop.f32.mrf.mxu0
      %v1516 = vadd.f32 0.0, %v1515
      %v1517 = vpop.f32.mrf.mxu0
      %1518 = vmatprep.mubr.bf16.mxu0 0
      %1519 = vmatmul.mubr.bf16.gmra.mxu0 %v1366
      %v1520 = vpop.f32.mrf.mxu0
      %v1521 = vadd.f32 0.0, %v1520
      %v1522 = vpop.f32.mrf.mxu0
      %v1523 = vpop.f32.mrf.mxu0
      %v1524 = vadd.f32 0.0, %v1523
      %v1525 = vpop.f32.mrf.mxu0
      %1526 = vmatprep.mubr.bf16.mxu0 0
      %1527 = vmatmul.mubr.bf16.gmra.mxu0 %v1369
      %v1528 = vpop.f32.mrf.mxu0
      %v1529 = vadd.f32 0.0, %v1528
      %v1530 = vpop.f32.mrf.mxu0
      %v1531 = vpop.f32.mrf.mxu0
      %v1532 = vadd.f32 0.0, %v1531
      %v1533 = vpop.f32.mrf.mxu0
      %1534 = vdwg.mxu0
      %v1535 = vadd.f32 %v1241, %v1409
      %v1536 = vadd.f32 %v1242, %v1412
      %v1537 = vadd.f32 %v1243, %v1417
      %v1538 = vadd.f32 %v1244, %v1420
      %v1539 = vadd.f32 %v1245, %v1425
      %v1540 = vadd.f32 %v1246, %v1428
      %v1541 = vadd.f32 %v1247, %v1433
      %v1542 = vadd.f32 %v1248, %v1436
      %v1543 = vadd.f32 %v1249, %v1441
      %v1544 = vadd.f32 %v1250, %v1444
      %v1545 = vadd.f32 %v1251, %v1449
      %v1546 = vadd.f32 %v1252, %v1452
      %v1547 = vadd.f32 %v1253, %v1457
      %v1548 = vadd.f32 %v1254, %v1460
      %v1549 = vadd.f32 %v1255, %v1465
      %v1550 = vadd.f32 %v1256, %v1468
      %v1551 = vadd.f32 %v1257, %v1473
      %v1552 = vadd.f32 %v1258, %v1476
      %v1553 = vadd.f32 %v1259, %v1481
      %v1554 = vadd.f32 %v1260, %v1484
      %v1555 = vadd.f32 %v1261, %v1489
      %v1556 = vadd.f32 %v1262, %v1492
      %v1557 = vadd.f32 %v1263, %v1497
      %v1558 = vadd.f32 %v1264, %v1500
      %v1559 = vadd.f32 %v1265, %v1505
      %v1560 = vadd.f32 %v1266, %v1508
      %v1561 = vadd.f32 %v1267, %v1513
      %v1562 = vadd.f32 %v1268, %v1516
      %v1563 = vadd.f32 %v1269, %v1521
      %v1564 = vadd.f32 %v1270, %v1524
      %v1565 = vadd.f32 %v1271, %v1529
      %v1566 = vadd.f32 %v1272, %v1532
      %v1567 = vld [vmem:[%s422 + $0x1] sm:$0xff]
      %v1568 = vld [vmem:[%s422 + $0x9] sm:$0xff]
      %v1569 = vld [vmem:[%s422 + $0x19] sm:$0xff]
      %v1570 = vld [vmem:[%s422 + $0x21] sm:$0xff]
      %v1571 = vld [vmem:[%s422 + $0x31] sm:$0xff]
      %v1572 = vld [vmem:[%s422 + $0x39] sm:$0xff]
      %v1573 = vld [vmem:[%s422 + $0x49] sm:$0xff]
      %v1574 = vld [vmem:[%s422 + $0x51] sm:$0xff]
      %v1575 = vld [vmem:[%s422 + $0x61] sm:$0xff]
      %v1576 = vld [vmem:[%s422 + $0x69] sm:$0xff]
      %v1577 = vld [vmem:[%s422 + $0x79] sm:$0xff]
      %v1578 = vld [vmem:[%s422 + $0x81] sm:$0xff]
      %v1579 = vld [vmem:[%s422 + $0x91] sm:$0xff]
      %v1580 = vld [vmem:[%s422 + $0x99] sm:$0xff]
      %v1581 = vld [vmem:[%s422 + $0xa9] sm:$0xff]
      %v1582 = vld [vmem:[%s422 + $0xb1] sm:$0xff]
      %v1583 = vld [vmem:[%s422 + $0xc1] sm:$0xff]
      %v1584 = vld [vmem:[%s422 + $0xc9] sm:$0xff]
      %v1585 = vld [vmem:[%s422 + $0xd9] sm:$0xff]
      %v1586 = vld [vmem:[%s422 + $0xe1] sm:$0xff]
      %v1587 = vld [vmem:[%s422 + $0xf1] sm:$0xff]
      %v1588 = vld [vmem:[%s422 + $0xf9] sm:$0xff]
      %v1589 = vld [vmem:[%s422 + $0x109] sm:$0xff]
      %v1590 = vld [vmem:[%s422 + $0x111] sm:$0xff]
      %v1591 = vld [vmem:[%s422 + $0x121] sm:$0xff]
      %v1592 = vld [vmem:[%s422 + $0x129] sm:$0xff]
      %v1593 = vld [vmem:[%s422 + $0x139] sm:$0xff]
      %v1594 = vld [vmem:[%s422 + $0x141] sm:$0xff]
      %v1595 = vld [vmem:[%s422 + $0x151] sm:$0xff]
      %v1596 = vld [vmem:[%s422 + $0x159] sm:$0xff]
      %v1597 = vld [vmem:[%s422 + $0x169] sm:$0xff]
      %v1598 = vld [vmem:[%s422 + $0x171] sm:$0xff]
      %v1599 = vpack.c.bf16 %v1568, %v1567
      %v1600 = vpack.c.bf16 %v1570, %v1569
      %v1601 = vpack.c.bf16 %v1572, %v1571
      %v1602 = vpack.c.bf16 %v1574, %v1573
      %v1603 = vpack.c.bf16 %v1576, %v1575
      %v1604 = vpack.c.bf16 %v1578, %v1577
      %v1605 = vpack.c.bf16 %v1580, %v1579
      %v1606 = vpack.c.bf16 %v1582, %v1581
      %v1607 = vpack.c.bf16 %v1584, %v1583
      %v1608 = vpack.c.bf16 %v1586, %v1585
      %v1609 = vpack.c.bf16 %v1588, %v1587
      %v1610 = vpack.c.bf16 %v1590, %v1589
      %v1611 = vpack.c.bf16 %v1592, %v1591
      %v1612 = vpack.c.bf16 %v1594, %v1593
      %v1613 = vpack.c.bf16 %v1596, %v1595
      %v1614 = vpack.c.bf16 %v1598, %v1597
      %s1615 = scalar_lea.vmem %s1, 8
      %v1616 = vld [vmem:[%s1615] sm:$0x3]
      %v1618 = vsel %vm366, %v1599, 0
      %v1621 = vsel %vm366, %v1600, 0
      %v1624 = vsel %vm366, %v1601, 0
      %v1627 = vsel %vm366, %v1602, 0
      %v1630 = vsel %vm366, %v1603, 0
      %v1633 = vsel %vm366, %v1604, 0
      %v1636 = vsel %vm366, %v1605, 0
      %v1639 = vsel %vm366, %v1606, 0
      %v1642 = vsel %vm366, %v1607, 0
      %v1645 = vsel %vm366, %v1608, 0
      %v1648 = vsel %vm366, %v1609, 0
      %v1651 = vsel %vm366, %v1610, 0
      %v1654 = vsel %vm366, %v1611, 0
      %v1657 = vsel %vm366, %v1612, 0
      %v1660 = vsel %vm366, %v1613, 0
      %v1663 = vsel %vm366, %v1614, 0
      %v1666 = vsel %vm602, %v1616, 0
      %1668 = vmatprep.subr.bf16.mxu0 0
      %1669 = vmatpush1.bf16.msra.mxu0 0
      %1670 = vmatprep.subr.bf16.mxu0 0
      %1671 = vmatpush1.bf16.msra.mxu0 0
      %1672 = vmatprep.subr.bf16.mxu0 0
      %1673 = vmatpush1.bf16.msra.mxu0 0
      %1674 = vmatprep.subr.bf16.mxu0 0
      %1675 = vmatpush1.bf16.msra.mxu0 0
      %1676 = vmatprep.subr.bf16.mxu0 0
      %1677 = vmatpush1.bf16.msra.mxu0 0
      %1678 = vmatprep.subr.bf16.mxu0 0
      %1679 = vmatpush1.bf16.msra.mxu0 0
      %1680 = vmatprep.subr.bf16.mxu0 0
      %1681 = vmatpush1.bf16.msra.mxu0 0
      %1682 = vmatprep.subr.bf16.mxu0 0
      %1683 = vmatpush1.bf16.msra.mxu0 %v1666
      %1684 = vmatprep.subr.bf16.mxu0 0
      %1685 = vmatpush2.bf16.msra.mxu0 0
      %1686 = vmatprep.subr.bf16.mxu0 0
      %1687 = vmatpush2.bf16.msra.mxu0 0
      %1688 = vmatprep.subr.bf16.mxu0 0
      %1689 = vmatpush2.bf16.msra.mxu0 0
      %1690 = vmatprep.subr.bf16.mxu0 0
      %1691 = vmatpush2.bf16.msra.mxu0 0
      %1692 = vmatprep.subr.bf16.mxu0 0
      %1693 = vmatpush2.bf16.msra.mxu0 0
      %1694 = vmatprep.subr.bf16.mxu0 0
      %1695 = vmatpush2.bf16.msra.mxu0 0
      %1696 = vmatprep.subr.bf16.mxu0 0
      %1697 = vmatpush2.bf16.msra.mxu0 0
      %1698 = vmatprep.subr.bf16.mxu0 0
      %1699 = vmatpush2.bf16.msra.mxu0 0
      %1700 = vmatprep.mubr.bf16.mxu0 0
      %1701 = vmatmul.mubr.bf16.gmra.mxu0 %v1618
      %v1702 = vpop.f32.mrf.mxu0
      %v1703 = vadd.f32 0.0, %v1702
      %v1704 = vpop.f32.mrf.mxu0
      %v1705 = vpop.f32.mrf.mxu0
      %v1706 = vadd.f32 0.0, %v1705
      %v1707 = vpop.f32.mrf.mxu0
      %1708 = vmatprep.mubr.bf16.mxu0 0
      %1709 = vmatmul.mubr.bf16.gmra.mxu0 %v1621
      %v1710 = vpop.f32.mrf.mxu0
      %v1711 = vadd.f32 0.0, %v1710
      %v1712 = vpop.f32.mrf.mxu0
      %v1713 = vpop.f32.mrf.mxu0
      %v1714 = vadd.f32 0.0, %v1713
      %v1715 = vpop.f32.mrf.mxu0
      %1716 = vmatprep.mubr.bf16.mxu0 0
      %1717 = vmatmul.mubr.bf16.gmra.mxu0 %v1624
      %v1718 = vpop.f32.mrf.mxu0
      %v1719 = vadd.f32 0.0, %v1718
      %v1720 = vpop.f32.mrf.mxu0
      %v1721 = vpop.f32.mrf.mxu0
      %v1722 = vadd.f32 0.0, %v1721
      %v1723 = vpop.f32.mrf.mxu0
      %1724 = vmatprep.mubr.bf16.mxu0 0
      %1725 = vmatmul.mubr.bf16.gmra.mxu0 %v1627
      %v1726 = vpop.f32.mrf.mxu0
      %v1727 = vadd.f32 0.0, %v1726
      %v1728 = vpop.f32.mrf.mxu0
      %v1729 = vpop.f32.mrf.mxu0
      %v1730 = vadd.f32 0.0, %v1729
      %v1731 = vpop.f32.mrf.mxu0
      %1732 = vmatprep.mubr.bf16.mxu0 0
      %1733 = vmatmul.mubr.bf16.gmra.mxu0 %v1630
      %v1734 = vpop.f32.mrf.mxu0
      %v1735 = vadd.f32 0.0, %v1734
      %v1736 = vpop.f32.mrf.mxu0
      %v1737 = vpop.f32.mrf.mxu0
      %v1738 = vadd.f32 0.0, %v1737
      %v1739 = vpop.f32.mrf.mxu0
      %1740 = vmatprep.mubr.bf16.mxu0 0
      %1741 = vmatmul.mubr.bf16.gmra.mxu0 %v1633
      %v1742 = vpop.f32.mrf.mxu0
      %v1743 = vadd.f32 0.0, %v1742
      %v1744 = vpop.f32.mrf.mxu0
      %v1745 = vpop.f32.mrf.mxu0
      %v1746 = vadd.f32 0.0, %v1745
      %v1747 = vpop.f32.mrf.mxu0
      %1748 = vmatprep.mubr.bf16.mxu0 0
      %1749 = vmatmul.mubr.bf16.gmra.mxu0 %v1636
      %v1750 = vpop.f32.mrf.mxu0
      %v1751 = vadd.f32 0.0, %v1750
      %v1752 = vpop.f32.mrf.mxu0
      %v1753 = vpop.f32.mrf.mxu0
      %v1754 = vadd.f32 0.0, %v1753
      %v1755 = vpop.f32.mrf.mxu0
      %1756 = vmatprep.mubr.bf16.mxu0 0
      %1757 = vmatmul.mubr.bf16.gmra.mxu0 %v1639
      %v1758 = vpop.f32.mrf.mxu0
      %v1759 = vadd.f32 0.0, %v1758
      %v1760 = vpop.f32.mrf.mxu0
      %v1761 = vpop.f32.mrf.mxu0
      %v1762 = vadd.f32 0.0, %v1761
      %v1763 = vpop.f32.mrf.mxu0
      %1764 = vmatprep.mubr.bf16.mxu0 0
      %1765 = vmatmul.mubr.bf16.gmra.mxu0 %v1642
      %v1766 = vpop.f32.mrf.mxu0
      %v1767 = vadd.f32 0.0, %v1766
      %v1768 = vpop.f32.mrf.mxu0
      %v1769 = vpop.f32.mrf.mxu0
      %v1770 = vadd.f32 0.0, %v1769
      %v1771 = vpop.f32.mrf.mxu0
      %1772 = vmatprep.mubr.bf16.mxu0 0
      %1773 = vmatmul.mubr.bf16.gmra.mxu0 %v1645
      %v1774 = vpop.f32.mrf.mxu0
      %v1775 = vadd.f32 0.0, %v1774
      %v1776 = vpop.f32.mrf.mxu0
      %v1777 = vpop.f32.mrf.mxu0
      %v1778 = vadd.f32 0.0, %v1777
      %v1779 = vpop.f32.mrf.mxu0
      %1780 = vmatprep.mubr.bf16.mxu0 0
      %1781 = vmatmul.mubr.bf16.gmra.mxu0 %v1648
      %v1782 = vpop.f32.mrf.mxu0
      %v1783 = vadd.f32 0.0, %v1782
      %v1784 = vpop.f32.mrf.mxu0
      %v1785 = vpop.f32.mrf.mxu0
      %v1786 = vadd.f32 0.0, %v1785
      %v1787 = vpop.f32.mrf.mxu0
      %1788 = vmatprep.mubr.bf16.mxu0 0
      %1789 = vmatmul.mubr.bf16.gmra.mxu0 %v1651
      %v1790 = vpop.f32.mrf.mxu0
      %v1791 = vadd.f32 0.0, %v1790
      %v1792 = vpop.f32.mrf.mxu0
      %v1793 = vpop.f32.mrf.mxu0
      %v1794 = vadd.f32 0.0, %v1793
      %v1795 = vpop.f32.mrf.mxu0
      %1796 = vmatprep.mubr.bf16.mxu0 0
      %1797 = vmatmul.mubr.bf16.gmra.mxu0 %v1654
      %v1798 = vpop.f32.mrf.mxu0
      %v1799 = vadd.f32 0.0, %v1798
      %v1800 = vpop.f32.mrf.mxu0
      %v1801 = vpop.f32.mrf.mxu0
      %v1802 = vadd.f32 0.0, %v1801
      %v1803 = vpop.f32.mrf.mxu0
      %1804 = vmatprep.mubr.bf16.mxu0 0
      %1805 = vmatmul.mubr.bf16.gmra.mxu0 %v1657
      %v1806 = vpop.f32.mrf.mxu0
      %v1807 = vadd.f32 0.0, %v1806
      %v1808 = vpop.f32.mrf.mxu0
      %v1809 = vpop.f32.mrf.mxu0
      %v1810 = vadd.f32 0.0, %v1809
      %v1811 = vpop.f32.mrf.mxu0
      %1812 = vmatprep.mubr.bf16.mxu0 0
      %1813 = vmatmul.mubr.bf16.gmra.mxu0 %v1660
      %v1814 = vpop.f32.mrf.mxu0
      %v1815 = vadd.f32 0.0, %v1814
      %v1816 = vpop.f32.mrf.mxu0
      %v1817 = vpop.f32.mrf.mxu0
      %v1818 = vadd.f32 0.0, %v1817
      %v1819 = vpop.f32.mrf.mxu0
      %1820 = vmatprep.mubr.bf16.mxu0 0
      %1821 = vmatmul.mubr.bf16.gmra.mxu0 %v1663
      %v1822 = vpop.f32.mrf.mxu0
      %v1823 = vadd.f32 0.0, %v1822
      %v1824 = vpop.f32.mrf.mxu0
      %v1825 = vpop.f32.mrf.mxu0
      %v1826 = vadd.f32 0.0, %v1825
      %v1827 = vpop.f32.mrf.mxu0
      %1828 = vdwg.mxu0
      %v1829 = vadd.f32 %v1535, %v1703
      %v1830 = vadd.f32 %v1536, %v1706
      %v1831 = vadd.f32 %v1537, %v1711
      %v1832 = vadd.f32 %v1538, %v1714
      %v1833 = vadd.f32 %v1539, %v1719
      %v1834 = vadd.f32 %v1540, %v1722
      %v1835 = vadd.f32 %v1541, %v1727
      %v1836 = vadd.f32 %v1542, %v1730
      %v1837 = vadd.f32 %v1543, %v1735
      %v1838 = vadd.f32 %v1544, %v1738
      %v1839 = vadd.f32 %v1545, %v1743
      %v1840 = vadd.f32 %v1546, %v1746
      %v1841 = vadd.f32 %v1547, %v1751
      %v1842 = vadd.f32 %v1548, %v1754
      %v1843 = vadd.f32 %v1549, %v1759
      %v1844 = vadd.f32 %v1550, %v1762
      %v1845 = vadd.f32 %v1551, %v1767
      %v1846 = vadd.f32 %v1552, %v1770
      %v1847 = vadd.f32 %v1553, %v1775
      %v1848 = vadd.f32 %v1554, %v1778
      %v1849 = vadd.f32 %v1555, %v1783
      %v1850 = vadd.f32 %v1556, %v1786
      %v1851 = vadd.f32 %v1557, %v1791
      %v1852 = vadd.f32 %v1558, %v1794
      %v1853 = vadd.f32 %v1559, %v1799
      %v1854 = vadd.f32 %v1560, %v1802
      %v1855 = vadd.f32 %v1561, %v1807
      %v1856 = vadd.f32 %v1562, %v1810
      %v1857 = vadd.f32 %v1563, %v1815
      %v1858 = vadd.f32 %v1564, %v1818
      %v1859 = vadd.f32 %v1565, %v1823
      %v1860 = vadd.f32 %v1566, %v1826
      %v1861 = vld [vmem:[%s422 + $0x2] sm:$0xff]
      %v1862 = vld [vmem:[%s422 + $0xa] sm:$0xff]
      %v1863 = vld [vmem:[%s422 + $0x1a] sm:$0xff]
      %v1864 = vld [vmem:[%s422 + $0x22] sm:$0xff]
      %v1865 = vld [vmem:[%s422 + $0x32] sm:$0xff]
      %v1866 = vld [vmem:[%s422 + $0x3a] sm:$0xff]
      %v1867 = vld [vmem:[%s422 + $0x4a] sm:$0xff]
      %v1868 = vld [vmem:[%s422 + $0x52] sm:$0xff]
      %v1869 = vld [vmem:[%s422 + $0x62] sm:$0xff]
      %v1870 = vld [vmem:[%s422 + $0x6a] sm:$0xff]
      %v1871 = vld [vmem:[%s422 + $0x7a] sm:$0xff]
      %v1872 = vld [vmem:[%s422 + $0x82] sm:$0xff]
      %v1873 = vld [vmem:[%s422 + $0x92] sm:$0xff]
      %v1874 = vld [vmem:[%s422 + $0x9a] sm:$0xff]
      %v1875 = vld [vmem:[%s422 + $0xaa] sm:$0xff]
      %v1876 = vld [vmem:[%s422 + $0xb2] sm:$0xff]
      %v1877 = vld [vmem:[%s422 + $0xc2] sm:$0xff]
      %v1878 = vld [vmem:[%s422 + $0xca] sm:$0xff]
      %v1879 = vld [vmem:[%s422 + $0xda] sm:$0xff]
      %v1880 = vld [vmem:[%s422 + $0xe2] sm:$0xff]
      %v1881 = vld [vmem:[%s422 + $0xf2] sm:$0xff]
      %v1882 = vld [vmem:[%s422 + $0xfa] sm:$0xff]
      %v1883 = vld [vmem:[%s422 + $0x10a] sm:$0xff]
      %v1884 = vld [vmem:[%s422 + $0x112] sm:$0xff]
      %v1885 = vld [vmem:[%s422 + $0x122] sm:$0xff]
      %v1886 = vld [vmem:[%s422 + $0x12a] sm:$0xff]
      %v1887 = vld [vmem:[%s422 + $0x13a] sm:$0xff]
      %v1888 = vld [vmem:[%s422 + $0x142] sm:$0xff]
      %v1889 = vld [vmem:[%s422 + $0x152] sm:$0xff]
      %v1890 = vld [vmem:[%s422 + $0x15a] sm:$0xff]
      %v1891 = vld [vmem:[%s422 + $0x16a] sm:$0xff]
      %v1892 = vld [vmem:[%s422 + $0x172] sm:$0xff]
      %v1893 = vpack.c.bf16 %v1862, %v1861
      %v1894 = vpack.c.bf16 %v1864, %v1863
      %v1895 = vpack.c.bf16 %v1866, %v1865
      %v1896 = vpack.c.bf16 %v1868, %v1867
      %v1897 = vpack.c.bf16 %v1870, %v1869
      %v1898 = vpack.c.bf16 %v1872, %v1871
      %v1899 = vpack.c.bf16 %v1874, %v1873
      %v1900 = vpack.c.bf16 %v1876, %v1875
      %v1901 = vpack.c.bf16 %v1878, %v1877
      %v1902 = vpack.c.bf16 %v1880, %v1879
      %v1903 = vpack.c.bf16 %v1882, %v1881
      %v1904 = vpack.c.bf16 %v1884, %v1883
      %v1905 = vpack.c.bf16 %v1886, %v1885
      %v1906 = vpack.c.bf16 %v1888, %v1887
      %v1907 = vpack.c.bf16 %v1890, %v1889
      %v1908 = vpack.c.bf16 %v1892, %v1891
      %s1909 = scalar_lea.vmem %s1, 10
      %v1910 = vld [vmem:[%s1909] sm:$0x3]
      %v1912 = vsel %vm366, %v1893, 0
      %v1915 = vsel %vm366, %v1894, 0
      %v1918 = vsel %vm366, %v1895, 0
      %v1921 = vsel %vm366, %v1896, 0
      %v1924 = vsel %vm366, %v1897, 0
      %v1927 = vsel %vm366, %v1898, 0
      %v1930 = vsel %vm366, %v1899, 0
      %v1933 = vsel %vm366, %v1900, 0
      %v1936 = vsel %vm366, %v1901, 0
      %v1939 = vsel %vm366, %v1902, 0
      %v1942 = vsel %vm366, %v1903, 0
      %v1945 = vsel %vm366, %v1904, 0
      %v1948 = vsel %vm366, %v1905, 0
      %v1951 = vsel %vm366, %v1906, 0
      %v1954 = vsel %vm366, %v1907, 0
      %v1957 = vsel %vm366, %v1908, 0
      %v1960 = vsel %vm602, %v1910, 0
      %1962 = vmatprep.subr.bf16.mxu0 0
      %1963 = vmatpush1.bf16.msra.mxu0 0
      %1964 = vmatprep.subr.bf16.mxu0 0
      %1965 = vmatpush1.bf16.msra.mxu0 0
      %1966 = vmatprep.subr.bf16.mxu0 0
      %1967 = vmatpush1.bf16.msra.mxu0 0
      %1968 = vmatprep.subr.bf16.mxu0 0
      %1969 = vmatpush1.bf16.msra.mxu0 0
      %1970 = vmatprep.subr.bf16.mxu0 0
      %1971 = vmatpush1.bf16.msra.mxu0 0
      %1972 = vmatprep.subr.bf16.mxu0 0
      %1973 = vmatpush1.bf16.msra.mxu0 0
      %1974 = vmatprep.subr.bf16.mxu0 0
      %1975 = vmatpush1.bf16.msra.mxu0 0
      %1976 = vmatprep.subr.bf16.mxu0 0
      %1977 = vmatpush1.bf16.msra.mxu0 %v1960
      %1978 = vmatprep.subr.bf16.mxu0 0
      %1979 = vmatpush2.bf16.msra.mxu0 0
      %1980 = vmatprep.subr.bf16.mxu0 0
      %1981 = vmatpush2.bf16.msra.mxu0 0
      %1982 = vmatprep.subr.bf16.mxu0 0
      %1983 = vmatpush2.bf16.msra.mxu0 0
      %1984 = vmatprep.subr.bf16.mxu0 0
      %1985 = vmatpush2.bf16.msra.mxu0 0
      %1986 = vmatprep.subr.bf16.mxu0 0
      %1987 = vmatpush2.bf16.msra.mxu0 0
      %1988 = vmatprep.subr.bf16.mxu0 0
      %1989 = vmatpush2.bf16.msra.mxu0 0
      %1990 = vmatprep.subr.bf16.mxu0 0
      %1991 = vmatpush2.bf16.msra.mxu0 0
      %1992 = vmatprep.subr.bf16.mxu0 0
      %1993 = vmatpush2.bf16.msra.mxu0 0
      %1994 = vmatprep.mubr.bf16.mxu0 0
      %1995 = vmatmul.mubr.bf16.gmra.mxu0 %v1912
      %v1996 = vpop.f32.mrf.mxu0
      %v1997 = vadd.f32 0.0, %v1996
      %v1998 = vpop.f32.mrf.mxu0
      %v1999 = vpop.f32.mrf.mxu0
      %v2000 = vadd.f32 0.0, %v1999
      %v2001 = vpop.f32.mrf.mxu0
      %2002 = vmatprep.mubr.bf16.mxu0 0
      %2003 = vmatmul.mubr.bf16.gmra.mxu0 %v1915
      %v2004 = vpop.f32.mrf.mxu0
      %v2005 = vadd.f32 0.0, %v2004
      %v2006 = vpop.f32.mrf.mxu0
      %v2007 = vpop.f32.mrf.mxu0
      %v2008 = vadd.f32 0.0, %v2007
      %v2009 = vpop.f32.mrf.mxu0
      %2010 = vmatprep.mubr.bf16.mxu0 0
      %2011 = vmatmul.mubr.bf16.gmra.mxu0 %v1918
      %v2012 = vpop.f32.mrf.mxu0
      %v2013 = vadd.f32 0.0, %v2012
      %v2014 = vpop.f32.mrf.mxu0
      %v2015 = vpop.f32.mrf.mxu0
      %v2016 = vadd.f32 0.0, %v2015
      %v2017 = vpop.f32.mrf.mxu0
      %2018 = vmatprep.mubr.bf16.mxu0 0
      %2019 = vmatmul.mubr.bf16.gmra.mxu0 %v1921
      %v2020 = vpop.f32.mrf.mxu0
      %v2021 = vadd.f32 0.0, %v2020
      %v2022 = vpop.f32.mrf.mxu0
      %v2023 = vpop.f32.mrf.mxu0
      %v2024 = vadd.f32 0.0, %v2023
      %v2025 = vpop.f32.mrf.mxu0
      %2026 = vmatprep.mubr.bf16.mxu0 0
      %2027 = vmatmul.mubr.bf16.gmra.mxu0 %v1924
      %v2028 = vpop.f32.mrf.mxu0
      %v2029 = vadd.f32 0.0, %v2028
      %v2030 = vpop.f32.mrf.mxu0
      %v2031 = vpop.f32.mrf.mxu0
      %v2032 = vadd.f32 0.0, %v2031
      %v2033 = vpop.f32.mrf.mxu0
      %2034 = vmatprep.mubr.bf16.mxu0 0
      %2035 = vmatmul.mubr.bf16.gmra.mxu0 %v1927
      %v2036 = vpop.f32.mrf.mxu0
      %v2037 = vadd.f32 0.0, %v2036
      %v2038 = vpop.f32.mrf.mxu0
      %v2039 = vpop.f32.mrf.mxu0
      %v2040 = vadd.f32 0.0, %v2039
      %v2041 = vpop.f32.mrf.mxu0
      %2042 = vmatprep.mubr.bf16.mxu0 0
      %2043 = vmatmul.mubr.bf16.gmra.mxu0 %v1930
      %v2044 = vpop.f32.mrf.mxu0
      %v2045 = vadd.f32 0.0, %v2044
      %v2046 = vpop.f32.mrf.mxu0
      %v2047 = vpop.f32.mrf.mxu0
      %v2048 = vadd.f32 0.0, %v2047
      %v2049 = vpop.f32.mrf.mxu0
      %2050 = vmatprep.mubr.bf16.mxu0 0
      %2051 = vmatmul.mubr.bf16.gmra.mxu0 %v1933
      %v2052 = vpop.f32.mrf.mxu0
      %v2053 = vadd.f32 0.0, %v2052
      %v2054 = vpop.f32.mrf.mxu0
      %v2055 = vpop.f32.mrf.mxu0
      %v2056 = vadd.f32 0.0, %v2055
      %v2057 = vpop.f32.mrf.mxu0
      %2058 = vmatprep.mubr.bf16.mxu0 0
      %2059 = vmatmul.mubr.bf16.gmra.mxu0 %v1936
      %v2060 = vpop.f32.mrf.mxu0
      %v2061 = vadd.f32 0.0, %v2060
      %v2062 = vpop.f32.mrf.mxu0
      %v2063 = vpop.f32.mrf.mxu0
      %v2064 = vadd.f32 0.0, %v2063
      %v2065 = vpop.f32.mrf.mxu0
      %2066 = vmatprep.mubr.bf16.mxu0 0
      %2067 = vmatmul.mubr.bf16.gmra.mxu0 %v1939
      %v2068 = vpop.f32.mrf.mxu0
      %v2069 = vadd.f32 0.0, %v2068
      %v2070 = vpop.f32.mrf.mxu0
      %v2071 = vpop.f32.mrf.mxu0
      %v2072 = vadd.f32 0.0, %v2071
      %v2073 = vpop.f32.mrf.mxu0
      %2074 = vmatprep.mubr.bf16.mxu0 0
      %2075 = vmatmul.mubr.bf16.gmra.mxu0 %v1942
      %v2076 = vpop.f32.mrf.mxu0
      %v2077 = vadd.f32 0.0, %v2076
      %v2078 = vpop.f32.mrf.mxu0
      %v2079 = vpop.f32.mrf.mxu0
      %v2080 = vadd.f32 0.0, %v2079
      %v2081 = vpop.f32.mrf.mxu0
      %2082 = vmatprep.mubr.bf16.mxu0 0
      %2083 = vmatmul.mubr.bf16.gmra.mxu0 %v1945
      %v2084 = vpop.f32.mrf.mxu0
      %v2085 = vadd.f32 0.0, %v2084
      %v2086 = vpop.f32.mrf.mxu0
      %v2087 = vpop.f32.mrf.mxu0
      %v2088 = vadd.f32 0.0, %v2087
      %v2089 = vpop.f32.mrf.mxu0
      %2090 = vmatprep.mubr.bf16.mxu0 0
      %2091 = vmatmul.mubr.bf16.gmra.mxu0 %v1948
      %v2092 = vpop.f32.mrf.mxu0
      %v2093 = vadd.f32 0.0, %v2092
      %v2094 = vpop.f32.mrf.mxu0
      %v2095 = vpop.f32.mrf.mxu0
      %v2096 = vadd.f32 0.0, %v2095
      %v2097 = vpop.f32.mrf.mxu0
      %2098 = vmatprep.mubr.bf16.mxu0 0
      %2099 = vmatmul.mubr.bf16.gmra.mxu0 %v1951
      %v2100 = vpop.f32.mrf.mxu0
      %v2101 = vadd.f32 0.0, %v2100
      %v2102 = vpop.f32.mrf.mxu0
      %v2103 = vpop.f32.mrf.mxu0
      %v2104 = vadd.f32 0.0, %v2103
      %v2105 = vpop.f32.mrf.mxu0
      %2106 = vmatprep.mubr.bf16.mxu0 0
      %2107 = vmatmul.mubr.bf16.gmra.mxu0 %v1954
      %v2108 = vpop.f32.mrf.mxu0
      %v2109 = vadd.f32 0.0, %v2108
      %v2110 = vpop.f32.mrf.mxu0
      %v2111 = vpop.f32.mrf.mxu0
      %v2112 = vadd.f32 0.0, %v2111
      %v2113 = vpop.f32.mrf.mxu0
      %2114 = vmatprep.mubr.bf16.mxu0 0
      %2115 = vmatmul.mubr.bf16.gmra.mxu0 %v1957
      %v2116 = vpop.f32.mrf.mxu0
      %v2117 = vadd.f32 0.0, %v2116
      %v2118 = vpop.f32.mrf.mxu0
      %v2119 = vpop.f32.mrf.mxu0
      %v2120 = vadd.f32 0.0, %v2119
      %v2121 = vpop.f32.mrf.mxu0
      %2122 = vdwg.mxu0
      %v2123 = vadd.f32 %v1829, %v1997
      %v2124 = vadd.f32 %v1830, %v2000
      %v2125 = vadd.f32 %v1831, %v2005
      %v2126 = vadd.f32 %v1832, %v2008
      %v2127 = vadd.f32 %v1833, %v2013
      %v2128 = vadd.f32 %v1834, %v2016
      %v2129 = vadd.f32 %v1835, %v2021
      %v2130 = vadd.f32 %v1836, %v2024
      %v2131 = vadd.f32 %v1837, %v2029
      %v2132 = vadd.f32 %v1838, %v2032
      %v2133 = vadd.f32 %v1839, %v2037
      %v2134 = vadd.f32 %v1840, %v2040
      %v2135 = vadd.f32 %v1841, %v2045
      %v2136 = vadd.f32 %v1842, %v2048
      %v2137 = vadd.f32 %v1843, %v2053
      %v2138 = vadd.f32 %v1844, %v2056
      %v2139 = vadd.f32 %v1845, %v2061
      %v2140 = vadd.f32 %v1846, %v2064
      %v2141 = vadd.f32 %v1847, %v2069
      %v2142 = vadd.f32 %v1848, %v2072
      %v2143 = vadd.f32 %v1849, %v2077
      %v2144 = vadd.f32 %v1850, %v2080
      %v2145 = vadd.f32 %v1851, %v2085
      %v2146 = vadd.f32 %v1852, %v2088
      %v2147 = vadd.f32 %v1853, %v2093
      %v2148 = vadd.f32 %v1854, %v2096
      %v2149 = vadd.f32 %v1855, %v2101
      %v2150 = vadd.f32 %v1856, %v2104
      %v2151 = vadd.f32 %v1857, %v2109
      %v2152 = vadd.f32 %v1858, %v2112
      %v2153 = vadd.f32 %v1859, %v2117
      %v2154 = vadd.f32 %v1860, %v2120
      %s2155 = scalar_lea.vmem [#allocation2], 48
      %v2156 = vld [vmem:[%s2155] sm:$0xff]
      %v2157 = vld [vmem:[%s2155 + $0x8] sm:$0xff]
      %v2158 = vld [vmem:[%s2155 + $0x18] sm:$0xff]
      %v2159 = vld [vmem:[%s2155 + $0x20] sm:$0xff]
      %v2160 = vld [vmem:[%s2155 + $0x30] sm:$0xff]
      %v2161 = vld [vmem:[%s2155 + $0x38] sm:$0xff]
      %v2162 = vld [vmem:[%s2155 + $0x48] sm:$0xff]
      %v2163 = vld [vmem:[%s2155 + $0x50] sm:$0xff]
      %v2164 = vld [vmem:[%s2155 + $0x60] sm:$0xff]
      %v2165 = vld [vmem:[%s2155 + $0x68] sm:$0xff]
      %v2166 = vld [vmem:[%s2155 + $0x78] sm:$0xff]
      %v2167 = vld [vmem:[%s2155 + $0x80] sm:$0xff]
      %v2168 = vld [vmem:[%s2155 + $0x90] sm:$0xff]
      %v2169 = vld [vmem:[%s2155 + $0x98] sm:$0xff]
      %v2170 = vld [vmem:[%s2155 + $0xa8] sm:$0xff]
      %v2171 = vld [vmem:[%s2155 + $0xb0] sm:$0xff]
      %v2172 = vld [vmem:[%s2155 + $0xc0] sm:$0xff]
      %v2173 = vld [vmem:[%s2155 + $0xc8] sm:$0xff]
      %v2174 = vld [vmem:[%s2155 + $0xd8] sm:$0xff]
      %v2175 = vld [vmem:[%s2155 + $0xe0] sm:$0xff]
      %v2176 = vld [vmem:[%s2155 + $0xf0] sm:$0xff]
      %v2177 = vld [vmem:[%s2155 + $0xf8] sm:$0xff]
      %v2178 = vld [vmem:[%s2155 + $0x108] sm:$0xff]
      %v2179 = vld [vmem:[%s2155 + $0x110] sm:$0xff]
      %v2180 = vld [vmem:[%s2155 + $0x120] sm:$0xff]
      %v2181 = vld [vmem:[%s2155 + $0x128] sm:$0xff]
      %v2182 = vld [vmem:[%s2155 + $0x138] sm:$0xff]
      %v2183 = vld [vmem:[%s2155 + $0x140] sm:$0xff]
      %v2184 = vld [vmem:[%s2155 + $0x150] sm:$0xff]
      %v2185 = vld [vmem:[%s2155 + $0x158] sm:$0xff]
      %v2186 = vld [vmem:[%s2155 + $0x168] sm:$0xff]
      %v2187 = vld [vmem:[%s2155 + $0x170] sm:$0xff]
      %v2188 = vpack.c.bf16 %v2157, %v2156
      %v2189 = vpack.c.bf16 %v2159, %v2158
      %v2190 = vpack.c.bf16 %v2161, %v2160
      %v2191 = vpack.c.bf16 %v2163, %v2162
      %v2192 = vpack.c.bf16 %v2165, %v2164
      %v2193 = vpack.c.bf16 %v2167, %v2166
      %v2194 = vpack.c.bf16 %v2169, %v2168
      %v2195 = vpack.c.bf16 %v2171, %v2170
      %v2196 = vpack.c.bf16 %v2173, %v2172
      %v2197 = vpack.c.bf16 %v2175, %v2174
      %v2198 = vpack.c.bf16 %v2177, %v2176
      %v2199 = vpack.c.bf16 %v2179, %v2178
      %v2200 = vpack.c.bf16 %v2181, %v2180
      %v2201 = vpack.c.bf16 %v2183, %v2182
      %v2202 = vpack.c.bf16 %v2185, %v2184
      %v2203 = vpack.c.bf16 %v2187, %v2186
      %s2204 = scalar_lea.vmem %s1, 12
      %v2205 = vld [vmem:[%s2204] sm:$0x3]
      %v2207 = vsel %vm366, %v2188, 0
      %v2210 = vsel %vm366, %v2189, 0
      %v2213 = vsel %vm366, %v2190, 0
      %v2216 = vsel %vm366, %v2191, 0
      %v2219 = vsel %vm366, %v2192, 0
      %v2222 = vsel %vm366, %v2193, 0
      %v2225 = vsel %vm366, %v2194, 0
      %v2228 = vsel %vm366, %v2195, 0
      %v2231 = vsel %vm366, %v2196, 0
      %v2234 = vsel %vm366, %v2197, 0
      %v2237 = vsel %vm366, %v2198, 0
      %v2240 = vsel %vm366, %v2199, 0
      %v2243 = vsel %vm366, %v2200, 0
      %v2246 = vsel %vm366, %v2201, 0
      %v2249 = vsel %vm366, %v2202, 0
      %v2252 = vsel %vm366, %v2203, 0
      %v2255 = vsel %vm602, %v2205, 0
      %2257 = vmatprep.subr.bf16.mxu0 0
      %2258 = vmatpush1.bf16.msra.mxu0 0
      %2259 = vmatprep.subr.bf16.mxu0 0
      %2260 = vmatpush1.bf16.msra.mxu0 0
      %2261 = vmatprep.subr.bf16.mxu0 0
      %2262 = vmatpush1.bf16.msra.mxu0 0
      %2263 = vmatprep.subr.bf16.mxu0 0
      %2264 = vmatpush1.bf16.msra.mxu0 0
      %2265 = vmatprep.subr.bf16.mxu0 0
      %2266 = vmatpush1.bf16.msra.mxu0 0
      %2267 = vmatprep.subr.bf16.mxu0 0
      %2268 = vmatpush1.bf16.msra.mxu0 0
      %2269 = vmatprep.subr.bf16.mxu0 0
      %2270 = vmatpush1.bf16.msra.mxu0 0
      %2271 = vmatprep.subr.bf16.mxu0 0
      %2272 = vmatpush1.bf16.msra.mxu0 %v2255
      %2273 = vmatprep.subr.bf16.mxu0 0
      %2274 = vmatpush2.bf16.msra.mxu0 0
      %2275 = vmatprep.subr.bf16.mxu0 0
      %2276 = vmatpush2.bf16.msra.mxu0 0
      %2277 = vmatprep.subr.bf16.mxu0 0
      %2278 = vmatpush2.bf16.msra.mxu0 0
      %2279 = vmatprep.subr.bf16.mxu0 0
      %2280 = vmatpush2.bf16.msra.mxu0 0
      %2281 = vmatprep.subr.bf16.mxu0 0
      %2282 = vmatpush2.bf16.msra.mxu0 0
      %2283 = vmatprep.subr.bf16.mxu0 0
      %2284 = vmatpush2.bf16.msra.mxu0 0
      %2285 = vmatprep.subr.bf16.mxu0 0
      %2286 = vmatpush2.bf16.msra.mxu0 0
      %2287 = vmatprep.subr.bf16.mxu0 0
      %2288 = vmatpush2.bf16.msra.mxu0 0
      %2289 = vmatprep.mubr.bf16.mxu0 0
      %2290 = vmatmul.mubr.bf16.gmra.mxu0 %v2207
      %v2291 = vpop.f32.mrf.mxu0
      %v2292 = vadd.f32 0.0, %v2291
      %v2293 = vpop.f32.mrf.mxu0
      %v2294 = vpop.f32.mrf.mxu0
      %v2295 = vadd.f32 0.0, %v2294
      %v2296 = vpop.f32.mrf.mxu0
      %2297 = vmatprep.mubr.bf16.mxu0 0
      %2298 = vmatmul.mubr.bf16.gmra.mxu0 %v2210
      %v2299 = vpop.f32.mrf.mxu0
      %v2300 = vadd.f32 0.0, %v2299
      %v2301 = vpop.f32.mrf.mxu0
      %v2302 = vpop.f32.mrf.mxu0
      %v2303 = vadd.f32 0.0, %v2302
      %v2304 = vpop.f32.mrf.mxu0
      %2305 = vmatprep.mubr.bf16.mxu0 0
      %2306 = vmatmul.mubr.bf16.gmra.mxu0 %v2213
      %v2307 = vpop.f32.mrf.mxu0
      %v2308 = vadd.f32 0.0, %v2307
      %v2309 = vpop.f32.mrf.mxu0
      %v2310 = vpop.f32.mrf.mxu0
      %v2311 = vadd.f32 0.0, %v2310
      %v2312 = vpop.f32.mrf.mxu0
      %2313 = vmatprep.mubr.bf16.mxu0 0
      %2314 = vmatmul.mubr.bf16.gmra.mxu0 %v2216
      %v2315 = vpop.f32.mrf.mxu0
      %v2316 = vadd.f32 0.0, %v2315
      %v2317 = vpop.f32.mrf.mxu0
      %v2318 = vpop.f32.mrf.mxu0
      %v2319 = vadd.f32 0.0, %v2318
      %v2320 = vpop.f32.mrf.mxu0
      %2321 = vmatprep.mubr.bf16.mxu0 0
      %2322 = vmatmul.mubr.bf16.gmra.mxu0 %v2219
      %v2323 = vpop.f32.mrf.mxu0
      %v2324 = vadd.f32 0.0, %v2323
      %v2325 = vpop.f32.mrf.mxu0
      %v2326 = vpop.f32.mrf.mxu0
      %v2327 = vadd.f32 0.0, %v2326
      %v2328 = vpop.f32.mrf.mxu0
      %2329 = vmatprep.mubr.bf16.mxu0 0
      %2330 = vmatmul.mubr.bf16.gmra.mxu0 %v2222
      %v2331 = vpop.f32.mrf.mxu0
      %v2332 = vadd.f32 0.0, %v2331
      %v2333 = vpop.f32.mrf.mxu0
      %v2334 = vpop.f32.mrf.mxu0
      %v2335 = vadd.f32 0.0, %v2334
      %v2336 = vpop.f32.mrf.mxu0
      %2337 = vmatprep.mubr.bf16.mxu0 0
      %2338 = vmatmul.mubr.bf16.gmra.mxu0 %v2225
      %v2339 = vpop.f32.mrf.mxu0
      %v2340 = vadd.f32 0.0, %v2339
      %v2341 = vpop.f32.mrf.mxu0
      %v2342 = vpop.f32.mrf.mxu0
      %v2343 = vadd.f32 0.0, %v2342
      %v2344 = vpop.f32.mrf.mxu0
      %2345 = vmatprep.mubr.bf16.mxu0 0
      %2346 = vmatmul.mubr.bf16.gmra.mxu0 %v2228
      %v2347 = vpop.f32.mrf.mxu0
      %v2348 = vadd.f32 0.0, %v2347
      %v2349 = vpop.f32.mrf.mxu0
      %v2350 = vpop.f32.mrf.mxu0
      %v2351 = vadd.f32 0.0, %v2350
      %v2352 = vpop.f32.mrf.mxu0
      %2353 = vmatprep.mubr.bf16.mxu0 0
      %2354 = vmatmul.mubr.bf16.gmra.mxu0 %v2231
      %v2355 = vpop.f32.mrf.mxu0
      %v2356 = vadd.f32 0.0, %v2355
      %v2357 = vpop.f32.mrf.mxu0
      %v2358 = vpop.f32.mrf.mxu0
      %v2359 = vadd.f32 0.0, %v2358
      %v2360 = vpop.f32.mrf.mxu0
      %2361 = vmatprep.mubr.bf16.mxu0 0
      %2362 = vmatmul.mubr.bf16.gmra.mxu0 %v2234
      %v2363 = vpop.f32.mrf.mxu0
      %v2364 = vadd.f32 0.0, %v2363
      %v2365 = vpop.f32.mrf.mxu0
      %v2366 = vpop.f32.mrf.mxu0
      %v2367 = vadd.f32 0.0, %v2366
      %v2368 = vpop.f32.mrf.mxu0
      %2369 = vmatprep.mubr.bf16.mxu0 0
      %2370 = vmatmul.mubr.bf16.gmra.mxu0 %v2237
      %v2371 = vpop.f32.mrf.mxu0
      %v2372 = vadd.f32 0.0, %v2371
      %v2373 = vpop.f32.mrf.mxu0
      %v2374 = vpop.f32.mrf.mxu0
      %v2375 = vadd.f32 0.0, %v2374
      %v2376 = vpop.f32.mrf.mxu0
      %2377 = vmatprep.mubr.bf16.mxu0 0
      %2378 = vmatmul.mubr.bf16.gmra.mxu0 %v2240
      %v2379 = vpop.f32.mrf.mxu0
      %v2380 = vadd.f32 0.0, %v2379
      %v2381 = vpop.f32.mrf.mxu0
      %v2382 = vpop.f32.mrf.mxu0
      %v2383 = vadd.f32 0.0, %v2382
      %v2384 = vpop.f32.mrf.mxu0
      %2385 = vmatprep.mubr.bf16.mxu0 0
      %2386 = vmatmul.mubr.bf16.gmra.mxu0 %v2243
      %v2387 = vpop.f32.mrf.mxu0
      %v2388 = vadd.f32 0.0, %v2387
      %v2389 = vpop.f32.mrf.mxu0
      %v2390 = vpop.f32.mrf.mxu0
      %v2391 = vadd.f32 0.0, %v2390
      %v2392 = vpop.f32.mrf.mxu0
      %2393 = vmatprep.mubr.bf16.mxu0 0
      %2394 = vmatmul.mubr.bf16.gmra.mxu0 %v2246
      %v2395 = vpop.f32.mrf.mxu0
      %v2396 = vadd.f32 0.0, %v2395
      %v2397 = vpop.f32.mrf.mxu0
      %v2398 = vpop.f32.mrf.mxu0
      %v2399 = vadd.f32 0.0, %v2398
      %v2400 = vpop.f32.mrf.mxu0
      %2401 = vmatprep.mubr.bf16.mxu0 0
      %2402 = vmatmul.mubr.bf16.gmra.mxu0 %v2249
      %v2403 = vpop.f32.mrf.mxu0
      %v2404 = vadd.f32 0.0, %v2403
      %v2405 = vpop.f32.mrf.mxu0
      %v2406 = vpop.f32.mrf.mxu0
      %v2407 = vadd.f32 0.0, %v2406
      %v2408 = vpop.f32.mrf.mxu0
      %2409 = vmatprep.mubr.bf16.mxu0 0
      %2410 = vmatmul.mubr.bf16.gmra.mxu0 %v2252
      %v2411 = vpop.f32.mrf.mxu0
      %v2412 = vadd.f32 0.0, %v2411
      %v2413 = vpop.f32.mrf.mxu0
      %v2414 = vpop.f32.mrf.mxu0
      %v2415 = vadd.f32 0.0, %v2414
      %v2416 = vpop.f32.mrf.mxu0
      %2417 = vdwg.mxu0
      %v2418 = vadd.f32 %v2123, %v2292
      %v2419 = vadd.f32 %v2124, %v2295
      %v2420 = vadd.f32 %v2125, %v2300
      %v2421 = vadd.f32 %v2126, %v2303
      %v2422 = vadd.f32 %v2127, %v2308
      %v2423 = vadd.f32 %v2128, %v2311
      %v2424 = vadd.f32 %v2129, %v2316
      %v2425 = vadd.f32 %v2130, %v2319
      %v2426 = vadd.f32 %v2131, %v2324
      %v2427 = vadd.f32 %v2132, %v2327
      %v2428 = vadd.f32 %v2133, %v2332
      %v2429 = vadd.f32 %v2134, %v2335
      %v2430 = vadd.f32 %v2135, %v2340
      %v2431 = vadd.f32 %v2136, %v2343
      %v2432 = vadd.f32 %v2137, %v2348
      %v2433 = vadd.f32 %v2138, %v2351
      %v2434 = vadd.f32 %v2139, %v2356
      %v2435 = vadd.f32 %v2140, %v2359
      %v2436 = vadd.f32 %v2141, %v2364
      %v2437 = vadd.f32 %v2142, %v2367
      %v2438 = vadd.f32 %v2143, %v2372
      %v2439 = vadd.f32 %v2144, %v2375
      %v2440 = vadd.f32 %v2145, %v2380
      %v2441 = vadd.f32 %v2146, %v2383
      %v2442 = vadd.f32 %v2147, %v2388
      %v2443 = vadd.f32 %v2148, %v2391
      %v2444 = vadd.f32 %v2149, %v2396
      %v2445 = vadd.f32 %v2150, %v2399
      %v2446 = vadd.f32 %v2151, %v2404
      %v2447 = vadd.f32 %v2152, %v2407
      %v2448 = vadd.f32 %v2153, %v2412
      %v2449 = vadd.f32 %v2154, %v2415
      %v2450 = vld [vmem:[%s2155 + $0x1] sm:$0xff]
      %v2451 = vld [vmem:[%s2155 + $0x9] sm:$0xff]
      %v2452 = vld [vmem:[%s2155 + $0x19] sm:$0xff]
      %v2453 = vld [vmem:[%s2155 + $0x21] sm:$0xff]
      %v2454 = vld [vmem:[%s2155 + $0x31] sm:$0xff]
      %v2455 = vld [vmem:[%s2155 + $0x39] sm:$0xff]
      %v2456 = vld [vmem:[%s2155 + $0x49] sm:$0xff]
      %v2457 = vld [vmem:[%s2155 + $0x51] sm:$0xff]
      %v2458 = vld [vmem:[%s2155 + $0x61] sm:$0xff]
      %v2459 = vld [vmem:[%s2155 + $0x69] sm:$0xff]
      %v2460 = vld [vmem:[%s2155 + $0x79] sm:$0xff]
      %v2461 = vld [vmem:[%s2155 + $0x81] sm:$0xff]
      %v2462 = vld [vmem:[%s2155 + $0x91] sm:$0xff]
      %v2463 = vld [vmem:[%s2155 + $0x99] sm:$0xff]
      %v2464 = vld [vmem:[%s2155 + $0xa9] sm:$0xff]
      %v2465 = vld [vmem:[%s2155 + $0xb1] sm:$0xff]
      %v2466 = vld [vmem:[%s2155 + $0xc1] sm:$0xff]
      %v2467 = vld [vmem:[%s2155 + $0xc9] sm:$0xff]
      %v2468 = vld [vmem:[%s2155 + $0xd9] sm:$0xff]
      %v2469 = vld [vmem:[%s2155 + $0xe1] sm:$0xff]
      %v2470 = vld [vmem:[%s2155 + $0xf1] sm:$0xff]
      %v2471 = vld [vmem:[%s2155 + $0xf9] sm:$0xff]
      %v2472 = vld [vmem:[%s2155 + $0x109] sm:$0xff]
      %v2473 = vld [vmem:[%s2155 + $0x111] sm:$0xff]
      %v2474 = vld [vmem:[%s2155 + $0x121] sm:$0xff]
      %v2475 = vld [vmem:[%s2155 + $0x129] sm:$0xff]
      %v2476 = vld [vmem:[%s2155 + $0x139] sm:$0xff]
      %v2477 = vld [vmem:[%s2155 + $0x141] sm:$0xff]
      %v2478 = vld [vmem:[%s2155 + $0x151] sm:$0xff]
      %v2479 = vld [vmem:[%s2155 + $0x159] sm:$0xff]
      %v2480 = vld [vmem:[%s2155 + $0x169] sm:$0xff]
      %v2481 = vld [vmem:[%s2155 + $0x171] sm:$0xff]
      %v2482 = vpack.c.bf16 %v2451, %v2450
      %v2483 = vpack.c.bf16 %v2453, %v2452
      %v2484 = vpack.c.bf16 %v2455, %v2454
      %v2485 = vpack.c.bf16 %v2457, %v2456
      %v2486 = vpack.c.bf16 %v2459, %v2458
      %v2487 = vpack.c.bf16 %v2461, %v2460
      %v2488 = vpack.c.bf16 %v2463, %v2462
      %v2489 = vpack.c.bf16 %v2465, %v2464
      %v2490 = vpack.c.bf16 %v2467, %v2466
      %v2491 = vpack.c.bf16 %v2469, %v2468
      %v2492 = vpack.c.bf16 %v2471, %v2470
      %v2493 = vpack.c.bf16 %v2473, %v2472
      %v2494 = vpack.c.bf16 %v2475, %v2474
      %v2495 = vpack.c.bf16 %v2477, %v2476
      %v2496 = vpack.c.bf16 %v2479, %v2478
      %v2497 = vpack.c.bf16 %v2481, %v2480
      %s2498 = scalar_lea.vmem %s1, 14
      %v2499 = vld [vmem:[%s2498] sm:$0x3]
      %v2501 = vsel %vm366, %v2482, 0
      %v2504 = vsel %vm366, %v2483, 0
      %v2507 = vsel %vm366, %v2484, 0
      %v2510 = vsel %vm366, %v2485, 0
      %v2513 = vsel %vm366, %v2486, 0
      %v2516 = vsel %vm366, %v2487, 0
      %v2519 = vsel %vm366, %v2488, 0
      %v2522 = vsel %vm366, %v2489, 0
      %v2525 = vsel %vm366, %v2490, 0
      %v2528 = vsel %vm366, %v2491, 0
      %v2531 = vsel %vm366, %v2492, 0
      %v2534 = vsel %vm366, %v2493, 0
      %v2537 = vsel %vm366, %v2494, 0
      %v2540 = vsel %vm366, %v2495, 0
      %v2543 = vsel %vm366, %v2496, 0
      %v2546 = vsel %vm366, %v2497, 0
      %v2549 = vsel %vm602, %v2499, 0
      %2551 = vmatprep.subr.bf16.mxu0 0
      %2552 = vmatpush1.bf16.msra.mxu0 0
      %2553 = vmatprep.subr.bf16.mxu0 0
      %2554 = vmatpush1.bf16.msra.mxu0 0
      %2555 = vmatprep.subr.bf16.mxu0 0
      %2556 = vmatpush1.bf16.msra.mxu0 0
      %2557 = vmatprep.subr.bf16.mxu0 0
      %2558 = vmatpush1.bf16.msra.mxu0 0
      %2559 = vmatprep.subr.bf16.mxu0 0
      %2560 = vmatpush1.bf16.msra.mxu0 0
      %2561 = vmatprep.subr.bf16.mxu0 0
      %2562 = vmatpush1.bf16.msra.mxu0 0
      %2563 = vmatprep.subr.bf16.mxu0 0
      %2564 = vmatpush1.bf16.msra.mxu0 0
      %2565 = vmatprep.subr.bf16.mxu0 0
      %2566 = vmatpush1.bf16.msra.mxu0 %v2549
      %2567 = vmatprep.subr.bf16.mxu0 0
      %2568 = vmatpush2.bf16.msra.mxu0 0
      %2569 = vmatprep.subr.bf16.mxu0 0
      %2570 = vmatpush2.bf16.msra.mxu0 0
      %2571 = vmatprep.subr.bf16.mxu0 0
      %2572 = vmatpush2.bf16.msra.mxu0 0
      %2573 = vmatprep.subr.bf16.mxu0 0
      %2574 = vmatpush2.bf16.msra.mxu0 0
      %2575 = vmatprep.subr.bf16.mxu0 0
      %2576 = vmatpush2.bf16.msra.mxu0 0
      %2577 = vmatprep.subr.bf16.mxu0 0
      %2578 = vmatpush2.bf16.msra.mxu0 0
      %2579 = vmatprep.subr.bf16.mxu0 0
      %2580 = vmatpush2.bf16.msra.mxu0 0
      %2581 = vmatprep.subr.bf16.mxu0 0
      %2582 = vmatpush2.bf16.msra.mxu0 0
      %2583 = vmatprep.mubr.bf16.mxu0 0
      %2584 = vmatmul.mubr.bf16.gmra.mxu0 %v2501
      %v2585 = vpop.f32.mrf.mxu0
      %v2586 = vadd.f32 0.0, %v2585
      %v2587 = vpop.f32.mrf.mxu0
      %v2588 = vpop.f32.mrf.mxu0
      %v2589 = vadd.f32 0.0, %v2588
      %v2590 = vpop.f32.mrf.mxu0
      %2591 = vmatprep.mubr.bf16.mxu0 0
      %2592 = vmatmul.mubr.bf16.gmra.mxu0 %v2504
      %v2593 = vpop.f32.mrf.mxu0
      %v2594 = vadd.f32 0.0, %v2593
      %v2595 = vpop.f32.mrf.mxu0
      %v2596 = vpop.f32.mrf.mxu0
      %v2597 = vadd.f32 0.0, %v2596
      %v2598 = vpop.f32.mrf.mxu0
      %2599 = vmatprep.mubr.bf16.mxu0 0
      %2600 = vmatmul.mubr.bf16.gmra.mxu0 %v2507
      %v2601 = vpop.f32.mrf.mxu0
      %v2602 = vadd.f32 0.0, %v2601
      %v2603 = vpop.f32.mrf.mxu0
      %v2604 = vpop.f32.mrf.mxu0
      %v2605 = vadd.f32 0.0, %v2604
      %v2606 = vpop.f32.mrf.mxu0
      %2607 = vmatprep.mubr.bf16.mxu0 0
      %2608 = vmatmul.mubr.bf16.gmra.mxu0 %v2510
      %v2609 = vpop.f32.mrf.mxu0
      %v2610 = vadd.f32 0.0, %v2609
      %v2611 = vpop.f32.mrf.mxu0
      %v2612 = vpop.f32.mrf.mxu0
      %v2613 = vadd.f32 0.0, %v2612
      %v2614 = vpop.f32.mrf.mxu0
      %2615 = vmatprep.mubr.bf16.mxu0 0
      %2616 = vmatmul.mubr.bf16.gmra.mxu0 %v2513
      %v2617 = vpop.f32.mrf.mxu0
      %v2618 = vadd.f32 0.0, %v2617
      %v2619 = vpop.f32.mrf.mxu0
      %v2620 = vpop.f32.mrf.mxu0
      %v2621 = vadd.f32 0.0, %v2620
      %v2622 = vpop.f32.mrf.mxu0
      %2623 = vmatprep.mubr.bf16.mxu0 0
      %2624 = vmatmul.mubr.bf16.gmra.mxu0 %v2516
      %v2625 = vpop.f32.mrf.mxu0
      %v2626 = vadd.f32 0.0, %v2625
      %v2627 = vpop.f32.mrf.mxu0
      %v2628 = vpop.f32.mrf.mxu0
      %v2629 = vadd.f32 0.0, %v2628
      %v2630 = vpop.f32.mrf.mxu0
      %2631 = vmatprep.mubr.bf16.mxu0 0
      %2632 = vmatmul.mubr.bf16.gmra.mxu0 %v2519
      %v2633 = vpop.f32.mrf.mxu0
      %v2634 = vadd.f32 0.0, %v2633
      %v2635 = vpop.f32.mrf.mxu0
      %v2636 = vpop.f32.mrf.mxu0
      %v2637 = vadd.f32 0.0, %v2636
      %v2638 = vpop.f32.mrf.mxu0
      %2639 = vmatprep.mubr.bf16.mxu0 0
      %2640 = vmatmul.mubr.bf16.gmra.mxu0 %v2522
      %v2641 = vpop.f32.mrf.mxu0
      %v2642 = vadd.f32 0.0, %v2641
      %v2643 = vpop.f32.mrf.mxu0
      %v2644 = vpop.f32.mrf.mxu0
      %v2645 = vadd.f32 0.0, %v2644
      %v2646 = vpop.f32.mrf.mxu0
      %2647 = vmatprep.mubr.bf16.mxu0 0
      %2648 = vmatmul.mubr.bf16.gmra.mxu0 %v2525
      %v2649 = vpop.f32.mrf.mxu0
      %v2650 = vadd.f32 0.0, %v2649
      %v2651 = vpop.f32.mrf.mxu0
      %v2652 = vpop.f32.mrf.mxu0
      %v2653 = vadd.f32 0.0, %v2652
      %v2654 = vpop.f32.mrf.mxu0
      %2655 = vmatprep.mubr.bf16.mxu0 0
      %2656 = vmatmul.mubr.bf16.gmra.mxu0 %v2528
      %v2657 = vpop.f32.mrf.mxu0
      %v2658 = vadd.f32 0.0, %v2657
      %v2659 = vpop.f32.mrf.mxu0
      %v2660 = vpop.f32.mrf.mxu0
      %v2661 = vadd.f32 0.0, %v2660
      %v2662 = vpop.f32.mrf.mxu0
      %2663 = vmatprep.mubr.bf16.mxu0 0
      %2664 = vmatmul.mubr.bf16.gmra.mxu0 %v2531
      %v2665 = vpop.f32.mrf.mxu0
      %v2666 = vadd.f32 0.0, %v2665
      %v2667 = vpop.f32.mrf.mxu0
      %v2668 = vpop.f32.mrf.mxu0
      %v2669 = vadd.f32 0.0, %v2668
      %v2670 = vpop.f32.mrf.mxu0
      %2671 = vmatprep.mubr.bf16.mxu0 0
      %2672 = vmatmul.mubr.bf16.gmra.mxu0 %v2534
      %v2673 = vpop.f32.mrf.mxu0
      %v2674 = vadd.f32 0.0, %v2673
      %v2675 = vpop.f32.mrf.mxu0
      %v2676 = vpop.f32.mrf.mxu0
      %v2677 = vadd.f32 0.0, %v2676
      %v2678 = vpop.f32.mrf.mxu0
      %2679 = vmatprep.mubr.bf16.mxu0 0
      %2680 = vmatmul.mubr.bf16.gmra.mxu0 %v2537
      %v2681 = vpop.f32.mrf.mxu0
      %v2682 = vadd.f32 0.0, %v2681
      %v2683 = vpop.f32.mrf.mxu0
      %v2684 = vpop.f32.mrf.mxu0
      %v2685 = vadd.f32 0.0, %v2684
      %v2686 = vpop.f32.mrf.mxu0
      %2687 = vmatprep.mubr.bf16.mxu0 0
      %2688 = vmatmul.mubr.bf16.gmra.mxu0 %v2540
      %v2689 = vpop.f32.mrf.mxu0
      %v2690 = vadd.f32 0.0, %v2689
      %v2691 = vpop.f32.mrf.mxu0
      %v2692 = vpop.f32.mrf.mxu0
      %v2693 = vadd.f32 0.0, %v2692
      %v2694 = vpop.f32.mrf.mxu0
      %2695 = vmatprep.mubr.bf16.mxu0 0
      %2696 = vmatmul.mubr.bf16.gmra.mxu0 %v2543
      %v2697 = vpop.f32.mrf.mxu0
      %v2698 = vadd.f32 0.0, %v2697
      %v2699 = vpop.f32.mrf.mxu0
      %v2700 = vpop.f32.mrf.mxu0
      %v2701 = vadd.f32 0.0, %v2700
      %v2702 = vpop.f32.mrf.mxu0
      %2703 = vmatprep.mubr.bf16.mxu0 0
      %2704 = vmatmul.mubr.bf16.gmra.mxu0 %v2546
      %v2705 = vpop.f32.mrf.mxu0
      %v2706 = vadd.f32 0.0, %v2705
      %v2707 = vpop.f32.mrf.mxu0
      %v2708 = vpop.f32.mrf.mxu0
      %v2709 = vadd.f32 0.0, %v2708
      %v2710 = vpop.f32.mrf.mxu0
      %2711 = vdwg.mxu0
      %v2712 = vadd.f32 %v2418, %v2586
      %v2713 = vadd.f32 %v2419, %v2589
      %v2714 = vadd.f32 %v2420, %v2594
      %v2715 = vadd.f32 %v2421, %v2597
      %v2716 = vadd.f32 %v2422, %v2602
      %v2717 = vadd.f32 %v2423, %v2605
      %v2718 = vadd.f32 %v2424, %v2610
      %v2719 = vadd.f32 %v2425, %v2613
      %v2720 = vadd.f32 %v2426, %v2618
      %v2721 = vadd.f32 %v2427, %v2621
      %v2722 = vadd.f32 %v2428, %v2626
      %v2723 = vadd.f32 %v2429, %v2629
      %v2724 = vadd.f32 %v2430, %v2634
      %v2725 = vadd.f32 %v2431, %v2637
      %v2726 = vadd.f32 %v2432, %v2642
      %v2727 = vadd.f32 %v2433, %v2645
      %v2728 = vadd.f32 %v2434, %v2650
      %v2729 = vadd.f32 %v2435, %v2653
      %v2730 = vadd.f32 %v2436, %v2658
      %v2731 = vadd.f32 %v2437, %v2661
      %v2732 = vadd.f32 %v2438, %v2666
      %v2733 = vadd.f32 %v2439, %v2669
      %v2734 = vadd.f32 %v2440, %v2674
      %v2735 = vadd.f32 %v2441, %v2677
      %v2736 = vadd.f32 %v2442, %v2682
      %v2737 = vadd.f32 %v2443, %v2685
      %v2738 = vadd.f32 %v2444, %v2690
      %v2739 = vadd.f32 %v2445, %v2693
      %v2740 = vadd.f32 %v2446, %v2698
      %v2741 = vadd.f32 %v2447, %v2701
      %v2742 = vadd.f32 %v2448, %v2706
      %v2743 = vadd.f32 %v2449, %v2709
      %v2744 = vld [vmem:[%s2155 + $0x2] sm:$0xff]
      %v2745 = vld [vmem:[%s2155 + $0xa] sm:$0xff]
      %v2746 = vld [vmem:[%s2155 + $0x1a] sm:$0xff]
      %v2747 = vld [vmem:[%s2155 + $0x22] sm:$0xff]
      %v2748 = vld [vmem:[%s2155 + $0x32] sm:$0xff]
      %v2749 = vld [vmem:[%s2155 + $0x3a] sm:$0xff]
      %v2750 = vld [vmem:[%s2155 + $0x4a] sm:$0xff]
      %v2751 = vld [vmem:[%s2155 + $0x52] sm:$0xff]
      %v2752 = vld [vmem:[%s2155 + $0x62] sm:$0xff]
      %v2753 = vld [vmem:[%s2155 + $0x6a] sm:$0xff]
      %v2754 = vld [vmem:[%s2155 + $0x7a] sm:$0xff]
      %v2755 = vld [vmem:[%s2155 + $0x82] sm:$0xff]
      %v2756 = vld [vmem:[%s2155 + $0x92] sm:$0xff]
      %v2757 = vld [vmem:[%s2155 + $0x9a] sm:$0xff]
      %v2758 = vld [vmem:[%s2155 + $0xaa] sm:$0xff]
      %v2759 = vld [vmem:[%s2155 + $0xb2] sm:$0xff]
      %v2760 = vld [vmem:[%s2155 + $0xc2] sm:$0xff]
      %v2761 = vld [vmem:[%s2155 + $0xca] sm:$0xff]
      %v2762 = vld [vmem:[%s2155 + $0xda] sm:$0xff]
      %v2763 = vld [vmem:[%s2155 + $0xe2] sm:$0xff]
      %v2764 = vld [vmem:[%s2155 + $0xf2] sm:$0xff]
      %v2765 = vld [vmem:[%s2155 + $0xfa] sm:$0xff]
      %v2766 = vld [vmem:[%s2155 + $0x10a] sm:$0xff]
      %v2767 = vld [vmem:[%s2155 + $0x112] sm:$0xff]
      %v2768 = vld [vmem:[%s2155 + $0x122] sm:$0xff]
      %v2769 = vld [vmem:[%s2155 + $0x12a] sm:$0xff]
      %v2770 = vld [vmem:[%s2155 + $0x13a] sm:$0xff]
      %v2771 = vld [vmem:[%s2155 + $0x142] sm:$0xff]
      %v2772 = vld [vmem:[%s2155 + $0x152] sm:$0xff]
      %v2773 = vld [vmem:[%s2155 + $0x15a] sm:$0xff]
      %v2774 = vld [vmem:[%s2155 + $0x16a] sm:$0xff]
      %v2775 = vld [vmem:[%s2155 + $0x172] sm:$0xff]
      %v2776 = vpack.c.bf16 %v2745, %v2744
      %v2777 = vpack.c.bf16 %v2747, %v2746
      %v2778 = vpack.c.bf16 %v2749, %v2748
      %v2779 = vpack.c.bf16 %v2751, %v2750
      %v2780 = vpack.c.bf16 %v2753, %v2752
      %v2781 = vpack.c.bf16 %v2755, %v2754
      %v2782 = vpack.c.bf16 %v2757, %v2756
      %v2783 = vpack.c.bf16 %v2759, %v2758
      %v2784 = vpack.c.bf16 %v2761, %v2760
      %v2785 = vpack.c.bf16 %v2763, %v2762
      %v2786 = vpack.c.bf16 %v2765, %v2764
      %v2787 = vpack.c.bf16 %v2767, %v2766
      %v2788 = vpack.c.bf16 %v2769, %v2768
      %v2789 = vpack.c.bf16 %v2771, %v2770
      %v2790 = vpack.c.bf16 %v2773, %v2772
      %v2791 = vpack.c.bf16 %v2775, %v2774
      %s2792 = scalar_lea.vmem %s1, 16
      %v2793 = vld [vmem:[%s2792] sm:$0x3]
      %v2795 = vsel %vm366, %v2776, 0
      %v2798 = vsel %vm366, %v2777, 0
      %v2801 = vsel %vm366, %v2778, 0
      %v2804 = vsel %vm366, %v2779, 0
      %v2807 = vsel %vm366, %v2780, 0
      %v2810 = vsel %vm366, %v2781, 0
      %v2813 = vsel %vm366, %v2782, 0
      %v2816 = vsel %vm366, %v2783, 0
      %v2819 = vsel %vm366, %v2784, 0
      %v2822 = vsel %vm366, %v2785, 0
      %v2825 = vsel %vm366, %v2786, 0
      %v2828 = vsel %vm366, %v2787, 0
      %v2831 = vsel %vm366, %v2788, 0
      %v2834 = vsel %vm366, %v2789, 0
      %v2837 = vsel %vm366, %v2790, 0
      %v2840 = vsel %vm366, %v2791, 0
      %v2843 = vsel %vm602, %v2793, 0
      %2845 = vmatprep.subr.bf16.mxu0 0
      %2846 = vmatpush1.bf16.msra.mxu0 0
      %2847 = vmatprep.subr.bf16.mxu0 0
      %2848 = vmatpush1.bf16.msra.mxu0 0
      %2849 = vmatprep.subr.bf16.mxu0 0
      %2850 = vmatpush1.bf16.msra.mxu0 0
      %2851 = vmatprep.subr.bf16.mxu0 0
      %2852 = vmatpush1.bf16.msra.mxu0 0
      %2853 = vmatprep.subr.bf16.mxu0 0
      %2854 = vmatpush1.bf16.msra.mxu0 0
      %2855 = vmatprep.subr.bf16.mxu0 0
      %2856 = vmatpush1.bf16.msra.mxu0 0
      %2857 = vmatprep.subr.bf16.mxu0 0
      %2858 = vmatpush1.bf16.msra.mxu0 0
      %2859 = vmatprep.subr.bf16.mxu0 0
      %2860 = vmatpush1.bf16.msra.mxu0 %v2843
      %2861 = vmatprep.subr.bf16.mxu0 0
      %2862 = vmatpush2.bf16.msra.mxu0 0
      %2863 = vmatprep.subr.bf16.mxu0 0
      %2864 = vmatpush2.bf16.msra.mxu0 0
      %2865 = vmatprep.subr.bf16.mxu0 0
      %2866 = vmatpush2.bf16.msra.mxu0 0
      %2867 = vmatprep.subr.bf16.mxu0 0
      %2868 = vmatpush2.bf16.msra.mxu0 0
      %2869 = vmatprep.subr.bf16.mxu0 0
      %2870 = vmatpush2.bf16.msra.mxu0 0
      %2871 = vmatprep.subr.bf16.mxu0 0
      %2872 = vmatpush2.bf16.msra.mxu0 0
      %2873 = vmatprep.subr.bf16.mxu0 0
      %2874 = vmatpush2.bf16.msra.mxu0 0
      %2875 = vmatprep.subr.bf16.mxu0 0
      %2876 = vmatpush2.bf16.msra.mxu0 0
      %2877 = vmatprep.mubr.bf16.mxu0 0
      %2878 = vmatmul.mubr.bf16.gmra.mxu0 %v2795
      %v2879 = vpop.f32.mrf.mxu0
      %v2880 = vadd.f32 0.0, %v2879
      %v2881 = vpop.f32.mrf.mxu0
      %v2882 = vpop.f32.mrf.mxu0
      %v2883 = vadd.f32 0.0, %v2882
      %v2884 = vpop.f32.mrf.mxu0
      %2885 = vmatprep.mubr.bf16.mxu0 0
      %2886 = vmatmul.mubr.bf16.gmra.mxu0 %v2798
      %v2887 = vpop.f32.mrf.mxu0
      %v2888 = vadd.f32 0.0, %v2887
      %v2889 = vpop.f32.mrf.mxu0
      %v2890 = vpop.f32.mrf.mxu0
      %v2891 = vadd.f32 0.0, %v2890
      %v2892 = vpop.f32.mrf.mxu0
      %2893 = vmatprep.mubr.bf16.mxu0 0
      %2894 = vmatmul.mubr.bf16.gmra.mxu0 %v2801
      %v2895 = vpop.f32.mrf.mxu0
      %v2896 = vadd.f32 0.0, %v2895
      %v2897 = vpop.f32.mrf.mxu0
      %v2898 = vpop.f32.mrf.mxu0
      %v2899 = vadd.f32 0.0, %v2898
      %v2900 = vpop.f32.mrf.mxu0
      %2901 = vmatprep.mubr.bf16.mxu0 0
      %2902 = vmatmul.mubr.bf16.gmra.mxu0 %v2804
      %v2903 = vpop.f32.mrf.mxu0
      %v2904 = vadd.f32 0.0, %v2903
      %v2905 = vpop.f32.mrf.mxu0
      %v2906 = vpop.f32.mrf.mxu0
      %v2907 = vadd.f32 0.0, %v2906
      %v2908 = vpop.f32.mrf.mxu0
      %2909 = vmatprep.mubr.bf16.mxu0 0
      %2910 = vmatmul.mubr.bf16.gmra.mxu0 %v2807
      %v2911 = vpop.f32.mrf.mxu0
      %v2912 = vadd.f32 0.0, %v2911
      %v2913 = vpop.f32.mrf.mxu0
      %v2914 = vpop.f32.mrf.mxu0
      %v2915 = vadd.f32 0.0, %v2914
      %v2916 = vpop.f32.mrf.mxu0
      %2917 = vmatprep.mubr.bf16.mxu0 0
      %2918 = vmatmul.mubr.bf16.gmra.mxu0 %v2810
      %v2919 = vpop.f32.mrf.mxu0
      %v2920 = vadd.f32 0.0, %v2919
      %v2921 = vpop.f32.mrf.mxu0
      %v2922 = vpop.f32.mrf.mxu0
      %v2923 = vadd.f32 0.0, %v2922
      %v2924 = vpop.f32.mrf.mxu0
      %2925 = vmatprep.mubr.bf16.mxu0 0
      %2926 = vmatmul.mubr.bf16.gmra.mxu0 %v2813
      %v2927 = vpop.f32.mrf.mxu0
      %v2928 = vadd.f32 0.0, %v2927
      %v2929 = vpop.f32.mrf.mxu0
      %v2930 = vpop.f32.mrf.mxu0
      %v2931 = vadd.f32 0.0, %v2930
      %v2932 = vpop.f32.mrf.mxu0
      %2933 = vmatprep.mubr.bf16.mxu0 0
      %2934 = vmatmul.mubr.bf16.gmra.mxu0 %v2816
      %v2935 = vpop.f32.mrf.mxu0
      %v2936 = vadd.f32 0.0, %v2935
      %v2937 = vpop.f32.mrf.mxu0
      %v2938 = vpop.f32.mrf.mxu0
      %v2939 = vadd.f32 0.0, %v2938
      %v2940 = vpop.f32.mrf.mxu0
      %2941 = vmatprep.mubr.bf16.mxu0 0
      %2942 = vmatmul.mubr.bf16.gmra.mxu0 %v2819
      %v2943 = vpop.f32.mrf.mxu0
      %v2944 = vadd.f32 0.0, %v2943
      %v2945 = vpop.f32.mrf.mxu0
      %v2946 = vpop.f32.mrf.mxu0
      %v2947 = vadd.f32 0.0, %v2946
      %v2948 = vpop.f32.mrf.mxu0
      %2949 = vmatprep.mubr.bf16.mxu0 0
      %2950 = vmatmul.mubr.bf16.gmra.mxu0 %v2822
      %v2951 = vpop.f32.mrf.mxu0
      %v2952 = vadd.f32 0.0, %v2951
      %v2953 = vpop.f32.mrf.mxu0
      %v2954 = vpop.f32.mrf.mxu0
      %v2955 = vadd.f32 0.0, %v2954
      %v2956 = vpop.f32.mrf.mxu0
      %2957 = vmatprep.mubr.bf16.mxu0 0
      %2958 = vmatmul.mubr.bf16.gmra.mxu0 %v2825
      %v2959 = vpop.f32.mrf.mxu0
      %v2960 = vadd.f32 0.0, %v2959
      %v2961 = vpop.f32.mrf.mxu0
      %v2962 = vpop.f32.mrf.mxu0
      %v2963 = vadd.f32 0.0, %v2962
      %v2964 = vpop.f32.mrf.mxu0
      %2965 = vmatprep.mubr.bf16.mxu0 0
      %2966 = vmatmul.mubr.bf16.gmra.mxu0 %v2828
      %v2967 = vpop.f32.mrf.mxu0
      %v2968 = vadd.f32 0.0, %v2967
      %v2969 = vpop.f32.mrf.mxu0
      %v2970 = vpop.f32.mrf.mxu0
      %v2971 = vadd.f32 0.0, %v2970
      %v2972 = vpop.f32.mrf.mxu0
      %2973 = vmatprep.mubr.bf16.mxu0 0
      %2974 = vmatmul.mubr.bf16.gmra.mxu0 %v2831
      %v2975 = vpop.f32.mrf.mxu0
      %v2976 = vadd.f32 0.0, %v2975
      %v2977 = vpop.f32.mrf.mxu0
      %v2978 = vpop.f32.mrf.mxu0
      %v2979 = vadd.f32 0.0, %v2978
      %v2980 = vpop.f32.mrf.mxu0
      %2981 = vmatprep.mubr.bf16.mxu0 0
      %2982 = vmatmul.mubr.bf16.gmra.mxu0 %v2834
      %v2983 = vpop.f32.mrf.mxu0
      %v2984 = vadd.f32 0.0, %v2983
      %v2985 = vpop.f32.mrf.mxu0
      %v2986 = vpop.f32.mrf.mxu0
      %v2987 = vadd.f32 0.0, %v2986
      %v2988 = vpop.f32.mrf.mxu0
      %2989 = vmatprep.mubr.bf16.mxu0 0
      %2990 = vmatmul.mubr.bf16.gmra.mxu0 %v2837
      %v2991 = vpop.f32.mrf.mxu0
      %v2992 = vadd.f32 0.0, %v2991
      %v2993 = vpop.f32.mrf.mxu0
      %v2994 = vpop.f32.mrf.mxu0
      %v2995 = vadd.f32 0.0, %v2994
      %v2996 = vpop.f32.mrf.mxu0
      %2997 = vmatprep.mubr.bf16.mxu0 0
      %2998 = vmatmul.mubr.bf16.gmra.mxu0 %v2840
      %v2999 = vpop.f32.mrf.mxu0
      %v3000 = vadd.f32 0.0, %v2999
      %v3001 = vpop.f32.mrf.mxu0
      %v3002 = vpop.f32.mrf.mxu0
      %v3003 = vadd.f32 0.0, %v3002
      %v3004 = vpop.f32.mrf.mxu0
      %3005 = vdwg.mxu0
      %v3006 = vadd.f32 %v2712, %v2880
      %v3007 = vadd.f32 %v2713, %v2883
      %v3008 = vadd.f32 %v2714, %v2888
      %v3009 = vadd.f32 %v2715, %v2891
      %v3010 = vadd.f32 %v2716, %v2896
      %v3011 = vadd.f32 %v2717, %v2899
      %v3012 = vadd.f32 %v2718, %v2904
      %v3013 = vadd.f32 %v2719, %v2907
      %v3014 = vadd.f32 %v2720, %v2912
      %v3015 = vadd.f32 %v2721, %v2915
      %v3016 = vadd.f32 %v2722, %v2920
      %v3017 = vadd.f32 %v2723, %v2923
      %v3018 = vadd.f32 %v2724, %v2928
      %v3019 = vadd.f32 %v2725, %v2931
      %v3020 = vadd.f32 %v2726, %v2936
      %v3021 = vadd.f32 %v2727, %v2939
      %v3022 = vadd.f32 %v2728, %v2944
      %v3023 = vadd.f32 %v2729, %v2947
      %v3024 = vadd.f32 %v2730, %v2952
      %v3025 = vadd.f32 %v2731, %v2955
      %v3026 = vadd.f32 %v2732, %v2960
      %v3027 = vadd.f32 %v2733, %v2963
      %v3028 = vadd.f32 %v2734, %v2968
      %v3029 = vadd.f32 %v2735, %v2971
      %v3030 = vadd.f32 %v2736, %v2976
      %v3031 = vadd.f32 %v2737, %v2979
      %v3032 = vadd.f32 %v2738, %v2984
      %v3033 = vadd.f32 %v2739, %v2987
      %v3034 = vadd.f32 %v2740, %v2992
      %v3035 = vadd.f32 %v2741, %v2995
      %v3036 = vadd.f32 %v2742, %v3000
      %v3037 = vadd.f32 %v2743, %v3003
      %v3038 = vld [vmem:[%s5] sm:$0x1]
      %v3039 = vlaneseq
      %v3040 = vshrl.u32 %v3039, 7
      %v3041 = vsub.s32 0, %v3040
      %v3042 = vrot.slane %v3038, %v3041
      %v3043 = vmul.f32 %v3006, %v3042
      %v3044 = vmul.f32 %v3007, %v3042
      %v3045 = vmul.f32 %v3008, %v3042
      %v3046 = vmul.f32 %v3009, %v3042
      %v3047 = vmul.f32 %v3010, %v3042
      %v3048 = vmul.f32 %v3011, %v3042
      %v3049 = vmul.f32 %v3012, %v3042
      %v3050 = vmul.f32 %v3013, %v3042
      %v3051 = vmul.f32 %v3014, %v3042
      %v3052 = vmul.f32 %v3015, %v3042
      %v3053 = vmul.f32 %v3016, %v3042
      %v3054 = vmul.f32 %v3017, %v3042
      %v3055 = vmul.f32 %v3018, %v3042
      %v3056 = vmul.f32 %v3019, %v3042
      %v3057 = vmul.f32 %v3020, %v3042
      %v3058 = vmul.f32 %v3021, %v3042
      %v3059 = vmul.f32 %v3022, %v3042
      %v3060 = vmul.f32 %v3023, %v3042
      %v3061 = vmul.f32 %v3024, %v3042
      %v3062 = vmul.f32 %v3025, %v3042
      %v3063 = vmul.f32 %v3026, %v3042
      %v3064 = vmul.f32 %v3027, %v3042
      %v3065 = vmul.f32 %v3028, %v3042
      %v3066 = vmul.f32 %v3029, %v3042
      %v3067 = vmul.f32 %v3030, %v3042
      %v3068 = vmul.f32 %v3031, %v3042
      %v3069 = vmul.f32 %v3032, %v3042
      %v3070 = vmul.f32 %v3033, %v3042
      %v3071 = vmul.f32 %v3034, %v3042
      %v3072 = vmul.f32 %v3035, %v3042
      %v3073 = vmul.f32 %v3036, %v3042
      %v3074 = vmul.f32 %v3037, %v3042
      %v3075 = vld [vmem:[%s5 + $0x1] sm:$0x1]
      %v3076 = vlaneseq
      %v3077 = vshrl.u32 %v3076, 7
      %v3078 = vsub.s32 0, %v3077
      %v3079 = vrot.slane %v3075, %v3078
      %v3080 = vadd.f32 %v3043, %v3079
      %v3081 = vadd.f32 %v3044, %v3079
      %v3082 = vadd.f32 %v3045, %v3079
      %v3083 = vadd.f32 %v3046, %v3079
      %v3084 = vadd.f32 %v3047, %v3079
      %v3085 = vadd.f32 %v3048, %v3079
      %v3086 = vadd.f32 %v3049, %v3079
      %v3087 = vadd.f32 %v3050, %v3079
      %v3088 = vadd.f32 %v3051, %v3079
      %v3089 = vadd.f32 %v3052, %v3079
      %v3090 = vadd.f32 %v3053, %v3079
      %v3091 = vadd.f32 %v3054, %v3079
      %v3092 = vadd.f32 %v3055, %v3079
      %v3093 = vadd.f32 %v3056, %v3079
      %v3094 = vadd.f32 %v3057, %v3079
      %v3095 = vadd.f32 %v3058, %v3079
      %v3096 = vadd.f32 %v3059, %v3079
      %v3097 = vadd.f32 %v3060, %v3079
      %v3098 = vadd.f32 %v3061, %v3079
      %v3099 = vadd.f32 %v3062, %v3079
      %v3100 = vadd.f32 %v3063, %v3079
      %v3101 = vadd.f32 %v3064, %v3079
      %v3102 = vadd.f32 %v3065, %v3079
      %v3103 = vadd.f32 %v3066, %v3079
      %v3104 = vadd.f32 %v3067, %v3079
      %v3105 = vadd.f32 %v3068, %v3079
      %v3106 = vadd.f32 %v3069, %v3079
      %v3107 = vadd.f32 %v3070, %v3079
      %v3108 = vadd.f32 %v3071, %v3079
      %v3109 = vadd.f32 %v3072, %v3079
      %v3110 = vadd.f32 %v3073, %v3079
      %v3111 = vadd.f32 %v3074, %v3079
      %v3112 = vmax.f32 %v3080, 0.0
      %v3113 = vmax.f32 %v3081, 0.0
      %v3114 = vmax.f32 %v3082, 0.0
      %v3115 = vmax.f32 %v3083, 0.0
      %v3116 = vmax.f32 %v3084, 0.0
      %v3117 = vmax.f32 %v3085, 0.0
      %v3118 = vmax.f32 %v3086, 0.0
      %v3119 = vmax.f32 %v3087, 0.0
      %v3120 = vmax.f32 %v3088, 0.0
      %v3121 = vmax.f32 %v3089, 0.0
      %v3122 = vmax.f32 %v3090, 0.0
      %v3123 = vmax.f32 %v3091, 0.0
      %v3124 = vmax.f32 %v3092, 0.0
      %v3125 = vmax.f32 %v3093, 0.0
      %v3126 = vmax.f32 %v3094, 0.0
      %v3127 = vmax.f32 %v3095, 0.0
      %v3128 = vmax.f32 %v3096, 0.0
      %v3129 = vmax.f32 %v3097, 0.0
      %v3130 = vmax.f32 %v3098, 0.0
      %v3131 = vmax.f32 %v3099, 0.0
      %v3132 = vmax.f32 %v3100, 0.0
      %v3133 = vmax.f32 %v3101, 0.0
      %v3134 = vmax.f32 %v3102, 0.0
      %v3135 = vmax.f32 %v3103, 0.0
      %v3136 = vmax.f32 %v3104, 0.0
      %v3137 = vmax.f32 %v3105, 0.0
      %v3138 = vmax.f32 %v3106, 0.0
      %v3139 = vmax.f32 %v3107, 0.0
      %v3140 = vmax.f32 %v3108, 0.0
      %v3141 = vmax.f32 %v3109, 0.0
      %v3142 = vmax.f32 %v3110, 0.0
      %v3143 = vmax.f32 %v3111, 0.0
      %vm3144 = vcmask 523264
      %3145 = vst.msk [vmem:[#allocation3] sm:$0xff] %vm3144, 0.0
      %3146 = vst.msk [vmem:[#allocation3 + $0x8] sm:$0xff] %vm3144, 0.0
      %vm3147 = vcmask 517120
      %3148 = vst.msk [vmem:[#allocation3 + $0x10] sm:$0x3] %vm3147, 0.0
      %3149 = vst.msk [vmem:[#allocation3 + $0x18] sm:$0xff] %vm3144, 0.0
      %3150 = vst.msk [vmem:[#allocation3 + $0x20] sm:$0xff] %vm3144, 0.0
      %3151 = vst.msk [vmem:[#allocation3 + $0x28] sm:$0x3] %vm3147, 0.0
      %3152 = vst.msk [vmem:[#allocation3 + $0x30] sm:$0xff] %vm3144, 0.0
      %3153 = vst.msk [vmem:[#allocation3 + $0x38] sm:$0xff] %vm3144, 0.0
      %3154 = vst.msk [vmem:[#allocation3 + $0x40] sm:$0x3] %vm3147, 0.0
      %3155 = vst.msk [vmem:[#allocation3 + $0x48] sm:$0xff] %vm3144, 0.0
      %3156 = vst.msk [vmem:[#allocation3 + $0x50] sm:$0xff] %vm3144, 0.0
      %3157 = vst.msk [vmem:[#allocation3 + $0x58] sm:$0x3] %vm3147, 0.0
      %3158 = vst.msk [vmem:[#allocation3 + $0x60] sm:$0xff] %vm3144, 0.0
      %3159 = vst.msk [vmem:[#allocation3 + $0x68] sm:$0xff] %vm3144, 0.0
      %3160 = vst.msk [vmem:[#allocation3 + $0x70] sm:$0x3] %vm3147, 0.0
      %3161 = vst.msk [vmem:[#allocation3 + $0x78] sm:$0xff] %vm3144, 0.0
      %3162 = vst.msk [vmem:[#allocation3 + $0x80] sm:$0xff] %vm3144, 0.0
      %3163 = vst.msk [vmem:[#allocation3 + $0x88] sm:$0x3] %vm3147, 0.0
      %3164 = vst.msk [vmem:[#allocation3 + $0x90] sm:$0xff] %vm3144, 0.0
      %3165 = vst.msk [vmem:[#allocation3 + $0x98] sm:$0xff] %vm3144, 0.0
      %3166 = vst.msk [vmem:[#allocation3 + $0xa0] sm:$0x3] %vm3147, 0.0
      %3167 = vst.msk [vmem:[#allocation3 + $0xa8] sm:$0xff] %vm3144, 0.0
      %3168 = vst.msk [vmem:[#allocation3 + $0xb0] sm:$0xff] %vm3144, 0.0
      %3169 = vst.msk [vmem:[#allocation3 + $0xb8] sm:$0x3] %vm3147, 0.0
      %3170 = vst.msk [vmem:[#allocation3 + $0xc0] sm:$0xff] %vm3144, 0.0
      %3171 = vst.msk [vmem:[#allocation3 + $0xc8] sm:$0xff] %vm3144, 0.0
      %3172 = vst.msk [vmem:[#allocation3 + $0xd0] sm:$0x3] %vm3147, 0.0
      %3173 = vst.msk [vmem:[#allocation3 + $0xd8] sm:$0xff] %vm3144, 0.0
      %3174 = vst.msk [vmem:[#allocation3 + $0xe0] sm:$0xff] %vm3144, 0.0
      %3175 = vst.msk [vmem:[#allocation3 + $0xe8] sm:$0x3] %vm3147, 0.0
      %3176 = vst.msk [vmem:[#allocation3 + $0xf0] sm:$0xff] %vm3144, 0.0
      %3177 = vst.msk [vmem:[#allocation3 + $0xf8] sm:$0xff] %vm3144, 0.0
      %3178 = vst.msk [vmem:[#allocation3 + $0x100] sm:$0x3] %vm3147, 0.0
      %3179 = vst.msk [vmem:[#allocation3 + $0x108] sm:$0xff] %vm3144, 0.0
      %3180 = vst.msk [vmem:[#allocation3 + $0x110] sm:$0xff] %vm3144, 0.0
      %3181 = vst.msk [vmem:[#allocation3 + $0x118] sm:$0x3] %vm3147, 0.0
      %3182 = vst.msk [vmem:[#allocation3 + $0x120] sm:$0xff] %vm3144, 0.0
      %3183 = vst.msk [vmem:[#allocation3 + $0x128] sm:$0xff] %vm3144, 0.0
      %3184 = vst.msk [vmem:[#allocation3 + $0x130] sm:$0x3] %vm3147, 0.0
      %3185 = vst.msk [vmem:[#allocation3 + $0x138] sm:$0xff] %vm3144, 0.0
      %3186 = vst.msk [vmem:[#allocation3 + $0x140] sm:$0xff] %vm3144, 0.0
      %3187 = vst.msk [vmem:[#allocation3 + $0x148] sm:$0x3] %vm3147, 0.0
      %3188 = vst.msk [vmem:[#allocation3 + $0x150] sm:$0xff] %vm3144, 0.0
      %3189 = vst.msk [vmem:[#allocation3 + $0x158] sm:$0xff] %vm3144, 0.0
      %3190 = vst.msk [vmem:[#allocation3 + $0x160] sm:$0x3] %vm3147, 0.0
      %3191 = vst.msk [vmem:[#allocation3 + $0x168] sm:$0xff] %vm3144, 0.0
      %3192 = vst.msk [vmem:[#allocation3 + $0x170] sm:$0xff] %vm3144, 0.0
      %3193 = vst.msk [vmem:[#allocation3 + $0x178] sm:$0x3] %vm3147, 0.0
      %3194 = vst.msk [vmem:[#allocation3 + $0x180] sm:$0xff] %vm3144, 0.0
      %3195 = vst.msk [vmem:[#allocation3 + $0x188] sm:$0xff] %vm3144, 0.0
      %3196 = vst.msk [vmem:[#allocation3 + $0x190] sm:$0x3] %vm3147, 0.0
      %3197 = vst.msk [vmem:[#allocation3 + $0x198] sm:$0xff] %vm3144, 0.0
      %3198 = vst.msk [vmem:[#allocation3 + $0x1a0] sm:$0xff] %vm3144, 0.0
      %3199 = vst.msk [vmem:[#allocation3 + $0x1a8] sm:$0x3] %vm3147, 0.0
      %s3200 = scalar_lea.vmem [#allocation3], 24
      %3201 = vst.msk [vmem:[%s3200 + $0x1] sm:$0xff] %vm3144, %v3112
      %3202 = vst.msk [vmem:[%s3200 + $0x9] sm:$0xff] %vm3144, %v3113
      %3203 = vst.msk [vmem:[%s3200 + $0x19] sm:$0xff] %vm3144, %v3114
      %3204 = vst.msk [vmem:[%s3200 + $0x21] sm:$0xff] %vm3144, %v3115
      %3205 = vst.msk [vmem:[%s3200 + $0x31] sm:$0xff] %vm3144, %v3116
      %3206 = vst.msk [vmem:[%s3200 + $0x39] sm:$0xff] %vm3144, %v3117
      %3207 = vst.msk [vmem:[%s3200 + $0x49] sm:$0xff] %vm3144, %v3118
      %3208 = vst.msk [vmem:[%s3200 + $0x51] sm:$0xff] %vm3144, %v3119
      %3209 = vst.msk [vmem:[%s3200 + $0x61] sm:$0xff] %vm3144, %v3120
      %3210 = vst.msk [vmem:[%s3200 + $0x69] sm:$0xff] %vm3144, %v3121
      %3211 = vst.msk [vmem:[%s3200 + $0x79] sm:$0xff] %vm3144, %v3122
      %3212 = vst.msk [vmem:[%s3200 + $0x81] sm:$0xff] %vm3144, %v3123
      %3213 = vst.msk [vmem:[%s3200 + $0x91] sm:$0xff] %vm3144, %v3124
      %3214 = vst.msk [vmem:[%s3200 + $0x99] sm:$0xff] %vm3144, %v3125
      %3215 = vst.msk [vmem:[%s3200 + $0xa9] sm:$0xff] %vm3144, %v3126
      %3216 = vst.msk [vmem:[%s3200 + $0xb1] sm:$0xff] %vm3144, %v3127
      %3217 = vst.msk [vmem:[%s3200 + $0xc1] sm:$0xff] %vm3144, %v3128
      %3218 = vst.msk [vmem:[%s3200 + $0xc9] sm:$0xff] %vm3144, %v3129
      %3219 = vst.msk [vmem:[%s3200 + $0xd9] sm:$0xff] %vm3144, %v3130
      %3220 = vst.msk [vmem:[%s3200 + $0xe1] sm:$0xff] %vm3144, %v3131
      %3221 = vst.msk [vmem:[%s3200 + $0xf1] sm:$0xff] %vm3144, %v3132
      %3222 = vst.msk [vmem:[%s3200 + $0xf9] sm:$0xff] %vm3144, %v3133
      %3223 = vst.msk [vmem:[%s3200 + $0x109] sm:$0xff] %vm3144, %v3134
      %3224 = vst.msk [vmem:[%s3200 + $0x111] sm:$0xff] %vm3144, %v3135
      %3225 = vst.msk [vmem:[%s3200 + $0x121] sm:$0xff] %vm3144, %v3136
      %3226 = vst.msk [vmem:[%s3200 + $0x129] sm:$0xff] %vm3144, %v3137
      %3227 = vst.msk [vmem:[%s3200 + $0x139] sm:$0xff] %vm3144, %v3138
      %3228 = vst.msk [vmem:[%s3200 + $0x141] sm:$0xff] %vm3144, %v3139
      %3229 = vst.msk [vmem:[%s3200 + $0x151] sm:$0xff] %vm3144, %v3140
      %3230 = vst.msk [vmem:[%s3200 + $0x159] sm:$0xff] %vm3144, %v3141
      %3231 = vst.msk [vmem:[%s3200 + $0x169] sm:$0xff] %vm3144, %v3142
      %3232 = vst.msk [vmem:[%s3200 + $0x171] sm:$0xff] %vm3144, %v3143
      %v3233 = vld [vmem:[#allocation3] sm:$0xff]
      %v3234 = vld [vmem:[#allocation3 + $0x8] sm:$0xff]
      %v3235 = vld [vmem:[#allocation3 + $0x18] sm:$0xff]
      %v3236 = vld [vmem:[#allocation3 + $0x20] sm:$0xff]
      %v3237 = vld [vmem:[#allocation3 + $0x30] sm:$0xff]
      %v3238 = vld [vmem:[#allocation3 + $0x38] sm:$0xff]
      %v3239 = vld [vmem:[#allocation3 + $0x48] sm:$0xff]
      %v3240 = vld [vmem:[#allocation3 + $0x50] sm:$0xff]
      %v3241 = vld [vmem:[#allocation3 + $0x60] sm:$0xff]
      %v3242 = vld [vmem:[#allocation3 + $0x68] sm:$0xff]
      %v3243 = vld [vmem:[#allocation3 + $0x78] sm:$0xff]
      %v3244 = vld [vmem:[#allocation3 + $0x80] sm:$0xff]
      %v3245 = vld [vmem:[#allocation3 + $0x90] sm:$0xff]
      %v3246 = vld [vmem:[#allocation3 + $0x98] sm:$0xff]
      %v3247 = vld [vmem:[#allocation3 + $0xa8] sm:$0xff]
      %v3248 = vld [vmem:[#allocation3 + $0xb0] sm:$0xff]
      %v3249 = vld [vmem:[#allocation3 + $0xc0] sm:$0xff]
      %v3250 = vld [vmem:[#allocation3 + $0xc8] sm:$0xff]
      %v3251 = vld [vmem:[#allocation3 + $0xd8] sm:$0xff]
      %v3252 = vld [vmem:[#allocation3 + $0xe0] sm:$0xff]
      %v3253 = vld [vmem:[#allocation3 + $0xf0] sm:$0xff]
      %v3254 = vld [vmem:[#allocation3 + $0xf8] sm:$0xff]
      %v3255 = vld [vmem:[#allocation3 + $0x108] sm:$0xff]
      %v3256 = vld [vmem:[#allocation3 + $0x110] sm:$0xff]
      %v3257 = vld [vmem:[#allocation3 + $0x120] sm:$0xff]
      %v3258 = vld [vmem:[#allocation3 + $0x128] sm:$0xff]
      %v3259 = vld [vmem:[#allocation3 + $0x138] sm:$0xff]
      %v3260 = vld [vmem:[#allocation3 + $0x140] sm:$0xff]
      %v3261 = vld [vmem:[#allocation3 + $0x150] sm:$0xff]
      %v3262 = vld [vmem:[#allocation3 + $0x158] sm:$0xff]
      %v3263 = vld [vmem:[#allocation3 + $0x168] sm:$0xff]
      %v3264 = vld [vmem:[#allocation3 + $0x170] sm:$0xff]
      %v3265 = vpack.c.bf16 %v3234, %v3233
      %v3266 = vpack.c.bf16 %v3236, %v3235
      %v3267 = vpack.c.bf16 %v3238, %v3237
      %v3268 = vpack.c.bf16 %v3240, %v3239
      %v3269 = vpack.c.bf16 %v3242, %v3241
      %v3270 = vpack.c.bf16 %v3244, %v3243
      %v3271 = vpack.c.bf16 %v3246, %v3245
      %v3272 = vpack.c.bf16 %v3248, %v3247
      %v3273 = vpack.c.bf16 %v3250, %v3249
      %v3274 = vpack.c.bf16 %v3252, %v3251
      %v3275 = vpack.c.bf16 %v3254, %v3253
      %v3276 = vpack.c.bf16 %v3256, %v3255
      %v3277 = vpack.c.bf16 %v3258, %v3257
      %v3278 = vpack.c.bf16 %v3260, %v3259
      %v3279 = vpack.c.bf16 %v3262, %v3261
      %v3280 = vpack.c.bf16 %v3264, %v3263
      %v3281 = vld [vmem:[%s2] sm:$0xf]
      %v3282 = vld [vmem:[%s2 + $0x4] sm:$0xf]
      %v3283 = vld [vmem:[%s2 + $0x8] sm:$0xf]
      %v3284 = vld [vmem:[%s2 + $0xc] sm:$0xf]
      %v3285 = vld [vmem:[%s2 + $0x10] sm:$0xf]
      %v3286 = vld [vmem:[%s2 + $0x14] sm:$0xf]
      %v3287 = vld [vmem:[%s2 + $0x18] sm:$0xf]
      %v3288 = vld [vmem:[%s2 + $0x1c] sm:$0xf]
      %v3289 = vld [vmem:[#allocation3 + $0x1] sm:$0xff]
      %v3290 = vld [vmem:[#allocation3 + $0x9] sm:$0xff]
      %v3291 = vld [vmem:[#allocation3 + $0x19] sm:$0xff]
      %v3292 = vld [vmem:[#allocation3 + $0x21] sm:$0xff]
      %v3293 = vld [vmem:[#allocation3 + $0x31] sm:$0xff]
      %v3294 = vld [vmem:[#allocation3 + $0x39] sm:$0xff]
      %v3295 = vld [vmem:[#allocation3 + $0x49] sm:$0xff]
      %v3296 = vld [vmem:[#allocation3 + $0x51] sm:$0xff]
      %v3297 = vld [vmem:[#allocation3 + $0x61] sm:$0xff]
      %v3298 = vld [vmem:[#allocation3 + $0x69] sm:$0xff]
      %v3299 = vld [vmem:[#allocation3 + $0x79] sm:$0xff]
      %v3300 = vld [vmem:[#allocation3 + $0x81] sm:$0xff]
      %v3301 = vld [vmem:[#allocation3 + $0x91] sm:$0xff]
      %v3302 = vld [vmem:[#allocation3 + $0x99] sm:$0xff]
      %v3303 = vld [vmem:[#allocation3 + $0xa9] sm:$0xff]
      %v3304 = vld [vmem:[#allocation3 + $0xb1] sm:$0xff]
      %v3305 = vld [vmem:[#allocation3 + $0xc1] sm:$0xff]
      %v3306 = vld [vmem:[#allocation3 + $0xc9] sm:$0xff]
      %v3307 = vld [vmem:[#allocation3 + $0xd9] sm:$0xff]
      %v3308 = vld [vmem:[#allocation3 + $0xe1] sm:$0xff]
      %v3309 = vld [vmem:[#allocation3 + $0xf1] sm:$0xff]
      %v3310 = vld [vmem:[#allocation3 + $0xf9] sm:$0xff]
      %v3311 = vld [vmem:[#allocation3 + $0x109] sm:$0xff]
      %v3312 = vld [vmem:[#allocation3 + $0x111] sm:$0xff]
      %v3313 = vld [vmem:[#allocation3 + $0x121] sm:$0xff]
      %v3314 = vld [vmem:[#allocation3 + $0x129] sm:$0xff]
      %v3315 = vld [vmem:[#allocation3 + $0x139] sm:$0xff]
      %v3316 = vld [vmem:[#allocation3 + $0x141] sm:$0xff]
      %v3317 = vld [vmem:[#allocation3 + $0x151] sm:$0xff]
      %v3318 = vld [vmem:[#allocation3 + $0x159] sm:$0xff]
      %v3319 = vld [vmem:[#allocation3 + $0x169] sm:$0xff]
      %v3320 = vld [vmem:[#allocation3 + $0x171] sm:$0xff]
      %v3321 = vpack.c.bf16 %v3290, %v3289
      %v3322 = vpack.c.bf16 %v3292, %v3291
      %v3323 = vpack.c.bf16 %v3294, %v3293
      %v3324 = vpack.c.bf16 %v3296, %v3295
      %v3325 = vpack.c.bf16 %v3298, %v3297
      %v3326 = vpack.c.bf16 %v3300, %v3299
      %v3327 = vpack.c.bf16 %v3302, %v3301
      %v3328 = vpack.c.bf16 %v3304, %v3303
      %v3329 = vpack.c.bf16 %v3306, %v3305
      %v3330 = vpack.c.bf16 %v3308, %v3307
      %v3331 = vpack.c.bf16 %v3310, %v3309
      %v3332 = vpack.c.bf16 %v3312, %v3311
      %v3333 = vpack.c.bf16 %v3314, %v3313
      %v3334 = vpack.c.bf16 %v3316, %v3315
      %v3335 = vpack.c.bf16 %v3318, %v3317
      %v3336 = vpack.c.bf16 %v3320, %v3319
      %s3337 = scalar_lea.vmem %s2, 32
      %v3338 = vld [vmem:[%s3337] sm:$0xf]
      %v3339 = vld [vmem:[%s3337 + $0x4] sm:$0xf]
      %v3340 = vld [vmem:[%s3337 + $0x8] sm:$0xf]
      %v3341 = vld [vmem:[%s3337 + $0xc] sm:$0xf]
      %v3342 = vld [vmem:[%s3337 + $0x10] sm:$0xf]
      %v3343 = vld [vmem:[%s3337 + $0x14] sm:$0xf]
      %v3344 = vld [vmem:[%s3337 + $0x18] sm:$0xf]
      %v3345 = vld [vmem:[%s3337 + $0x1c] sm:$0xf]
      %v3354 = vunpack.c.l.b16 %v3338
      %v3355 = vunpack.c.l.b16 %v3339
      %v3356 = vunpack.c.l.b16 %v3340
      %v3357 = vunpack.c.l.b16 %v3341
      %v3358 = vunpack.c.l.b16 %v3342
      %v3359 = vunpack.c.l.b16 %v3343
      %v3360 = vunpack.c.l.b16 %v3344
      %v3361 = vunpack.c.l.b16 %v3345
      %v3362 = vpack.c.b16 %v3355, %v3354
      %v3363 = vpack.c.b16 %v3357, %v3356
      %v3364 = vpack.c.b16 %v3359, %v3358
      %v3365 = vpack.c.b16 %v3361, %v3360
      %v3371 = vsel %vm3144, %v3321, 0
      %v3374 = vsel %vm3144, %v3322, 0
      %v3377 = vsel %vm3144, %v3323, 0
      %v3380 = vsel %vm3144, %v3324, 0
      %v3383 = vsel %vm3144, %v3325, 0
      %v3386 = vsel %vm3144, %v3326, 0
      %v3389 = vsel %vm3144, %v3327, 0
      %v3392 = vsel %vm3144, %v3328, 0
      %v3395 = vsel %vm3144, %v3329, 0
      %v3398 = vsel %vm3144, %v3330, 0
      %v3401 = vsel %vm3144, %v3331, 0
      %v3404 = vsel %vm3144, %v3332, 0
      %v3407 = vsel %vm3144, %v3333, 0
      %v3410 = vsel %vm3144, %v3334, 0
      %v3413 = vsel %vm3144, %v3335, 0
      %v3416 = vsel %vm3144, %v3336, 0
      %3418 = vmatprep.subr.bf16.mxu0 0
      %3419 = vmatpush1.bf16.msra.mxu0 0
      %3420 = vmatprep.subr.bf16.mxu0 0
      %3421 = vmatpush1.bf16.msra.mxu0 0
      %3422 = vmatprep.subr.bf16.mxu0 0
      %3423 = vmatpush1.bf16.msra.mxu0 0
      %3424 = vmatprep.subr.bf16.mxu0 0
      %3425 = vmatpush1.bf16.msra.mxu0 0
      %3426 = vmatprep.subr.bf16.mxu0 0
      %3427 = vmatpush1.bf16.msra.mxu0 %v3365
      %3428 = vmatprep.subr.bf16.mxu0 0
      %3429 = vmatpush1.bf16.msra.mxu0 %v3364
      %3430 = vmatprep.subr.bf16.mxu0 0
      %3431 = vmatpush1.bf16.msra.mxu0 %v3363
      %3432 = vmatprep.subr.bf16.mxu0 0
      %3433 = vmatpush1.bf16.msra.mxu0 %v3362
      %3434 = vmatprep.subr.bf16.mxu0 0
      %3435 = vmatpush2.bf16.msra.mxu0 0
      %3436 = vmatprep.subr.bf16.mxu0 0
      %3437 = vmatpush2.bf16.msra.mxu0 0
      %3438 = vmatprep.subr.bf16.mxu0 0
      %3439 = vmatpush2.bf16.msra.mxu0 0
      %3440 = vmatprep.subr.bf16.mxu0 0
      %3441 = vmatpush2.bf16.msra.mxu0 0
      %3442 = vmatprep.subr.bf16.mxu0 0
      %3443 = vmatpush2.bf16.msra.mxu0 0
      %3444 = vmatprep.subr.bf16.mxu0 0
      %3445 = vmatpush2.bf16.msra.mxu0 0
      %3446 = vmatprep.subr.bf16.mxu0 0
      %3447 = vmatpush2.bf16.msra.mxu0 0
      %3448 = vmatprep.subr.bf16.mxu0 0
      %3449 = vmatpush2.bf16.msra.mxu0 0
      %3450 = vmatprep.mubr.bf16.mxu0 0
      %3451 = vmatmul.mubr.bf16.gmra.mxu0 %v3371
      %v3452 = vpop.f32.mrf.mxu0
      %v3453 = vadd.f32 0.0, %v3452
      %v3454 = vpop.f32.mrf.mxu0
      %v3455 = vpop.f32.mrf.mxu0
      %v3456 = vadd.f32 0.0, %v3455
      %v3457 = vpop.f32.mrf.mxu0
      %3458 = vmatprep.mubr.bf16.mxu0 0
      %3459 = vmatmul.mubr.bf16.gmra.mxu0 %v3374
      %v3460 = vpop.f32.mrf.mxu0
      %v3461 = vadd.f32 0.0, %v3460
      %v3462 = vpop.f32.mrf.mxu0
      %v3463 = vpop.f32.mrf.mxu0
      %v3464 = vadd.f32 0.0, %v3463
      %v3465 = vpop.f32.mrf.mxu0
      %3466 = vmatprep.mubr.bf16.mxu0 0
      %3467 = vmatmul.mubr.bf16.gmra.mxu0 %v3377
      %v3468 = vpop.f32.mrf.mxu0
      %v3469 = vadd.f32 0.0, %v3468
      %v3470 = vpop.f32.mrf.mxu0
      %v3471 = vpop.f32.mrf.mxu0
      %v3472 = vadd.f32 0.0, %v3471
      %v3473 = vpop.f32.mrf.mxu0
      %3474 = vmatprep.mubr.bf16.mxu0 0
      %3475 = vmatmul.mubr.bf16.gmra.mxu0 %v3380
      %v3476 = vpop.f32.mrf.mxu0
      %v3477 = vadd.f32 0.0, %v3476
      %v3478 = vpop.f32.mrf.mxu0
      %v3479 = vpop.f32.mrf.mxu0
      %v3480 = vadd.f32 0.0, %v3479
      %v3481 = vpop.f32.mrf.mxu0
      %3482 = vmatprep.mubr.bf16.mxu0 0
      %3483 = vmatmul.mubr.bf16.gmra.mxu0 %v3383
      %v3484 = vpop.f32.mrf.mxu0
      %v3485 = vadd.f32 0.0, %v3484
      %v3486 = vpop.f32.mrf.mxu0
      %v3487 = vpop.f32.mrf.mxu0
      %v3488 = vadd.f32 0.0, %v3487
      %v3489 = vpop.f32.mrf.mxu0
      %3490 = vmatprep.mubr.bf16.mxu0 0
      %3491 = vmatmul.mubr.bf16.gmra.mxu0 %v3386
      %v3492 = vpop.f32.mrf.mxu0
      %v3493 = vadd.f32 0.0, %v3492
      %v3494 = vpop.f32.mrf.mxu0
      %v3495 = vpop.f32.mrf.mxu0
      %v3496 = vadd.f32 0.0, %v3495
      %v3497 = vpop.f32.mrf.mxu0
      %3498 = vmatprep.mubr.bf16.mxu0 0
      %3499 = vmatmul.mubr.bf16.gmra.mxu0 %v3389
      %v3500 = vpop.f32.mrf.mxu0
      %v3501 = vadd.f32 0.0, %v3500
      %v3502 = vpop.f32.mrf.mxu0
      %v3503 = vpop.f32.mrf.mxu0
      %v3504 = vadd.f32 0.0, %v3503
      %v3505 = vpop.f32.mrf.mxu0
      %3506 = vmatprep.mubr.bf16.mxu0 0
      %3507 = vmatmul.mubr.bf16.gmra.mxu0 %v3392
      %v3508 = vpop.f32.mrf.mxu0
      %v3509 = vadd.f32 0.0, %v3508
      %v3510 = vpop.f32.mrf.mxu0
      %v3511 = vpop.f32.mrf.mxu0
      %v3512 = vadd.f32 0.0, %v3511
      %v3513 = vpop.f32.mrf.mxu0
      %3514 = vmatprep.mubr.bf16.mxu0 0
      %3515 = vmatmul.mubr.bf16.gmra.mxu0 %v3395
      %v3516 = vpop.f32.mrf.mxu0
      %v3517 = vadd.f32 0.0, %v3516
      %v3518 = vpop.f32.mrf.mxu0
      %v3519 = vpop.f32.mrf.mxu0
      %v3520 = vadd.f32 0.0, %v3519
      %v3521 = vpop.f32.mrf.mxu0
      %3522 = vmatprep.mubr.bf16.mxu0 0
      %3523 = vmatmul.mubr.bf16.gmra.mxu0 %v3398
      %v3524 = vpop.f32.mrf.mxu0
      %v3525 = vadd.f32 0.0, %v3524
      %v3526 = vpop.f32.mrf.mxu0
      %v3527 = vpop.f32.mrf.mxu0
      %v3528 = vadd.f32 0.0, %v3527
      %v3529 = vpop.f32.mrf.mxu0
      %3530 = vmatprep.mubr.bf16.mxu0 0
      %3531 = vmatmul.mubr.bf16.gmra.mxu0 %v3401
      %v3532 = vpop.f32.mrf.mxu0
      %v3533 = vadd.f32 0.0, %v3532
      %v3534 = vpop.f32.mrf.mxu0
      %v3535 = vpop.f32.mrf.mxu0
      %v3536 = vadd.f32 0.0, %v3535
      %v3537 = vpop.f32.mrf.mxu0
      %3538 = vmatprep.mubr.bf16.mxu0 0
      %3539 = vmatmul.mubr.bf16.gmra.mxu0 %v3404
      %v3540 = vpop.f32.mrf.mxu0
      %v3541 = vadd.f32 0.0, %v3540
      %v3542 = vpop.f32.mrf.mxu0
      %v3543 = vpop.f32.mrf.mxu0
      %v3544 = vadd.f32 0.0, %v3543
      %v3545 = vpop.f32.mrf.mxu0
      %3546 = vmatprep.mubr.bf16.mxu0 0
      %3547 = vmatmul.mubr.bf16.gmra.mxu0 %v3407
      %v3548 = vpop.f32.mrf.mxu0
      %v3549 = vadd.f32 0.0, %v3548
      %v3550 = vpop.f32.mrf.mxu0
      %v3551 = vpop.f32.mrf.mxu0
      %v3552 = vadd.f32 0.0, %v3551
      %v3553 = vpop.f32.mrf.mxu0
      %3554 = vmatprep.mubr.bf16.mxu0 0
      %3555 = vmatmul.mubr.bf16.gmra.mxu0 %v3410
      %v3556 = vpop.f32.mrf.mxu0
      %v3557 = vadd.f32 0.0, %v3556
      %v3558 = vpop.f32.mrf.mxu0
      %v3559 = vpop.f32.mrf.mxu0
      %v3560 = vadd.f32 0.0, %v3559
      %v3561 = vpop.f32.mrf.mxu0
      %3562 = vmatprep.mubr.bf16.mxu0 0
      %3563 = vmatmul.mubr.bf16.gmra.mxu0 %v3413
      %v3564 = vpop.f32.mrf.mxu0
      %v3565 = vadd.f32 0.0, %v3564
      %v3566 = vpop.f32.mrf.mxu0
      %v3567 = vpop.f32.mrf.mxu0
      %v3568 = vadd.f32 0.0, %v3567
      %v3569 = vpop.f32.mrf.mxu0
      %3570 = vmatprep.mubr.bf16.mxu0 0
      %3571 = vmatmul.mubr.bf16.gmra.mxu0 %v3416
      %v3572 = vpop.f32.mrf.mxu0
      %v3573 = vadd.f32 0.0, %v3572
      %v3574 = vpop.f32.mrf.mxu0
      %v3575 = vpop.f32.mrf.mxu0
      %v3576 = vadd.f32 0.0, %v3575
      %v3577 = vpop.f32.mrf.mxu0
      %3578 = vdwg.mxu0
      %v3587 = vunpack.c.l.b16 %v3281
      %v3588 = vunpack.c.l.b16 %v3282
      %v3589 = vunpack.c.l.b16 %v3283
      %v3590 = vunpack.c.l.b16 %v3284
      %v3591 = vunpack.c.l.b16 %v3285
      %v3592 = vunpack.c.l.b16 %v3286
      %v3593 = vunpack.c.l.b16 %v3287
      %v3594 = vunpack.c.l.b16 %v3288
      %v3595 = vpack.c.b16 %v3588, %v3587
      %v3596 = vpack.c.b16 %v3590, %v3589
      %v3597 = vpack.c.b16 %v3592, %v3591
      %v3598 = vpack.c.b16 %v3594, %v3593
      %v3604 = vsel %vm3144, %v3265, 0
      %v3607 = vsel %vm3144, %v3266, 0
      %v3610 = vsel %vm3144, %v3267, 0
      %v3613 = vsel %vm3144, %v3268, 0
      %v3616 = vsel %vm3144, %v3269, 0
      %v3619 = vsel %vm3144, %v3270, 0
      %v3622 = vsel %vm3144, %v3271, 0
      %v3625 = vsel %vm3144, %v3272, 0
      %v3628 = vsel %vm3144, %v3273, 0
      %v3631 = vsel %vm3144, %v3274, 0
      %v3634 = vsel %vm3144, %v3275, 0
      %v3637 = vsel %vm3144, %v3276, 0
      %v3640 = vsel %vm3144, %v3277, 0
      %v3643 = vsel %vm3144, %v3278, 0
      %v3646 = vsel %vm3144, %v3279, 0
      %v3649 = vsel %vm3144, %v3280, 0
      %3651 = vmatprep.subr.bf16.mxu0 0
      %3652 = vmatpush1.bf16.msra.mxu0 0
      %3653 = vmatprep.subr.bf16.mxu0 0
      %3654 = vmatpush1.bf16.msra.mxu0 0
      %3655 = vmatprep.subr.bf16.mxu0 0
      %3656 = vmatpush1.bf16.msra.mxu0 0
      %3657 = vmatprep.subr.bf16.mxu0 0
      %3658 = vmatpush1.bf16.msra.mxu0 0
      %3659 = vmatprep.subr.bf16.mxu0 0
      %3660 = vmatpush1.bf16.msra.mxu0 %v3598
      %3661 = vmatprep.subr.bf16.mxu0 0
      %3662 = vmatpush1.bf16.msra.mxu0 %v3597
      %3663 = vmatprep.subr.bf16.mxu0 0
      %3664 = vmatpush1.bf16.msra.mxu0 %v3596
      %3665 = vmatprep.subr.bf16.mxu0 0
      %3666 = vmatpush1.bf16.msra.mxu0 %v3595
      %3667 = vmatprep.subr.bf16.mxu0 0
      %3668 = vmatpush2.bf16.msra.mxu0 0
      %3669 = vmatprep.subr.bf16.mxu0 0
      %3670 = vmatpush2.bf16.msra.mxu0 0
      %3671 = vmatprep.subr.bf16.mxu0 0
      %3672 = vmatpush2.bf16.msra.mxu0 0
      %3673 = vmatprep.subr.bf16.mxu0 0
      %3674 = vmatpush2.bf16.msra.mxu0 0
      %3675 = vmatprep.subr.bf16.mxu0 0
      %3676 = vmatpush2.bf16.msra.mxu0 0
      %3677 = vmatprep.subr.bf16.mxu0 0
      %3678 = vmatpush2.bf16.msra.mxu0 0
      %3679 = vmatprep.subr.bf16.mxu0 0
      %3680 = vmatpush2.bf16.msra.mxu0 0
      %3681 = vmatprep.subr.bf16.mxu0 0
      %3682 = vmatpush2.bf16.msra.mxu0 0
      %3683 = vmatprep.mubr.bf16.mxu0 0
      %3684 = vmatmul.mubr.bf16.gmra.mxu0 %v3604
      %v3685 = vpop.f32.mrf.mxu0
      %v3686 = vadd.f32 %v3453, %v3685
      %v3687 = vpop.f32.mrf.mxu0
      %v3688 = vpop.f32.mrf.mxu0
      %v3689 = vadd.f32 %v3456, %v3688
      %v3690 = vpop.f32.mrf.mxu0
      %3691 = vmatprep.mubr.bf16.mxu0 0
      %3692 = vmatmul.mubr.bf16.gmra.mxu0 %v3607
      %v3693 = vpop.f32.mrf.mxu0
      %v3694 = vadd.f32 %v3461, %v3693
      %v3695 = vpop.f32.mrf.mxu0
      %v3696 = vpop.f32.mrf.mxu0
      %v3697 = vadd.f32 %v3464, %v3696
      %v3698 = vpop.f32.mrf.mxu0
      %3699 = vmatprep.mubr.bf16.mxu0 0
      %3700 = vmatmul.mubr.bf16.gmra.mxu0 %v3610
      %v3701 = vpop.f32.mrf.mxu0
      %v3702 = vadd.f32 %v3469, %v3701
      %v3703 = vpop.f32.mrf.mxu0
      %v3704 = vpop.f32.mrf.mxu0
      %v3705 = vadd.f32 %v3472, %v3704
      %v3706 = vpop.f32.mrf.mxu0
      %3707 = vmatprep.mubr.bf16.mxu0 0
      %3708 = vmatmul.mubr.bf16.gmra.mxu0 %v3613
      %v3709 = vpop.f32.mrf.mxu0
      %v3710 = vadd.f32 %v3477, %v3709
      %v3711 = vpop.f32.mrf.mxu0
      %v3712 = vpop.f32.mrf.mxu0
      %v3713 = vadd.f32 %v3480, %v3712
      %v3714 = vpop.f32.mrf.mxu0
      %3715 = vmatprep.mubr.bf16.mxu0 0
      %3716 = vmatmul.mubr.bf16.gmra.mxu0 %v3616
      %v3717 = vpop.f32.mrf.mxu0
      %v3718 = vadd.f32 %v3485, %v3717
      %v3719 = vpop.f32.mrf.mxu0
      %v3720 = vpop.f32.mrf.mxu0
      %v3721 = vadd.f32 %v3488, %v3720
      %v3722 = vpop.f32.mrf.mxu0
      %3723 = vmatprep.mubr.bf16.mxu0 0
      %3724 = vmatmul.mubr.bf16.gmra.mxu0 %v3619
      %v3725 = vpop.f32.mrf.mxu0
      %v3726 = vadd.f32 %v3493, %v3725
      %v3727 = vpop.f32.mrf.mxu0
      %v3728 = vpop.f32.mrf.mxu0
      %v3729 = vadd.f32 %v3496, %v3728
      %v3730 = vpop.f32.mrf.mxu0
      %3731 = vmatprep.mubr.bf16.mxu0 0
      %3732 = vmatmul.mubr.bf16.gmra.mxu0 %v3622
      %v3733 = vpop.f32.mrf.mxu0
      %v3734 = vadd.f32 %v3501, %v3733
      %v3735 = vpop.f32.mrf.mxu0
      %v3736 = vpop.f32.mrf.mxu0
      %v3737 = vadd.f32 %v3504, %v3736
      %v3738 = vpop.f32.mrf.mxu0
      %3739 = vmatprep.mubr.bf16.mxu0 0
      %3740 = vmatmul.mubr.bf16.gmra.mxu0 %v3625
      %v3741 = vpop.f32.mrf.mxu0
      %v3742 = vadd.f32 %v3509, %v3741
      %v3743 = vpop.f32.mrf.mxu0
      %v3744 = vpop.f32.mrf.mxu0
      %v3745 = vadd.f32 %v3512, %v3744
      %v3746 = vpop.f32.mrf.mxu0
      %3747 = vmatprep.mubr.bf16.mxu0 0
      %3748 = vmatmul.mubr.bf16.gmra.mxu0 %v3628
      %v3749 = vpop.f32.mrf.mxu0
      %v3750 = vadd.f32 %v3517, %v3749
      %v3751 = vpop.f32.mrf.mxu0
      %v3752 = vpop.f32.mrf.mxu0
      %v3753 = vadd.f32 %v3520, %v3752
      %v3754 = vpop.f32.mrf.mxu0
      %3755 = vmatprep.mubr.bf16.mxu0 0
      %3756 = vmatmul.mubr.bf16.gmra.mxu0 %v3631
      %v3757 = vpop.f32.mrf.mxu0
      %v3758 = vadd.f32 %v3525, %v3757
      %v3759 = vpop.f32.mrf.mxu0
      %v3760 = vpop.f32.mrf.mxu0
      %v3761 = vadd.f32 %v3528, %v3760
      %v3762 = vpop.f32.mrf.mxu0
      %3763 = vmatprep.mubr.bf16.mxu0 0
      %3764 = vmatmul.mubr.bf16.gmra.mxu0 %v3634
      %v3765 = vpop.f32.mrf.mxu0
      %v3766 = vadd.f32 %v3533, %v3765
      %v3767 = vpop.f32.mrf.mxu0
      %v3768 = vpop.f32.mrf.mxu0
      %v3769 = vadd.f32 %v3536, %v3768
      %v3770 = vpop.f32.mrf.mxu0
      %3771 = vmatprep.mubr.bf16.mxu0 0
      %3772 = vmatmul.mubr.bf16.gmra.mxu0 %v3637
      %v3773 = vpop.f32.mrf.mxu0
      %v3774 = vadd.f32 %v3541, %v3773
      %v3775 = vpop.f32.mrf.mxu0
      %v3776 = vpop.f32.mrf.mxu0
      %v3777 = vadd.f32 %v3544, %v3776
      %v3778 = vpop.f32.mrf.mxu0
      %3779 = vmatprep.mubr.bf16.mxu0 0
      %3780 = vmatmul.mubr.bf16.gmra.mxu0 %v3640
      %v3781 = vpop.f32.mrf.mxu0
      %v3782 = vadd.f32 %v3549, %v3781
      %v3783 = vpop.f32.mrf.mxu0
      %v3784 = vpop.f32.mrf.mxu0
      %v3785 = vadd.f32 %v3552, %v3784
      %v3786 = vpop.f32.mrf.mxu0
      %3787 = vmatprep.mubr.bf16.mxu0 0
      %3788 = vmatmul.mubr.bf16.gmra.mxu0 %v3643
      %v3789 = vpop.f32.mrf.mxu0
      %v3790 = vadd.f32 %v3557, %v3789
      %v3791 = vpop.f32.mrf.mxu0
      %v3792 = vpop.f32.mrf.mxu0
      %v3793 = vadd.f32 %v3560, %v3792
      %v3794 = vpop.f32.mrf.mxu0
      %3795 = vmatprep.mubr.bf16.mxu0 0
      %3796 = vmatmul.mubr.bf16.gmra.mxu0 %v3646
      %v3797 = vpop.f32.mrf.mxu0
      %v3798 = vadd.f32 %v3565, %v3797
      %v3799 = vpop.f32.mrf.mxu0
      %v3800 = vpop.f32.mrf.mxu0
      %v3801 = vadd.f32 %v3568, %v3800
      %v3802 = vpop.f32.mrf.mxu0
      %3803 = vmatprep.mubr.bf16.mxu0 0
      %3804 = vmatmul.mubr.bf16.gmra.mxu0 %v3649
      %v3805 = vpop.f32.mrf.mxu0
      %v3806 = vadd.f32 %v3573, %v3805
      %v3807 = vpop.f32.mrf.mxu0
      %v3808 = vpop.f32.mrf.mxu0
      %v3809 = vadd.f32 %v3576, %v3808
      %v3810 = vpop.f32.mrf.mxu0
      %3811 = vdwg.mxu0
      %v3812 = vld [vmem:[#allocation3 + $0x2] sm:$0xff]
      %v3813 = vld [vmem:[#allocation3 + $0xa] sm:$0xff]
      %v3814 = vld [vmem:[#allocation3 + $0x1a] sm:$0xff]
      %v3815 = vld [vmem:[#allocation3 + $0x22] sm:$0xff]
      %v3816 = vld [vmem:[#allocation3 + $0x32] sm:$0xff]
      %v3817 = vld [vmem:[#allocation3 + $0x3a] sm:$0xff]
      %v3818 = vld [vmem:[#allocation3 + $0x4a] sm:$0xff]
      %v3819 = vld [vmem:[#allocation3 + $0x52] sm:$0xff]
      %v3820 = vld [vmem:[#allocation3 + $0x62] sm:$0xff]
      %v3821 = vld [vmem:[#allocation3 + $0x6a] sm:$0xff]
      %v3822 = vld [vmem:[#allocation3 + $0x7a] sm:$0xff]
      %v3823 = vld [vmem:[#allocation3 + $0x82] sm:$0xff]
      %v3824 = vld [vmem:[#allocation3 + $0x92] sm:$0xff]
      %v3825 = vld [vmem:[#allocation3 + $0x9a] sm:$0xff]
      %v3826 = vld [vmem:[#allocation3 + $0xaa] sm:$0xff]
      %v3827 = vld [vmem:[#allocation3 + $0xb2] sm:$0xff]
      %v3828 = vld [vmem:[#allocation3 + $0xc2] sm:$0xff]
      %v3829 = vld [vmem:[#allocation3 + $0xca] sm:$0xff]
      %v3830 = vld [vmem:[#allocation3 + $0xda] sm:$0xff]
      %v3831 = vld [vmem:[#allocation3 + $0xe2] sm:$0xff]
      %v3832 = vld [vmem:[#allocation3 + $0xf2] sm:$0xff]
      %v3833 = vld [vmem:[#allocation3 + $0xfa] sm:$0xff]
      %v3834 = vld [vmem:[#allocation3 + $0x10a] sm:$0xff]
      %v3835 = vld [vmem:[#allocation3 + $0x112] sm:$0xff]
      %v3836 = vld [vmem:[#allocation3 + $0x122] sm:$0xff]
      %v3837 = vld [vmem:[#allocation3 + $0x12a] sm:$0xff]
      %v3838 = vld [vmem:[#allocation3 + $0x13a] sm:$0xff]
      %v3839 = vld [vmem:[#allocation3 + $0x142] sm:$0xff]
      %v3840 = vld [vmem:[#allocation3 + $0x152] sm:$0xff]
      %v3841 = vld [vmem:[#allocation3 + $0x15a] sm:$0xff]
      %v3842 = vld [vmem:[#allocation3 + $0x16a] sm:$0xff]
      %v3843 = vld [vmem:[#allocation3 + $0x172] sm:$0xff]
      %v3844 = vpack.c.bf16 %v3813, %v3812
      %v3845 = vpack.c.bf16 %v3815, %v3814
      %v3846 = vpack.c.bf16 %v3817, %v3816
      %v3847 = vpack.c.bf16 %v3819, %v3818
      %v3848 = vpack.c.bf16 %v3821, %v3820
      %v3849 = vpack.c.bf16 %v3823, %v3822
      %v3850 = vpack.c.bf16 %v3825, %v3824
      %v3851 = vpack.c.bf16 %v3827, %v3826
      %v3852 = vpack.c.bf16 %v3829, %v3828
      %v3853 = vpack.c.bf16 %v3831, %v3830
      %v3854 = vpack.c.bf16 %v3833, %v3832
      %v3855 = vpack.c.bf16 %v3835, %v3834
      %v3856 = vpack.c.bf16 %v3837, %v3836
      %v3857 = vpack.c.bf16 %v3839, %v3838
      %v3858 = vpack.c.bf16 %v3841, %v3840
      %v3859 = vpack.c.bf16 %v3843, %v3842
      %s3860 = scalar_lea.vmem %s2, 64
      %v3861 = vld [vmem:[%s3860] sm:$0xf]
      %v3862 = vld [vmem:[%s3860 + $0x4] sm:$0xf]
      %v3863 = vld [vmem:[%s3860 + $0x8] sm:$0xf]
      %v3864 = vld [vmem:[%s3860 + $0xc] sm:$0xf]
      %v3865 = vld [vmem:[%s3860 + $0x10] sm:$0xf]
      %v3866 = vld [vmem:[%s3860 + $0x14] sm:$0xf]
      %v3867 = vld [vmem:[%s3860 + $0x18] sm:$0xf]
      %v3868 = vld [vmem:[%s3860 + $0x1c] sm:$0xf]
      %v3877 = vunpack.c.l.b16 %v3861
      %v3878 = vunpack.c.l.b16 %v3862
      %v3879 = vunpack.c.l.b16 %v3863
      %v3880 = vunpack.c.l.b16 %v3864
      %v3881 = vunpack.c.l.b16 %v3865
      %v3882 = vunpack.c.l.b16 %v3866
      %v3883 = vunpack.c.l.b16 %v3867
      %v3884 = vunpack.c.l.b16 %v3868
      %v3885 = vpack.c.b16 %v3878, %v3877
      %v3886 = vpack.c.b16 %v3880, %v3879
      %v3887 = vpack.c.b16 %v3882, %v3881
      %v3888 = vpack.c.b16 %v3884, %v3883
      %v3894 = vsel %vm3144, %v3844, 0
      %v3897 = vsel %vm3144, %v3845, 0
      %v3900 = vsel %vm3144, %v3846, 0
      %v3903 = vsel %vm3144, %v3847, 0
      %v3906 = vsel %vm3144, %v3848, 0
      %v3909 = vsel %vm3144, %v3849, 0
      %v3912 = vsel %vm3144, %v3850, 0
      %v3915 = vsel %vm3144, %v3851, 0
      %v3918 = vsel %vm3144, %v3852, 0
      %v3921 = vsel %vm3144, %v3853, 0
      %v3924 = vsel %vm3144, %v3854, 0
      %v3927 = vsel %vm3144, %v3855, 0
      %v3930 = vsel %vm3144, %v3856, 0
      %v3933 = vsel %vm3144, %v3857, 0
      %v3936 = vsel %vm3144, %v3858, 0
      %v3939 = vsel %vm3144, %v3859, 0
      %3941 = vmatprep.subr.bf16.mxu0 0
      %3942 = vmatpush1.bf16.msra.mxu0 0
      %3943 = vmatprep.subr.bf16.mxu0 0
      %3944 = vmatpush1.bf16.msra.mxu0 0
      %3945 = vmatprep.subr.bf16.mxu0 0
      %3946 = vmatpush1.bf16.msra.mxu0 0
      %3947 = vmatprep.subr.bf16.mxu0 0
      %3948 = vmatpush1.bf16.msra.mxu0 0
      %3949 = vmatprep.subr.bf16.mxu0 0
      %3950 = vmatpush1.bf16.msra.mxu0 %v3888
      %3951 = vmatprep.subr.bf16.mxu0 0
      %3952 = vmatpush1.bf16.msra.mxu0 %v3887
      %3953 = vmatprep.subr.bf16.mxu0 0
      %3954 = vmatpush1.bf16.msra.mxu0 %v3886
      %3955 = vmatprep.subr.bf16.mxu0 0
      %3956 = vmatpush1.bf16.msra.mxu0 %v3885
      %3957 = vmatprep.subr.bf16.mxu0 0
      %3958 = vmatpush2.bf16.msra.mxu0 0
      %3959 = vmatprep.subr.bf16.mxu0 0
      %3960 = vmatpush2.bf16.msra.mxu0 0
      %3961 = vmatprep.subr.bf16.mxu0 0
      %3962 = vmatpush2.bf16.msra.mxu0 0
      %3963 = vmatprep.subr.bf16.mxu0 0
      %3964 = vmatpush2.bf16.msra.mxu0 0
      %3965 = vmatprep.subr.bf16.mxu0 0
      %3966 = vmatpush2.bf16.msra.mxu0 0
      %3967 = vmatprep.subr.bf16.mxu0 0
      %3968 = vmatpush2.bf16.msra.mxu0 0
      %3969 = vmatprep.subr.bf16.mxu0 0
      %3970 = vmatpush2.bf16.msra.mxu0 0
      %3971 = vmatprep.subr.bf16.mxu0 0
      %3972 = vmatpush2.bf16.msra.mxu0 0
      %3973 = vmatprep.mubr.bf16.mxu0 0
      %3974 = vmatmul.mubr.bf16.gmra.mxu0 %v3894
      %v3975 = vpop.f32.mrf.mxu0
      %v3976 = vadd.f32 0.0, %v3975
      %v3977 = vpop.f32.mrf.mxu0
      %v3978 = vpop.f32.mrf.mxu0
      %v3979 = vadd.f32 0.0, %v3978
      %v3980 = vpop.f32.mrf.mxu0
      %3981 = vmatprep.mubr.bf16.mxu0 0
      %3982 = vmatmul.mubr.bf16.gmra.mxu0 %v3897
      %v3983 = vpop.f32.mrf.mxu0
      %v3984 = vadd.f32 0.0, %v3983
      %v3985 = vpop.f32.mrf.mxu0
      %v3986 = vpop.f32.mrf.mxu0
      %v3987 = vadd.f32 0.0, %v3986
      %v3988 = vpop.f32.mrf.mxu0
      %3989 = vmatprep.mubr.bf16.mxu0 0
      %3990 = vmatmul.mubr.bf16.gmra.mxu0 %v3900
      %v3991 = vpop.f32.mrf.mxu0
      %v3992 = vadd.f32 0.0, %v3991
      %v3993 = vpop.f32.mrf.mxu0
      %v3994 = vpop.f32.mrf.mxu0
      %v3995 = vadd.f32 0.0, %v3994
      %v3996 = vpop.f32.mrf.mxu0
      %3997 = vmatprep.mubr.bf16.mxu0 0
      %3998 = vmatmul.mubr.bf16.gmra.mxu0 %v3903
      %v3999 = vpop.f32.mrf.mxu0
      %v4000 = vadd.f32 0.0, %v3999
      %v4001 = vpop.f32.mrf.mxu0
      %v4002 = vpop.f32.mrf.mxu0
      %v4003 = vadd.f32 0.0, %v4002
      %v4004 = vpop.f32.mrf.mxu0
      %4005 = vmatprep.mubr.bf16.mxu0 0
      %4006 = vmatmul.mubr.bf16.gmra.mxu0 %v3906
      %v4007 = vpop.f32.mrf.mxu0
      %v4008 = vadd.f32 0.0, %v4007
      %v4009 = vpop.f32.mrf.mxu0
      %v4010 = vpop.f32.mrf.mxu0
      %v4011 = vadd.f32 0.0, %v4010
      %v4012 = vpop.f32.mrf.mxu0
      %4013 = vmatprep.mubr.bf16.mxu0 0
      %4014 = vmatmul.mubr.bf16.gmra.mxu0 %v3909
      %v4015 = vpop.f32.mrf.mxu0
      %v4016 = vadd.f32 0.0, %v4015
      %v4017 = vpop.f32.mrf.mxu0
      %v4018 = vpop.f32.mrf.mxu0
      %v4019 = vadd.f32 0.0, %v4018
      %v4020 = vpop.f32.mrf.mxu0
      %4021 = vmatprep.mubr.bf16.mxu0 0
      %4022 = vmatmul.mubr.bf16.gmra.mxu0 %v3912
      %v4023 = vpop.f32.mrf.mxu0
      %v4024 = vadd.f32 0.0, %v4023
      %v4025 = vpop.f32.mrf.mxu0
      %v4026 = vpop.f32.mrf.mxu0
      %v4027 = vadd.f32 0.0, %v4026
      %v4028 = vpop.f32.mrf.mxu0
      %4029 = vmatprep.mubr.bf16.mxu0 0
      %4030 = vmatmul.mubr.bf16.gmra.mxu0 %v3915
      %v4031 = vpop.f32.mrf.mxu0
      %v4032 = vadd.f32 0.0, %v4031
      %v4033 = vpop.f32.mrf.mxu0
      %v4034 = vpop.f32.mrf.mxu0
      %v4035 = vadd.f32 0.0, %v4034
      %v4036 = vpop.f32.mrf.mxu0
      %4037 = vmatprep.mubr.bf16.mxu0 0
      %4038 = vmatmul.mubr.bf16.gmra.mxu0 %v3918
      %v4039 = vpop.f32.mrf.mxu0
      %v4040 = vadd.f32 0.0, %v4039
      %v4041 = vpop.f32.mrf.mxu0
      %v4042 = vpop.f32.mrf.mxu0
      %v4043 = vadd.f32 0.0, %v4042
      %v4044 = vpop.f32.mrf.mxu0
      %4045 = vmatprep.mubr.bf16.mxu0 0
      %4046 = vmatmul.mubr.bf16.gmra.mxu0 %v3921
      %v4047 = vpop.f32.mrf.mxu0
      %v4048 = vadd.f32 0.0, %v4047
      %v4049 = vpop.f32.mrf.mxu0
      %v4050 = vpop.f32.mrf.mxu0
      %v4051 = vadd.f32 0.0, %v4050
      %v4052 = vpop.f32.mrf.mxu0
      %4053 = vmatprep.mubr.bf16.mxu0 0
      %4054 = vmatmul.mubr.bf16.gmra.mxu0 %v3924
      %v4055 = vpop.f32.mrf.mxu0
      %v4056 = vadd.f32 0.0, %v4055
      %v4057 = vpop.f32.mrf.mxu0
      %v4058 = vpop.f32.mrf.mxu0
      %v4059 = vadd.f32 0.0, %v4058
      %v4060 = vpop.f32.mrf.mxu0
      %4061 = vmatprep.mubr.bf16.mxu0 0
      %4062 = vmatmul.mubr.bf16.gmra.mxu0 %v3927
      %v4063 = vpop.f32.mrf.mxu0
      %v4064 = vadd.f32 0.0, %v4063
      %v4065 = vpop.f32.mrf.mxu0
      %v4066 = vpop.f32.mrf.mxu0
      %v4067 = vadd.f32 0.0, %v4066
      %v4068 = vpop.f32.mrf.mxu0
      %4069 = vmatprep.mubr.bf16.mxu0 0
      %4070 = vmatmul.mubr.bf16.gmra.mxu0 %v3930
      %v4071 = vpop.f32.mrf.mxu0
      %v4072 = vadd.f32 0.0, %v4071
      %v4073 = vpop.f32.mrf.mxu0
      %v4074 = vpop.f32.mrf.mxu0
      %v4075 = vadd.f32 0.0, %v4074
      %v4076 = vpop.f32.mrf.mxu0
      %4077 = vmatprep.mubr.bf16.mxu0 0
      %4078 = vmatmul.mubr.bf16.gmra.mxu0 %v3933
      %v4079 = vpop.f32.mrf.mxu0
      %v4080 = vadd.f32 0.0, %v4079
      %v4081 = vpop.f32.mrf.mxu0
      %v4082 = vpop.f32.mrf.mxu0
      %v4083 = vadd.f32 0.0, %v4082
      %v4084 = vpop.f32.mrf.mxu0
      %4085 = vmatprep.mubr.bf16.mxu0 0
      %4086 = vmatmul.mubr.bf16.gmra.mxu0 %v3936
      %v4087 = vpop.f32.mrf.mxu0
      %v4088 = vadd.f32 0.0, %v4087
      %v4089 = vpop.f32.mrf.mxu0
      %v4090 = vpop.f32.mrf.mxu0
      %v4091 = vadd.f32 0.0, %v4090
      %v4092 = vpop.f32.mrf.mxu0
      %4093 = vmatprep.mubr.bf16.mxu0 0
      %4094 = vmatmul.mubr.bf16.gmra.mxu0 %v3939
      %v4095 = vpop.f32.mrf.mxu0
      %v4096 = vadd.f32 0.0, %v4095
      %v4097 = vpop.f32.mrf.mxu0
      %v4098 = vpop.f32.mrf.mxu0
      %v4099 = vadd.f32 0.0, %v4098
      %v4100 = vpop.f32.mrf.mxu0
      %4101 = vdwg.mxu0
      %v4102 = vadd.f32 %v3686, %v3976
      %v4103 = vadd.f32 %v3689, %v3979
      %v4104 = vadd.f32 %v3694, %v3984
      %v4105 = vadd.f32 %v3697, %v3987
      %v4106 = vadd.f32 %v3702, %v3992
      %v4107 = vadd.f32 %v3705, %v3995
      %v4108 = vadd.f32 %v3710, %v4000
      %v4109 = vadd.f32 %v3713, %v4003
      %v4110 = vadd.f32 %v3718, %v4008
      %v4111 = vadd.f32 %v3721, %v4011
      %v4112 = vadd.f32 %v3726, %v4016
      %v4113 = vadd.f32 %v3729, %v4019
      %v4114 = vadd.f32 %v3734, %v4024
      %v4115 = vadd.f32 %v3737, %v4027
      %v4116 = vadd.f32 %v3742, %v4032
      %v4117 = vadd.f32 %v3745, %v4035
      %v4118 = vadd.f32 %v3750, %v4040
      %v4119 = vadd.f32 %v3753, %v4043
      %v4120 = vadd.f32 %v3758, %v4048
      %v4121 = vadd.f32 %v3761, %v4051
      %v4122 = vadd.f32 %v3766, %v4056
      %v4123 = vadd.f32 %v3769, %v4059
      %v4124 = vadd.f32 %v3774, %v4064
      %v4125 = vadd.f32 %v3777, %v4067
      %v4126 = vadd.f32 %v3782, %v4072
      %v4127 = vadd.f32 %v3785, %v4075
      %v4128 = vadd.f32 %v3790, %v4080
      %v4129 = vadd.f32 %v3793, %v4083
      %v4130 = vadd.f32 %v3798, %v4088
      %v4131 = vadd.f32 %v3801, %v4091
      %v4132 = vadd.f32 %v3806, %v4096
      %v4133 = vadd.f32 %v3809, %v4099
      %v4134 = vld [vmem:[%s3200] sm:$0xff]
      %v4135 = vld [vmem:[%s3200 + $0x8] sm:$0xff]
      %v4136 = vld [vmem:[%s3200 + $0x18] sm:$0xff]
      %v4137 = vld [vmem:[%s3200 + $0x20] sm:$0xff]
      %v4138 = vld [vmem:[%s3200 + $0x30] sm:$0xff]
      %v4139 = vld [vmem:[%s3200 + $0x38] sm:$0xff]
      %v4140 = vld [vmem:[%s3200 + $0x48] sm:$0xff]
      %v4141 = vld [vmem:[%s3200 + $0x50] sm:$0xff]
      %v4142 = vld [vmem:[%s3200 + $0x60] sm:$0xff]
      %v4143 = vld [vmem:[%s3200 + $0x68] sm:$0xff]
      %v4144 = vld [vmem:[%s3200 + $0x78] sm:$0xff]
      %v4145 = vld [vmem:[%s3200 + $0x80] sm:$0xff]
      %v4146 = vld [vmem:[%s3200 + $0x90] sm:$0xff]
      %v4147 = vld [vmem:[%s3200 + $0x98] sm:$0xff]
      %v4148 = vld [vmem:[%s3200 + $0xa8] sm:$0xff]
      %v4149 = vld [vmem:[%s3200 + $0xb0] sm:$0xff]
      %v4150 = vld [vmem:[%s3200 + $0xc0] sm:$0xff]
      %v4151 = vld [vmem:[%s3200 + $0xc8] sm:$0xff]
      %v4152 = vld [vmem:[%s3200 + $0xd8] sm:$0xff]
      %v4153 = vld [vmem:[%s3200 + $0xe0] sm:$0xff]
      %v4154 = vld [vmem:[%s3200 + $0xf0] sm:$0xff]
      %v4155 = vld [vmem:[%s3200 + $0xf8] sm:$0xff]
      %v4156 = vld [vmem:[%s3200 + $0x108] sm:$0xff]
      %v4157 = vld [vmem:[%s3200 + $0x110] sm:$0xff]
      %v4158 = vld [vmem:[%s3200 + $0x120] sm:$0xff]
      %v4159 = vld [vmem:[%s3200 + $0x128] sm:$0xff]
      %v4160 = vld [vmem:[%s3200 + $0x138] sm:$0xff]
      %v4161 = vld [vmem:[%s3200 + $0x140] sm:$0xff]
      %v4162 = vld [vmem:[%s3200 + $0x150] sm:$0xff]
      %v4163 = vld [vmem:[%s3200 + $0x158] sm:$0xff]
      %v4164 = vld [vmem:[%s3200 + $0x168] sm:$0xff]
      %v4165 = vld [vmem:[%s3200 + $0x170] sm:$0xff]
      %v4166 = vpack.c.bf16 %v4135, %v4134
      %v4167 = vpack.c.bf16 %v4137, %v4136
      %v4168 = vpack.c.bf16 %v4139, %v4138
      %v4169 = vpack.c.bf16 %v4141, %v4140
      %v4170 = vpack.c.bf16 %v4143, %v4142
      %v4171 = vpack.c.bf16 %v4145, %v4144
      %v4172 = vpack.c.bf16 %v4147, %v4146
      %v4173 = vpack.c.bf16 %v4149, %v4148
      %v4174 = vpack.c.bf16 %v4151, %v4150
      %v4175 = vpack.c.bf16 %v4153, %v4152
      %v4176 = vpack.c.bf16 %v4155, %v4154
      %v4177 = vpack.c.bf16 %v4157, %v4156
      %v4178 = vpack.c.bf16 %v4159, %v4158
      %v4179 = vpack.c.bf16 %v4161, %v4160
      %v4180 = vpack.c.bf16 %v4163, %v4162
      %v4181 = vpack.c.bf16 %v4165, %v4164
      %s4182 = scalar_lea.vmem %s2, 96
      %v4183 = vld [vmem:[%s4182] sm:$0xf]
      %v4184 = vld [vmem:[%s4182 + $0x4] sm:$0xf]
      %v4185 = vld [vmem:[%s4182 + $0x8] sm:$0xf]
      %v4186 = vld [vmem:[%s4182 + $0xc] sm:$0xf]
      %v4187 = vld [vmem:[%s4182 + $0x10] sm:$0xf]
      %v4188 = vld [vmem:[%s4182 + $0x14] sm:$0xf]
      %v4189 = vld [vmem:[%s4182 + $0x18] sm:$0xf]
      %v4190 = vld [vmem:[%s4182 + $0x1c] sm:$0xf]
      %v4199 = vunpack.c.l.b16 %v4183
      %v4200 = vunpack.c.l.b16 %v4184
      %v4201 = vunpack.c.l.b16 %v4185
      %v4202 = vunpack.c.l.b16 %v4186
      %v4203 = vunpack.c.l.b16 %v4187
      %v4204 = vunpack.c.l.b16 %v4188
      %v4205 = vunpack.c.l.b16 %v4189
      %v4206 = vunpack.c.l.b16 %v4190
      %v4207 = vpack.c.b16 %v4200, %v4199
      %v4208 = vpack.c.b16 %v4202, %v4201
      %v4209 = vpack.c.b16 %v4204, %v4203
      %v4210 = vpack.c.b16 %v4206, %v4205
      %v4216 = vsel %vm3144, %v4166, 0
      %v4219 = vsel %vm3144, %v4167, 0
      %v4222 = vsel %vm3144, %v4168, 0
      %v4225 = vsel %vm3144, %v4169, 0
      %v4228 = vsel %vm3144, %v4170, 0
      %v4231 = vsel %vm3144, %v4171, 0
      %v4234 = vsel %vm3144, %v4172, 0
      %v4237 = vsel %vm3144, %v4173, 0
      %v4240 = vsel %vm3144, %v4174, 0
      %v4243 = vsel %vm3144, %v4175, 0
      %v4246 = vsel %vm3144, %v4176, 0
      %v4249 = vsel %vm3144, %v4177, 0
      %v4252 = vsel %vm3144, %v4178, 0
      %v4255 = vsel %vm3144, %v4179, 0
      %v4258 = vsel %vm3144, %v4180, 0
      %v4261 = vsel %vm3144, %v4181, 0
      %4263 = vmatprep.subr.bf16.mxu0 0
      %4264 = vmatpush1.bf16.msra.mxu0 0
      %4265 = vmatprep.subr.bf16.mxu0 0
      %4266 = vmatpush1.bf16.msra.mxu0 0
      %4267 = vmatprep.subr.bf16.mxu0 0
      %4268 = vmatpush1.bf16.msra.mxu0 0
      %4269 = vmatprep.subr.bf16.mxu0 0
      %4270 = vmatpush1.bf16.msra.mxu0 0
      %4271 = vmatprep.subr.bf16.mxu0 0
      %4272 = vmatpush1.bf16.msra.mxu0 %v4210
      %4273 = vmatprep.subr.bf16.mxu0 0
      %4274 = vmatpush1.bf16.msra.mxu0 %v4209
      %4275 = vmatprep.subr.bf16.mxu0 0
      %4276 = vmatpush1.bf16.msra.mxu0 %v4208
      %4277 = vmatprep.subr.bf16.mxu0 0
      %4278 = vmatpush1.bf16.msra.mxu0 %v4207
      %4279 = vmatprep.subr.bf16.mxu0 0
      %4280 = vmatpush2.bf16.msra.mxu0 0
      %4281 = vmatprep.subr.bf16.mxu0 0
      %4282 = vmatpush2.bf16.msra.mxu0 0
      %4283 = vmatprep.subr.bf16.mxu0 0
      %4284 = vmatpush2.bf16.msra.mxu0 0
      %4285 = vmatprep.subr.bf16.mxu0 0
      %4286 = vmatpush2.bf16.msra.mxu0 0
      %4287 = vmatprep.subr.bf16.mxu0 0
      %4288 = vmatpush2.bf16.msra.mxu0 0
      %4289 = vmatprep.subr.bf16.mxu0 0
      %4290 = vmatpush2.bf16.msra.mxu0 0
      %4291 = vmatprep.subr.bf16.mxu0 0
      %4292 = vmatpush2.bf16.msra.mxu0 0
      %4293 = vmatprep.subr.bf16.mxu0 0
      %4294 = vmatpush2.bf16.msra.mxu0 0
      %4295 = vmatprep.mubr.bf16.mxu0 0
      %4296 = vmatmul.mubr.bf16.gmra.mxu0 %v4216
      %v4297 = vpop.f32.mrf.mxu0
      %v4298 = vadd.f32 0.0, %v4297
      %v4299 = vpop.f32.mrf.mxu0
      %v4300 = vpop.f32.mrf.mxu0
      %v4301 = vadd.f32 0.0, %v4300
      %v4302 = vpop.f32.mrf.mxu0
      %4303 = vmatprep.mubr.bf16.mxu0 0
      %4304 = vmatmul.mubr.bf16.gmra.mxu0 %v4219
      %v4305 = vpop.f32.mrf.mxu0
      %v4306 = vadd.f32 0.0, %v4305
      %v4307 = vpop.f32.mrf.mxu0
      %v4308 = vpop.f32.mrf.mxu0
      %v4309 = vadd.f32 0.0, %v4308
      %v4310 = vpop.f32.mrf.mxu0
      %4311 = vmatprep.mubr.bf16.mxu0 0
      %4312 = vmatmul.mubr.bf16.gmra.mxu0 %v4222
      %v4313 = vpop.f32.mrf.mxu0
      %v4314 = vadd.f32 0.0, %v4313
      %v4315 = vpop.f32.mrf.mxu0
      %v4316 = vpop.f32.mrf.mxu0
      %v4317 = vadd.f32 0.0, %v4316
      %v4318 = vpop.f32.mrf.mxu0
      %4319 = vmatprep.mubr.bf16.mxu0 0
      %4320 = vmatmul.mubr.bf16.gmra.mxu0 %v4225
      %v4321 = vpop.f32.mrf.mxu0
      %v4322 = vadd.f32 0.0, %v4321
      %v4323 = vpop.f32.mrf.mxu0
      %v4324 = vpop.f32.mrf.mxu0
      %v4325 = vadd.f32 0.0, %v4324
      %v4326 = vpop.f32.mrf.mxu0
      %4327 = vmatprep.mubr.bf16.mxu0 0
      %4328 = vmatmul.mubr.bf16.gmra.mxu0 %v4228
      %v4329 = vpop.f32.mrf.mxu0
      %v4330 = vadd.f32 0.0, %v4329
      %v4331 = vpop.f32.mrf.mxu0
      %v4332 = vpop.f32.mrf.mxu0
      %v4333 = vadd.f32 0.0, %v4332
      %v4334 = vpop.f32.mrf.mxu0
      %4335 = vmatprep.mubr.bf16.mxu0 0
      %4336 = vmatmul.mubr.bf16.gmra.mxu0 %v4231
      %v4337 = vpop.f32.mrf.mxu0
      %v4338 = vadd.f32 0.0, %v4337
      %v4339 = vpop.f32.mrf.mxu0
      %v4340 = vpop.f32.mrf.mxu0
      %v4341 = vadd.f32 0.0, %v4340
      %v4342 = vpop.f32.mrf.mxu0
      %4343 = vmatprep.mubr.bf16.mxu0 0
      %4344 = vmatmul.mubr.bf16.gmra.mxu0 %v4234
      %v4345 = vpop.f32.mrf.mxu0
      %v4346 = vadd.f32 0.0, %v4345
      %v4347 = vpop.f32.mrf.mxu0
      %v4348 = vpop.f32.mrf.mxu0
      %v4349 = vadd.f32 0.0, %v4348
      %v4350 = vpop.f32.mrf.mxu0
      %4351 = vmatprep.mubr.bf16.mxu0 0
      %4352 = vmatmul.mubr.bf16.gmra.mxu0 %v4237
      %v4353 = vpop.f32.mrf.mxu0
      %v4354 = vadd.f32 0.0, %v4353
      %v4355 = vpop.f32.mrf.mxu0
      %v4356 = vpop.f32.mrf.mxu0
      %v4357 = vadd.f32 0.0, %v4356
      %v4358 = vpop.f32.mrf.mxu0
      %4359 = vmatprep.mubr.bf16.mxu0 0
      %4360 = vmatmul.mubr.bf16.gmra.mxu0 %v4240
      %v4361 = vpop.f32.mrf.mxu0
      %v4362 = vadd.f32 0.0, %v4361
      %v4363 = vpop.f32.mrf.mxu0
      %v4364 = vpop.f32.mrf.mxu0
      %v4365 = vadd.f32 0.0, %v4364
      %v4366 = vpop.f32.mrf.mxu0
      %4367 = vmatprep.mubr.bf16.mxu0 0
      %4368 = vmatmul.mubr.bf16.gmra.mxu0 %v4243
      %v4369 = vpop.f32.mrf.mxu0
      %v4370 = vadd.f32 0.0, %v4369
      %v4371 = vpop.f32.mrf.mxu0
      %v4372 = vpop.f32.mrf.mxu0
      %v4373 = vadd.f32 0.0, %v4372
      %v4374 = vpop.f32.mrf.mxu0
      %4375 = vmatprep.mubr.bf16.mxu0 0
      %4376 = vmatmul.mubr.bf16.gmra.mxu0 %v4246
      %v4377 = vpop.f32.mrf.mxu0
      %v4378 = vadd.f32 0.0, %v4377
      %v4379 = vpop.f32.mrf.mxu0
      %v4380 = vpop.f32.mrf.mxu0
      %v4381 = vadd.f32 0.0, %v4380
      %v4382 = vpop.f32.mrf.mxu0
      %4383 = vmatprep.mubr.bf16.mxu0 0
      %4384 = vmatmul.mubr.bf16.gmra.mxu0 %v4249
      %v4385 = vpop.f32.mrf.mxu0
      %v4386 = vadd.f32 0.0, %v4385
      %v4387 = vpop.f32.mrf.mxu0
      %v4388 = vpop.f32.mrf.mxu0
      %v4389 = vadd.f32 0.0, %v4388
      %v4390 = vpop.f32.mrf.mxu0
      %4391 = vmatprep.mubr.bf16.mxu0 0
      %4392 = vmatmul.mubr.bf16.gmra.mxu0 %v4252
      %v4393 = vpop.f32.mrf.mxu0
      %v4394 = vadd.f32 0.0, %v4393
      %v4395 = vpop.f32.mrf.mxu0
      %v4396 = vpop.f32.mrf.mxu0
      %v4397 = vadd.f32 0.0, %v4396
      %v4398 = vpop.f32.mrf.mxu0
      %4399 = vmatprep.mubr.bf16.mxu0 0
      %4400 = vmatmul.mubr.bf16.gmra.mxu0 %v4255
      %v4401 = vpop.f32.mrf.mxu0
      %v4402 = vadd.f32 0.0, %v4401
      %v4403 = vpop.f32.mrf.mxu0
      %v4404 = vpop.f32.mrf.mxu0
      %v4405 = vadd.f32 0.0, %v4404
      %v4406 = vpop.f32.mrf.mxu0
      %4407 = vmatprep.mubr.bf16.mxu0 0
      %4408 = vmatmul.mubr.bf16.gmra.mxu0 %v4258
      %v4409 = vpop.f32.mrf.mxu0
      %v4410 = vadd.f32 0.0, %v4409
      %v4411 = vpop.f32.mrf.mxu0
      %v4412 = vpop.f32.mrf.mxu0
      %v4413 = vadd.f32 0.0, %v4412
      %v4414 = vpop.f32.mrf.mxu0
      %4415 = vmatprep.mubr.bf16.mxu0 0
      %4416 = vmatmul.mubr.bf16.gmra.mxu0 %v4261
      %v4417 = vpop.f32.mrf.mxu0
      %v4418 = vadd.f32 0.0, %v4417
      %v4419 = vpop.f32.mrf.mxu0
      %v4420 = vpop.f32.mrf.mxu0
      %v4421 = vadd.f32 0.0, %v4420
      %v4422 = vpop.f32.mrf.mxu0
      %4423 = vdwg.mxu0
      %v4424 = vadd.f32 %v4102, %v4298
      %v4425 = vadd.f32 %v4103, %v4301
      %v4426 = vadd.f32 %v4104, %v4306
      %v4427 = vadd.f32 %v4105, %v4309
      %v4428 = vadd.f32 %v4106, %v4314
      %v4429 = vadd.f32 %v4107, %v4317
      %v4430 = vadd.f32 %v4108, %v4322
      %v4431 = vadd.f32 %v4109, %v4325
      %v4432 = vadd.f32 %v4110, %v4330
      %v4433 = vadd.f32 %v4111, %v4333
      %v4434 = vadd.f32 %v4112, %v4338
      %v4435 = vadd.f32 %v4113, %v4341
      %v4436 = vadd.f32 %v4114, %v4346
      %v4437 = vadd.f32 %v4115, %v4349
      %v4438 = vadd.f32 %v4116, %v4354
      %v4439 = vadd.f32 %v4117, %v4357
      %v4440 = vadd.f32 %v4118, %v4362
      %v4441 = vadd.f32 %v4119, %v4365
      %v4442 = vadd.f32 %v4120, %v4370
      %v4443 = vadd.f32 %v4121, %v4373
      %v4444 = vadd.f32 %v4122, %v4378
      %v4445 = vadd.f32 %v4123, %v4381
      %v4446 = vadd.f32 %v4124, %v4386
      %v4447 = vadd.f32 %v4125, %v4389
      %v4448 = vadd.f32 %v4126, %v4394
      %v4449 = vadd.f32 %v4127, %v4397
      %v4450 = vadd.f32 %v4128, %v4402
      %v4451 = vadd.f32 %v4129, %v4405
      %v4452 = vadd.f32 %v4130, %v4410
      %v4453 = vadd.f32 %v4131, %v4413
      %v4454 = vadd.f32 %v4132, %v4418
      %v4455 = vadd.f32 %v4133, %v4421
      %v4456 = vld [vmem:[%s3200 + $0x1] sm:$0xff]
      %v4457 = vld [vmem:[%s3200 + $0x9] sm:$0xff]
      %v4458 = vld [vmem:[%s3200 + $0x19] sm:$0xff]
      %v4459 = vld [vmem:[%s3200 + $0x21] sm:$0xff]
      %v4460 = vld [vmem:[%s3200 + $0x31] sm:$0xff]
      %v4461 = vld [vmem:[%s3200 + $0x39] sm:$0xff]
      %v4462 = vld [vmem:[%s3200 + $0x49] sm:$0xff]
      %v4463 = vld [vmem:[%s3200 + $0x51] sm:$0xff]
      %v4464 = vld [vmem:[%s3200 + $0x61] sm:$0xff]
      %v4465 = vld [vmem:[%s3200 + $0x69] sm:$0xff]
      %v4466 = vld [vmem:[%s3200 + $0x79] sm:$0xff]
      %v4467 = vld [vmem:[%s3200 + $0x81] sm:$0xff]
      %v4468 = vld [vmem:[%s3200 + $0x91] sm:$0xff]
      %v4469 = vld [vmem:[%s3200 + $0x99] sm:$0xff]
      %v4470 = vld [vmem:[%s3200 + $0xa9] sm:$0xff]
      %v4471 = vld [vmem:[%s3200 + $0xb1] sm:$0xff]
      %v4472 = vld [vmem:[%s3200 + $0xc1] sm:$0xff]
      %v4473 = vld [vmem:[%s3200 + $0xc9] sm:$0xff]
      %v4474 = vld [vmem:[%s3200 + $0xd9] sm:$0xff]
      %v4475 = vld [vmem:[%s3200 + $0xe1] sm:$0xff]
      %v4476 = vld [vmem:[%s3200 + $0xf1] sm:$0xff]
      %v4477 = vld [vmem:[%s3200 + $0xf9] sm:$0xff]
      %v4478 = vld [vmem:[%s3200 + $0x109] sm:$0xff]
      %v4479 = vld [vmem:[%s3200 + $0x111] sm:$0xff]
      %v4480 = vld [vmem:[%s3200 + $0x121] sm:$0xff]
      %v4481 = vld [vmem:[%s3200 + $0x129] sm:$0xff]
      %v4482 = vld [vmem:[%s3200 + $0x139] sm:$0xff]
      %v4483 = vld [vmem:[%s3200 + $0x141] sm:$0xff]
      %v4484 = vld [vmem:[%s3200 + $0x151] sm:$0xff]
      %v4485 = vld [vmem:[%s3200 + $0x159] sm:$0xff]
      %v4486 = vld [vmem:[%s3200 + $0x169] sm:$0xff]
      %v4487 = vld [vmem:[%s3200 + $0x171] sm:$0xff]
      %v4488 = vpack.c.bf16 %v4457, %v4456
      %v4489 = vpack.c.bf16 %v4459, %v4458
      %v4490 = vpack.c.bf16 %v4461, %v4460
      %v4491 = vpack.c.bf16 %v4463, %v4462
      %v4492 = vpack.c.bf16 %v4465, %v4464
      %v4493 = vpack.c.bf16 %v4467, %v4466
      %v4494 = vpack.c.bf16 %v4469, %v4468
      %v4495 = vpack.c.bf16 %v4471, %v4470
      %v4496 = vpack.c.bf16 %v4473, %v4472
      %v4497 = vpack.c.bf16 %v4475, %v4474
      %v4498 = vpack.c.bf16 %v4477, %v4476
      %v4499 = vpack.c.bf16 %v4479, %v4478
      %v4500 = vpack.c.bf16 %v4481, %v4480
      %v4501 = vpack.c.bf16 %v4483, %v4482
      %v4502 = vpack.c.bf16 %v4485, %v4484
      %v4503 = vpack.c.bf16 %v4487, %v4486
      %s4504 = scalar_lea.vmem %s2, 128
      %v4505 = vld [vmem:[%s4504] sm:$0xf]
      %v4506 = vld [vmem:[%s4504 + $0x4] sm:$0xf]
      %v4507 = vld [vmem:[%s4504 + $0x8] sm:$0xf]
      %v4508 = vld [vmem:[%s4504 + $0xc] sm:$0xf]
      %v4509 = vld [vmem:[%s4504 + $0x10] sm:$0xf]
      %v4510 = vld [vmem:[%s4504 + $0x14] sm:$0xf]
      %v4511 = vld [vmem:[%s4504 + $0x18] sm:$0xf]
      %v4512 = vld [vmem:[%s4504 + $0x1c] sm:$0xf]
      %v4521 = vunpack.c.l.b16 %v4505
      %v4522 = vunpack.c.l.b16 %v4506
      %v4523 = vunpack.c.l.b16 %v4507
      %v4524 = vunpack.c.l.b16 %v4508
      %v4525 = vunpack.c.l.b16 %v4509
      %v4526 = vunpack.c.l.b16 %v4510
      %v4527 = vunpack.c.l.b16 %v4511
      %v4528 = vunpack.c.l.b16 %v4512
      %v4529 = vpack.c.b16 %v4522, %v4521
      %v4530 = vpack.c.b16 %v4524, %v4523
      %v4531 = vpack.c.b16 %v4526, %v4525
      %v4532 = vpack.c.b16 %v4528, %v4527
      %v4538 = vsel %vm3144, %v4488, 0
      %v4541 = vsel %vm3144, %v4489, 0
      %v4544 = vsel %vm3144, %v4490, 0
      %v4547 = vsel %vm3144, %v4491, 0
      %v4550 = vsel %vm3144, %v4492, 0
      %v4553 = vsel %vm3144, %v4493, 0
      %v4556 = vsel %vm3144, %v4494, 0
      %v4559 = vsel %vm3144, %v4495, 0
      %v4562 = vsel %vm3144, %v4496, 0
      %v4565 = vsel %vm3144, %v4497, 0
      %v4568 = vsel %vm3144, %v4498, 0
      %v4571 = vsel %vm3144, %v4499, 0
      %v4574 = vsel %vm3144, %v4500, 0
      %v4577 = vsel %vm3144, %v4501, 0
      %v4580 = vsel %vm3144, %v4502, 0
      %v4583 = vsel %vm3144, %v4503, 0
      %4585 = vmatprep.subr.bf16.mxu0 0
      %4586 = vmatpush1.bf16.msra.mxu0 0
      %4587 = vmatprep.subr.bf16.mxu0 0
      %4588 = vmatpush1.bf16.msra.mxu0 0
      %4589 = vmatprep.subr.bf16.mxu0 0
      %4590 = vmatpush1.bf16.msra.mxu0 0
      %4591 = vmatprep.subr.bf16.mxu0 0
      %4592 = vmatpush1.bf16.msra.mxu0 0
      %4593 = vmatprep.subr.bf16.mxu0 0
      %4594 = vmatpush1.bf16.msra.mxu0 %v4532
      %4595 = vmatprep.subr.bf16.mxu0 0
      %4596 = vmatpush1.bf16.msra.mxu0 %v4531
      %4597 = vmatprep.subr.bf16.mxu0 0
      %4598 = vmatpush1.bf16.msra.mxu0 %v4530
      %4599 = vmatprep.subr.bf16.mxu0 0
      %4600 = vmatpush1.bf16.msra.mxu0 %v4529
      %4601 = vmatprep.subr.bf16.mxu0 0
      %4602 = vmatpush2.bf16.msra.mxu0 0
      %4603 = vmatprep.subr.bf16.mxu0 0
      %4604 = vmatpush2.bf16.msra.mxu0 0
      %4605 = vmatprep.subr.bf16.mxu0 0
      %4606 = vmatpush2.bf16.msra.mxu0 0
      %4607 = vmatprep.subr.bf16.mxu0 0
      %4608 = vmatpush2.bf16.msra.mxu0 0
      %4609 = vmatprep.subr.bf16.mxu0 0
      %4610 = vmatpush2.bf16.msra.mxu0 0
      %4611 = vmatprep.subr.bf16.mxu0 0
      %4612 = vmatpush2.bf16.msra.mxu0 0
      %4613 = vmatprep.subr.bf16.mxu0 0
      %4614 = vmatpush2.bf16.msra.mxu0 0
      %4615 = vmatprep.subr.bf16.mxu0 0
      %4616 = vmatpush2.bf16.msra.mxu0 0
      %4617 = vmatprep.mubr.bf16.mxu0 0
      %4618 = vmatmul.mubr.bf16.gmra.mxu0 %v4538
      %v4619 = vpop.f32.mrf.mxu0
      %v4620 = vadd.f32 0.0, %v4619
      %v4621 = vpop.f32.mrf.mxu0
      %v4622 = vpop.f32.mrf.mxu0
      %v4623 = vadd.f32 0.0, %v4622
      %v4624 = vpop.f32.mrf.mxu0
      %4625 = vmatprep.mubr.bf16.mxu0 0
      %4626 = vmatmul.mubr.bf16.gmra.mxu0 %v4541
      %v4627 = vpop.f32.mrf.mxu0
      %v4628 = vadd.f32 0.0, %v4627
      %v4629 = vpop.f32.mrf.mxu0
      %v4630 = vpop.f32.mrf.mxu0
      %v4631 = vadd.f32 0.0, %v4630
      %v4632 = vpop.f32.mrf.mxu0
      %4633 = vmatprep.mubr.bf16.mxu0 0
      %4634 = vmatmul.mubr.bf16.gmra.mxu0 %v4544
      %v4635 = vpop.f32.mrf.mxu0
      %v4636 = vadd.f32 0.0, %v4635
      %v4637 = vpop.f32.mrf.mxu0
      %v4638 = vpop.f32.mrf.mxu0
      %v4639 = vadd.f32 0.0, %v4638
      %v4640 = vpop.f32.mrf.mxu0
      %4641 = vmatprep.mubr.bf16.mxu0 0
      %4642 = vmatmul.mubr.bf16.gmra.mxu0 %v4547
      %v4643 = vpop.f32.mrf.mxu0
      %v4644 = vadd.f32 0.0, %v4643
      %v4645 = vpop.f32.mrf.mxu0
      %v4646 = vpop.f32.mrf.mxu0
      %v4647 = vadd.f32 0.0, %v4646
      %v4648 = vpop.f32.mrf.mxu0
      %4649 = vmatprep.mubr.bf16.mxu0 0
      %4650 = vmatmul.mubr.bf16.gmra.mxu0 %v4550
      %v4651 = vpop.f32.mrf.mxu0
      %v4652 = vadd.f32 0.0, %v4651
      %v4653 = vpop.f32.mrf.mxu0
      %v4654 = vpop.f32.mrf.mxu0
      %v4655 = vadd.f32 0.0, %v4654
      %v4656 = vpop.f32.mrf.mxu0
      %4657 = vmatprep.mubr.bf16.mxu0 0
      %4658 = vmatmul.mubr.bf16.gmra.mxu0 %v4553
      %v4659 = vpop.f32.mrf.mxu0
      %v4660 = vadd.f32 0.0, %v4659
      %v4661 = vpop.f32.mrf.mxu0
      %v4662 = vpop.f32.mrf.mxu0
      %v4663 = vadd.f32 0.0, %v4662
      %v4664 = vpop.f32.mrf.mxu0
      %4665 = vmatprep.mubr.bf16.mxu0 0
      %4666 = vmatmul.mubr.bf16.gmra.mxu0 %v4556
      %v4667 = vpop.f32.mrf.mxu0
      %v4668 = vadd.f32 0.0, %v4667
      %v4669 = vpop.f32.mrf.mxu0
      %v4670 = vpop.f32.mrf.mxu0
      %v4671 = vadd.f32 0.0, %v4670
      %v4672 = vpop.f32.mrf.mxu0
      %4673 = vmatprep.mubr.bf16.mxu0 0
      %4674 = vmatmul.mubr.bf16.gmra.mxu0 %v4559
      %v4675 = vpop.f32.mrf.mxu0
      %v4676 = vadd.f32 0.0, %v4675
      %v4677 = vpop.f32.mrf.mxu0
      %v4678 = vpop.f32.mrf.mxu0
      %v4679 = vadd.f32 0.0, %v4678
      %v4680 = vpop.f32.mrf.mxu0
      %4681 = vmatprep.mubr.bf16.mxu0 0
      %4682 = vmatmul.mubr.bf16.gmra.mxu0 %v4562
      %v4683 = vpop.f32.mrf.mxu0
      %v4684 = vadd.f32 0.0, %v4683
      %v4685 = vpop.f32.mrf.mxu0
      %v4686 = vpop.f32.mrf.mxu0
      %v4687 = vadd.f32 0.0, %v4686
      %v4688 = vpop.f32.mrf.mxu0
      %4689 = vmatprep.mubr.bf16.mxu0 0
      %4690 = vmatmul.mubr.bf16.gmra.mxu0 %v4565
      %v4691 = vpop.f32.mrf.mxu0
      %v4692 = vadd.f32 0.0, %v4691
      %v4693 = vpop.f32.mrf.mxu0
      %v4694 = vpop.f32.mrf.mxu0
      %v4695 = vadd.f32 0.0, %v4694
      %v4696 = vpop.f32.mrf.mxu0
      %4697 = vmatprep.mubr.bf16.mxu0 0
      %4698 = vmatmul.mubr.bf16.gmra.mxu0 %v4568
      %v4699 = vpop.f32.mrf.mxu0
      %v4700 = vadd.f32 0.0, %v4699
      %v4701 = vpop.f32.mrf.mxu0
      %v4702 = vpop.f32.mrf.mxu0
      %v4703 = vadd.f32 0.0, %v4702
      %v4704 = vpop.f32.mrf.mxu0
      %4705 = vmatprep.mubr.bf16.mxu0 0
      %4706 = vmatmul.mubr.bf16.gmra.mxu0 %v4571
      %v4707 = vpop.f32.mrf.mxu0
      %v4708 = vadd.f32 0.0, %v4707
      %v4709 = vpop.f32.mrf.mxu0
      %v4710 = vpop.f32.mrf.mxu0
      %v4711 = vadd.f32 0.0, %v4710
      %v4712 = vpop.f32.mrf.mxu0
      %4713 = vmatprep.mubr.bf16.mxu0 0
      %4714 = vmatmul.mubr.bf16.gmra.mxu0 %v4574
      %v4715 = vpop.f32.mrf.mxu0
      %v4716 = vadd.f32 0.0, %v4715
      %v4717 = vpop.f32.mrf.mxu0
      %v4718 = vpop.f32.mrf.mxu0
      %v4719 = vadd.f32 0.0, %v4718
      %v4720 = vpop.f32.mrf.mxu0
      %4721 = vmatprep.mubr.bf16.mxu0 0
      %4722 = vmatmul.mubr.bf16.gmra.mxu0 %v4577
      %v4723 = vpop.f32.mrf.mxu0
      %v4724 = vadd.f32 0.0, %v4723
      %v4725 = vpop.f32.mrf.mxu0
      %v4726 = vpop.f32.mrf.mxu0
      %v4727 = vadd.f32 0.0, %v4726
      %v4728 = vpop.f32.mrf.mxu0
      %4729 = vmatprep.mubr.bf16.mxu0 0
      %4730 = vmatmul.mubr.bf16.gmra.mxu0 %v4580
      %v4731 = vpop.f32.mrf.mxu0
      %v4732 = vadd.f32 0.0, %v4731
      %v4733 = vpop.f32.mrf.mxu0
      %v4734 = vpop.f32.mrf.mxu0
      %v4735 = vadd.f32 0.0, %v4734
      %v4736 = vpop.f32.mrf.mxu0
      %4737 = vmatprep.mubr.bf16.mxu0 0
      %4738 = vmatmul.mubr.bf16.gmra.mxu0 %v4583
      %v4739 = vpop.f32.mrf.mxu0
      %v4740 = vadd.f32 0.0, %v4739
      %v4741 = vpop.f32.mrf.mxu0
      %v4742 = vpop.f32.mrf.mxu0
      %v4743 = vadd.f32 0.0, %v4742
      %v4744 = vpop.f32.mrf.mxu0
      %4745 = vdwg.mxu0
      %v4746 = vadd.f32 %v4424, %v4620
      %v4747 = vadd.f32 %v4425, %v4623
      %v4748 = vadd.f32 %v4426, %v4628
      %v4749 = vadd.f32 %v4427, %v4631
      %v4750 = vadd.f32 %v4428, %v4636
      %v4751 = vadd.f32 %v4429, %v4639
      %v4752 = vadd.f32 %v4430, %v4644
      %v4753 = vadd.f32 %v4431, %v4647
      %v4754 = vadd.f32 %v4432, %v4652
      %v4755 = vadd.f32 %v4433, %v4655
      %v4756 = vadd.f32 %v4434, %v4660
      %v4757 = vadd.f32 %v4435, %v4663
      %v4758 = vadd.f32 %v4436, %v4668
      %v4759 = vadd.f32 %v4437, %v4671
      %v4760 = vadd.f32 %v4438, %v4676
      %v4761 = vadd.f32 %v4439, %v4679
      %v4762 = vadd.f32 %v4440, %v4684
      %v4763 = vadd.f32 %v4441, %v4687
      %v4764 = vadd.f32 %v4442, %v4692
      %v4765 = vadd.f32 %v4443, %v4695
      %v4766 = vadd.f32 %v4444, %v4700
      %v4767 = vadd.f32 %v4445, %v4703
      %v4768 = vadd.f32 %v4446, %v4708
      %v4769 = vadd.f32 %v4447, %v4711
      %v4770 = vadd.f32 %v4448, %v4716
      %v4771 = vadd.f32 %v4449, %v4719
      %v4772 = vadd.f32 %v4450, %v4724
      %v4773 = vadd.f32 %v4451, %v4727
      %v4774 = vadd.f32 %v4452, %v4732
      %v4775 = vadd.f32 %v4453, %v4735
      %v4776 = vadd.f32 %v4454, %v4740
      %v4777 = vadd.f32 %v4455, %v4743
      %v4778 = vld [vmem:[%s3200 + $0x2] sm:$0xff]
      %v4779 = vld [vmem:[%s3200 + $0xa] sm:$0xff]
      %v4780 = vld [vmem:[%s3200 + $0x1a] sm:$0xff]
      %v4781 = vld [vmem:[%s3200 + $0x22] sm:$0xff]
      %v4782 = vld [vmem:[%s3200 + $0x32] sm:$0xff]
      %v4783 = vld [vmem:[%s3200 + $0x3a] sm:$0xff]
      %v4784 = vld [vmem:[%s3200 + $0x4a] sm:$0xff]
      %v4785 = vld [vmem:[%s3200 + $0x52] sm:$0xff]
      %v4786 = vld [vmem:[%s3200 + $0x62] sm:$0xff]
      %v4787 = vld [vmem:[%s3200 + $0x6a] sm:$0xff]
      %v4788 = vld [vmem:[%s3200 + $0x7a] sm:$0xff]
      %v4789 = vld [vmem:[%s3200 + $0x82] sm:$0xff]
      %v4790 = vld [vmem:[%s3200 + $0x92] sm:$0xff]
      %v4791 = vld [vmem:[%s3200 + $0x9a] sm:$0xff]
      %v4792 = vld [vmem:[%s3200 + $0xaa] sm:$0xff]
      %v4793 = vld [vmem:[%s3200 + $0xb2] sm:$0xff]
      %v4794 = vld [vmem:[%s3200 + $0xc2] sm:$0xff]
      %v4795 = vld [vmem:[%s3200 + $0xca] sm:$0xff]
      %v4796 = vld [vmem:[%s3200 + $0xda] sm:$0xff]
      %v4797 = vld [vmem:[%s3200 + $0xe2] sm:$0xff]
      %v4798 = vld [vmem:[%s3200 + $0xf2] sm:$0xff]
      %v4799 = vld [vmem:[%s3200 + $0xfa] sm:$0xff]
      %v4800 = vld [vmem:[%s3200 + $0x10a] sm:$0xff]
      %v4801 = vld [vmem:[%s3200 + $0x112] sm:$0xff]
      %v4802 = vld [vmem:[%s3200 + $0x122] sm:$0xff]
      %v4803 = vld [vmem:[%s3200 + $0x12a] sm:$0xff]
      %v4804 = vld [vmem:[%s3200 + $0x13a] sm:$0xff]
      %v4805 = vld [vmem:[%s3200 + $0x142] sm:$0xff]
      %v4806 = vld [vmem:[%s3200 + $0x152] sm:$0xff]
      %v4807 = vld [vmem:[%s3200 + $0x15a] sm:$0xff]
      %v4808 = vld [vmem:[%s3200 + $0x16a] sm:$0xff]
      %v4809 = vld [vmem:[%s3200 + $0x172] sm:$0xff]
      %v4810 = vpack.c.bf16 %v4779, %v4778
      %v4811 = vpack.c.bf16 %v4781, %v4780
      %v4812 = vpack.c.bf16 %v4783, %v4782
      %v4813 = vpack.c.bf16 %v4785, %v4784
      %v4814 = vpack.c.bf16 %v4787, %v4786
      %v4815 = vpack.c.bf16 %v4789, %v4788
      %v4816 = vpack.c.bf16 %v4791, %v4790
      %v4817 = vpack.c.bf16 %v4793, %v4792
      %v4818 = vpack.c.bf16 %v4795, %v4794
      %v4819 = vpack.c.bf16 %v4797, %v4796
      %v4820 = vpack.c.bf16 %v4799, %v4798
      %v4821 = vpack.c.bf16 %v4801, %v4800
      %v4822 = vpack.c.bf16 %v4803, %v4802
      %v4823 = vpack.c.bf16 %v4805, %v4804
      %v4824 = vpack.c.bf16 %v4807, %v4806
      %v4825 = vpack.c.bf16 %v4809, %v4808
      %s4826 = scalar_lea.vmem %s2, 160
      %v4827 = vld [vmem:[%s4826] sm:$0xf]
      %v4828 = vld [vmem:[%s4826 + $0x4] sm:$0xf]
      %v4829 = vld [vmem:[%s4826 + $0x8] sm:$0xf]
      %v4830 = vld [vmem:[%s4826 + $0xc] sm:$0xf]
      %v4831 = vld [vmem:[%s4826 + $0x10] sm:$0xf]
      %v4832 = vld [vmem:[%s4826 + $0x14] sm:$0xf]
      %v4833 = vld [vmem:[%s4826 + $0x18] sm:$0xf]
      %v4834 = vld [vmem:[%s4826 + $0x1c] sm:$0xf]
      %v4843 = vunpack.c.l.b16 %v4827
      %v4844 = vunpack.c.l.b16 %v4828
      %v4845 = vunpack.c.l.b16 %v4829
      %v4846 = vunpack.c.l.b16 %v4830
      %v4847 = vunpack.c.l.b16 %v4831
      %v4848 = vunpack.c.l.b16 %v4832
      %v4849 = vunpack.c.l.b16 %v4833
      %v4850 = vunpack.c.l.b16 %v4834
      %v4851 = vpack.c.b16 %v4844, %v4843
      %v4852 = vpack.c.b16 %v4846, %v4845
      %v4853 = vpack.c.b16 %v4848, %v4847
      %v4854 = vpack.c.b16 %v4850, %v4849
      %v4860 = vsel %vm3144, %v4810, 0
      %v4863 = vsel %vm3144, %v4811, 0
      %v4866 = vsel %vm3144, %v4812, 0
      %v4869 = vsel %vm3144, %v4813, 0
      %v4872 = vsel %vm3144, %v4814, 0
      %v4875 = vsel %vm3144, %v4815, 0
      %v4878 = vsel %vm3144, %v4816, 0
      %v4881 = vsel %vm3144, %v4817, 0
      %v4884 = vsel %vm3144, %v4818, 0
      %v4887 = vsel %vm3144, %v4819, 0
      %v4890 = vsel %vm3144, %v4820, 0
      %v4893 = vsel %vm3144, %v4821, 0
      %v4896 = vsel %vm3144, %v4822, 0
      %v4899 = vsel %vm3144, %v4823, 0
      %v4902 = vsel %vm3144, %v4824, 0
      %v4905 = vsel %vm3144, %v4825, 0
      %4907 = vmatprep.subr.bf16.mxu0 0
      %4908 = vmatpush1.bf16.msra.mxu0 0
      %4909 = vmatprep.subr.bf16.mxu0 0
      %4910 = vmatpush1.bf16.msra.mxu0 0
      %4911 = vmatprep.subr.bf16.mxu0 0
      %4912 = vmatpush1.bf16.msra.mxu0 0
      %4913 = vmatprep.subr.bf16.mxu0 0
      %4914 = vmatpush1.bf16.msra.mxu0 0
      %4915 = vmatprep.subr.bf16.mxu0 0
      %4916 = vmatpush1.bf16.msra.mxu0 %v4854
      %4917 = vmatprep.subr.bf16.mxu0 0
      %4918 = vmatpush1.bf16.msra.mxu0 %v4853
      %4919 = vmatprep.subr.bf16.mxu0 0
      %4920 = vmatpush1.bf16.msra.mxu0 %v4852
      %4921 = vmatprep.subr.bf16.mxu0 0
      %4922 = vmatpush1.bf16.msra.mxu0 %v4851
      %4923 = vmatprep.subr.bf16.mxu0 0
      %4924 = vmatpush2.bf16.msra.mxu0 0
      %4925 = vmatprep.subr.bf16.mxu0 0
      %4926 = vmatpush2.bf16.msra.mxu0 0
      %4927 = vmatprep.subr.bf16.mxu0 0
      %4928 = vmatpush2.bf16.msra.mxu0 0
      %4929 = vmatprep.subr.bf16.mxu0 0
      %4930 = vmatpush2.bf16.msra.mxu0 0
      %4931 = vmatprep.subr.bf16.mxu0 0
      %4932 = vmatpush2.bf16.msra.mxu0 0
      %4933 = vmatprep.subr.bf16.mxu0 0
      %4934 = vmatpush2.bf16.msra.mxu0 0
      %4935 = vmatprep.subr.bf16.mxu0 0
      %4936 = vmatpush2.bf16.msra.mxu0 0
      %4937 = vmatprep.subr.bf16.mxu0 0
      %4938 = vmatpush2.bf16.msra.mxu0 0
      %4939 = vmatprep.mubr.bf16.mxu0 0
      %4940 = vmatmul.mubr.bf16.gmra.mxu0 %v4860
      %v4941 = vpop.f32.mrf.mxu0
      %v4942 = vadd.f32 0.0, %v4941
      %v4943 = vpop.f32.mrf.mxu0
      %v4944 = vpop.f32.mrf.mxu0
      %v4945 = vadd.f32 0.0, %v4944
      %v4946 = vpop.f32.mrf.mxu0
      %4947 = vmatprep.mubr.bf16.mxu0 0
      %4948 = vmatmul.mubr.bf16.gmra.mxu0 %v4863
      %v4949 = vpop.f32.mrf.mxu0
      %v4950 = vadd.f32 0.0, %v4949
      %v4951 = vpop.f32.mrf.mxu0
      %v4952 = vpop.f32.mrf.mxu0
      %v4953 = vadd.f32 0.0, %v4952
      %v4954 = vpop.f32.mrf.mxu0
      %4955 = vmatprep.mubr.bf16.mxu0 0
      %4956 = vmatmul.mubr.bf16.gmra.mxu0 %v4866
      %v4957 = vpop.f32.mrf.mxu0
      %v4958 = vadd.f32 0.0, %v4957
      %v4959 = vpop.f32.mrf.mxu0
      %v4960 = vpop.f32.mrf.mxu0
      %v4961 = vadd.f32 0.0, %v4960
      %v4962 = vpop.f32.mrf.mxu0
      %4963 = vmatprep.mubr.bf16.mxu0 0
      %4964 = vmatmul.mubr.bf16.gmra.mxu0 %v4869
      %v4965 = vpop.f32.mrf.mxu0
      %v4966 = vadd.f32 0.0, %v4965
      %v4967 = vpop.f32.mrf.mxu0
      %v4968 = vpop.f32.mrf.mxu0
      %v4969 = vadd.f32 0.0, %v4968
      %v4970 = vpop.f32.mrf.mxu0
      %4971 = vmatprep.mubr.bf16.mxu0 0
      %4972 = vmatmul.mubr.bf16.gmra.mxu0 %v4872
      %v4973 = vpop.f32.mrf.mxu0
      %v4974 = vadd.f32 0.0, %v4973
      %v4975 = vpop.f32.mrf.mxu0
      %v4976 = vpop.f32.mrf.mxu0
      %v4977 = vadd.f32 0.0, %v4976
      %v4978 = vpop.f32.mrf.mxu0
      %4979 = vmatprep.mubr.bf16.mxu0 0
      %4980 = vmatmul.mubr.bf16.gmra.mxu0 %v4875
      %v4981 = vpop.f32.mrf.mxu0
      %v4982 = vadd.f32 0.0, %v4981
      %v4983 = vpop.f32.mrf.mxu0
      %v4984 = vpop.f32.mrf.mxu0
      %v4985 = vadd.f32 0.0, %v4984
      %v4986 = vpop.f32.mrf.mxu0
      %4987 = vmatprep.mubr.bf16.mxu0 0
      %4988 = vmatmul.mubr.bf16.gmra.mxu0 %v4878
      %v4989 = vpop.f32.mrf.mxu0
      %v4990 = vadd.f32 0.0, %v4989
      %v4991 = vpop.f32.mrf.mxu0
      %v4992 = vpop.f32.mrf.mxu0
      %v4993 = vadd.f32 0.0, %v4992
      %v4994 = vpop.f32.mrf.mxu0
      %4995 = vmatprep.mubr.bf16.mxu0 0
      %4996 = vmatmul.mubr.bf16.gmra.mxu0 %v4881
      %v4997 = vpop.f32.mrf.mxu0
      %v4998 = vadd.f32 0.0, %v4997
      %v4999 = vpop.f32.mrf.mxu0
      %v5000 = vpop.f32.mrf.mxu0
      %v5001 = vadd.f32 0.0, %v5000
      %v5002 = vpop.f32.mrf.mxu0
      %5003 = vmatprep.mubr.bf16.mxu0 0
      %5004 = vmatmul.mubr.bf16.gmra.mxu0 %v4884
      %v5005 = vpop.f32.mrf.mxu0
      %v5006 = vadd.f32 0.0, %v5005
      %v5007 = vpop.f32.mrf.mxu0
      %v5008 = vpop.f32.mrf.mxu0
      %v5009 = vadd.f32 0.0, %v5008
      %v5010 = vpop.f32.mrf.mxu0
      %5011 = vmatprep.mubr.bf16.mxu0 0
      %5012 = vmatmul.mubr.bf16.gmra.mxu0 %v4887
      %v5013 = vpop.f32.mrf.mxu0
      %v5014 = vadd.f32 0.0, %v5013
      %v5015 = vpop.f32.mrf.mxu0
      %v5016 = vpop.f32.mrf.mxu0
      %v5017 = vadd.f32 0.0, %v5016
      %v5018 = vpop.f32.mrf.mxu0
      %5019 = vmatprep.mubr.bf16.mxu0 0
      %5020 = vmatmul.mubr.bf16.gmra.mxu0 %v4890
      %v5021 = vpop.f32.mrf.mxu0
      %v5022 = vadd.f32 0.0, %v5021
      %v5023 = vpop.f32.mrf.mxu0
      %v5024 = vpop.f32.mrf.mxu0
      %v5025 = vadd.f32 0.0, %v5024
      %v5026 = vpop.f32.mrf.mxu0
      %5027 = vmatprep.mubr.bf16.mxu0 0
      %5028 = vmatmul.mubr.bf16.gmra.mxu0 %v4893
      %v5029 = vpop.f32.mrf.mxu0
      %v5030 = vadd.f32 0.0, %v5029
      %v5031 = vpop.f32.mrf.mxu0
      %v5032 = vpop.f32.mrf.mxu0
      %v5033 = vadd.f32 0.0, %v5032
      %v5034 = vpop.f32.mrf.mxu0
      %5035 = vmatprep.mubr.bf16.mxu0 0
      %5036 = vmatmul.mubr.bf16.gmra.mxu0 %v4896
      %v5037 = vpop.f32.mrf.mxu0
      %v5038 = vadd.f32 0.0, %v5037
      %v5039 = vpop.f32.mrf.mxu0
      %v5040 = vpop.f32.mrf.mxu0
      %v5041 = vadd.f32 0.0, %v5040
      %v5042 = vpop.f32.mrf.mxu0
      %5043 = vmatprep.mubr.bf16.mxu0 0
      %5044 = vmatmul.mubr.bf16.gmra.mxu0 %v4899
      %v5045 = vpop.f32.mrf.mxu0
      %v5046 = vadd.f32 0.0, %v5045
      %v5047 = vpop.f32.mrf.mxu0
      %v5048 = vpop.f32.mrf.mxu0
      %v5049 = vadd.f32 0.0, %v5048
      %v5050 = vpop.f32.mrf.mxu0
      %5051 = vmatprep.mubr.bf16.mxu0 0
      %5052 = vmatmul.mubr.bf16.gmra.mxu0 %v4902
      %v5053 = vpop.f32.mrf.mxu0
      %v5054 = vadd.f32 0.0, %v5053
      %v5055 = vpop.f32.mrf.mxu0
      %v5056 = vpop.f32.mrf.mxu0
      %v5057 = vadd.f32 0.0, %v5056
      %v5058 = vpop.f32.mrf.mxu0
      %5059 = vmatprep.mubr.bf16.mxu0 0
      %5060 = vmatmul.mubr.bf16.gmra.mxu0 %v4905
      %v5061 = vpop.f32.mrf.mxu0
      %v5062 = vadd.f32 0.0, %v5061
      %v5063 = vpop.f32.mrf.mxu0
      %v5064 = vpop.f32.mrf.mxu0
      %v5065 = vadd.f32 0.0, %v5064
      %v5066 = vpop.f32.mrf.mxu0
      %5067 = vdwg.mxu0
      %v5068 = vadd.f32 %v4746, %v4942
      %v5069 = vadd.f32 %v4747, %v4945
      %v5070 = vadd.f32 %v4748, %v4950
      %v5071 = vadd.f32 %v4749, %v4953
      %v5072 = vadd.f32 %v4750, %v4958
      %v5073 = vadd.f32 %v4751, %v4961
      %v5074 = vadd.f32 %v4752, %v4966
      %v5075 = vadd.f32 %v4753, %v4969
      %v5076 = vadd.f32 %v4754, %v4974
      %v5077 = vadd.f32 %v4755, %v4977
      %v5078 = vadd.f32 %v4756, %v4982
      %v5079 = vadd.f32 %v4757, %v4985
      %v5080 = vadd.f32 %v4758, %v4990
      %v5081 = vadd.f32 %v4759, %v4993
      %v5082 = vadd.f32 %v4760, %v4998
      %v5083 = vadd.f32 %v4761, %v5001
      %v5084 = vadd.f32 %v4762, %v5006
      %v5085 = vadd.f32 %v4763, %v5009
      %v5086 = vadd.f32 %v4764, %v5014
      %v5087 = vadd.f32 %v4765, %v5017
      %v5088 = vadd.f32 %v4766, %v5022
      %v5089 = vadd.f32 %v4767, %v5025
      %v5090 = vadd.f32 %v4768, %v5030
      %v5091 = vadd.f32 %v4769, %v5033
      %v5092 = vadd.f32 %v4770, %v5038
      %v5093 = vadd.f32 %v4771, %v5041
      %v5094 = vadd.f32 %v4772, %v5046
      %v5095 = vadd.f32 %v4773, %v5049
      %v5096 = vadd.f32 %v4774, %v5054
      %v5097 = vadd.f32 %v4775, %v5057
      %v5098 = vadd.f32 %v4776, %v5062
      %v5099 = vadd.f32 %v4777, %v5065
      %s5100 = scalar_lea.vmem [#allocation3], 48
      %v5101 = vld [vmem:[%s5100] sm:$0xff]
      %v5102 = vld [vmem:[%s5100 + $0x8] sm:$0xff]
      %v5103 = vld [vmem:[%s5100 + $0x18] sm:$0xff]
      %v5104 = vld [vmem:[%s5100 + $0x20] sm:$0xff]
      %v5105 = vld [vmem:[%s5100 + $0x30] sm:$0xff]
      %v5106 = vld [vmem:[%s5100 + $0x38] sm:$0xff]
      %v5107 = vld [vmem:[%s5100 + $0x48] sm:$0xff]
      %v5108 = vld [vmem:[%s5100 + $0x50] sm:$0xff]
      %v5109 = vld [vmem:[%s5100 + $0x60] sm:$0xff]
      %v5110 = vld [vmem:[%s5100 + $0x68] sm:$0xff]
      %v5111 = vld [vmem:[%s5100 + $0x78] sm:$0xff]
      %v5112 = vld [vmem:[%s5100 + $0x80] sm:$0xff]
      %v5113 = vld [vmem:[%s5100 + $0x90] sm:$0xff]
      %v5114 = vld [vmem:[%s5100 + $0x98] sm:$0xff]
      %v5115 = vld [vmem:[%s5100 + $0xa8] sm:$0xff]
      %v5116 = vld [vmem:[%s5100 + $0xb0] sm:$0xff]
      %v5117 = vld [vmem:[%s5100 + $0xc0] sm:$0xff]
      %v5118 = vld [vmem:[%s5100 + $0xc8] sm:$0xff]
      %v5119 = vld [vmem:[%s5100 + $0xd8] sm:$0xff]
      %v5120 = vld [vmem:[%s5100 + $0xe0] sm:$0xff]
      %v5121 = vld [vmem:[%s5100 + $0xf0] sm:$0xff]
      %v5122 = vld [vmem:[%s5100 + $0xf8] sm:$0xff]
      %v5123 = vld [vmem:[%s5100 + $0x108] sm:$0xff]
      %v5124 = vld [vmem:[%s5100 + $0x110] sm:$0xff]
      %v5125 = vld [vmem:[%s5100 + $0x120] sm:$0xff]
      %v5126 = vld [vmem:[%s5100 + $0x128] sm:$0xff]
      %v5127 = vld [vmem:[%s5100 + $0x138] sm:$0xff]
      %v5128 = vld [vmem:[%s5100 + $0x140] sm:$0xff]
      %v5129 = vld [vmem:[%s5100 + $0x150] sm:$0xff]
      %v5130 = vld [vmem:[%s5100 + $0x158] sm:$0xff]
      %v5131 = vld [vmem:[%s5100 + $0x168] sm:$0xff]
      %v5132 = vld [vmem:[%s5100 + $0x170] sm:$0xff]
      %v5133 = vpack.c.bf16 %v5102, %v5101
      %v5134 = vpack.c.bf16 %v5104, %v5103
      %v5135 = vpack.c.bf16 %v5106, %v5105
      %v5136 = vpack.c.bf16 %v5108, %v5107
      %v5137 = vpack.c.bf16 %v5110, %v5109
      %v5138 = vpack.c.bf16 %v5112, %v5111
      %v5139 = vpack.c.bf16 %v5114, %v5113
      %v5140 = vpack.c.bf16 %v5116, %v5115
      %v5141 = vpack.c.bf16 %v5118, %v5117
      %v5142 = vpack.c.bf16 %v5120, %v5119
      %v5143 = vpack.c.bf16 %v5122, %v5121
      %v5144 = vpack.c.bf16 %v5124, %v5123
      %v5145 = vpack.c.bf16 %v5126, %v5125
      %v5146 = vpack.c.bf16 %v5128, %v5127
      %v5147 = vpack.c.bf16 %v5130, %v5129
      %v5148 = vpack.c.bf16 %v5132, %v5131
      %s5149 = scalar_lea.vmem %s2, 192
      %v5150 = vld [vmem:[%s5149] sm:$0xf]
      %v5151 = vld [vmem:[%s5149 + $0x4] sm:$0xf]
      %v5152 = vld [vmem:[%s5149 + $0x8] sm:$0xf]
      %v5153 = vld [vmem:[%s5149 + $0xc] sm:$0xf]
      %v5154 = vld [vmem:[%s5149 + $0x10] sm:$0xf]
      %v5155 = vld [vmem:[%s5149 + $0x14] sm:$0xf]
      %v5156 = vld [vmem:[%s5149 + $0x18] sm:$0xf]
      %v5157 = vld [vmem:[%s5149 + $0x1c] sm:$0xf]
      %v5166 = vunpack.c.l.b16 %v5150
      %v5167 = vunpack.c.l.b16 %v5151
      %v5168 = vunpack.c.l.b16 %v5152
      %v5169 = vunpack.c.l.b16 %v5153
      %v5170 = vunpack.c.l.b16 %v5154
      %v5171 = vunpack.c.l.b16 %v5155
      %v5172 = vunpack.c.l.b16 %v5156
      %v5173 = vunpack.c.l.b16 %v5157
      %v5174 = vpack.c.b16 %v5167, %v5166
      %v5175 = vpack.c.b16 %v5169, %v5168
      %v5176 = vpack.c.b16 %v5171, %v5170
      %v5177 = vpack.c.b16 %v5173, %v5172
      %v5183 = vsel %vm3144, %v5133, 0
      %v5186 = vsel %vm3144, %v5134, 0
      %v5189 = vsel %vm3144, %v5135, 0
      %v5192 = vsel %vm3144, %v5136, 0
      %v5195 = vsel %vm3144, %v5137, 0
      %v5198 = vsel %vm3144, %v5138, 0
      %v5201 = vsel %vm3144, %v5139, 0
      %v5204 = vsel %vm3144, %v5140, 0
      %v5207 = vsel %vm3144, %v5141, 0
      %v5210 = vsel %vm3144, %v5142, 0
      %v5213 = vsel %vm3144, %v5143, 0
      %v5216 = vsel %vm3144, %v5144, 0
      %v5219 = vsel %vm3144, %v5145, 0
      %v5222 = vsel %vm3144, %v5146, 0
      %v5225 = vsel %vm3144, %v5147, 0
      %v5228 = vsel %vm3144, %v5148, 0
      %5230 = vmatprep.subr.bf16.mxu0 0
      %5231 = vmatpush1.bf16.msra.mxu0 0
      %5232 = vmatprep.subr.bf16.mxu0 0
      %5233 = vmatpush1.bf16.msra.mxu0 0
      %5234 = vmatprep.subr.bf16.mxu0 0
      %5235 = vmatpush1.bf16.msra.mxu0 0
      %5236 = vmatprep.subr.bf16.mxu0 0
      %5237 = vmatpush1.bf16.msra.mxu0 0
      %5238 = vmatprep.subr.bf16.mxu0 0
      %5239 = vmatpush1.bf16.msra.mxu0 %v5177
      %5240 = vmatprep.subr.bf16.mxu0 0
      %5241 = vmatpush1.bf16.msra.mxu0 %v5176
      %5242 = vmatprep.subr.bf16.mxu0 0
      %5243 = vmatpush1.bf16.msra.mxu0 %v5175
      %5244 = vmatprep.subr.bf16.mxu0 0
      %5245 = vmatpush1.bf16.msra.mxu0 %v5174
      %5246 = vmatprep.subr.bf16.mxu0 0
      %5247 = vmatpush2.bf16.msra.mxu0 0
      %5248 = vmatprep.subr.bf16.mxu0 0
      %5249 = vmatpush2.bf16.msra.mxu0 0
      %5250 = vmatprep.subr.bf16.mxu0 0
      %5251 = vmatpush2.bf16.msra.mxu0 0
      %5252 = vmatprep.subr.bf16.mxu0 0
      %5253 = vmatpush2.bf16.msra.mxu0 0
      %5254 = vmatprep.subr.bf16.mxu0 0
      %5255 = vmatpush2.bf16.msra.mxu0 0
      %5256 = vmatprep.subr.bf16.mxu0 0
      %5257 = vmatpush2.bf16.msra.mxu0 0
      %5258 = vmatprep.subr.bf16.mxu0 0
      %5259 = vmatpush2.bf16.msra.mxu0 0
      %5260 = vmatprep.subr.bf16.mxu0 0
      %5261 = vmatpush2.bf16.msra.mxu0 0
      %5262 = vmatprep.mubr.bf16.mxu0 0
      %5263 = vmatmul.mubr.bf16.gmra.mxu0 %v5183
      %v5264 = vpop.f32.mrf.mxu0
      %v5265 = vadd.f32 0.0, %v5264
      %v5266 = vpop.f32.mrf.mxu0
      %v5267 = vpop.f32.mrf.mxu0
      %v5268 = vadd.f32 0.0, %v5267
      %v5269 = vpop.f32.mrf.mxu0
      %5270 = vmatprep.mubr.bf16.mxu0 0
      %5271 = vmatmul.mubr.bf16.gmra.mxu0 %v5186
      %v5272 = vpop.f32.mrf.mxu0
      %v5273 = vadd.f32 0.0, %v5272
      %v5274 = vpop.f32.mrf.mxu0
      %v5275 = vpop.f32.mrf.mxu0
      %v5276 = vadd.f32 0.0, %v5275
      %v5277 = vpop.f32.mrf.mxu0
      %5278 = vmatprep.mubr.bf16.mxu0 0
      %5279 = vmatmul.mubr.bf16.gmra.mxu0 %v5189
      %v5280 = vpop.f32.mrf.mxu0
      %v5281 = vadd.f32 0.0, %v5280
      %v5282 = vpop.f32.mrf.mxu0
      %v5283 = vpop.f32.mrf.mxu0
      %v5284 = vadd.f32 0.0, %v5283
      %v5285 = vpop.f32.mrf.mxu0
      %5286 = vmatprep.mubr.bf16.mxu0 0
      %5287 = vmatmul.mubr.bf16.gmra.mxu0 %v5192
      %v5288 = vpop.f32.mrf.mxu0
      %v5289 = vadd.f32 0.0, %v5288
      %v5290 = vpop.f32.mrf.mxu0
      %v5291 = vpop.f32.mrf.mxu0
      %v5292 = vadd.f32 0.0, %v5291
      %v5293 = vpop.f32.mrf.mxu0
      %5294 = vmatprep.mubr.bf16.mxu0 0
      %5295 = vmatmul.mubr.bf16.gmra.mxu0 %v5195
      %v5296 = vpop.f32.mrf.mxu0
      %v5297 = vadd.f32 0.0, %v5296
      %v5298 = vpop.f32.mrf.mxu0
      %v5299 = vpop.f32.mrf.mxu0
      %v5300 = vadd.f32 0.0, %v5299
      %v5301 = vpop.f32.mrf.mxu0
      %5302 = vmatprep.mubr.bf16.mxu0 0
      %5303 = vmatmul.mubr.bf16.gmra.mxu0 %v5198
      %v5304 = vpop.f32.mrf.mxu0
      %v5305 = vadd.f32 0.0, %v5304
      %v5306 = vpop.f32.mrf.mxu0
      %v5307 = vpop.f32.mrf.mxu0
      %v5308 = vadd.f32 0.0, %v5307
      %v5309 = vpop.f32.mrf.mxu0
      %5310 = vmatprep.mubr.bf16.mxu0 0
      %5311 = vmatmul.mubr.bf16.gmra.mxu0 %v5201
      %v5312 = vpop.f32.mrf.mxu0
      %v5313 = vadd.f32 0.0, %v5312
      %v5314 = vpop.f32.mrf.mxu0
      %v5315 = vpop.f32.mrf.mxu0
      %v5316 = vadd.f32 0.0, %v5315
      %v5317 = vpop.f32.mrf.mxu0
      %5318 = vmatprep.mubr.bf16.mxu0 0
      %5319 = vmatmul.mubr.bf16.gmra.mxu0 %v5204
      %v5320 = vpop.f32.mrf.mxu0
      %v5321 = vadd.f32 0.0, %v5320
      %v5322 = vpop.f32.mrf.mxu0
      %v5323 = vpop.f32.mrf.mxu0
      %v5324 = vadd.f32 0.0, %v5323
      %v5325 = vpop.f32.mrf.mxu0
      %5326 = vmatprep.mubr.bf16.mxu0 0
      %5327 = vmatmul.mubr.bf16.gmra.mxu0 %v5207
      %v5328 = vpop.f32.mrf.mxu0
      %v5329 = vadd.f32 0.0, %v5328
      %v5330 = vpop.f32.mrf.mxu0
      %v5331 = vpop.f32.mrf.mxu0
      %v5332 = vadd.f32 0.0, %v5331
      %v5333 = vpop.f32.mrf.mxu0
      %5334 = vmatprep.mubr.bf16.mxu0 0
      %5335 = vmatmul.mubr.bf16.gmra.mxu0 %v5210
      %v5336 = vpop.f32.mrf.mxu0
      %v5337 = vadd.f32 0.0, %v5336
      %v5338 = vpop.f32.mrf.mxu0
      %v5339 = vpop.f32.mrf.mxu0
      %v5340 = vadd.f32 0.0, %v5339
      %v5341 = vpop.f32.mrf.mxu0
      %5342 = vmatprep.mubr.bf16.mxu0 0
      %5343 = vmatmul.mubr.bf16.gmra.mxu0 %v5213
      %v5344 = vpop.f32.mrf.mxu0
      %v5345 = vadd.f32 0.0, %v5344
      %v5346 = vpop.f32.mrf.mxu0
      %v5347 = vpop.f32.mrf.mxu0
      %v5348 = vadd.f32 0.0, %v5347
      %v5349 = vpop.f32.mrf.mxu0
      %5350 = vmatprep.mubr.bf16.mxu0 0
      %5351 = vmatmul.mubr.bf16.gmra.mxu0 %v5216
      %v5352 = vpop.f32.mrf.mxu0
      %v5353 = vadd.f32 0.0, %v5352
      %v5354 = vpop.f32.mrf.mxu0
      %v5355 = vpop.f32.mrf.mxu0
      %v5356 = vadd.f32 0.0, %v5355
      %v5357 = vpop.f32.mrf.mxu0
      %5358 = vmatprep.mubr.bf16.mxu0 0
      %5359 = vmatmul.mubr.bf16.gmra.mxu0 %v5219
      %v5360 = vpop.f32.mrf.mxu0
      %v5361 = vadd.f32 0.0, %v5360
      %v5362 = vpop.f32.mrf.mxu0
      %v5363 = vpop.f32.mrf.mxu0
      %v5364 = vadd.f32 0.0, %v5363
      %v5365 = vpop.f32.mrf.mxu0
      %5366 = vmatprep.mubr.bf16.mxu0 0
      %5367 = vmatmul.mubr.bf16.gmra.mxu0 %v5222
      %v5368 = vpop.f32.mrf.mxu0
      %v5369 = vadd.f32 0.0, %v5368
      %v5370 = vpop.f32.mrf.mxu0
      %v5371 = vpop.f32.mrf.mxu0
      %v5372 = vadd.f32 0.0, %v5371
      %v5373 = vpop.f32.mrf.mxu0
      %5374 = vmatprep.mubr.bf16.mxu0 0
      %5375 = vmatmul.mubr.bf16.gmra.mxu0 %v5225
      %v5376 = vpop.f32.mrf.mxu0
      %v5377 = vadd.f32 0.0, %v5376
      %v5378 = vpop.f32.mrf.mxu0
      %v5379 = vpop.f32.mrf.mxu0
      %v5380 = vadd.f32 0.0, %v5379
      %v5381 = vpop.f32.mrf.mxu0
      %5382 = vmatprep.mubr.bf16.mxu0 0
      %5383 = vmatmul.mubr.bf16.gmra.mxu0 %v5228
      %v5384 = vpop.f32.mrf.mxu0
      %v5385 = vadd.f32 0.0, %v5384
      %v5386 = vpop.f32.mrf.mxu0
      %v5387 = vpop.f32.mrf.mxu0
      %v5388 = vadd.f32 0.0, %v5387
      %v5389 = vpop.f32.mrf.mxu0
      %5390 = vdwg.mxu0
      %v5391 = vadd.f32 %v5068, %v5265
      %v5392 = vadd.f32 %v5069, %v5268
      %v5393 = vadd.f32 %v5070, %v5273
      %v5394 = vadd.f32 %v5071, %v5276
      %v5395 = vadd.f32 %v5072, %v5281
      %v5396 = vadd.f32 %v5073, %v5284
      %v5397 = vadd.f32 %v5074, %v5289
      %v5398 = vadd.f32 %v5075, %v5292
      %v5399 = vadd.f32 %v5076, %v5297
      %v5400 = vadd.f32 %v5077, %v5300
      %v5401 = vadd.f32 %v5078, %v5305
      %v5402 = vadd.f32 %v5079, %v5308
      %v5403 = vadd.f32 %v5080, %v5313
      %v5404 = vadd.f32 %v5081, %v5316
      %v5405 = vadd.f32 %v5082, %v5321
      %v5406 = vadd.f32 %v5083, %v5324
      %v5407 = vadd.f32 %v5084, %v5329
      %v5408 = vadd.f32 %v5085, %v5332
      %v5409 = vadd.f32 %v5086, %v5337
      %v5410 = vadd.f32 %v5087, %v5340
      %v5411 = vadd.f32 %v5088, %v5345
      %v5412 = vadd.f32 %v5089, %v5348
      %v5413 = vadd.f32 %v5090, %v5353
      %v5414 = vadd.f32 %v5091, %v5356
      %v5415 = vadd.f32 %v5092, %v5361
      %v5416 = vadd.f32 %v5093, %v5364
      %v5417 = vadd.f32 %v5094, %v5369
      %v5418 = vadd.f32 %v5095, %v5372
      %v5419 = vadd.f32 %v5096, %v5377
      %v5420 = vadd.f32 %v5097, %v5380
      %v5421 = vadd.f32 %v5098, %v5385
      %v5422 = vadd.f32 %v5099, %v5388
      %v5423 = vld [vmem:[%s5100 + $0x1] sm:$0xff]
      %v5424 = vld [vmem:[%s5100 + $0x9] sm:$0xff]
      %v5425 = vld [vmem:[%s5100 + $0x19] sm:$0xff]
      %v5426 = vld [vmem:[%s5100 + $0x21] sm:$0xff]
      %v5427 = vld [vmem:[%s5100 + $0x31] sm:$0xff]
      %v5428 = vld [vmem:[%s5100 + $0x39] sm:$0xff]
      %v5429 = vld [vmem:[%s5100 + $0x49] sm:$0xff]
      %v5430 = vld [vmem:[%s5100 + $0x51] sm:$0xff]
      %v5431 = vld [vmem:[%s5100 + $0x61] sm:$0xff]
      %v5432 = vld [vmem:[%s5100 + $0x69] sm:$0xff]
      %v5433 = vld [vmem:[%s5100 + $0x79] sm:$0xff]
      %v5434 = vld [vmem:[%s5100 + $0x81] sm:$0xff]
      %v5435 = vld [vmem:[%s5100 + $0x91] sm:$0xff]
      %v5436 = vld [vmem:[%s5100 + $0x99] sm:$0xff]
      %v5437 = vld [vmem:[%s5100 + $0xa9] sm:$0xff]
      %v5438 = vld [vmem:[%s5100 + $0xb1] sm:$0xff]
      %v5439 = vld [vmem:[%s5100 + $0xc1] sm:$0xff]
      %v5440 = vld [vmem:[%s5100 + $0xc9] sm:$0xff]
      %v5441 = vld [vmem:[%s5100 + $0xd9] sm:$0xff]
      %v5442 = vld [vmem:[%s5100 + $0xe1] sm:$0xff]
      %v5443 = vld [vmem:[%s5100 + $0xf1] sm:$0xff]
      %v5444 = vld [vmem:[%s5100 + $0xf9] sm:$0xff]
      %v5445 = vld [vmem:[%s5100 + $0x109] sm:$0xff]
      %v5446 = vld [vmem:[%s5100 + $0x111] sm:$0xff]
      %v5447 = vld [vmem:[%s5100 + $0x121] sm:$0xff]
      %v5448 = vld [vmem:[%s5100 + $0x129] sm:$0xff]
      %v5449 = vld [vmem:[%s5100 + $0x139] sm:$0xff]
      %v5450 = vld [vmem:[%s5100 + $0x141] sm:$0xff]
      %v5451 = vld [vmem:[%s5100 + $0x151] sm:$0xff]
      %v5452 = vld [vmem:[%s5100 + $0x159] sm:$0xff]
      %v5453 = vld [vmem:[%s5100 + $0x169] sm:$0xff]
      %v5454 = vld [vmem:[%s5100 + $0x171] sm:$0xff]
      %v5455 = vpack.c.bf16 %v5424, %v5423
      %v5456 = vpack.c.bf16 %v5426, %v5425
      %v5457 = vpack.c.bf16 %v5428, %v5427
      %v5458 = vpack.c.bf16 %v5430, %v5429
      %v5459 = vpack.c.bf16 %v5432, %v5431
      %v5460 = vpack.c.bf16 %v5434, %v5433
      %v5461 = vpack.c.bf16 %v5436, %v5435
      %v5462 = vpack.c.bf16 %v5438, %v5437
      %v5463 = vpack.c.bf16 %v5440, %v5439
      %v5464 = vpack.c.bf16 %v5442, %v5441
      %v5465 = vpack.c.bf16 %v5444, %v5443
      %v5466 = vpack.c.bf16 %v5446, %v5445
      %v5467 = vpack.c.bf16 %v5448, %v5447
      %v5468 = vpack.c.bf16 %v5450, %v5449
      %v5469 = vpack.c.bf16 %v5452, %v5451
      %v5470 = vpack.c.bf16 %v5454, %v5453
      %s5471 = scalar_lea.vmem %s2, 224
      %v5472 = vld [vmem:[%s5471] sm:$0xf]
      %v5473 = vld [vmem:[%s5471 + $0x4] sm:$0xf]
      %v5474 = vld [vmem:[%s5471 + $0x8] sm:$0xf]
      %v5475 = vld [vmem:[%s5471 + $0xc] sm:$0xf]
      %v5476 = vld [vmem:[%s5471 + $0x10] sm:$0xf]
      %v5477 = vld [vmem:[%s5471 + $0x14] sm:$0xf]
      %v5478 = vld [vmem:[%s5471 + $0x18] sm:$0xf]
      %v5479 = vld [vmem:[%s5471 + $0x1c] sm:$0xf]
      %v5488 = vunpack.c.l.b16 %v5472
      %v5489 = vunpack.c.l.b16 %v5473
      %v5490 = vunpack.c.l.b16 %v5474
      %v5491 = vunpack.c.l.b16 %v5475
      %v5492 = vunpack.c.l.b16 %v5476
      %v5493 = vunpack.c.l.b16 %v5477
      %v5494 = vunpack.c.l.b16 %v5478
      %v5495 = vunpack.c.l.b16 %v5479
      %v5496 = vpack.c.b16 %v5489, %v5488
      %v5497 = vpack.c.b16 %v5491, %v5490
      %v5498 = vpack.c.b16 %v5493, %v5492
      %v5499 = vpack.c.b16 %v5495, %v5494
      %v5505 = vsel %vm3144, %v5455, 0
      %v5508 = vsel %vm3144, %v5456, 0
      %v5511 = vsel %vm3144, %v5457, 0
      %v5514 = vsel %vm3144, %v5458, 0
      %v5517 = vsel %vm3144, %v5459, 0
      %v5520 = vsel %vm3144, %v5460, 0
      %v5523 = vsel %vm3144, %v5461, 0
      %v5526 = vsel %vm3144, %v5462, 0
      %v5529 = vsel %vm3144, %v5463, 0
      %v5532 = vsel %vm3144, %v5464, 0
      %v5535 = vsel %vm3144, %v5465, 0
      %v5538 = vsel %vm3144, %v5466, 0
      %v5541 = vsel %vm3144, %v5467, 0
      %v5544 = vsel %vm3144, %v5468, 0
      %v5547 = vsel %vm3144, %v5469, 0
      %v5550 = vsel %vm3144, %v5470, 0
      %5552 = vmatprep.subr.bf16.mxu0 0
      %5553 = vmatpush1.bf16.msra.mxu0 0
      %5554 = vmatprep.subr.bf16.mxu0 0
      %5555 = vmatpush1.bf16.msra.mxu0 0
      %5556 = vmatprep.subr.bf16.mxu0 0
      %5557 = vmatpush1.bf16.msra.mxu0 0
      %5558 = vmatprep.subr.bf16.mxu0 0
      %5559 = vmatpush1.bf16.msra.mxu0 0
      %5560 = vmatprep.subr.bf16.mxu0 0
      %5561 = vmatpush1.bf16.msra.mxu0 %v5499
      %5562 = vmatprep.subr.bf16.mxu0 0
      %5563 = vmatpush1.bf16.msra.mxu0 %v5498
      %5564 = vmatprep.subr.bf16.mxu0 0
      %5565 = vmatpush1.bf16.msra.mxu0 %v5497
      %5566 = vmatprep.subr.bf16.mxu0 0
      %5567 = vmatpush1.bf16.msra.mxu0 %v5496
      %5568 = vmatprep.subr.bf16.mxu0 0
      %5569 = vmatpush2.bf16.msra.mxu0 0
      %5570 = vmatprep.subr.bf16.mxu0 0
      %5571 = vmatpush2.bf16.msra.mxu0 0
      %5572 = vmatprep.subr.bf16.mxu0 0
      %5573 = vmatpush2.bf16.msra.mxu0 0
      %5574 = vmatprep.subr.bf16.mxu0 0
      %5575 = vmatpush2.bf16.msra.mxu0 0
      %5576 = vmatprep.subr.bf16.mxu0 0
      %5577 = vmatpush2.bf16.msra.mxu0 0
      %5578 = vmatprep.subr.bf16.mxu0 0
      %5579 = vmatpush2.bf16.msra.mxu0 0
      %5580 = vmatprep.subr.bf16.mxu0 0
      %5581 = vmatpush2.bf16.msra.mxu0 0
      %5582 = vmatprep.subr.bf16.mxu0 0
      %5583 = vmatpush2.bf16.msra.mxu0 0
      %5584 = vmatprep.mubr.bf16.mxu0 0
      %5585 = vmatmul.mubr.bf16.gmra.mxu0 %v5505
      %v5586 = vpop.f32.mrf.mxu0
      %v5587 = vadd.f32 0.0, %v5586
      %v5588 = vpop.f32.mrf.mxu0
      %v5589 = vpop.f32.mrf.mxu0
      %v5590 = vadd.f32 0.0, %v5589
      %v5591 = vpop.f32.mrf.mxu0
      %5592 = vmatprep.mubr.bf16.mxu0 0
      %5593 = vmatmul.mubr.bf16.gmra.mxu0 %v5508
      %v5594 = vpop.f32.mrf.mxu0
      %v5595 = vadd.f32 0.0, %v5594
      %v5596 = vpop.f32.mrf.mxu0
      %v5597 = vpop.f32.mrf.mxu0
      %v5598 = vadd.f32 0.0, %v5597
      %v5599 = vpop.f32.mrf.mxu0
      %5600 = vmatprep.mubr.bf16.mxu0 0
      %5601 = vmatmul.mubr.bf16.gmra.mxu0 %v5511
      %v5602 = vpop.f32.mrf.mxu0
      %v5603 = vadd.f32 0.0, %v5602
      %v5604 = vpop.f32.mrf.mxu0
      %v5605 = vpop.f32.mrf.mxu0
      %v5606 = vadd.f32 0.0, %v5605
      %v5607 = vpop.f32.mrf.mxu0
      %5608 = vmatprep.mubr.bf16.mxu0 0
      %5609 = vmatmul.mubr.bf16.gmra.mxu0 %v5514
      %v5610 = vpop.f32.mrf.mxu0
      %v5611 = vadd.f32 0.0, %v5610
      %v5612 = vpop.f32.mrf.mxu0
      %v5613 = vpop.f32.mrf.mxu0
      %v5614 = vadd.f32 0.0, %v5613
      %v5615 = vpop.f32.mrf.mxu0
      %5616 = vmatprep.mubr.bf16.mxu0 0
      %5617 = vmatmul.mubr.bf16.gmra.mxu0 %v5517
      %v5618 = vpop.f32.mrf.mxu0
      %v5619 = vadd.f32 0.0, %v5618
      %v5620 = vpop.f32.mrf.mxu0
      %v5621 = vpop.f32.mrf.mxu0
      %v5622 = vadd.f32 0.0, %v5621
      %v5623 = vpop.f32.mrf.mxu0
      %5624 = vmatprep.mubr.bf16.mxu0 0
      %5625 = vmatmul.mubr.bf16.gmra.mxu0 %v5520
      %v5626 = vpop.f32.mrf.mxu0
      %v5627 = vadd.f32 0.0, %v5626
      %v5628 = vpop.f32.mrf.mxu0
      %v5629 = vpop.f32.mrf.mxu0
      %v5630 = vadd.f32 0.0, %v5629
      %v5631 = vpop.f32.mrf.mxu0
      %5632 = vmatprep.mubr.bf16.mxu0 0
      %5633 = vmatmul.mubr.bf16.gmra.mxu0 %v5523
      %v5634 = vpop.f32.mrf.mxu0
      %v5635 = vadd.f32 0.0, %v5634
      %v5636 = vpop.f32.mrf.mxu0
      %v5637 = vpop.f32.mrf.mxu0
      %v5638 = vadd.f32 0.0, %v5637
      %v5639 = vpop.f32.mrf.mxu0
      %5640 = vmatprep.mubr.bf16.mxu0 0
      %5641 = vmatmul.mubr.bf16.gmra.mxu0 %v5526
      %v5642 = vpop.f32.mrf.mxu0
      %v5643 = vadd.f32 0.0, %v5642
      %v5644 = vpop.f32.mrf.mxu0
      %v5645 = vpop.f32.mrf.mxu0
      %v5646 = vadd.f32 0.0, %v5645
      %v5647 = vpop.f32.mrf.mxu0
      %5648 = vmatprep.mubr.bf16.mxu0 0
      %5649 = vmatmul.mubr.bf16.gmra.mxu0 %v5529
      %v5650 = vpop.f32.mrf.mxu0
      %v5651 = vadd.f32 0.0, %v5650
      %v5652 = vpop.f32.mrf.mxu0
      %v5653 = vpop.f32.mrf.mxu0
      %v5654 = vadd.f32 0.0, %v5653
      %v5655 = vpop.f32.mrf.mxu0
      %5656 = vmatprep.mubr.bf16.mxu0 0
      %5657 = vmatmul.mubr.bf16.gmra.mxu0 %v5532
      %v5658 = vpop.f32.mrf.mxu0
      %v5659 = vadd.f32 0.0, %v5658
      %v5660 = vpop.f32.mrf.mxu0
      %v5661 = vpop.f32.mrf.mxu0
      %v5662 = vadd.f32 0.0, %v5661
      %v5663 = vpop.f32.mrf.mxu0
      %5664 = vmatprep.mubr.bf16.mxu0 0
      %5665 = vmatmul.mubr.bf16.gmra.mxu0 %v5535
      %v5666 = vpop.f32.mrf.mxu0
      %v5667 = vadd.f32 0.0, %v5666
      %v5668 = vpop.f32.mrf.mxu0
      %v5669 = vpop.f32.mrf.mxu0
      %v5670 = vadd.f32 0.0, %v5669
      %v5671 = vpop.f32.mrf.mxu0
      %5672 = vmatprep.mubr.bf16.mxu0 0
      %5673 = vmatmul.mubr.bf16.gmra.mxu0 %v5538
      %v5674 = vpop.f32.mrf.mxu0
      %v5675 = vadd.f32 0.0, %v5674
      %v5676 = vpop.f32.mrf.mxu0
      %v5677 = vpop.f32.mrf.mxu0
      %v5678 = vadd.f32 0.0, %v5677
      %v5679 = vpop.f32.mrf.mxu0
      %5680 = vmatprep.mubr.bf16.mxu0 0
      %5681 = vmatmul.mubr.bf16.gmra.mxu0 %v5541
      %v5682 = vpop.f32.mrf.mxu0
      %v5683 = vadd.f32 0.0, %v5682
      %v5684 = vpop.f32.mrf.mxu0
      %v5685 = vpop.f32.mrf.mxu0
      %v5686 = vadd.f32 0.0, %v5685
      %v5687 = vpop.f32.mrf.mxu0
      %5688 = vmatprep.mubr.bf16.mxu0 0
      %5689 = vmatmul.mubr.bf16.gmra.mxu0 %v5544
      %v5690 = vpop.f32.mrf.mxu0
      %v5691 = vadd.f32 0.0, %v5690
      %v5692 = vpop.f32.mrf.mxu0
      %v5693 = vpop.f32.mrf.mxu0
      %v5694 = vadd.f32 0.0, %v5693
      %v5695 = vpop.f32.mrf.mxu0
      %5696 = vmatprep.mubr.bf16.mxu0 0
      %5697 = vmatmul.mubr.bf16.gmra.mxu0 %v5547
      %v5698 = vpop.f32.mrf.mxu0
      %v5699 = vadd.f32 0.0, %v5698
      %v5700 = vpop.f32.mrf.mxu0
      %v5701 = vpop.f32.mrf.mxu0
      %v5702 = vadd.f32 0.0, %v5701
      %v5703 = vpop.f32.mrf.mxu0
      %5704 = vmatprep.mubr.bf16.mxu0 0
      %5705 = vmatmul.mubr.bf16.gmra.mxu0 %v5550
      %v5706 = vpop.f32.mrf.mxu0
      %v5707 = vadd.f32 0.0, %v5706
      %v5708 = vpop.f32.mrf.mxu0
      %v5709 = vpop.f32.mrf.mxu0
      %v5710 = vadd.f32 0.0, %v5709
      %v5711 = vpop.f32.mrf.mxu0
      %5712 = vdwg.mxu0
      %v5713 = vadd.f32 %v5391, %v5587
      %v5714 = vadd.f32 %v5392, %v5590
      %v5715 = vadd.f32 %v5393, %v5595
      %v5716 = vadd.f32 %v5394, %v5598
      %v5717 = vadd.f32 %v5395, %v5603
      %v5718 = vadd.f32 %v5396, %v5606
      %v5719 = vadd.f32 %v5397, %v5611
      %v5720 = vadd.f32 %v5398, %v5614
      %v5721 = vadd.f32 %v5399, %v5619
      %v5722 = vadd.f32 %v5400, %v5622
      %v5723 = vadd.f32 %v5401, %v5627
      %v5724 = vadd.f32 %v5402, %v5630
      %v5725 = vadd.f32 %v5403, %v5635
      %v5726 = vadd.f32 %v5404, %v5638
      %v5727 = vadd.f32 %v5405, %v5643
      %v5728 = vadd.f32 %v5406, %v5646
      %v5729 = vadd.f32 %v5407, %v5651
      %v5730 = vadd.f32 %v5408, %v5654
      %v5731 = vadd.f32 %v5409, %v5659
      %v5732 = vadd.f32 %v5410, %v5662
      %v5733 = vadd.f32 %v5411, %v5667
      %v5734 = vadd.f32 %v5412, %v5670
      %v5735 = vadd.f32 %v5413, %v5675
      %v5736 = vadd.f32 %v5414, %v5678
      %v5737 = vadd.f32 %v5415, %v5683
      %v5738 = vadd.f32 %v5416, %v5686
      %v5739 = vadd.f32 %v5417, %v5691
      %v5740 = vadd.f32 %v5418, %v5694
      %v5741 = vadd.f32 %v5419, %v5699
      %v5742 = vadd.f32 %v5420, %v5702
      %v5743 = vadd.f32 %v5421, %v5707
      %v5744 = vadd.f32 %v5422, %v5710
      %v5745 = vld [vmem:[%s5100 + $0x2] sm:$0xff]
      %v5746 = vld [vmem:[%s5100 + $0xa] sm:$0xff]
      %v5747 = vld [vmem:[%s5100 + $0x1a] sm:$0xff]
      %v5748 = vld [vmem:[%s5100 + $0x22] sm:$0xff]
      %v5749 = vld [vmem:[%s5100 + $0x32] sm:$0xff]
      %v5750 = vld [vmem:[%s5100 + $0x3a] sm:$0xff]
      %v5751 = vld [vmem:[%s5100 + $0x4a] sm:$0xff]
      %v5752 = vld [vmem:[%s5100 + $0x52] sm:$0xff]
      %v5753 = vld [vmem:[%s5100 + $0x62] sm:$0xff]
      %v5754 = vld [vmem:[%s5100 + $0x6a] sm:$0xff]
      %v5755 = vld [vmem:[%s5100 + $0x7a] sm:$0xff]
      %v5756 = vld [vmem:[%s5100 + $0x82] sm:$0xff]
      %v5757 = vld [vmem:[%s5100 + $0x92] sm:$0xff]
      %v5758 = vld [vmem:[%s5100 + $0x9a] sm:$0xff]
      %v5759 = vld [vmem:[%s5100 + $0xaa] sm:$0xff]
      %v5760 = vld [vmem:[%s5100 + $0xb2] sm:$0xff]
      %v5761 = vld [vmem:[%s5100 + $0xc2] sm:$0xff]
      %v5762 = vld [vmem:[%s5100 + $0xca] sm:$0xff]
      %v5763 = vld [vmem:[%s5100 + $0xda] sm:$0xff]
      %v5764 = vld [vmem:[%s5100 + $0xe2] sm:$0xff]
      %v5765 = vld [vmem:[%s5100 + $0xf2] sm:$0xff]
      %v5766 = vld [vmem:[%s5100 + $0xfa] sm:$0xff]
      %v5767 = vld [vmem:[%s5100 + $0x10a] sm:$0xff]
      %v5768 = vld [vmem:[%s5100 + $0x112] sm:$0xff]
      %v5769 = vld [vmem:[%s5100 + $0x122] sm:$0xff]
      %v5770 = vld [vmem:[%s5100 + $0x12a] sm:$0xff]
      %v5771 = vld [vmem:[%s5100 + $0x13a] sm:$0xff]
      %v5772 = vld [vmem:[%s5100 + $0x142] sm:$0xff]
      %v5773 = vld [vmem:[%s5100 + $0x152] sm:$0xff]
      %v5774 = vld [vmem:[%s5100 + $0x15a] sm:$0xff]
      %v5775 = vld [vmem:[%s5100 + $0x16a] sm:$0xff]
      %v5776 = vld [vmem:[%s5100 + $0x172] sm:$0xff]
      %v5777 = vpack.c.bf16 %v5746, %v5745
      %v5778 = vpack.c.bf16 %v5748, %v5747
      %v5779 = vpack.c.bf16 %v5750, %v5749
      %v5780 = vpack.c.bf16 %v5752, %v5751
      %v5781 = vpack.c.bf16 %v5754, %v5753
      %v5782 = vpack.c.bf16 %v5756, %v5755
      %v5783 = vpack.c.bf16 %v5758, %v5757
      %v5784 = vpack.c.bf16 %v5760, %v5759
      %v5785 = vpack.c.bf16 %v5762, %v5761
      %v5786 = vpack.c.bf16 %v5764, %v5763
      %v5787 = vpack.c.bf16 %v5766, %v5765
      %v5788 = vpack.c.bf16 %v5768, %v5767
      %v5789 = vpack.c.bf16 %v5770, %v5769
      %v5790 = vpack.c.bf16 %v5772, %v5771
      %v5791 = vpack.c.bf16 %v5774, %v5773
      %v5792 = vpack.c.bf16 %v5776, %v5775
      %s5793 = scalar_lea.vmem %s2, 256
      %v5794 = vld [vmem:[%s5793] sm:$0xf]
      %v5795 = vld [vmem:[%s5793 + $0x4] sm:$0xf]
      %v5796 = vld [vmem:[%s5793 + $0x8] sm:$0xf]
      %v5797 = vld [vmem:[%s5793 + $0xc] sm:$0xf]
      %v5798 = vld [vmem:[%s5793 + $0x10] sm:$0xf]
      %v5799 = vld [vmem:[%s5793 + $0x14] sm:$0xf]
      %v5800 = vld [vmem:[%s5793 + $0x18] sm:$0xf]
      %v5801 = vld [vmem:[%s5793 + $0x1c] sm:$0xf]
      %v5810 = vunpack.c.l.b16 %v5794
      %v5811 = vunpack.c.l.b16 %v5795
      %v5812 = vunpack.c.l.b16 %v5796
      %v5813 = vunpack.c.l.b16 %v5797
      %v5814 = vunpack.c.l.b16 %v5798
      %v5815 = vunpack.c.l.b16 %v5799
      %v5816 = vunpack.c.l.b16 %v5800
      %v5817 = vunpack.c.l.b16 %v5801
      %v5818 = vpack.c.b16 %v5811, %v5810
      %v5819 = vpack.c.b16 %v5813, %v5812
      %v5820 = vpack.c.b16 %v5815, %v5814
      %v5821 = vpack.c.b16 %v5817, %v5816
      %v5827 = vsel %vm3144, %v5777, 0
      %v5830 = vsel %vm3144, %v5778, 0
      %v5833 = vsel %vm3144, %v5779, 0
      %v5836 = vsel %vm3144, %v5780, 0
      %v5839 = vsel %vm3144, %v5781, 0
      %v5842 = vsel %vm3144, %v5782, 0
      %v5845 = vsel %vm3144, %v5783, 0
      %v5848 = vsel %vm3144, %v5784, 0
      %v5851 = vsel %vm3144, %v5785, 0
      %v5854 = vsel %vm3144, %v5786, 0
      %v5857 = vsel %vm3144, %v5787, 0
      %v5860 = vsel %vm3144, %v5788, 0
      %v5863 = vsel %vm3144, %v5789, 0
      %v5866 = vsel %vm3144, %v5790, 0
      %v5869 = vsel %vm3144, %v5791, 0
      %v5872 = vsel %vm3144, %v5792, 0
      %5874 = vmatprep.subr.bf16.mxu0 0
      %5875 = vmatpush1.bf16.msra.mxu0 0
      %5876 = vmatprep.subr.bf16.mxu0 0
      %5877 = vmatpush1.bf16.msra.mxu0 0
      %5878 = vmatprep.subr.bf16.mxu0 0
      %5879 = vmatpush1.bf16.msra.mxu0 0
      %5880 = vmatprep.subr.bf16.mxu0 0
      %5881 = vmatpush1.bf16.msra.mxu0 0
      %5882 = vmatprep.subr.bf16.mxu0 0
      %5883 = vmatpush1.bf16.msra.mxu0 %v5821
      %5884 = vmatprep.subr.bf16.mxu0 0
      %5885 = vmatpush1.bf16.msra.mxu0 %v5820
      %5886 = vmatprep.subr.bf16.mxu0 0
      %5887 = vmatpush1.bf16.msra.mxu0 %v5819
      %5888 = vmatprep.subr.bf16.mxu0 0
      %5889 = vmatpush1.bf16.msra.mxu0 %v5818
      %5890 = vmatprep.subr.bf16.mxu0 0
      %5891 = vmatpush2.bf16.msra.mxu0 0
      %5892 = vmatprep.subr.bf16.mxu0 0
      %5893 = vmatpush2.bf16.msra.mxu0 0
      %5894 = vmatprep.subr.bf16.mxu0 0
      %5895 = vmatpush2.bf16.msra.mxu0 0
      %5896 = vmatprep.subr.bf16.mxu0 0
      %5897 = vmatpush2.bf16.msra.mxu0 0
      %5898 = vmatprep.subr.bf16.mxu0 0
      %5899 = vmatpush2.bf16.msra.mxu0 0
      %5900 = vmatprep.subr.bf16.mxu0 0
      %5901 = vmatpush2.bf16.msra.mxu0 0
      %5902 = vmatprep.subr.bf16.mxu0 0
      %5903 = vmatpush2.bf16.msra.mxu0 0
      %5904 = vmatprep.subr.bf16.mxu0 0
      %5905 = vmatpush2.bf16.msra.mxu0 0
      %5906 = vmatprep.mubr.bf16.mxu0 0
      %5907 = vmatmul.mubr.bf16.gmra.mxu0 %v5827
      %v5908 = vpop.f32.mrf.mxu0
      %v5909 = vadd.f32 0.0, %v5908
      %v5910 = vpop.f32.mrf.mxu0
      %v5911 = vpop.f32.mrf.mxu0
      %v5912 = vadd.f32 0.0, %v5911
      %v5913 = vpop.f32.mrf.mxu0
      %5914 = vmatprep.mubr.bf16.mxu0 0
      %5915 = vmatmul.mubr.bf16.gmra.mxu0 %v5830
      %v5916 = vpop.f32.mrf.mxu0
      %v5917 = vadd.f32 0.0, %v5916
      %v5918 = vpop.f32.mrf.mxu0
      %v5919 = vpop.f32.mrf.mxu0
      %v5920 = vadd.f32 0.0, %v5919
      %v5921 = vpop.f32.mrf.mxu0
      %5922 = vmatprep.mubr.bf16.mxu0 0
      %5923 = vmatmul.mubr.bf16.gmra.mxu0 %v5833
      %v5924 = vpop.f32.mrf.mxu0
      %v5925 = vadd.f32 0.0, %v5924
      %v5926 = vpop.f32.mrf.mxu0
      %v5927 = vpop.f32.mrf.mxu0
      %v5928 = vadd.f32 0.0, %v5927
      %v5929 = vpop.f32.mrf.mxu0
      %5930 = vmatprep.mubr.bf16.mxu0 0
      %5931 = vmatmul.mubr.bf16.gmra.mxu0 %v5836
      %v5932 = vpop.f32.mrf.mxu0
      %v5933 = vadd.f32 0.0, %v5932
      %v5934 = vpop.f32.mrf.mxu0
      %v5935 = vpop.f32.mrf.mxu0
      %v5936 = vadd.f32 0.0, %v5935
      %v5937 = vpop.f32.mrf.mxu0
      %5938 = vmatprep.mubr.bf16.mxu0 0
      %5939 = vmatmul.mubr.bf16.gmra.mxu0 %v5839
      %v5940 = vpop.f32.mrf.mxu0
      %v5941 = vadd.f32 0.0, %v5940
      %v5942 = vpop.f32.mrf.mxu0
      %v5943 = vpop.f32.mrf.mxu0
      %v5944 = vadd.f32 0.0, %v5943
      %v5945 = vpop.f32.mrf.mxu0
      %5946 = vmatprep.mubr.bf16.mxu0 0
      %5947 = vmatmul.mubr.bf16.gmra.mxu0 %v5842
      %v5948 = vpop.f32.mrf.mxu0
      %v5949 = vadd.f32 0.0, %v5948
      %v5950 = vpop.f32.mrf.mxu0
      %v5951 = vpop.f32.mrf.mxu0
      %v5952 = vadd.f32 0.0, %v5951
      %v5953 = vpop.f32.mrf.mxu0
      %5954 = vmatprep.mubr.bf16.mxu0 0
      %5955 = vmatmul.mubr.bf16.gmra.mxu0 %v5845
      %v5956 = vpop.f32.mrf.mxu0
      %v5957 = vadd.f32 0.0, %v5956
      %v5958 = vpop.f32.mrf.mxu0
      %v5959 = vpop.f32.mrf.mxu0
      %v5960 = vadd.f32 0.0, %v5959
      %v5961 = vpop.f32.mrf.mxu0
      %5962 = vmatprep.mubr.bf16.mxu0 0
      %5963 = vmatmul.mubr.bf16.gmra.mxu0 %v5848
      %v5964 = vpop.f32.mrf.mxu0
      %v5965 = vadd.f32 0.0, %v5964
      %v5966 = vpop.f32.mrf.mxu0
      %v5967 = vpop.f32.mrf.mxu0
      %v5968 = vadd.f32 0.0, %v5967
      %v5969 = vpop.f32.mrf.mxu0
      %5970 = vmatprep.mubr.bf16.mxu0 0
      %5971 = vmatmul.mubr.bf16.gmra.mxu0 %v5851
      %v5972 = vpop.f32.mrf.mxu0
      %v5973 = vadd.f32 0.0, %v5972
      %v5974 = vpop.f32.mrf.mxu0
      %v5975 = vpop.f32.mrf.mxu0
      %v5976 = vadd.f32 0.0, %v5975
      %v5977 = vpop.f32.mrf.mxu0
      %5978 = vmatprep.mubr.bf16.mxu0 0
      %5979 = vmatmul.mubr.bf16.gmra.mxu0 %v5854
      %v5980 = vpop.f32.mrf.mxu0
      %v5981 = vadd.f32 0.0, %v5980
      %v5982 = vpop.f32.mrf.mxu0
      %v5983 = vpop.f32.mrf.mxu0
      %v5984 = vadd.f32 0.0, %v5983
      %v5985 = vpop.f32.mrf.mxu0
      %5986 = vmatprep.mubr.bf16.mxu0 0
      %5987 = vmatmul.mubr.bf16.gmra.mxu0 %v5857
      %v5988 = vpop.f32.mrf.mxu0
      %v5989 = vadd.f32 0.0, %v5988
      %v5990 = vpop.f32.mrf.mxu0
      %v5991 = vpop.f32.mrf.mxu0
      %v5992 = vadd.f32 0.0, %v5991
      %v5993 = vpop.f32.mrf.mxu0
      %5994 = vmatprep.mubr.bf16.mxu0 0
      %5995 = vmatmul.mubr.bf16.gmra.mxu0 %v5860
      %v5996 = vpop.f32.mrf.mxu0
      %v5997 = vadd.f32 0.0, %v5996
      %v5998 = vpop.f32.mrf.mxu0
      %v5999 = vpop.f32.mrf.mxu0
      %v6000 = vadd.f32 0.0, %v5999
      %v6001 = vpop.f32.mrf.mxu0
      %6002 = vmatprep.mubr.bf16.mxu0 0
      %6003 = vmatmul.mubr.bf16.gmra.mxu0 %v5863
      %v6004 = vpop.f32.mrf.mxu0
      %v6005 = vadd.f32 0.0, %v6004
      %v6006 = vpop.f32.mrf.mxu0
      %v6007 = vpop.f32.mrf.mxu0
      %v6008 = vadd.f32 0.0, %v6007
      %v6009 = vpop.f32.mrf.mxu0
      %6010 = vmatprep.mubr.bf16.mxu0 0
      %6011 = vmatmul.mubr.bf16.gmra.mxu0 %v5866
      %v6012 = vpop.f32.mrf.mxu0
      %v6013 = vadd.f32 0.0, %v6012
      %v6014 = vpop.f32.mrf.mxu0
      %v6015 = vpop.f32.mrf.mxu0
      %v6016 = vadd.f32 0.0, %v6015
      %v6017 = vpop.f32.mrf.mxu0
      %6018 = vmatprep.mubr.bf16.mxu0 0
      %6019 = vmatmul.mubr.bf16.gmra.mxu0 %v5869
      %v6020 = vpop.f32.mrf.mxu0
      %v6021 = vadd.f32 0.0, %v6020
      %v6022 = vpop.f32.mrf.mxu0
      %v6023 = vpop.f32.mrf.mxu0
      %v6024 = vadd.f32 0.0, %v6023
      %v6025 = vpop.f32.mrf.mxu0
      %6026 = vmatprep.mubr.bf16.mxu0 0
      %6027 = vmatmul.mubr.bf16.gmra.mxu0 %v5872
      %v6028 = vpop.f32.mrf.mxu0
      %v6029 = vadd.f32 0.0, %v6028
      %v6030 = vpop.f32.mrf.mxu0
      %v6031 = vpop.f32.mrf.mxu0
      %v6032 = vadd.f32 0.0, %v6031
      %v6033 = vpop.f32.mrf.mxu0
      %6034 = vdwg.mxu0
      %v6035 = vadd.f32 %v5713, %v5909
      %v6036 = vadd.f32 %v5714, %v5912
      %v6037 = vadd.f32 %v5715, %v5917
      %v6038 = vadd.f32 %v5716, %v5920
      %v6039 = vadd.f32 %v5717, %v5925
      %v6040 = vadd.f32 %v5718, %v5928
      %v6041 = vadd.f32 %v5719, %v5933
      %v6042 = vadd.f32 %v5720, %v5936
      %v6043 = vadd.f32 %v5721, %v5941
      %v6044 = vadd.f32 %v5722, %v5944
      %v6045 = vadd.f32 %v5723, %v5949
      %v6046 = vadd.f32 %v5724, %v5952
      %v6047 = vadd.f32 %v5725, %v5957
      %v6048 = vadd.f32 %v5726, %v5960
      %v6049 = vadd.f32 %v5727, %v5965
      %v6050 = vadd.f32 %v5728, %v5968
      %v6051 = vadd.f32 %v5729, %v5973
      %v6052 = vadd.f32 %v5730, %v5976
      %v6053 = vadd.f32 %v5731, %v5981
      %v6054 = vadd.f32 %v5732, %v5984
      %v6055 = vadd.f32 %v5733, %v5989
      %v6056 = vadd.f32 %v5734, %v5992
      %v6057 = vadd.f32 %v5735, %v5997
      %v6058 = vadd.f32 %v5736, %v6000
      %v6059 = vadd.f32 %v5737, %v6005
      %v6060 = vadd.f32 %v5738, %v6008
      %v6061 = vadd.f32 %v5739, %v6013
      %v6062 = vadd.f32 %v5740, %v6016
      %v6063 = vadd.f32 %v5741, %v6021
      %v6064 = vadd.f32 %v5742, %v6024
      %v6065 = vadd.f32 %v5743, %v6029
      %v6066 = vadd.f32 %v5744, %v6032
      %v6067 = vld [vmem:[%s6] sm:$0x1]
      %v6068 = vlaneseq
      %v6069 = vshrl.u32 %v6068, 7
      %v6070 = vsub.s32 0, %v6069
      %v6071 = vrot.slane %v6067, %v6070
      %v6072 = vmul.f32 %v6035, %v6071
      %v6073 = vmul.f32 %v6036, %v6071
      %v6074 = vmul.f32 %v6037, %v6071
      %v6075 = vmul.f32 %v6038, %v6071
      %v6076 = vmul.f32 %v6039, %v6071
      %v6077 = vmul.f32 %v6040, %v6071
      %v6078 = vmul.f32 %v6041, %v6071
      %v6079 = vmul.f32 %v6042, %v6071
      %v6080 = vmul.f32 %v6043, %v6071
      %v6081 = vmul.f32 %v6044, %v6071
      %v6082 = vmul.f32 %v6045, %v6071
      %v6083 = vmul.f32 %v6046, %v6071
      %v6084 = vmul.f32 %v6047, %v6071
      %v6085 = vmul.f32 %v6048, %v6071
      %v6086 = vmul.f32 %v6049, %v6071
      %v6087 = vmul.f32 %v6050, %v6071
      %v6088 = vmul.f32 %v6051, %v6071
      %v6089 = vmul.f32 %v6052, %v6071
      %v6090 = vmul.f32 %v6053, %v6071
      %v6091 = vmul.f32 %v6054, %v6071
      %v6092 = vmul.f32 %v6055, %v6071
      %v6093 = vmul.f32 %v6056, %v6071
      %v6094 = vmul.f32 %v6057, %v6071
      %v6095 = vmul.f32 %v6058, %v6071
      %v6096 = vmul.f32 %v6059, %v6071
      %v6097 = vmul.f32 %v6060, %v6071
      %v6098 = vmul.f32 %v6061, %v6071
      %v6099 = vmul.f32 %v6062, %v6071
      %v6100 = vmul.f32 %v6063, %v6071
      %v6101 = vmul.f32 %v6064, %v6071
      %v6102 = vmul.f32 %v6065, %v6071
      %v6103 = vmul.f32 %v6066, %v6071
      %v6104 = vld [vmem:[%s6 + $0x1] sm:$0x1]
      %v6105 = vlaneseq
      %v6106 = vshrl.u32 %v6105, 7
      %v6107 = vsub.s32 0, %v6106
      %v6108 = vrot.slane %v6104, %v6107
      %v6109 = vadd.f32 %v6072, %v6108
      %v6110 = vadd.f32 %v6073, %v6108
      %v6111 = vadd.f32 %v6074, %v6108
      %v6112 = vadd.f32 %v6075, %v6108
      %v6113 = vadd.f32 %v6076, %v6108
      %v6114 = vadd.f32 %v6077, %v6108
      %v6115 = vadd.f32 %v6078, %v6108
      %v6116 = vadd.f32 %v6079, %v6108
      %v6117 = vadd.f32 %v6080, %v6108
      %v6118 = vadd.f32 %v6081, %v6108
      %v6119 = vadd.f32 %v6082, %v6108
      %v6120 = vadd.f32 %v6083, %v6108
      %v6121 = vadd.f32 %v6084, %v6108
      %v6122 = vadd.f32 %v6085, %v6108
      %v6123 = vadd.f32 %v6086, %v6108
      %v6124 = vadd.f32 %v6087, %v6108
      %v6125 = vadd.f32 %v6088, %v6108
      %v6126 = vadd.f32 %v6089, %v6108
      %v6127 = vadd.f32 %v6090, %v6108
      %v6128 = vadd.f32 %v6091, %v6108
      %v6129 = vadd.f32 %v6092, %v6108
      %v6130 = vadd.f32 %v6093, %v6108
      %v6131 = vadd.f32 %v6094, %v6108
      %v6132 = vadd.f32 %v6095, %v6108
      %v6133 = vadd.f32 %v6096, %v6108
      %v6134 = vadd.f32 %v6097, %v6108
      %v6135 = vadd.f32 %v6098, %v6108
      %v6136 = vadd.f32 %v6099, %v6108
      %v6137 = vadd.f32 %v6100, %v6108
      %v6138 = vadd.f32 %v6101, %v6108
      %v6139 = vadd.f32 %v6102, %v6108
      %v6140 = vadd.f32 %v6103, %v6108
      %v6141 = vmax.f32 %v6109, 0.0
      %v6142 = vmax.f32 %v6110, 0.0
      %v6143 = vmax.f32 %v6111, 0.0
      %v6144 = vmax.f32 %v6112, 0.0
      %v6145 = vmax.f32 %v6113, 0.0
      %v6146 = vmax.f32 %v6114, 0.0
      %v6147 = vmax.f32 %v6115, 0.0
      %v6148 = vmax.f32 %v6116, 0.0
      %v6149 = vmax.f32 %v6117, 0.0
      %v6150 = vmax.f32 %v6118, 0.0
      %v6151 = vmax.f32 %v6119, 0.0
      %v6152 = vmax.f32 %v6120, 0.0
      %v6153 = vmax.f32 %v6121, 0.0
      %v6154 = vmax.f32 %v6122, 0.0
      %v6155 = vmax.f32 %v6123, 0.0
      %v6156 = vmax.f32 %v6124, 0.0
      %v6157 = vmax.f32 %v6125, 0.0
      %v6158 = vmax.f32 %v6126, 0.0
      %v6159 = vmax.f32 %v6127, 0.0
      %v6160 = vmax.f32 %v6128, 0.0
      %v6161 = vmax.f32 %v6129, 0.0
      %v6162 = vmax.f32 %v6130, 0.0
      %v6163 = vmax.f32 %v6131, 0.0
      %v6164 = vmax.f32 %v6132, 0.0
      %v6165 = vmax.f32 %v6133, 0.0
      %v6166 = vmax.f32 %v6134, 0.0
      %v6167 = vmax.f32 %v6135, 0.0
      %v6168 = vmax.f32 %v6136, 0.0
      %v6169 = vmax.f32 %v6137, 0.0
      %v6170 = vmax.f32 %v6138, 0.0
      %v6171 = vmax.f32 %v6139, 0.0
      %v6172 = vmax.f32 %v6140, 0.0
      %6173 = vst [vmem:[#allocation4] sm:$0xff] 0.0
      %6174 = vst [vmem:[#allocation4 + $0x8] sm:$0xff] 0.0
      %6175 = vst [vmem:[#allocation4 + $0x10] sm:$0x3] 0.0
      %6176 = vst [vmem:[#allocation4 + $0x18] sm:$0xff] 0.0
      %6177 = vst [vmem:[#allocation4 + $0x20] sm:$0xff] 0.0
      %6178 = vst [vmem:[#allocation4 + $0x28] sm:$0x3] 0.0
      %6179 = vst [vmem:[#allocation4 + $0x30] sm:$0xff] 0.0
      %6180 = vst [vmem:[#allocation4 + $0x38] sm:$0xff] 0.0
      %6181 = vst [vmem:[#allocation4 + $0x40] sm:$0x3] 0.0
      %6182 = vst [vmem:[#allocation4 + $0x48] sm:$0xff] 0.0
      %6183 = vst [vmem:[#allocation4 + $0x50] sm:$0xff] 0.0
      %6184 = vst [vmem:[#allocation4 + $0x58] sm:$0x3] 0.0
      %6185 = vst [vmem:[#allocation4 + $0x60] sm:$0xff] 0.0
      %6186 = vst [vmem:[#allocation4 + $0x68] sm:$0xff] 0.0
      %6187 = vst [vmem:[#allocation4 + $0x70] sm:$0x3] 0.0
      %6188 = vst [vmem:[#allocation4 + $0x78] sm:$0xff] 0.0
      %6189 = vst [vmem:[#allocation4 + $0x80] sm:$0xff] 0.0
      %6190 = vst [vmem:[#allocation4 + $0x88] sm:$0x3] 0.0
      %6191 = vst [vmem:[#allocation4 + $0x90] sm:$0xff] 0.0
      %6192 = vst [vmem:[#allocation4 + $0x98] sm:$0xff] 0.0
      %6193 = vst [vmem:[#allocation4 + $0xa0] sm:$0x3] 0.0
      %6194 = vst [vmem:[#allocation4 + $0xa8] sm:$0xff] 0.0
      %6195 = vst [vmem:[#allocation4 + $0xb0] sm:$0xff] 0.0
      %6196 = vst [vmem:[#allocation4 + $0xb8] sm:$0x3] 0.0
      %6197 = vst [vmem:[#allocation4 + $0xc0] sm:$0xff] 0.0
      %6198 = vst [vmem:[#allocation4 + $0xc8] sm:$0xff] 0.0
      %6199 = vst [vmem:[#allocation4 + $0xd0] sm:$0x3] 0.0
      %6200 = vst [vmem:[#allocation4 + $0xd8] sm:$0xff] 0.0
      %6201 = vst [vmem:[#allocation4 + $0xe0] sm:$0xff] 0.0
      %6202 = vst [vmem:[#allocation4 + $0xe8] sm:$0x3] 0.0
      %6203 = vst [vmem:[#allocation4 + $0xf0] sm:$0xff] 0.0
      %6204 = vst [vmem:[#allocation4 + $0xf8] sm:$0xff] 0.0
      %6205 = vst [vmem:[#allocation4 + $0x100] sm:$0x3] 0.0
      %6206 = vst [vmem:[#allocation4 + $0x108] sm:$0xff] 0.0
      %6207 = vst [vmem:[#allocation4 + $0x110] sm:$0xff] 0.0
      %6208 = vst [vmem:[#allocation4 + $0x118] sm:$0x3] 0.0
      %6209 = vst [vmem:[#allocation4 + $0x120] sm:$0xff] 0.0
      %6210 = vst [vmem:[#allocation4 + $0x128] sm:$0xff] 0.0
      %6211 = vst [vmem:[#allocation4 + $0x130] sm:$0x3] 0.0
      %6212 = vst [vmem:[#allocation4 + $0x138] sm:$0xff] 0.0
      %6213 = vst [vmem:[#allocation4 + $0x140] sm:$0xff] 0.0
      %6214 = vst [vmem:[#allocation4 + $0x148] sm:$0x3] 0.0
      %6215 = vst [vmem:[#allocation4 + $0x150] sm:$0xff] 0.0
      %6216 = vst [vmem:[#allocation4 + $0x158] sm:$0xff] 0.0
      %6217 = vst [vmem:[#allocation4 + $0x160] sm:$0x3] 0.0
      %6218 = vst [vmem:[#allocation4 + $0x168] sm:$0xff] 0.0
      %6219 = vst [vmem:[#allocation4 + $0x170] sm:$0xff] 0.0
      %6220 = vst [vmem:[#allocation4 + $0x178] sm:$0x3] 0.0
      %6221 = vst [vmem:[#allocation4 + $0x180] sm:$0xff] 0.0
      %6222 = vst [vmem:[#allocation4 + $0x188] sm:$0xff] 0.0
      %6223 = vst [vmem:[#allocation4 + $0x190] sm:$0x3] 0.0
      %6224 = vst [vmem:[#allocation4 + $0x198] sm:$0xff] 0.0
      %6225 = vst [vmem:[#allocation4 + $0x1a0] sm:$0xff] 0.0
      %6226 = vst [vmem:[#allocation4 + $0x1a8] sm:$0x3] 0.0
      %s6227 = scalar_lea.vmem [#allocation4], 24
      %6228 = vst [vmem:[%s6227 + $0x1] sm:$0xff] %v6141
      %6229 = vst [vmem:[%s6227 + $0x9] sm:$0xff] %v6142
      %6230 = vst [vmem:[%s6227 + $0x19] sm:$0xff] %v6143
      %6231 = vst [vmem:[%s6227 + $0x21] sm:$0xff] %v6144
      %6232 = vst [vmem:[%s6227 + $0x31] sm:$0xff] %v6145
      %6233 = vst [vmem:[%s6227 + $0x39] sm:$0xff] %v6146
      %6234 = vst [vmem:[%s6227 + $0x49] sm:$0xff] %v6147
      %6235 = vst [vmem:[%s6227 + $0x51] sm:$0xff] %v6148
      %6236 = vst [vmem:[%s6227 + $0x61] sm:$0xff] %v6149
      %6237 = vst [vmem:[%s6227 + $0x69] sm:$0xff] %v6150
      %6238 = vst [vmem:[%s6227 + $0x79] sm:$0xff] %v6151
      %6239 = vst [vmem:[%s6227 + $0x81] sm:$0xff] %v6152
      %6240 = vst [vmem:[%s6227 + $0x91] sm:$0xff] %v6153
      %6241 = vst [vmem:[%s6227 + $0x99] sm:$0xff] %v6154
      %6242 = vst [vmem:[%s6227 + $0xa9] sm:$0xff] %v6155
      %6243 = vst [vmem:[%s6227 + $0xb1] sm:$0xff] %v6156
      %6244 = vst [vmem:[%s6227 + $0xc1] sm:$0xff] %v6157
      %6245 = vst [vmem:[%s6227 + $0xc9] sm:$0xff] %v6158
      %6246 = vst [vmem:[%s6227 + $0xd9] sm:$0xff] %v6159
      %6247 = vst [vmem:[%s6227 + $0xe1] sm:$0xff] %v6160
      %6248 = vst [vmem:[%s6227 + $0xf1] sm:$0xff] %v6161
      %6249 = vst [vmem:[%s6227 + $0xf9] sm:$0xff] %v6162
      %6250 = vst [vmem:[%s6227 + $0x109] sm:$0xff] %v6163
      %6251 = vst [vmem:[%s6227 + $0x111] sm:$0xff] %v6164
      %6252 = vst [vmem:[%s6227 + $0x121] sm:$0xff] %v6165
      %6253 = vst [vmem:[%s6227 + $0x129] sm:$0xff] %v6166
      %6254 = vst [vmem:[%s6227 + $0x139] sm:$0xff] %v6167
      %6255 = vst [vmem:[%s6227 + $0x141] sm:$0xff] %v6168
      %6256 = vst [vmem:[%s6227 + $0x151] sm:$0xff] %v6169
      %6257 = vst [vmem:[%s6227 + $0x159] sm:$0xff] %v6170
      %6258 = vst [vmem:[%s6227 + $0x169] sm:$0xff] %v6171
      %6259 = vst [vmem:[%s6227 + $0x171] sm:$0xff] %v6172
      %v6260 = vld [vmem:[#allocation4] sm:$0xff]
      %v6261 = vld [vmem:[#allocation4 + $0x8] sm:$0xff]
      %v6262 = vld [vmem:[#allocation4 + $0x18] sm:$0xff]
      %v6263 = vld [vmem:[#allocation4 + $0x20] sm:$0xff]
      %v6264 = vld [vmem:[#allocation4 + $0x30] sm:$0xff]
      %v6265 = vld [vmem:[#allocation4 + $0x38] sm:$0xff]
      %v6266 = vld [vmem:[#allocation4 + $0x48] sm:$0xff]
      %v6267 = vld [vmem:[#allocation4 + $0x50] sm:$0xff]
      %v6268 = vld [vmem:[#allocation4 + $0x60] sm:$0xff]
      %v6269 = vld [vmem:[#allocation4 + $0x68] sm:$0xff]
      %v6270 = vld [vmem:[#allocation4 + $0x78] sm:$0xff]
      %v6271 = vld [vmem:[#allocation4 + $0x80] sm:$0xff]
      %v6272 = vld [vmem:[#allocation4 + $0x90] sm:$0xff]
      %v6273 = vld [vmem:[#allocation4 + $0x98] sm:$0xff]
      %v6274 = vld [vmem:[#allocation4 + $0xa8] sm:$0xff]
      %v6275 = vld [vmem:[#allocation4 + $0xb0] sm:$0xff]
      %v6276 = vld [vmem:[#allocation4 + $0xc0] sm:$0xff]
      %v6277 = vld [vmem:[#allocation4 + $0xc8] sm:$0xff]
      %v6278 = vld [vmem:[#allocation4 + $0xd8] sm:$0xff]
      %v6279 = vld [vmem:[#allocation4 + $0xe0] sm:$0xff]
      %v6280 = vld [vmem:[#allocation4 + $0xf0] sm:$0xff]
      %v6281 = vld [vmem:[#allocation4 + $0xf8] sm:$0xff]
      %v6282 = vld [vmem:[#allocation4 + $0x108] sm:$0xff]
      %v6283 = vld [vmem:[#allocation4 + $0x110] sm:$0xff]
      %v6284 = vld [vmem:[#allocation4 + $0x120] sm:$0xff]
      %v6285 = vld [vmem:[#allocation4 + $0x128] sm:$0xff]
      %v6286 = vld [vmem:[#allocation4 + $0x138] sm:$0xff]
      %v6287 = vld [vmem:[#allocation4 + $0x140] sm:$0xff]
      %v6288 = vld [vmem:[#allocation4 + $0x150] sm:$0xff]
      %v6289 = vld [vmem:[#allocation4 + $0x158] sm:$0xff]
      %v6290 = vld [vmem:[#allocation4 + $0x168] sm:$0xff]
      %v6291 = vld [vmem:[#allocation4 + $0x170] sm:$0xff]
      %v6292 = vpack.c.bf16 %v6261, %v6260
      %v6293 = vpack.c.bf16 %v6263, %v6262
      %v6294 = vpack.c.bf16 %v6265, %v6264
      %v6295 = vpack.c.bf16 %v6267, %v6266
      %v6296 = vpack.c.bf16 %v6269, %v6268
      %v6297 = vpack.c.bf16 %v6271, %v6270
      %v6298 = vpack.c.bf16 %v6273, %v6272
      %v6299 = vpack.c.bf16 %v6275, %v6274
      %v6300 = vpack.c.bf16 %v6277, %v6276
      %v6301 = vpack.c.bf16 %v6279, %v6278
      %v6302 = vpack.c.bf16 %v6281, %v6280
      %v6303 = vpack.c.bf16 %v6283, %v6282
      %v6304 = vpack.c.bf16 %v6285, %v6284
      %v6305 = vpack.c.bf16 %v6287, %v6286
      %v6306 = vpack.c.bf16 %v6289, %v6288
      %v6307 = vpack.c.bf16 %v6291, %v6290
      %v6308 = vld [vmem:[%s3] sm:$0xf]
      %v6309 = vld [vmem:[%s3 + $0x4] sm:$0xf]
      %v6310 = vld [vmem:[%s3 + $0x8] sm:$0xf]
      %v6311 = vld [vmem:[%s3 + $0xc] sm:$0xf]
      %v6312 = vld [vmem:[%s3 + $0x10] sm:$0xf]
      %v6313 = vld [vmem:[%s3 + $0x14] sm:$0xf]
      %v6314 = vld [vmem:[%s3 + $0x18] sm:$0xf]
      %v6315 = vld [vmem:[%s3 + $0x1c] sm:$0xf]
      %v6316 = vld [vmem:[%s3 + $0x20] sm:$0xf]
      %v6317 = vld [vmem:[%s3 + $0x24] sm:$0xf]
      %v6318 = vld [vmem:[%s3 + $0x28] sm:$0xf]
      %v6319 = vld [vmem:[%s3 + $0x2c] sm:$0xf]
      %v6320 = vld [vmem:[%s3 + $0x30] sm:$0xf]
      %v6321 = vld [vmem:[%s3 + $0x34] sm:$0xf]
      %v6322 = vld [vmem:[%s3 + $0x38] sm:$0xf]
      %v6323 = vld [vmem:[%s3 + $0x3c] sm:$0xf]
      %v6324 = vld [vmem:[#allocation4 + $0x1] sm:$0xff]
      %v6325 = vld [vmem:[#allocation4 + $0x9] sm:$0xff]
      %v6326 = vld [vmem:[#allocation4 + $0x19] sm:$0xff]
      %v6327 = vld [vmem:[#allocation4 + $0x21] sm:$0xff]
      %v6328 = vld [vmem:[#allocation4 + $0x31] sm:$0xff]
      %v6329 = vld [vmem:[#allocation4 + $0x39] sm:$0xff]
      %v6330 = vld [vmem:[#allocation4 + $0x49] sm:$0xff]
      %v6331 = vld [vmem:[#allocation4 + $0x51] sm:$0xff]
      %v6332 = vld [vmem:[#allocation4 + $0x61] sm:$0xff]
      %v6333 = vld [vmem:[#allocation4 + $0x69] sm:$0xff]
      %v6334 = vld [vmem:[#allocation4 + $0x79] sm:$0xff]
      %v6335 = vld [vmem:[#allocation4 + $0x81] sm:$0xff]
      %v6336 = vld [vmem:[#allocation4 + $0x91] sm:$0xff]
      %v6337 = vld [vmem:[#allocation4 + $0x99] sm:$0xff]
      %v6338 = vld [vmem:[#allocation4 + $0xa9] sm:$0xff]
      %v6339 = vld [vmem:[#allocation4 + $0xb1] sm:$0xff]
      %v6340 = vld [vmem:[#allocation4 + $0xc1] sm:$0xff]
      %v6341 = vld [vmem:[#allocation4 + $0xc9] sm:$0xff]
      %v6342 = vld [vmem:[#allocation4 + $0xd9] sm:$0xff]
      %v6343 = vld [vmem:[#allocation4 + $0xe1] sm:$0xff]
      %v6344 = vld [vmem:[#allocation4 + $0xf1] sm:$0xff]
      %v6345 = vld [vmem:[#allocation4 + $0xf9] sm:$0xff]
      %v6346 = vld [vmem:[#allocation4 + $0x109] sm:$0xff]
      %v6347 = vld [vmem:[#allocation4 + $0x111] sm:$0xff]
      %v6348 = vld [vmem:[#allocation4 + $0x121] sm:$0xff]
      %v6349 = vld [vmem:[#allocation4 + $0x129] sm:$0xff]
      %v6350 = vld [vmem:[#allocation4 + $0x139] sm:$0xff]
      %v6351 = vld [vmem:[#allocation4 + $0x141] sm:$0xff]
      %v6352 = vld [vmem:[#allocation4 + $0x151] sm:$0xff]
      %v6353 = vld [vmem:[#allocation4 + $0x159] sm:$0xff]
      %v6354 = vld [vmem:[#allocation4 + $0x169] sm:$0xff]
      %v6355 = vld [vmem:[#allocation4 + $0x171] sm:$0xff]
      %v6356 = vpack.c.bf16 %v6325, %v6324
      %v6357 = vpack.c.bf16 %v6327, %v6326
      %v6358 = vpack.c.bf16 %v6329, %v6328
      %v6359 = vpack.c.bf16 %v6331, %v6330
      %v6360 = vpack.c.bf16 %v6333, %v6332
      %v6361 = vpack.c.bf16 %v6335, %v6334
      %v6362 = vpack.c.bf16 %v6337, %v6336
      %v6363 = vpack.c.bf16 %v6339, %v6338
      %v6364 = vpack.c.bf16 %v6341, %v6340
      %v6365 = vpack.c.bf16 %v6343, %v6342
      %v6366 = vpack.c.bf16 %v6345, %v6344
      %v6367 = vpack.c.bf16 %v6347, %v6346
      %v6368 = vpack.c.bf16 %v6349, %v6348
      %v6369 = vpack.c.bf16 %v6351, %v6350
      %v6370 = vpack.c.bf16 %v6353, %v6352
      %v6371 = vpack.c.bf16 %v6355, %v6354
      %s6372 = scalar_lea.vmem %s3, 64
      %v6373 = vld [vmem:[%s6372] sm:$0xf]
      %v6374 = vld [vmem:[%s6372 + $0x4] sm:$0xf]
      %v6375 = vld [vmem:[%s6372 + $0x8] sm:$0xf]
      %v6376 = vld [vmem:[%s6372 + $0xc] sm:$0xf]
      %v6377 = vld [vmem:[%s6372 + $0x10] sm:$0xf]
      %v6378 = vld [vmem:[%s6372 + $0x14] sm:$0xf]
      %v6379 = vld [vmem:[%s6372 + $0x18] sm:$0xf]
      %v6380 = vld [vmem:[%s6372 + $0x1c] sm:$0xf]
      %v6381 = vld [vmem:[%s6372 + $0x20] sm:$0xf]
      %v6382 = vld [vmem:[%s6372 + $0x24] sm:$0xf]
      %v6383 = vld [vmem:[%s6372 + $0x28] sm:$0xf]
      %v6384 = vld [vmem:[%s6372 + $0x2c] sm:$0xf]
      %v6385 = vld [vmem:[%s6372 + $0x30] sm:$0xf]
      %v6386 = vld [vmem:[%s6372 + $0x34] sm:$0xf]
      %v6387 = vld [vmem:[%s6372 + $0x38] sm:$0xf]
      %v6388 = vld [vmem:[%s6372 + $0x3c] sm:$0xf]
      %v6405 = vunpack.c.l.b16 %v6373
      %v6406 = vunpack.c.l.b16 %v6374
      %v6407 = vunpack.c.l.b16 %v6375
      %v6408 = vunpack.c.l.b16 %v6376
      %v6409 = vunpack.c.l.b16 %v6377
      %v6410 = vunpack.c.l.b16 %v6378
      %v6411 = vunpack.c.l.b16 %v6379
      %v6412 = vunpack.c.l.b16 %v6380
      %v6413 = vunpack.c.l.b16 %v6381
      %v6414 = vunpack.c.l.b16 %v6382
      %v6415 = vunpack.c.l.b16 %v6383
      %v6416 = vunpack.c.l.b16 %v6384
      %v6417 = vunpack.c.l.b16 %v6385
      %v6418 = vunpack.c.l.b16 %v6386
      %v6419 = vunpack.c.l.b16 %v6387
      %v6420 = vunpack.c.l.b16 %v6388
      %v6421 = vpack.c.b16 %v6406, %v6405
      %v6422 = vpack.c.b16 %v6408, %v6407
      %v6423 = vpack.c.b16 %v6410, %v6409
      %v6424 = vpack.c.b16 %v6412, %v6411
      %v6425 = vpack.c.b16 %v6414, %v6413
      %v6426 = vpack.c.b16 %v6416, %v6415
      %v6427 = vpack.c.b16 %v6418, %v6417
      %v6428 = vpack.c.b16 %v6420, %v6419
      %6437 = vmatprep.subr.bf16.mxu0 0
      %6438 = vmatpush1.bf16.msra.mxu0 %v6428
      %6439 = vmatprep.subr.bf16.mxu0 0
      %6440 = vmatpush1.bf16.msra.mxu0 %v6427
      %6441 = vmatprep.subr.bf16.mxu0 0
      %6442 = vmatpush1.bf16.msra.mxu0 %v6426
      %6443 = vmatprep.subr.bf16.mxu0 0
      %6444 = vmatpush1.bf16.msra.mxu0 %v6425
      %6445 = vmatprep.subr.bf16.mxu0 0
      %6446 = vmatpush1.bf16.msra.mxu0 %v6424
      %6447 = vmatprep.subr.bf16.mxu0 0
      %6448 = vmatpush1.bf16.msra.mxu0 %v6423
      %6449 = vmatprep.subr.bf16.mxu0 0
      %6450 = vmatpush1.bf16.msra.mxu0 %v6422
      %6451 = vmatprep.subr.bf16.mxu0 0
      %6452 = vmatpush1.bf16.msra.mxu0 %v6421
      %6453 = vmatprep.subr.bf16.mxu0 0
      %6454 = vmatpush2.bf16.msra.mxu0 0
      %6455 = vmatprep.subr.bf16.mxu0 0
      %6456 = vmatpush2.bf16.msra.mxu0 0
      %6457 = vmatprep.subr.bf16.mxu0 0
      %6458 = vmatpush2.bf16.msra.mxu0 0
      %6459 = vmatprep.subr.bf16.mxu0 0
      %6460 = vmatpush2.bf16.msra.mxu0 0
      %6461 = vmatprep.subr.bf16.mxu0 0
      %6462 = vmatpush2.bf16.msra.mxu0 0
      %6463 = vmatprep.subr.bf16.mxu0 0
      %6464 = vmatpush2.bf16.msra.mxu0 0
      %6465 = vmatprep.subr.bf16.mxu0 0
      %6466 = vmatpush2.bf16.msra.mxu0 0
      %6467 = vmatprep.subr.bf16.mxu0 0
      %6468 = vmatpush2.bf16.msra.mxu0 0
      %6469 = vmatprep.mubr.bf16.mxu0 0
      %6470 = vmatmul.mubr.bf16.gmra.mxu0 %v6356
      %v6471 = vpop.f32.mrf.mxu0
      %v6472 = vadd.f32 0.0, %v6471
      %v6473 = vpop.f32.mrf.mxu0
      %v6474 = vpop.f32.mrf.mxu0
      %v6475 = vadd.f32 0.0, %v6474
      %v6476 = vpop.f32.mrf.mxu0
      %6477 = vmatprep.mubr.bf16.mxu0 0
      %6478 = vmatmul.mubr.bf16.gmra.mxu0 %v6357
      %v6479 = vpop.f32.mrf.mxu0
      %v6480 = vadd.f32 0.0, %v6479
      %v6481 = vpop.f32.mrf.mxu0
      %v6482 = vpop.f32.mrf.mxu0
      %v6483 = vadd.f32 0.0, %v6482
      %v6484 = vpop.f32.mrf.mxu0
      %6485 = vmatprep.mubr.bf16.mxu0 0
      %6486 = vmatmul.mubr.bf16.gmra.mxu0 %v6358
      %v6487 = vpop.f32.mrf.mxu0
      %v6488 = vadd.f32 0.0, %v6487
      %v6489 = vpop.f32.mrf.mxu0
      %v6490 = vpop.f32.mrf.mxu0
      %v6491 = vadd.f32 0.0, %v6490
      %v6492 = vpop.f32.mrf.mxu0
      %6493 = vmatprep.mubr.bf16.mxu0 0
      %6494 = vmatmul.mubr.bf16.gmra.mxu0 %v6359
      %v6495 = vpop.f32.mrf.mxu0
      %v6496 = vadd.f32 0.0, %v6495
      %v6497 = vpop.f32.mrf.mxu0
      %v6498 = vpop.f32.mrf.mxu0
      %v6499 = vadd.f32 0.0, %v6498
      %v6500 = vpop.f32.mrf.mxu0
      %6501 = vmatprep.mubr.bf16.mxu0 0
      %6502 = vmatmul.mubr.bf16.gmra.mxu0 %v6360
      %v6503 = vpop.f32.mrf.mxu0
      %v6504 = vadd.f32 0.0, %v6503
      %v6505 = vpop.f32.mrf.mxu0
      %v6506 = vpop.f32.mrf.mxu0
      %v6507 = vadd.f32 0.0, %v6506
      %v6508 = vpop.f32.mrf.mxu0
      %6509 = vmatprep.mubr.bf16.mxu0 0
      %6510 = vmatmul.mubr.bf16.gmra.mxu0 %v6361
      %v6511 = vpop.f32.mrf.mxu0
      %v6512 = vadd.f32 0.0, %v6511
      %v6513 = vpop.f32.mrf.mxu0
      %v6514 = vpop.f32.mrf.mxu0
      %v6515 = vadd.f32 0.0, %v6514
      %v6516 = vpop.f32.mrf.mxu0
      %6517 = vmatprep.mubr.bf16.mxu0 0
      %6518 = vmatmul.mubr.bf16.gmra.mxu0 %v6362
      %v6519 = vpop.f32.mrf.mxu0
      %v6520 = vadd.f32 0.0, %v6519
      %v6521 = vpop.f32.mrf.mxu0
      %v6522 = vpop.f32.mrf.mxu0
      %v6523 = vadd.f32 0.0, %v6522
      %v6524 = vpop.f32.mrf.mxu0
      %6525 = vmatprep.mubr.bf16.mxu0 0
      %6526 = vmatmul.mubr.bf16.gmra.mxu0 %v6363
      %v6527 = vpop.f32.mrf.mxu0
      %v6528 = vadd.f32 0.0, %v6527
      %v6529 = vpop.f32.mrf.mxu0
      %v6530 = vpop.f32.mrf.mxu0
      %v6531 = vadd.f32 0.0, %v6530
      %v6532 = vpop.f32.mrf.mxu0
      %6533 = vmatprep.mubr.bf16.mxu0 0
      %6534 = vmatmul.mubr.bf16.gmra.mxu0 %v6364
      %v6535 = vpop.f32.mrf.mxu0
      %v6536 = vadd.f32 0.0, %v6535
      %v6537 = vpop.f32.mrf.mxu0
      %v6538 = vpop.f32.mrf.mxu0
      %v6539 = vadd.f32 0.0, %v6538
      %v6540 = vpop.f32.mrf.mxu0
      %6541 = vmatprep.mubr.bf16.mxu0 0
      %6542 = vmatmul.mubr.bf16.gmra.mxu0 %v6365
      %v6543 = vpop.f32.mrf.mxu0
      %v6544 = vadd.f32 0.0, %v6543
      %v6545 = vpop.f32.mrf.mxu0
      %v6546 = vpop.f32.mrf.mxu0
      %v6547 = vadd.f32 0.0, %v6546
      %v6548 = vpop.f32.mrf.mxu0
      %6549 = vmatprep.mubr.bf16.mxu0 0
      %6550 = vmatmul.mubr.bf16.gmra.mxu0 %v6366
      %v6551 = vpop.f32.mrf.mxu0
      %v6552 = vadd.f32 0.0, %v6551
      %v6553 = vpop.f32.mrf.mxu0
      %v6554 = vpop.f32.mrf.mxu0
      %v6555 = vadd.f32 0.0, %v6554
      %v6556 = vpop.f32.mrf.mxu0
      %6557 = vmatprep.mubr.bf16.mxu0 0
      %6558 = vmatmul.mubr.bf16.gmra.mxu0 %v6367
      %v6559 = vpop.f32.mrf.mxu0
      %v6560 = vadd.f32 0.0, %v6559
      %v6561 = vpop.f32.mrf.mxu0
      %v6562 = vpop.f32.mrf.mxu0
      %v6563 = vadd.f32 0.0, %v6562
      %v6564 = vpop.f32.mrf.mxu0
      %6565 = vmatprep.mubr.bf16.mxu0 0
      %6566 = vmatmul.mubr.bf16.gmra.mxu0 %v6368
      %v6567 = vpop.f32.mrf.mxu0
      %v6568 = vadd.f32 0.0, %v6567
      %v6569 = vpop.f32.mrf.mxu0
      %v6570 = vpop.f32.mrf.mxu0
      %v6571 = vadd.f32 0.0, %v6570
      %v6572 = vpop.f32.mrf.mxu0
      %6573 = vmatprep.mubr.bf16.mxu0 0
      %6574 = vmatmul.mubr.bf16.gmra.mxu0 %v6369
      %v6575 = vpop.f32.mrf.mxu0
      %v6576 = vadd.f32 0.0, %v6575
      %v6577 = vpop.f32.mrf.mxu0
      %v6578 = vpop.f32.mrf.mxu0
      %v6579 = vadd.f32 0.0, %v6578
      %v6580 = vpop.f32.mrf.mxu0
      %6581 = vmatprep.mubr.bf16.mxu0 0
      %6582 = vmatmul.mubr.bf16.gmra.mxu0 %v6370
      %v6583 = vpop.f32.mrf.mxu0
      %v6584 = vadd.f32 0.0, %v6583
      %v6585 = vpop.f32.mrf.mxu0
      %v6586 = vpop.f32.mrf.mxu0
      %v6587 = vadd.f32 0.0, %v6586
      %v6588 = vpop.f32.mrf.mxu0
      %6589 = vmatprep.mubr.bf16.mxu0 0
      %6590 = vmatmul.mubr.bf16.gmra.mxu0 %v6371
      %v6591 = vpop.f32.mrf.mxu0
      %v6592 = vadd.f32 0.0, %v6591
      %v6593 = vpop.f32.mrf.mxu0
      %v6594 = vpop.f32.mrf.mxu0
      %v6595 = vadd.f32 0.0, %v6594
      %v6596 = vpop.f32.mrf.mxu0
      %6597 = vdwg.mxu0
      %v6614 = vunpack.c.l.b16 %v6308
      %v6615 = vunpack.c.l.b16 %v6309
      %v6616 = vunpack.c.l.b16 %v6310
      %v6617 = vunpack.c.l.b16 %v6311
      %v6618 = vunpack.c.l.b16 %v6312
      %v6619 = vunpack.c.l.b16 %v6313
      %v6620 = vunpack.c.l.b16 %v6314
      %v6621 = vunpack.c.l.b16 %v6315
      %v6622 = vunpack.c.l.b16 %v6316
      %v6623 = vunpack.c.l.b16 %v6317
      %v6624 = vunpack.c.l.b16 %v6318
      %v6625 = vunpack.c.l.b16 %v6319
      %v6626 = vunpack.c.l.b16 %v6320
      %v6627 = vunpack.c.l.b16 %v6321
      %v6628 = vunpack.c.l.b16 %v6322
      %v6629 = vunpack.c.l.b16 %v6323
      %v6630 = vpack.c.b16 %v6615, %v6614
      %v6631 = vpack.c.b16 %v6617, %v6616
      %v6632 = vpack.c.b16 %v6619, %v6618
      %v6633 = vpack.c.b16 %v6621, %v6620
      %v6634 = vpack.c.b16 %v6623, %v6622
      %v6635 = vpack.c.b16 %v6625, %v6624
      %v6636 = vpack.c.b16 %v6627, %v6626
      %v6637 = vpack.c.b16 %v6629, %v6628
      %6646 = vmatprep.subr.bf16.mxu0 0
      %6647 = vmatpush1.bf16.msra.mxu0 %v6637
      %6648 = vmatprep.subr.bf16.mxu0 0
      %6649 = vmatpush1.bf16.msra.mxu0 %v6636
      %6650 = vmatprep.subr.bf16.mxu0 0
      %6651 = vmatpush1.bf16.msra.mxu0 %v6635
      %6652 = vmatprep.subr.bf16.mxu0 0
      %6653 = vmatpush1.bf16.msra.mxu0 %v6634
      %6654 = vmatprep.subr.bf16.mxu0 0
      %6655 = vmatpush1.bf16.msra.mxu0 %v6633
      %6656 = vmatprep.subr.bf16.mxu0 0
      %6657 = vmatpush1.bf16.msra.mxu0 %v6632
      %6658 = vmatprep.subr.bf16.mxu0 0
      %6659 = vmatpush1.bf16.msra.mxu0 %v6631
      %6660 = vmatprep.subr.bf16.mxu0 0
      %6661 = vmatpush1.bf16.msra.mxu0 %v6630
      %6662 = vmatprep.subr.bf16.mxu0 0
      %6663 = vmatpush2.bf16.msra.mxu0 0
      %6664 = vmatprep.subr.bf16.mxu0 0
      %6665 = vmatpush2.bf16.msra.mxu0 0
      %6666 = vmatprep.subr.bf16.mxu0 0
      %6667 = vmatpush2.bf16.msra.mxu0 0
      %6668 = vmatprep.subr.bf16.mxu0 0
      %6669 = vmatpush2.bf16.msra.mxu0 0
      %6670 = vmatprep.subr.bf16.mxu0 0
      %6671 = vmatpush2.bf16.msra.mxu0 0
      %6672 = vmatprep.subr.bf16.mxu0 0
      %6673 = vmatpush2.bf16.msra.mxu0 0
      %6674 = vmatprep.subr.bf16.mxu0 0
      %6675 = vmatpush2.bf16.msra.mxu0 0
      %6676 = vmatprep.subr.bf16.mxu0 0
      %6677 = vmatpush2.bf16.msra.mxu0 0
      %6678 = vmatprep.mubr.bf16.mxu0 0
      %6679 = vmatmul.mubr.bf16.gmra.mxu0 %v6292
      %v6680 = vpop.f32.mrf.mxu0
      %v6681 = vadd.f32 %v6472, %v6680
      %v6682 = vpop.f32.mrf.mxu0
      %v6683 = vpop.f32.mrf.mxu0
      %v6684 = vadd.f32 %v6475, %v6683
      %v6685 = vpop.f32.mrf.mxu0
      %6686 = vmatprep.mubr.bf16.mxu0 0
      %6687 = vmatmul.mubr.bf16.gmra.mxu0 %v6293
      %v6688 = vpop.f32.mrf.mxu0
      %v6689 = vadd.f32 %v6480, %v6688
      %v6690 = vpop.f32.mrf.mxu0
      %v6691 = vpop.f32.mrf.mxu0
      %v6692 = vadd.f32 %v6483, %v6691
      %v6693 = vpop.f32.mrf.mxu0
      %6694 = vmatprep.mubr.bf16.mxu0 0
      %6695 = vmatmul.mubr.bf16.gmra.mxu0 %v6294
      %v6696 = vpop.f32.mrf.mxu0
      %v6697 = vadd.f32 %v6488, %v6696
      %v6698 = vpop.f32.mrf.mxu0
      %v6699 = vpop.f32.mrf.mxu0
      %v6700 = vadd.f32 %v6491, %v6699
      %v6701 = vpop.f32.mrf.mxu0
      %6702 = vmatprep.mubr.bf16.mxu0 0
      %6703 = vmatmul.mubr.bf16.gmra.mxu0 %v6295
      %v6704 = vpop.f32.mrf.mxu0
      %v6705 = vadd.f32 %v6496, %v6704
      %v6706 = vpop.f32.mrf.mxu0
      %v6707 = vpop.f32.mrf.mxu0
      %v6708 = vadd.f32 %v6499, %v6707
      %v6709 = vpop.f32.mrf.mxu0
      %6710 = vmatprep.mubr.bf16.mxu0 0
      %6711 = vmatmul.mubr.bf16.gmra.mxu0 %v6296
      %v6712 = vpop.f32.mrf.mxu0
      %v6713 = vadd.f32 %v6504, %v6712
      %v6714 = vpop.f32.mrf.mxu0
      %v6715 = vpop.f32.mrf.mxu0
      %v6716 = vadd.f32 %v6507, %v6715
      %v6717 = vpop.f32.mrf.mxu0
      %6718 = vmatprep.mubr.bf16.mxu0 0
      %6719 = vmatmul.mubr.bf16.gmra.mxu0 %v6297
      %v6720 = vpop.f32.mrf.mxu0
      %v6721 = vadd.f32 %v6512, %v6720
      %v6722 = vpop.f32.mrf.mxu0
      %v6723 = vpop.f32.mrf.mxu0
      %v6724 = vadd.f32 %v6515, %v6723
      %v6725 = vpop.f32.mrf.mxu0
      %6726 = vmatprep.mubr.bf16.mxu0 0
      %6727 = vmatmul.mubr.bf16.gmra.mxu0 %v6298
      %v6728 = vpop.f32.mrf.mxu0
      %v6729 = vadd.f32 %v6520, %v6728
      %v6730 = vpop.f32.mrf.mxu0
      %v6731 = vpop.f32.mrf.mxu0
      %v6732 = vadd.f32 %v6523, %v6731
      %v6733 = vpop.f32.mrf.mxu0
      %6734 = vmatprep.mubr.bf16.mxu0 0
      %6735 = vmatmul.mubr.bf16.gmra.mxu0 %v6299
      %v6736 = vpop.f32.mrf.mxu0
      %v6737 = vadd.f32 %v6528, %v6736
      %v6738 = vpop.f32.mrf.mxu0
      %v6739 = vpop.f32.mrf.mxu0
      %v6740 = vadd.f32 %v6531, %v6739
      %v6741 = vpop.f32.mrf.mxu0
      %6742 = vmatprep.mubr.bf16.mxu0 0
      %6743 = vmatmul.mubr.bf16.gmra.mxu0 %v6300
      %v6744 = vpop.f32.mrf.mxu0
      %v6745 = vadd.f32 %v6536, %v6744
      %v6746 = vpop.f32.mrf.mxu0
      %v6747 = vpop.f32.mrf.mxu0
      %v6748 = vadd.f32 %v6539, %v6747
      %v6749 = vpop.f32.mrf.mxu0
      %6750 = vmatprep.mubr.bf16.mxu0 0
      %6751 = vmatmul.mubr.bf16.gmra.mxu0 %v6301
      %v6752 = vpop.f32.mrf.mxu0
      %v6753 = vadd.f32 %v6544, %v6752
      %v6754 = vpop.f32.mrf.mxu0
      %v6755 = vpop.f32.mrf.mxu0
      %v6756 = vadd.f32 %v6547, %v6755
      %v6757 = vpop.f32.mrf.mxu0
      %6758 = vmatprep.mubr.bf16.mxu0 0
      %6759 = vmatmul.mubr.bf16.gmra.mxu0 %v6302
      %v6760 = vpop.f32.mrf.mxu0
      %v6761 = vadd.f32 %v6552, %v6760
      %v6762 = vpop.f32.mrf.mxu0
      %v6763 = vpop.f32.mrf.mxu0
      %v6764 = vadd.f32 %v6555, %v6763
      %v6765 = vpop.f32.mrf.mxu0
      %6766 = vmatprep.mubr.bf16.mxu0 0
      %6767 = vmatmul.mubr.bf16.gmra.mxu0 %v6303
      %v6768 = vpop.f32.mrf.mxu0
      %v6769 = vadd.f32 %v6560, %v6768
      %v6770 = vpop.f32.mrf.mxu0
      %v6771 = vpop.f32.mrf.mxu0
      %v6772 = vadd.f32 %v6563, %v6771
      %v6773 = vpop.f32.mrf.mxu0
      %6774 = vmatprep.mubr.bf16.mxu0 0
      %6775 = vmatmul.mubr.bf16.gmra.mxu0 %v6304
      %v6776 = vpop.f32.mrf.mxu0
      %v6777 = vadd.f32 %v6568, %v6776
      %v6778 = vpop.f32.mrf.mxu0
      %v6779 = vpop.f32.mrf.mxu0
      %v6780 = vadd.f32 %v6571, %v6779
      %v6781 = vpop.f32.mrf.mxu0
      %6782 = vmatprep.mubr.bf16.mxu0 0
      %6783 = vmatmul.mubr.bf16.gmra.mxu0 %v6305
      %v6784 = vpop.f32.mrf.mxu0
      %v6785 = vadd.f32 %v6576, %v6784
      %v6786 = vpop.f32.mrf.mxu0
      %v6787 = vpop.f32.mrf.mxu0
      %v6788 = vadd.f32 %v6579, %v6787
      %v6789 = vpop.f32.mrf.mxu0
      %6790 = vmatprep.mubr.bf16.mxu0 0
      %6791 = vmatmul.mubr.bf16.gmra.mxu0 %v6306
      %v6792 = vpop.f32.mrf.mxu0
      %v6793 = vadd.f32 %v6584, %v6792
      %v6794 = vpop.f32.mrf.mxu0
      %v6795 = vpop.f32.mrf.mxu0
      %v6796 = vadd.f32 %v6587, %v6795
      %v6797 = vpop.f32.mrf.mxu0
      %6798 = vmatprep.mubr.bf16.mxu0 0
      %6799 = vmatmul.mubr.bf16.gmra.mxu0 %v6307
      %v6800 = vpop.f32.mrf.mxu0
      %v6801 = vadd.f32 %v6592, %v6800
      %v6802 = vpop.f32.mrf.mxu0
      %v6803 = vpop.f32.mrf.mxu0
      %v6804 = vadd.f32 %v6595, %v6803
      %v6805 = vpop.f32.mrf.mxu0
      %6806 = vdwg.mxu0
      %v6807 = vld [vmem:[#allocation4 + $0x2] sm:$0xff]
      %v6808 = vld [vmem:[#allocation4 + $0xa] sm:$0xff]
      %v6809 = vld [vmem:[#allocation4 + $0x1a] sm:$0xff]
      %v6810 = vld [vmem:[#allocation4 + $0x22] sm:$0xff]
      %v6811 = vld [vmem:[#allocation4 + $0x32] sm:$0xff]
      %v6812 = vld [vmem:[#allocation4 + $0x3a] sm:$0xff]
      %v6813 = vld [vmem:[#allocation4 + $0x4a] sm:$0xff]
      %v6814 = vld [vmem:[#allocation4 + $0x52] sm:$0xff]
      %v6815 = vld [vmem:[#allocation4 + $0x62] sm:$0xff]
      %v6816 = vld [vmem:[#allocation4 + $0x6a] sm:$0xff]
      %v6817 = vld [vmem:[#allocation4 + $0x7a] sm:$0xff]
      %v6818 = vld [vmem:[#allocation4 + $0x82] sm:$0xff]
      %v6819 = vld [vmem:[#allocation4 + $0x92] sm:$0xff]
      %v6820 = vld [vmem:[#allocation4 + $0x9a] sm:$0xff]
      %v6821 = vld [vmem:[#allocation4 + $0xaa] sm:$0xff]
      %v6822 = vld [vmem:[#allocation4 + $0xb2] sm:$0xff]
      %v6823 = vld [vmem:[#allocation4 + $0xc2] sm:$0xff]
      %v6824 = vld [vmem:[#allocation4 + $0xca] sm:$0xff]
      %v6825 = vld [vmem:[#allocation4 + $0xda] sm:$0xff]
      %v6826 = vld [vmem:[#allocation4 + $0xe2] sm:$0xff]
      %v6827 = vld [vmem:[#allocation4 + $0xf2] sm:$0xff]
      %v6828 = vld [vmem:[#allocation4 + $0xfa] sm:$0xff]
      %v6829 = vld [vmem:[#allocation4 + $0x10a] sm:$0xff]
      %v6830 = vld [vmem:[#allocation4 + $0x112] sm:$0xff]
      %v6831 = vld [vmem:[#allocation4 + $0x122] sm:$0xff]
      %v6832 = vld [vmem:[#allocation4 + $0x12a] sm:$0xff]
      %v6833 = vld [vmem:[#allocation4 + $0x13a] sm:$0xff]
      %v6834 = vld [vmem:[#allocation4 + $0x142] sm:$0xff]
      %v6835 = vld [vmem:[#allocation4 + $0x152] sm:$0xff]
      %v6836 = vld [vmem:[#allocation4 + $0x15a] sm:$0xff]
      %v6837 = vld [vmem:[#allocation4 + $0x16a] sm:$0xff]
      %v6838 = vld [vmem:[#allocation4 + $0x172] sm:$0xff]
      %v6839 = vpack.c.bf16 %v6808, %v6807
      %v6840 = vpack.c.bf16 %v6810, %v6809
      %v6841 = vpack.c.bf16 %v6812, %v6811
      %v6842 = vpack.c.bf16 %v6814, %v6813
      %v6843 = vpack.c.bf16 %v6816, %v6815
      %v6844 = vpack.c.bf16 %v6818, %v6817
      %v6845 = vpack.c.bf16 %v6820, %v6819
      %v6846 = vpack.c.bf16 %v6822, %v6821
      %v6847 = vpack.c.bf16 %v6824, %v6823
      %v6848 = vpack.c.bf16 %v6826, %v6825
      %v6849 = vpack.c.bf16 %v6828, %v6827
      %v6850 = vpack.c.bf16 %v6830, %v6829
      %v6851 = vpack.c.bf16 %v6832, %v6831
      %v6852 = vpack.c.bf16 %v6834, %v6833
      %v6853 = vpack.c.bf16 %v6836, %v6835
      %v6854 = vpack.c.bf16 %v6838, %v6837
      %s6855 = scalar_lea.vmem %s3, 128
      %v6856 = vld [vmem:[%s6855] sm:$0xf]
      %v6857 = vld [vmem:[%s6855 + $0x4] sm:$0xf]
      %v6858 = vld [vmem:[%s6855 + $0x8] sm:$0xf]
      %v6859 = vld [vmem:[%s6855 + $0xc] sm:$0xf]
      %v6860 = vld [vmem:[%s6855 + $0x10] sm:$0xf]
      %v6861 = vld [vmem:[%s6855 + $0x14] sm:$0xf]
      %v6862 = vld [vmem:[%s6855 + $0x18] sm:$0xf]
      %v6863 = vld [vmem:[%s6855 + $0x1c] sm:$0xf]
      %v6864 = vld [vmem:[%s6855 + $0x20] sm:$0xf]
      %v6865 = vld [vmem:[%s6855 + $0x24] sm:$0xf]
      %v6866 = vld [vmem:[%s6855 + $0x28] sm:$0xf]
      %v6867 = vld [vmem:[%s6855 + $0x2c] sm:$0xf]
      %v6868 = vld [vmem:[%s6855 + $0x30] sm:$0xf]
      %v6869 = vld [vmem:[%s6855 + $0x34] sm:$0xf]
      %v6870 = vld [vmem:[%s6855 + $0x38] sm:$0xf]
      %v6871 = vld [vmem:[%s6855 + $0x3c] sm:$0xf]
      %v6888 = vunpack.c.l.b16 %v6856
      %v6889 = vunpack.c.l.b16 %v6857
      %v6890 = vunpack.c.l.b16 %v6858
      %v6891 = vunpack.c.l.b16 %v6859
      %v6892 = vunpack.c.l.b16 %v6860
      %v6893 = vunpack.c.l.b16 %v6861
      %v6894 = vunpack.c.l.b16 %v6862
      %v6895 = vunpack.c.l.b16 %v6863
      %v6896 = vunpack.c.l.b16 %v6864
      %v6897 = vunpack.c.l.b16 %v6865
      %v6898 = vunpack.c.l.b16 %v6866
      %v6899 = vunpack.c.l.b16 %v6867
      %v6900 = vunpack.c.l.b16 %v6868
      %v6901 = vunpack.c.l.b16 %v6869
      %v6902 = vunpack.c.l.b16 %v6870
      %v6903 = vunpack.c.l.b16 %v6871
      %v6904 = vpack.c.b16 %v6889, %v6888
      %v6905 = vpack.c.b16 %v6891, %v6890
      %v6906 = vpack.c.b16 %v6893, %v6892
      %v6907 = vpack.c.b16 %v6895, %v6894
      %v6908 = vpack.c.b16 %v6897, %v6896
      %v6909 = vpack.c.b16 %v6899, %v6898
      %v6910 = vpack.c.b16 %v6901, %v6900
      %v6911 = vpack.c.b16 %v6903, %v6902
      %6920 = vmatprep.subr.bf16.mxu0 0
      %6921 = vmatpush1.bf16.msra.mxu0 %v6911
      %6922 = vmatprep.subr.bf16.mxu0 0
      %6923 = vmatpush1.bf16.msra.mxu0 %v6910
      %6924 = vmatprep.subr.bf16.mxu0 0
      %6925 = vmatpush1.bf16.msra.mxu0 %v6909
      %6926 = vmatprep.subr.bf16.mxu0 0
      %6927 = vmatpush1.bf16.msra.mxu0 %v6908
      %6928 = vmatprep.subr.bf16.mxu0 0
      %6929 = vmatpush1.bf16.msra.mxu0 %v6907
      %6930 = vmatprep.subr.bf16.mxu0 0
      %6931 = vmatpush1.bf16.msra.mxu0 %v6906
      %6932 = vmatprep.subr.bf16.mxu0 0
      %6933 = vmatpush1.bf16.msra.mxu0 %v6905
      %6934 = vmatprep.subr.bf16.mxu0 0
      %6935 = vmatpush1.bf16.msra.mxu0 %v6904
      %6936 = vmatprep.subr.bf16.mxu0 0
      %6937 = vmatpush2.bf16.msra.mxu0 0
      %6938 = vmatprep.subr.bf16.mxu0 0
      %6939 = vmatpush2.bf16.msra.mxu0 0
      %6940 = vmatprep.subr.bf16.mxu0 0
      %6941 = vmatpush2.bf16.msra.mxu0 0
      %6942 = vmatprep.subr.bf16.mxu0 0
      %6943 = vmatpush2.bf16.msra.mxu0 0
      %6944 = vmatprep.subr.bf16.mxu0 0
      %6945 = vmatpush2.bf16.msra.mxu0 0
      %6946 = vmatprep.subr.bf16.mxu0 0
      %6947 = vmatpush2.bf16.msra.mxu0 0
      %6948 = vmatprep.subr.bf16.mxu0 0
      %6949 = vmatpush2.bf16.msra.mxu0 0
      %6950 = vmatprep.subr.bf16.mxu0 0
      %6951 = vmatpush2.bf16.msra.mxu0 0
      %6952 = vmatprep.mubr.bf16.mxu0 0
      %6953 = vmatmul.mubr.bf16.gmra.mxu0 %v6839
      %v6954 = vpop.f32.mrf.mxu0
      %v6955 = vadd.f32 0.0, %v6954
      %v6956 = vpop.f32.mrf.mxu0
      %v6957 = vpop.f32.mrf.mxu0
      %v6958 = vadd.f32 0.0, %v6957
      %v6959 = vpop.f32.mrf.mxu0
      %6960 = vmatprep.mubr.bf16.mxu0 0
      %6961 = vmatmul.mubr.bf16.gmra.mxu0 %v6840
      %v6962 = vpop.f32.mrf.mxu0
      %v6963 = vadd.f32 0.0, %v6962
      %v6964 = vpop.f32.mrf.mxu0
      %v6965 = vpop.f32.mrf.mxu0
      %v6966 = vadd.f32 0.0, %v6965
      %v6967 = vpop.f32.mrf.mxu0
      %6968 = vmatprep.mubr.bf16.mxu0 0
      %6969 = vmatmul.mubr.bf16.gmra.mxu0 %v6841
      %v6970 = vpop.f32.mrf.mxu0
      %v6971 = vadd.f32 0.0, %v6970
      %v6972 = vpop.f32.mrf.mxu0
      %v6973 = vpop.f32.mrf.mxu0
      %v6974 = vadd.f32 0.0, %v6973
      %v6975 = vpop.f32.mrf.mxu0
      %6976 = vmatprep.mubr.bf16.mxu0 0
      %6977 = vmatmul.mubr.bf16.gmra.mxu0 %v6842
      %v6978 = vpop.f32.mrf.mxu0
      %v6979 = vadd.f32 0.0, %v6978
      %v6980 = vpop.f32.mrf.mxu0
      %v6981 = vpop.f32.mrf.mxu0
      %v6982 = vadd.f32 0.0, %v6981
      %v6983 = vpop.f32.mrf.mxu0
      %6984 = vmatprep.mubr.bf16.mxu0 0
      %6985 = vmatmul.mubr.bf16.gmra.mxu0 %v6843
      %v6986 = vpop.f32.mrf.mxu0
      %v6987 = vadd.f32 0.0, %v6986
      %v6988 = vpop.f32.mrf.mxu0
      %v6989 = vpop.f32.mrf.mxu0
      %v6990 = vadd.f32 0.0, %v6989
      %v6991 = vpop.f32.mrf.mxu0
      %6992 = vmatprep.mubr.bf16.mxu0 0
      %6993 = vmatmul.mubr.bf16.gmra.mxu0 %v6844
      %v6994 = vpop.f32.mrf.mxu0
      %v6995 = vadd.f32 0.0, %v6994
      %v6996 = vpop.f32.mrf.mxu0
      %v6997 = vpop.f32.mrf.mxu0
      %v6998 = vadd.f32 0.0, %v6997
      %v6999 = vpop.f32.mrf.mxu0
      %7000 = vmatprep.mubr.bf16.mxu0 0
      %7001 = vmatmul.mubr.bf16.gmra.mxu0 %v6845
      %v7002 = vpop.f32.mrf.mxu0
      %v7003 = vadd.f32 0.0, %v7002
      %v7004 = vpop.f32.mrf.mxu0
      %v7005 = vpop.f32.mrf.mxu0
      %v7006 = vadd.f32 0.0, %v7005
      %v7007 = vpop.f32.mrf.mxu0
      %7008 = vmatprep.mubr.bf16.mxu0 0
      %7009 = vmatmul.mubr.bf16.gmra.mxu0 %v6846
      %v7010 = vpop.f32.mrf.mxu0
      %v7011 = vadd.f32 0.0, %v7010
      %v7012 = vpop.f32.mrf.mxu0
      %v7013 = vpop.f32.mrf.mxu0
      %v7014 = vadd.f32 0.0, %v7013
      %v7015 = vpop.f32.mrf.mxu0
      %7016 = vmatprep.mubr.bf16.mxu0 0
      %7017 = vmatmul.mubr.bf16.gmra.mxu0 %v6847
      %v7018 = vpop.f32.mrf.mxu0
      %v7019 = vadd.f32 0.0, %v7018
      %v7020 = vpop.f32.mrf.mxu0
      %v7021 = vpop.f32.mrf.mxu0
      %v7022 = vadd.f32 0.0, %v7021
      %v7023 = vpop.f32.mrf.mxu0
      %7024 = vmatprep.mubr.bf16.mxu0 0
      %7025 = vmatmul.mubr.bf16.gmra.mxu0 %v6848
      %v7026 = vpop.f32.mrf.mxu0
      %v7027 = vadd.f32 0.0, %v7026
      %v7028 = vpop.f32.mrf.mxu0
      %v7029 = vpop.f32.mrf.mxu0
      %v7030 = vadd.f32 0.0, %v7029
      %v7031 = vpop.f32.mrf.mxu0
      %7032 = vmatprep.mubr.bf16.mxu0 0
      %7033 = vmatmul.mubr.bf16.gmra.mxu0 %v6849
      %v7034 = vpop.f32.mrf.mxu0
      %v7035 = vadd.f32 0.0, %v7034
      %v7036 = vpop.f32.mrf.mxu0
      %v7037 = vpop.f32.mrf.mxu0
      %v7038 = vadd.f32 0.0, %v7037
      %v7039 = vpop.f32.mrf.mxu0
      %7040 = vmatprep.mubr.bf16.mxu0 0
      %7041 = vmatmul.mubr.bf16.gmra.mxu0 %v6850
      %v7042 = vpop.f32.mrf.mxu0
      %v7043 = vadd.f32 0.0, %v7042
      %v7044 = vpop.f32.mrf.mxu0
      %v7045 = vpop.f32.mrf.mxu0
      %v7046 = vadd.f32 0.0, %v7045
      %v7047 = vpop.f32.mrf.mxu0
      %7048 = vmatprep.mubr.bf16.mxu0 0
      %7049 = vmatmul.mubr.bf16.gmra.mxu0 %v6851
      %v7050 = vpop.f32.mrf.mxu0
      %v7051 = vadd.f32 0.0, %v7050
      %v7052 = vpop.f32.mrf.mxu0
      %v7053 = vpop.f32.mrf.mxu0
      %v7054 = vadd.f32 0.0, %v7053
      %v7055 = vpop.f32.mrf.mxu0
      %7056 = vmatprep.mubr.bf16.mxu0 0
      %7057 = vmatmul.mubr.bf16.gmra.mxu0 %v6852
      %v7058 = vpop.f32.mrf.mxu0
      %v7059 = vadd.f32 0.0, %v7058
      %v7060 = vpop.f32.mrf.mxu0
      %v7061 = vpop.f32.mrf.mxu0
      %v7062 = vadd.f32 0.0, %v7061
      %v7063 = vpop.f32.mrf.mxu0
      %7064 = vmatprep.mubr.bf16.mxu0 0
      %7065 = vmatmul.mubr.bf16.gmra.mxu0 %v6853
      %v7066 = vpop.f32.mrf.mxu0
      %v7067 = vadd.f32 0.0, %v7066
      %v7068 = vpop.f32.mrf.mxu0
      %v7069 = vpop.f32.mrf.mxu0
      %v7070 = vadd.f32 0.0, %v7069
      %v7071 = vpop.f32.mrf.mxu0
      %7072 = vmatprep.mubr.bf16.mxu0 0
      %7073 = vmatmul.mubr.bf16.gmra.mxu0 %v6854
      %v7074 = vpop.f32.mrf.mxu0
      %v7075 = vadd.f32 0.0, %v7074
      %v7076 = vpop.f32.mrf.mxu0
      %v7077 = vpop.f32.mrf.mxu0
      %v7078 = vadd.f32 0.0, %v7077
      %v7079 = vpop.f32.mrf.mxu0
      %7080 = vdwg.mxu0
      %v7081 = vadd.f32 %v6681, %v6955
      %v7082 = vadd.f32 %v6684, %v6958
      %v7083 = vadd.f32 %v6689, %v6963
      %v7084 = vadd.f32 %v6692, %v6966
      %v7085 = vadd.f32 %v6697, %v6971
      %v7086 = vadd.f32 %v6700, %v6974
      %v7087 = vadd.f32 %v6705, %v6979
      %v7088 = vadd.f32 %v6708, %v6982
      %v7089 = vadd.f32 %v6713, %v6987
      %v7090 = vadd.f32 %v6716, %v6990
      %v7091 = vadd.f32 %v6721, %v6995
      %v7092 = vadd.f32 %v6724, %v6998
      %v7093 = vadd.f32 %v6729, %v7003
      %v7094 = vadd.f32 %v6732, %v7006
      %v7095 = vadd.f32 %v6737, %v7011
      %v7096 = vadd.f32 %v6740, %v7014
      %v7097 = vadd.f32 %v6745, %v7019
      %v7098 = vadd.f32 %v6748, %v7022
      %v7099 = vadd.f32 %v6753, %v7027
      %v7100 = vadd.f32 %v6756, %v7030
      %v7101 = vadd.f32 %v6761, %v7035
      %v7102 = vadd.f32 %v6764, %v7038
      %v7103 = vadd.f32 %v6769, %v7043
      %v7104 = vadd.f32 %v6772, %v7046
      %v7105 = vadd.f32 %v6777, %v7051
      %v7106 = vadd.f32 %v6780, %v7054
      %v7107 = vadd.f32 %v6785, %v7059
      %v7108 = vadd.f32 %v6788, %v7062
      %v7109 = vadd.f32 %v6793, %v7067
      %v7110 = vadd.f32 %v6796, %v7070
      %v7111 = vadd.f32 %v6801, %v7075
      %v7112 = vadd.f32 %v6804, %v7078
      %v7113 = vld [vmem:[%s6227] sm:$0xff]
      %v7114 = vld [vmem:[%s6227 + $0x8] sm:$0xff]
      %v7115 = vld [vmem:[%s6227 + $0x18] sm:$0xff]
      %v7116 = vld [vmem:[%s6227 + $0x20] sm:$0xff]
      %v7117 = vld [vmem:[%s6227 + $0x30] sm:$0xff]
      %v7118 = vld [vmem:[%s6227 + $0x38] sm:$0xff]
      %v7119 = vld [vmem:[%s6227 + $0x48] sm:$0xff]
      %v7120 = vld [vmem:[%s6227 + $0x50] sm:$0xff]
      %v7121 = vld [vmem:[%s6227 + $0x60] sm:$0xff]
      %v7122 = vld [vmem:[%s6227 + $0x68] sm:$0xff]
      %v7123 = vld [vmem:[%s6227 + $0x78] sm:$0xff]
      %v7124 = vld [vmem:[%s6227 + $0x80] sm:$0xff]
      %v7125 = vld [vmem:[%s6227 + $0x90] sm:$0xff]
      %v7126 = vld [vmem:[%s6227 + $0x98] sm:$0xff]
      %v7127 = vld [vmem:[%s6227 + $0xa8] sm:$0xff]
      %v7128 = vld [vmem:[%s6227 + $0xb0] sm:$0xff]
      %v7129 = vld [vmem:[%s6227 + $0xc0] sm:$0xff]
      %v7130 = vld [vmem:[%s6227 + $0xc8] sm:$0xff]
      %v7131 = vld [vmem:[%s6227 + $0xd8] sm:$0xff]
      %v7132 = vld [vmem:[%s6227 + $0xe0] sm:$0xff]
      %v7133 = vld [vmem:[%s6227 + $0xf0] sm:$0xff]
      %v7134 = vld [vmem:[%s6227 + $0xf8] sm:$0xff]
      %v7135 = vld [vmem:[%s6227 + $0x108] sm:$0xff]
      %v7136 = vld [vmem:[%s6227 + $0x110] sm:$0xff]
      %v7137 = vld [vmem:[%s6227 + $0x120] sm:$0xff]
      %v7138 = vld [vmem:[%s6227 + $0x128] sm:$0xff]
      %v7139 = vld [vmem:[%s6227 + $0x138] sm:$0xff]
      %v7140 = vld [vmem:[%s6227 + $0x140] sm:$0xff]
      %v7141 = vld [vmem:[%s6227 + $0x150] sm:$0xff]
      %v7142 = vld [vmem:[%s6227 + $0x158] sm:$0xff]
      %v7143 = vld [vmem:[%s6227 + $0x168] sm:$0xff]
      %v7144 = vld [vmem:[%s6227 + $0x170] sm:$0xff]
      %v7145 = vpack.c.bf16 %v7114, %v7113
      %v7146 = vpack.c.bf16 %v7116, %v7115
      %v7147 = vpack.c.bf16 %v7118, %v7117
      %v7148 = vpack.c.bf16 %v7120, %v7119
      %v7149 = vpack.c.bf16 %v7122, %v7121
      %v7150 = vpack.c.bf16 %v7124, %v7123
      %v7151 = vpack.c.bf16 %v7126, %v7125
      %v7152 = vpack.c.bf16 %v7128, %v7127
      %v7153 = vpack.c.bf16 %v7130, %v7129
      %v7154 = vpack.c.bf16 %v7132, %v7131
      %v7155 = vpack.c.bf16 %v7134, %v7133
      %v7156 = vpack.c.bf16 %v7136, %v7135
      %v7157 = vpack.c.bf16 %v7138, %v7137
      %v7158 = vpack.c.bf16 %v7140, %v7139
      %v7159 = vpack.c.bf16 %v7142, %v7141
      %v7160 = vpack.c.bf16 %v7144, %v7143
      %s7161 = scalar_lea.vmem %s3, 192
      %v7162 = vld [vmem:[%s7161] sm:$0xf]
      %v7163 = vld [vmem:[%s7161 + $0x4] sm:$0xf]
      %v7164 = vld [vmem:[%s7161 + $0x8] sm:$0xf]
      %v7165 = vld [vmem:[%s7161 + $0xc] sm:$0xf]
      %v7166 = vld [vmem:[%s7161 + $0x10] sm:$0xf]
      %v7167 = vld [vmem:[%s7161 + $0x14] sm:$0xf]
      %v7168 = vld [vmem:[%s7161 + $0x18] sm:$0xf]
      %v7169 = vld [vmem:[%s7161 + $0x1c] sm:$0xf]
      %v7170 = vld [vmem:[%s7161 + $0x20] sm:$0xf]
      %v7171 = vld [vmem:[%s7161 + $0x24] sm:$0xf]
      %v7172 = vld [vmem:[%s7161 + $0x28] sm:$0xf]
      %v7173 = vld [vmem:[%s7161 + $0x2c] sm:$0xf]
      %v7174 = vld [vmem:[%s7161 + $0x30] sm:$0xf]
      %v7175 = vld [vmem:[%s7161 + $0x34] sm:$0xf]
      %v7176 = vld [vmem:[%s7161 + $0x38] sm:$0xf]
      %v7177 = vld [vmem:[%s7161 + $0x3c] sm:$0xf]
      %v7194 = vunpack.c.l.b16 %v7162
      %v7195 = vunpack.c.l.b16 %v7163
      %v7196 = vunpack.c.l.b16 %v7164
      %v7197 = vunpack.c.l.b16 %v7165
      %v7198 = vunpack.c.l.b16 %v7166
      %v7199 = vunpack.c.l.b16 %v7167
      %v7200 = vunpack.c.l.b16 %v7168
      %v7201 = vunpack.c.l.b16 %v7169
      %v7202 = vunpack.c.l.b16 %v7170
      %v7203 = vunpack.c.l.b16 %v7171
      %v7204 = vunpack.c.l.b16 %v7172
      %v7205 = vunpack.c.l.b16 %v7173
      %v7206 = vunpack.c.l.b16 %v7174
      %v7207 = vunpack.c.l.b16 %v7175
      %v7208 = vunpack.c.l.b16 %v7176
      %v7209 = vunpack.c.l.b16 %v7177
      %v7210 = vpack.c.b16 %v7195, %v7194
      %v7211 = vpack.c.b16 %v7197, %v7196
      %v7212 = vpack.c.b16 %v7199, %v7198
      %v7213 = vpack.c.b16 %v7201, %v7200
      %v7214 = vpack.c.b16 %v7203, %v7202
      %v7215 = vpack.c.b16 %v7205, %v7204
      %v7216 = vpack.c.b16 %v7207, %v7206
      %v7217 = vpack.c.b16 %v7209, %v7208
      %7226 = vmatprep.subr.bf16.mxu0 0
      %7227 = vmatpush1.bf16.msra.mxu0 %v7217
      %7228 = vmatprep.subr.bf16.mxu0 0
      %7229 = vmatpush1.bf16.msra.mxu0 %v7216
      %7230 = vmatprep.subr.bf16.mxu0 0
      %7231 = vmatpush1.bf16.msra.mxu0 %v7215
      %7232 = vmatprep.subr.bf16.mxu0 0
      %7233 = vmatpush1.bf16.msra.mxu0 %v7214
      %7234 = vmatprep.subr.bf16.mxu0 0
      %7235 = vmatpush1.bf16.msra.mxu0 %v7213
      %7236 = vmatprep.subr.bf16.mxu0 0
      %7237 = vmatpush1.bf16.msra.mxu0 %v7212
      %7238 = vmatprep.subr.bf16.mxu0 0
      %7239 = vmatpush1.bf16.msra.mxu0 %v7211
      %7240 = vmatprep.subr.bf16.mxu0 0
      %7241 = vmatpush1.bf16.msra.mxu0 %v7210
      %7242 = vmatprep.subr.bf16.mxu0 0
      %7243 = vmatpush2.bf16.msra.mxu0 0
      %7244 = vmatprep.subr.bf16.mxu0 0
      %7245 = vmatpush2.bf16.msra.mxu0 0
      %7246 = vmatprep.subr.bf16.mxu0 0
      %7247 = vmatpush2.bf16.msra.mxu0 0
      %7248 = vmatprep.subr.bf16.mxu0 0
      %7249 = vmatpush2.bf16.msra.mxu0 0
      %7250 = vmatprep.subr.bf16.mxu0 0
      %7251 = vmatpush2.bf16.msra.mxu0 0
      %7252 = vmatprep.subr.bf16.mxu0 0
      %7253 = vmatpush2.bf16.msra.mxu0 0
      %7254 = vmatprep.subr.bf16.mxu0 0
      %7255 = vmatpush2.bf16.msra.mxu0 0
      %7256 = vmatprep.subr.bf16.mxu0 0
      %7257 = vmatpush2.bf16.msra.mxu0 0
      %7258 = vmatprep.mubr.bf16.mxu0 0
      %7259 = vmatmul.mubr.bf16.gmra.mxu0 %v7145
      %v7260 = vpop.f32.mrf.mxu0
      %v7261 = vadd.f32 0.0, %v7260
      %v7262 = vpop.f32.mrf.mxu0
      %v7263 = vpop.f32.mrf.mxu0
      %v7264 = vadd.f32 0.0, %v7263
      %v7265 = vpop.f32.mrf.mxu0
      %7266 = vmatprep.mubr.bf16.mxu0 0
      %7267 = vmatmul.mubr.bf16.gmra.mxu0 %v7146
      %v7268 = vpop.f32.mrf.mxu0
      %v7269 = vadd.f32 0.0, %v7268
      %v7270 = vpop.f32.mrf.mxu0
      %v7271 = vpop.f32.mrf.mxu0
      %v7272 = vadd.f32 0.0, %v7271
      %v7273 = vpop.f32.mrf.mxu0
      %7274 = vmatprep.mubr.bf16.mxu0 0
      %7275 = vmatmul.mubr.bf16.gmra.mxu0 %v7147
      %v7276 = vpop.f32.mrf.mxu0
      %v7277 = vadd.f32 0.0, %v7276
      %v7278 = vpop.f32.mrf.mxu0
      %v7279 = vpop.f32.mrf.mxu0
      %v7280 = vadd.f32 0.0, %v7279
      %v7281 = vpop.f32.mrf.mxu0
      %7282 = vmatprep.mubr.bf16.mxu0 0
      %7283 = vmatmul.mubr.bf16.gmra.mxu0 %v7148
      %v7284 = vpop.f32.mrf.mxu0
      %v7285 = vadd.f32 0.0, %v7284
      %v7286 = vpop.f32.mrf.mxu0
      %v7287 = vpop.f32.mrf.mxu0
      %v7288 = vadd.f32 0.0, %v7287
      %v7289 = vpop.f32.mrf.mxu0
      %7290 = vmatprep.mubr.bf16.mxu0 0
      %7291 = vmatmul.mubr.bf16.gmra.mxu0 %v7149
      %v7292 = vpop.f32.mrf.mxu0
      %v7293 = vadd.f32 0.0, %v7292
      %v7294 = vpop.f32.mrf.mxu0
      %v7295 = vpop.f32.mrf.mxu0
      %v7296 = vadd.f32 0.0, %v7295
      %v7297 = vpop.f32.mrf.mxu0
      %7298 = vmatprep.mubr.bf16.mxu0 0
      %7299 = vmatmul.mubr.bf16.gmra.mxu0 %v7150
      %v7300 = vpop.f32.mrf.mxu0
      %v7301 = vadd.f32 0.0, %v7300
      %v7302 = vpop.f32.mrf.mxu0
      %v7303 = vpop.f32.mrf.mxu0
      %v7304 = vadd.f32 0.0, %v7303
      %v7305 = vpop.f32.mrf.mxu0
      %7306 = vmatprep.mubr.bf16.mxu0 0
      %7307 = vmatmul.mubr.bf16.gmra.mxu0 %v7151
      %v7308 = vpop.f32.mrf.mxu0
      %v7309 = vadd.f32 0.0, %v7308
      %v7310 = vpop.f32.mrf.mxu0
      %v7311 = vpop.f32.mrf.mxu0
      %v7312 = vadd.f32 0.0, %v7311
      %v7313 = vpop.f32.mrf.mxu0
      %7314 = vmatprep.mubr.bf16.mxu0 0
      %7315 = vmatmul.mubr.bf16.gmra.mxu0 %v7152
      %v7316 = vpop.f32.mrf.mxu0
      %v7317 = vadd.f32 0.0, %v7316
      %v7318 = vpop.f32.mrf.mxu0
      %v7319 = vpop.f32.mrf.mxu0
      %v7320 = vadd.f32 0.0, %v7319
      %v7321 = vpop.f32.mrf.mxu0
      %7322 = vmatprep.mubr.bf16.mxu0 0
      %7323 = vmatmul.mubr.bf16.gmra.mxu0 %v7153
      %v7324 = vpop.f32.mrf.mxu0
      %v7325 = vadd.f32 0.0, %v7324
      %v7326 = vpop.f32.mrf.mxu0
      %v7327 = vpop.f32.mrf.mxu0
      %v7328 = vadd.f32 0.0, %v7327
      %v7329 = vpop.f32.mrf.mxu0
      %7330 = vmatprep.mubr.bf16.mxu0 0
      %7331 = vmatmul.mubr.bf16.gmra.mxu0 %v7154
      %v7332 = vpop.f32.mrf.mxu0
      %v7333 = vadd.f32 0.0, %v7332
      %v7334 = vpop.f32.mrf.mxu0
      %v7335 = vpop.f32.mrf.mxu0
      %v7336 = vadd.f32 0.0, %v7335
      %v7337 = vpop.f32.mrf.mxu0
      %7338 = vmatprep.mubr.bf16.mxu0 0
      %7339 = vmatmul.mubr.bf16.gmra.mxu0 %v7155
      %v7340 = vpop.f32.mrf.mxu0
      %v7341 = vadd.f32 0.0, %v7340
      %v7342 = vpop.f32.mrf.mxu0
      %v7343 = vpop.f32.mrf.mxu0
      %v7344 = vadd.f32 0.0, %v7343
      %v7345 = vpop.f32.mrf.mxu0
      %7346 = vmatprep.mubr.bf16.mxu0 0
      %7347 = vmatmul.mubr.bf16.gmra.mxu0 %v7156
      %v7348 = vpop.f32.mrf.mxu0
      %v7349 = vadd.f32 0.0, %v7348
      %v7350 = vpop.f32.mrf.mxu0
      %v7351 = vpop.f32.mrf.mxu0
      %v7352 = vadd.f32 0.0, %v7351
      %v7353 = vpop.f32.mrf.mxu0
      %7354 = vmatprep.mubr.bf16.mxu0 0
      %7355 = vmatmul.mubr.bf16.gmra.mxu0 %v7157
      %v7356 = vpop.f32.mrf.mxu0
      %v7357 = vadd.f32 0.0, %v7356
      %v7358 = vpop.f32.mrf.mxu0
      %v7359 = vpop.f32.mrf.mxu0
      %v7360 = vadd.f32 0.0, %v7359
      %v7361 = vpop.f32.mrf.mxu0
      %7362 = vmatprep.mubr.bf16.mxu0 0
      %7363 = vmatmul.mubr.bf16.gmra.mxu0 %v7158
      %v7364 = vpop.f32.mrf.mxu0
      %v7365 = vadd.f32 0.0, %v7364
      %v7366 = vpop.f32.mrf.mxu0
      %v7367 = vpop.f32.mrf.mxu0
      %v7368 = vadd.f32 0.0, %v7367
      %v7369 = vpop.f32.mrf.mxu0
      %7370 = vmatprep.mubr.bf16.mxu0 0
      %7371 = vmatmul.mubr.bf16.gmra.mxu0 %v7159
      %v7372 = vpop.f32.mrf.mxu0
      %v7373 = vadd.f32 0.0, %v7372
      %v7374 = vpop.f32.mrf.mxu0
      %v7375 = vpop.f32.mrf.mxu0
      %v7376 = vadd.f32 0.0, %v7375
      %v7377 = vpop.f32.mrf.mxu0
      %7378 = vmatprep.mubr.bf16.mxu0 0
      %7379 = vmatmul.mubr.bf16.gmra.mxu0 %v7160
      %v7380 = vpop.f32.mrf.mxu0
      %v7381 = vadd.f32 0.0, %v7380
      %v7382 = vpop.f32.mrf.mxu0
      %v7383 = vpop.f32.mrf.mxu0
      %v7384 = vadd.f32 0.0, %v7383
      %v7385 = vpop.f32.mrf.mxu0
      %7386 = vdwg.mxu0
      %v7387 = vadd.f32 %v7081, %v7261
      %v7388 = vadd.f32 %v7082, %v7264
      %v7389 = vadd.f32 %v7083, %v7269
      %v7390 = vadd.f32 %v7084, %v7272
      %v7391 = vadd.f32 %v7085, %v7277
      %v7392 = vadd.f32 %v7086, %v7280
      %v7393 = vadd.f32 %v7087, %v7285
      %v7394 = vadd.f32 %v7088, %v7288
      %v7395 = vadd.f32 %v7089, %v7293
      %v7396 = vadd.f32 %v7090, %v7296
      %v7397 = vadd.f32 %v7091, %v7301
      %v7398 = vadd.f32 %v7092, %v7304
      %v7399 = vadd.f32 %v7093, %v7309
      %v7400 = vadd.f32 %v7094, %v7312
      %v7401 = vadd.f32 %v7095, %v7317
      %v7402 = vadd.f32 %v7096, %v7320
      %v7403 = vadd.f32 %v7097, %v7325
      %v7404 = vadd.f32 %v7098, %v7328
      %v7405 = vadd.f32 %v7099, %v7333
      %v7406 = vadd.f32 %v7100, %v7336
      %v7407 = vadd.f32 %v7101, %v7341
      %v7408 = vadd.f32 %v7102, %v7344
      %v7409 = vadd.f32 %v7103, %v7349
      %v7410 = vadd.f32 %v7104, %v7352
      %v7411 = vadd.f32 %v7105, %v7357
      %v7412 = vadd.f32 %v7106, %v7360
      %v7413 = vadd.f32 %v7107, %v7365
      %v7414 = vadd.f32 %v7108, %v7368
      %v7415 = vadd.f32 %v7109, %v7373
      %v7416 = vadd.f32 %v7110, %v7376
      %v7417 = vadd.f32 %v7111, %v7381
      %v7418 = vadd.f32 %v7112, %v7384
      %v7419 = vld [vmem:[%s6227 + $0x1] sm:$0xff]
      %v7420 = vld [vmem:[%s6227 + $0x9] sm:$0xff]
      %v7421 = vld [vmem:[%s6227 + $0x19] sm:$0xff]
      %v7422 = vld [vmem:[%s6227 + $0x21] sm:$0xff]
      %v7423 = vld [vmem:[%s6227 + $0x31] sm:$0xff]
      %v7424 = vld [vmem:[%s6227 + $0x39] sm:$0xff]
      %v7425 = vld [vmem:[%s6227 + $0x49] sm:$0xff]
      %v7426 = vld [vmem:[%s6227 + $0x51] sm:$0xff]
      %v7427 = vld [vmem:[%s6227 + $0x61] sm:$0xff]
      %v7428 = vld [vmem:[%s6227 + $0x69] sm:$0xff]
      %v7429 = vld [vmem:[%s6227 + $0x79] sm:$0xff]
      %v7430 = vld [vmem:[%s6227 + $0x81] sm:$0xff]
      %v7431 = vld [vmem:[%s6227 + $0x91] sm:$0xff]
      %v7432 = vld [vmem:[%s6227 + $0x99] sm:$0xff]
      %v7433 = vld [vmem:[%s6227 + $0xa9] sm:$0xff]
      %v7434 = vld [vmem:[%s6227 + $0xb1] sm:$0xff]
      %v7435 = vld [vmem:[%s6227 + $0xc1] sm:$0xff]
      %v7436 = vld [vmem:[%s6227 + $0xc9] sm:$0xff]
      %v7437 = vld [vmem:[%s6227 + $0xd9] sm:$0xff]
      %v7438 = vld [vmem:[%s6227 + $0xe1] sm:$0xff]
      %v7439 = vld [vmem:[%s6227 + $0xf1] sm:$0xff]
      %v7440 = vld [vmem:[%s6227 + $0xf9] sm:$0xff]
      %v7441 = vld [vmem:[%s6227 + $0x109] sm:$0xff]
      %v7442 = vld [vmem:[%s6227 + $0x111] sm:$0xff]
      %v7443 = vld [vmem:[%s6227 + $0x121] sm:$0xff]
      %v7444 = vld [vmem:[%s6227 + $0x129] sm:$0xff]
      %v7445 = vld [vmem:[%s6227 + $0x139] sm:$0xff]
      %v7446 = vld [vmem:[%s6227 + $0x141] sm:$0xff]
      %v7447 = vld [vmem:[%s6227 + $0x151] sm:$0xff]
      %v7448 = vld [vmem:[%s6227 + $0x159] sm:$0xff]
      %v7449 = vld [vmem:[%s6227 + $0x169] sm:$0xff]
      %v7450 = vld [vmem:[%s6227 + $0x171] sm:$0xff]
      %v7451 = vpack.c.bf16 %v7420, %v7419
      %v7452 = vpack.c.bf16 %v7422, %v7421
      %v7453 = vpack.c.bf16 %v7424, %v7423
      %v7454 = vpack.c.bf16 %v7426, %v7425
      %v7455 = vpack.c.bf16 %v7428, %v7427
      %v7456 = vpack.c.bf16 %v7430, %v7429
      %v7457 = vpack.c.bf16 %v7432, %v7431
      %v7458 = vpack.c.bf16 %v7434, %v7433
      %v7459 = vpack.c.bf16 %v7436, %v7435
      %v7460 = vpack.c.bf16 %v7438, %v7437
      %v7461 = vpack.c.bf16 %v7440, %v7439
      %v7462 = vpack.c.bf16 %v7442, %v7441
      %v7463 = vpack.c.bf16 %v7444, %v7443
      %v7464 = vpack.c.bf16 %v7446, %v7445
      %v7465 = vpack.c.bf16 %v7448, %v7447
      %v7466 = vpack.c.bf16 %v7450, %v7449
      %s7467 = scalar_lea.vmem %s3, 256
      %v7468 = vld [vmem:[%s7467] sm:$0xf]
      %v7469 = vld [vmem:[%s7467 + $0x4] sm:$0xf]
      %v7470 = vld [vmem:[%s7467 + $0x8] sm:$0xf]
      %v7471 = vld [vmem:[%s7467 + $0xc] sm:$0xf]
      %v7472 = vld [vmem:[%s7467 + $0x10] sm:$0xf]
      %v7473 = vld [vmem:[%s7467 + $0x14] sm:$0xf]
      %v7474 = vld [vmem:[%s7467 + $0x18] sm:$0xf]
      %v7475 = vld [vmem:[%s7467 + $0x1c] sm:$0xf]
      %v7476 = vld [vmem:[%s7467 + $0x20] sm:$0xf]
      %v7477 = vld [vmem:[%s7467 + $0x24] sm:$0xf]
      %v7478 = vld [vmem:[%s7467 + $0x28] sm:$0xf]
      %v7479 = vld [vmem:[%s7467 + $0x2c] sm:$0xf]
      %v7480 = vld [vmem:[%s7467 + $0x30] sm:$0xf]
      %v7481 = vld [vmem:[%s7467 + $0x34] sm:$0xf]
      %v7482 = vld [vmem:[%s7467 + $0x38] sm:$0xf]
      %v7483 = vld [vmem:[%s7467 + $0x3c] sm:$0xf]
      %v7500 = vunpack.c.l.b16 %v7468
      %v7501 = vunpack.c.l.b16 %v7469
      %v7502 = vunpack.c.l.b16 %v7470
      %v7503 = vunpack.c.l.b16 %v7471
      %v7504 = vunpack.c.l.b16 %v7472
      %v7505 = vunpack.c.l.b16 %v7473
      %v7506 = vunpack.c.l.b16 %v7474
      %v7507 = vunpack.c.l.b16 %v7475
      %v7508 = vunpack.c.l.b16 %v7476
      %v7509 = vunpack.c.l.b16 %v7477
      %v7510 = vunpack.c.l.b16 %v7478
      %v7511 = vunpack.c.l.b16 %v7479
      %v7512 = vunpack.c.l.b16 %v7480
      %v7513 = vunpack.c.l.b16 %v7481
      %v7514 = vunpack.c.l.b16 %v7482
      %v7515 = vunpack.c.l.b16 %v7483
      %v7516 = vpack.c.b16 %v7501, %v7500
      %v7517 = vpack.c.b16 %v7503, %v7502
      %v7518 = vpack.c.b16 %v7505, %v7504
      %v7519 = vpack.c.b16 %v7507, %v7506
      %v7520 = vpack.c.b16 %v7509, %v7508
      %v7521 = vpack.c.b16 %v7511, %v7510
      %v7522 = vpack.c.b16 %v7513, %v7512
      %v7523 = vpack.c.b16 %v7515, %v7514
      %7532 = vmatprep.subr.bf16.mxu0 0
      %7533 = vmatpush1.bf16.msra.mxu0 %v7523
      %7534 = vmatprep.subr.bf16.mxu0 0
      %7535 = vmatpush1.bf16.msra.mxu0 %v7522
      %7536 = vmatprep.subr.bf16.mxu0 0
      %7537 = vmatpush1.bf16.msra.mxu0 %v7521
      %7538 = vmatprep.subr.bf16.mxu0 0
      %7539 = vmatpush1.bf16.msra.mxu0 %v7520
      %7540 = vmatprep.subr.bf16.mxu0 0
      %7541 = vmatpush1.bf16.msra.mxu0 %v7519
      %7542 = vmatprep.subr.bf16.mxu0 0
      %7543 = vmatpush1.bf16.msra.mxu0 %v7518
      %7544 = vmatprep.subr.bf16.mxu0 0
      %7545 = vmatpush1.bf16.msra.mxu0 %v7517
      %7546 = vmatprep.subr.bf16.mxu0 0
      %7547 = vmatpush1.bf16.msra.mxu0 %v7516
      %7548 = vmatprep.subr.bf16.mxu0 0
      %7549 = vmatpush2.bf16.msra.mxu0 0
      %7550 = vmatprep.subr.bf16.mxu0 0
      %7551 = vmatpush2.bf16.msra.mxu0 0
      %7552 = vmatprep.subr.bf16.mxu0 0
      %7553 = vmatpush2.bf16.msra.mxu0 0
      %7554 = vmatprep.subr.bf16.mxu0 0
      %7555 = vmatpush2.bf16.msra.mxu0 0
      %7556 = vmatprep.subr.bf16.mxu0 0
      %7557 = vmatpush2.bf16.msra.mxu0 0
      %7558 = vmatprep.subr.bf16.mxu0 0
      %7559 = vmatpush2.bf16.msra.mxu0 0
      %7560 = vmatprep.subr.bf16.mxu0 0
      %7561 = vmatpush2.bf16.msra.mxu0 0
      %7562 = vmatprep.subr.bf16.mxu0 0
      %7563 = vmatpush2.bf16.msra.mxu0 0
      %7564 = vmatprep.mubr.bf16.mxu0 0
      %7565 = vmatmul.mubr.bf16.gmra.mxu0 %v7451
      %v7566 = vpop.f32.mrf.mxu0
      %v7567 = vadd.f32 0.0, %v7566
      %v7568 = vpop.f32.mrf.mxu0
      %v7569 = vpop.f32.mrf.mxu0
      %v7570 = vadd.f32 0.0, %v7569
      %v7571 = vpop.f32.mrf.mxu0
      %7572 = vmatprep.mubr.bf16.mxu0 0
      %7573 = vmatmul.mubr.bf16.gmra.mxu0 %v7452
      %v7574 = vpop.f32.mrf.mxu0
      %v7575 = vadd.f32 0.0, %v7574
      %v7576 = vpop.f32.mrf.mxu0
      %v7577 = vpop.f32.mrf.mxu0
      %v7578 = vadd.f32 0.0, %v7577
      %v7579 = vpop.f32.mrf.mxu0
      %7580 = vmatprep.mubr.bf16.mxu0 0
      %7581 = vmatmul.mubr.bf16.gmra.mxu0 %v7453
      %v7582 = vpop.f32.mrf.mxu0
      %v7583 = vadd.f32 0.0, %v7582
      %v7584 = vpop.f32.mrf.mxu0
      %v7585 = vpop.f32.mrf.mxu0
      %v7586 = vadd.f32 0.0, %v7585
      %v7587 = vpop.f32.mrf.mxu0
      %7588 = vmatprep.mubr.bf16.mxu0 0
      %7589 = vmatmul.mubr.bf16.gmra.mxu0 %v7454
      %v7590 = vpop.f32.mrf.mxu0
      %v7591 = vadd.f32 0.0, %v7590
      %v7592 = vpop.f32.mrf.mxu0
      %v7593 = vpop.f32.mrf.mxu0
      %v7594 = vadd.f32 0.0, %v7593
      %v7595 = vpop.f32.mrf.mxu0
      %7596 = vmatprep.mubr.bf16.mxu0 0
      %7597 = vmatmul.mubr.bf16.gmra.mxu0 %v7455
      %v7598 = vpop.f32.mrf.mxu0
      %v7599 = vadd.f32 0.0, %v7598
      %v7600 = vpop.f32.mrf.mxu0
      %v7601 = vpop.f32.mrf.mxu0
      %v7602 = vadd.f32 0.0, %v7601
      %v7603 = vpop.f32.mrf.mxu0
      %7604 = vmatprep.mubr.bf16.mxu0 0
      %7605 = vmatmul.mubr.bf16.gmra.mxu0 %v7456
      %v7606 = vpop.f32.mrf.mxu0
      %v7607 = vadd.f32 0.0, %v7606
      %v7608 = vpop.f32.mrf.mxu0
      %v7609 = vpop.f32.mrf.mxu0
      %v7610 = vadd.f32 0.0, %v7609
      %v7611 = vpop.f32.mrf.mxu0
      %7612 = vmatprep.mubr.bf16.mxu0 0
      %7613 = vmatmul.mubr.bf16.gmra.mxu0 %v7457
      %v7614 = vpop.f32.mrf.mxu0
      %v7615 = vadd.f32 0.0, %v7614
      %v7616 = vpop.f32.mrf.mxu0
      %v7617 = vpop.f32.mrf.mxu0
      %v7618 = vadd.f32 0.0, %v7617
      %v7619 = vpop.f32.mrf.mxu0
      %7620 = vmatprep.mubr.bf16.mxu0 0
      %7621 = vmatmul.mubr.bf16.gmra.mxu0 %v7458
      %v7622 = vpop.f32.mrf.mxu0
      %v7623 = vadd.f32 0.0, %v7622
      %v7624 = vpop.f32.mrf.mxu0
      %v7625 = vpop.f32.mrf.mxu0
      %v7626 = vadd.f32 0.0, %v7625
      %v7627 = vpop.f32.mrf.mxu0
      %7628 = vmatprep.mubr.bf16.mxu0 0
      %7629 = vmatmul.mubr.bf16.gmra.mxu0 %v7459
      %v7630 = vpop.f32.mrf.mxu0
      %v7631 = vadd.f32 0.0, %v7630
      %v7632 = vpop.f32.mrf.mxu0
      %v7633 = vpop.f32.mrf.mxu0
      %v7634 = vadd.f32 0.0, %v7633
      %v7635 = vpop.f32.mrf.mxu0
      %7636 = vmatprep.mubr.bf16.mxu0 0
      %7637 = vmatmul.mubr.bf16.gmra.mxu0 %v7460
      %v7638 = vpop.f32.mrf.mxu0
      %v7639 = vadd.f32 0.0, %v7638
      %v7640 = vpop.f32.mrf.mxu0
      %v7641 = vpop.f32.mrf.mxu0
      %v7642 = vadd.f32 0.0, %v7641
      %v7643 = vpop.f32.mrf.mxu0
      %7644 = vmatprep.mubr.bf16.mxu0 0
      %7645 = vmatmul.mubr.bf16.gmra.mxu0 %v7461
      %v7646 = vpop.f32.mrf.mxu0
      %v7647 = vadd.f32 0.0, %v7646
      %v7648 = vpop.f32.mrf.mxu0
      %v7649 = vpop.f32.mrf.mxu0
      %v7650 = vadd.f32 0.0, %v7649
      %v7651 = vpop.f32.mrf.mxu0
      %7652 = vmatprep.mubr.bf16.mxu0 0
      %7653 = vmatmul.mubr.bf16.gmra.mxu0 %v7462
      %v7654 = vpop.f32.mrf.mxu0
      %v7655 = vadd.f32 0.0, %v7654
      %v7656 = vpop.f32.mrf.mxu0
      %v7657 = vpop.f32.mrf.mxu0
      %v7658 = vadd.f32 0.0, %v7657
      %v7659 = vpop.f32.mrf.mxu0
      %7660 = vmatprep.mubr.bf16.mxu0 0
      %7661 = vmatmul.mubr.bf16.gmra.mxu0 %v7463
      %v7662 = vpop.f32.mrf.mxu0
      %v7663 = vadd.f32 0.0, %v7662
      %v7664 = vpop.f32.mrf.mxu0
      %v7665 = vpop.f32.mrf.mxu0
      %v7666 = vadd.f32 0.0, %v7665
      %v7667 = vpop.f32.mrf.mxu0
      %7668 = vmatprep.mubr.bf16.mxu0 0
      %7669 = vmatmul.mubr.bf16.gmra.mxu0 %v7464
      %v7670 = vpop.f32.mrf.mxu0
      %v7671 = vadd.f32 0.0, %v7670
      %v7672 = vpop.f32.mrf.mxu0
      %v7673 = vpop.f32.mrf.mxu0
      %v7674 = vadd.f32 0.0, %v7673
      %v7675 = vpop.f32.mrf.mxu0
      %7676 = vmatprep.mubr.bf16.mxu0 0
      %7677 = vmatmul.mubr.bf16.gmra.mxu0 %v7465
      %v7678 = vpop.f32.mrf.mxu0
      %v7679 = vadd.f32 0.0, %v7678
      %v7680 = vpop.f32.mrf.mxu0
      %v7681 = vpop.f32.mrf.mxu0
      %v7682 = vadd.f32 0.0, %v7681
      %v7683 = vpop.f32.mrf.mxu0
      %7684 = vmatprep.mubr.bf16.mxu0 0
      %7685 = vmatmul.mubr.bf16.gmra.mxu0 %v7466
      %v7686 = vpop.f32.mrf.mxu0
      %v7687 = vadd.f32 0.0, %v7686
      %v7688 = vpop.f32.mrf.mxu0
      %v7689 = vpop.f32.mrf.mxu0
      %v7690 = vadd.f32 0.0, %v7689
      %v7691 = vpop.f32.mrf.mxu0
      %7692 = vdwg.mxu0
      %v7693 = vadd.f32 %v7387, %v7567
      %v7694 = vadd.f32 %v7388, %v7570
      %v7695 = vadd.f32 %v7389, %v7575
      %v7696 = vadd.f32 %v7390, %v7578
      %v7697 = vadd.f32 %v7391, %v7583
      %v7698 = vadd.f32 %v7392, %v7586
      %v7699 = vadd.f32 %v7393, %v7591
      %v7700 = vadd.f32 %v7394, %v7594
      %v7701 = vadd.f32 %v7395, %v7599
      %v7702 = vadd.f32 %v7396, %v7602
      %v7703 = vadd.f32 %v7397, %v7607
      %v7704 = vadd.f32 %v7398, %v7610
      %v7705 = vadd.f32 %v7399, %v7615
      %v7706 = vadd.f32 %v7400, %v7618
      %v7707 = vadd.f32 %v7401, %v7623
      %v7708 = vadd.f32 %v7402, %v7626
      %v7709 = vadd.f32 %v7403, %v7631
      %v7710 = vadd.f32 %v7404, %v7634
      %v7711 = vadd.f32 %v7405, %v7639
      %v7712 = vadd.f32 %v7406, %v7642
      %v7713 = vadd.f32 %v7407, %v7647
      %v7714 = vadd.f32 %v7408, %v7650
      %v7715 = vadd.f32 %v7409, %v7655
      %v7716 = vadd.f32 %v7410, %v7658
      %v7717 = vadd.f32 %v7411, %v7663
      %v7718 = vadd.f32 %v7412, %v7666
      %v7719 = vadd.f32 %v7413, %v7671
      %v7720 = vadd.f32 %v7414, %v7674
      %v7721 = vadd.f32 %v7415, %v7679
      %v7722 = vadd.f32 %v7416, %v7682
      %v7723 = vadd.f32 %v7417, %v7687
      %v7724 = vadd.f32 %v7418, %v7690
      %v7725 = vld [vmem:[%s6227 + $0x2] sm:$0xff]
      %v7726 = vld [vmem:[%s6227 + $0xa] sm:$0xff]
      %v7727 = vld [vmem:[%s6227 + $0x1a] sm:$0xff]
      %v7728 = vld [vmem:[%s6227 + $0x22] sm:$0xff]
      %v7729 = vld [vmem:[%s6227 + $0x32] sm:$0xff]
      %v7730 = vld [vmem:[%s6227 + $0x3a] sm:$0xff]
      %v7731 = vld [vmem:[%s6227 + $0x4a] sm:$0xff]
      %v7732 = vld [vmem:[%s6227 + $0x52] sm:$0xff]
      %v7733 = vld [vmem:[%s6227 + $0x62] sm:$0xff]
      %v7734 = vld [vmem:[%s6227 + $0x6a] sm:$0xff]
      %v7735 = vld [vmem:[%s6227 + $0x7a] sm:$0xff]
      %v7736 = vld [vmem:[%s6227 + $0x82] sm:$0xff]
      %v7737 = vld [vmem:[%s6227 + $0x92] sm:$0xff]
      %v7738 = vld [vmem:[%s6227 + $0x9a] sm:$0xff]
      %v7739 = vld [vmem:[%s6227 + $0xaa] sm:$0xff]
      %v7740 = vld [vmem:[%s6227 + $0xb2] sm:$0xff]
      %v7741 = vld [vmem:[%s6227 + $0xc2] sm:$0xff]
      %v7742 = vld [vmem:[%s6227 + $0xca] sm:$0xff]
      %v7743 = vld [vmem:[%s6227 + $0xda] sm:$0xff]
      %v7744 = vld [vmem:[%s6227 + $0xe2] sm:$0xff]
      %v7745 = vld [vmem:[%s6227 + $0xf2] sm:$0xff]
      %v7746 = vld [vmem:[%s6227 + $0xfa] sm:$0xff]
      %v7747 = vld [vmem:[%s6227 + $0x10a] sm:$0xff]
      %v7748 = vld [vmem:[%s6227 + $0x112] sm:$0xff]
      %v7749 = vld [vmem:[%s6227 + $0x122] sm:$0xff]
      %v7750 = vld [vmem:[%s6227 + $0x12a] sm:$0xff]
      %v7751 = vld [vmem:[%s6227 + $0x13a] sm:$0xff]
      %v7752 = vld [vmem:[%s6227 + $0x142] sm:$0xff]
      %v7753 = vld [vmem:[%s6227 + $0x152] sm:$0xff]
      %v7754 = vld [vmem:[%s6227 + $0x15a] sm:$0xff]
      %v7755 = vld [vmem:[%s6227 + $0x16a] sm:$0xff]
      %v7756 = vld [vmem:[%s6227 + $0x172] sm:$0xff]
      %v7757 = vpack.c.bf16 %v7726, %v7725
      %v7758 = vpack.c.bf16 %v7728, %v7727
      %v7759 = vpack.c.bf16 %v7730, %v7729
      %v7760 = vpack.c.bf16 %v7732, %v7731
      %v7761 = vpack.c.bf16 %v7734, %v7733
      %v7762 = vpack.c.bf16 %v7736, %v7735
      %v7763 = vpack.c.bf16 %v7738, %v7737
      %v7764 = vpack.c.bf16 %v7740, %v7739
      %v7765 = vpack.c.bf16 %v7742, %v7741
      %v7766 = vpack.c.bf16 %v7744, %v7743
      %v7767 = vpack.c.bf16 %v7746, %v7745
      %v7768 = vpack.c.bf16 %v7748, %v7747
      %v7769 = vpack.c.bf16 %v7750, %v7749
      %v7770 = vpack.c.bf16 %v7752, %v7751
      %v7771 = vpack.c.bf16 %v7754, %v7753
      %v7772 = vpack.c.bf16 %v7756, %v7755
      %s7773 = scalar_lea.vmem %s3, 320
      %v7774 = vld [vmem:[%s7773] sm:$0xf]
      %v7775 = vld [vmem:[%s7773 + $0x4] sm:$0xf]
      %v7776 = vld [vmem:[%s7773 + $0x8] sm:$0xf]
      %v7777 = vld [vmem:[%s7773 + $0xc] sm:$0xf]
      %v7778 = vld [vmem:[%s7773 + $0x10] sm:$0xf]
      %v7779 = vld [vmem:[%s7773 + $0x14] sm:$0xf]
      %v7780 = vld [vmem:[%s7773 + $0x18] sm:$0xf]
      %v7781 = vld [vmem:[%s7773 + $0x1c] sm:$0xf]
      %v7782 = vld [vmem:[%s7773 + $0x20] sm:$0xf]
      %v7783 = vld [vmem:[%s7773 + $0x24] sm:$0xf]
      %v7784 = vld [vmem:[%s7773 + $0x28] sm:$0xf]
      %v7785 = vld [vmem:[%s7773 + $0x2c] sm:$0xf]
      %v7786 = vld [vmem:[%s7773 + $0x30] sm:$0xf]
      %v7787 = vld [vmem:[%s7773 + $0x34] sm:$0xf]
      %v7788 = vld [vmem:[%s7773 + $0x38] sm:$0xf]
      %v7789 = vld [vmem:[%s7773 + $0x3c] sm:$0xf]
      %v7806 = vunpack.c.l.b16 %v7774
      %v7807 = vunpack.c.l.b16 %v7775
      %v7808 = vunpack.c.l.b16 %v7776
      %v7809 = vunpack.c.l.b16 %v7777
      %v7810 = vunpack.c.l.b16 %v7778
      %v7811 = vunpack.c.l.b16 %v7779
      %v7812 = vunpack.c.l.b16 %v7780
      %v7813 = vunpack.c.l.b16 %v7781
      %v7814 = vunpack.c.l.b16 %v7782
      %v7815 = vunpack.c.l.b16 %v7783
      %v7816 = vunpack.c.l.b16 %v7784
      %v7817 = vunpack.c.l.b16 %v7785
      %v7818 = vunpack.c.l.b16 %v7786
      %v7819 = vunpack.c.l.b16 %v7787
      %v7820 = vunpack.c.l.b16 %v7788
      %v7821 = vunpack.c.l.b16 %v7789
      %v7822 = vpack.c.b16 %v7807, %v7806
      %v7823 = vpack.c.b16 %v7809, %v7808
      %v7824 = vpack.c.b16 %v7811, %v7810
      %v7825 = vpack.c.b16 %v7813, %v7812
      %v7826 = vpack.c.b16 %v7815, %v7814
      %v7827 = vpack.c.b16 %v7817, %v7816
      %v7828 = vpack.c.b16 %v7819, %v7818
      %v7829 = vpack.c.b16 %v7821, %v7820
      %7838 = vmatprep.subr.bf16.mxu0 0
      %7839 = vmatpush1.bf16.msra.mxu0 %v7829
      %7840 = vmatprep.subr.bf16.mxu0 0
      %7841 = vmatpush1.bf16.msra.mxu0 %v7828
      %7842 = vmatprep.subr.bf16.mxu0 0
      %7843 = vmatpush1.bf16.msra.mxu0 %v7827
      %7844 = vmatprep.subr.bf16.mxu0 0
      %7845 = vmatpush1.bf16.msra.mxu0 %v7826
      %7846 = vmatprep.subr.bf16.mxu0 0
      %7847 = vmatpush1.bf16.msra.mxu0 %v7825
      %7848 = vmatprep.subr.bf16.mxu0 0
      %7849 = vmatpush1.bf16.msra.mxu0 %v7824
      %7850 = vmatprep.subr.bf16.mxu0 0
      %7851 = vmatpush1.bf16.msra.mxu0 %v7823
      %7852 = vmatprep.subr.bf16.mxu0 0
      %7853 = vmatpush1.bf16.msra.mxu0 %v7822
      %7854 = vmatprep.subr.bf16.mxu0 0
      %7855 = vmatpush2.bf16.msra.mxu0 0
      %7856 = vmatprep.subr.bf16.mxu0 0
      %7857 = vmatpush2.bf16.msra.mxu0 0
      %7858 = vmatprep.subr.bf16.mxu0 0
      %7859 = vmatpush2.bf16.msra.mxu0 0
      %7860 = vmatprep.subr.bf16.mxu0 0
      %7861 = vmatpush2.bf16.msra.mxu0 0
      %7862 = vmatprep.subr.bf16.mxu0 0
      %7863 = vmatpush2.bf16.msra.mxu0 0
      %7864 = vmatprep.subr.bf16.mxu0 0
      %7865 = vmatpush2.bf16.msra.mxu0 0
      %7866 = vmatprep.subr.bf16.mxu0 0
      %7867 = vmatpush2.bf16.msra.mxu0 0
      %7868 = vmatprep.subr.bf16.mxu0 0
      %7869 = vmatpush2.bf16.msra.mxu0 0
      %7870 = vmatprep.mubr.bf16.mxu0 0
      %7871 = vmatmul.mubr.bf16.gmra.mxu0 %v7757
      %v7872 = vpop.f32.mrf.mxu0
      %v7873 = vadd.f32 0.0, %v7872
      %v7874 = vpop.f32.mrf.mxu0
      %v7875 = vpop.f32.mrf.mxu0
      %v7876 = vadd.f32 0.0, %v7875
      %v7877 = vpop.f32.mrf.mxu0
      %7878 = vmatprep.mubr.bf16.mxu0 0
      %7879 = vmatmul.mubr.bf16.gmra.mxu0 %v7758
      %v7880 = vpop.f32.mrf.mxu0
      %v7881 = vadd.f32 0.0, %v7880
      %v7882 = vpop.f32.mrf.mxu0
      %v7883 = vpop.f32.mrf.mxu0
      %v7884 = vadd.f32 0.0, %v7883
      %v7885 = vpop.f32.mrf.mxu0
      %7886 = vmatprep.mubr.bf16.mxu0 0
      %7887 = vmatmul.mubr.bf16.gmra.mxu0 %v7759
      %v7888 = vpop.f32.mrf.mxu0
      %v7889 = vadd.f32 0.0, %v7888
      %v7890 = vpop.f32.mrf.mxu0
      %v7891 = vpop.f32.mrf.mxu0
      %v7892 = vadd.f32 0.0, %v7891
      %v7893 = vpop.f32.mrf.mxu0
      %7894 = vmatprep.mubr.bf16.mxu0 0
      %7895 = vmatmul.mubr.bf16.gmra.mxu0 %v7760
      %v7896 = vpop.f32.mrf.mxu0
      %v7897 = vadd.f32 0.0, %v7896
      %v7898 = vpop.f32.mrf.mxu0
      %v7899 = vpop.f32.mrf.mxu0
      %v7900 = vadd.f32 0.0, %v7899
      %v7901 = vpop.f32.mrf.mxu0
      %7902 = vmatprep.mubr.bf16.mxu0 0
      %7903 = vmatmul.mubr.bf16.gmra.mxu0 %v7761
      %v7904 = vpop.f32.mrf.mxu0
      %v7905 = vadd.f32 0.0, %v7904
      %v7906 = vpop.f32.mrf.mxu0
      %v7907 = vpop.f32.mrf.mxu0
      %v7908 = vadd.f32 0.0, %v7907
      %v7909 = vpop.f32.mrf.mxu0
      %7910 = vmatprep.mubr.bf16.mxu0 0
      %7911 = vmatmul.mubr.bf16.gmra.mxu0 %v7762
      %v7912 = vpop.f32.mrf.mxu0
      %v7913 = vadd.f32 0.0, %v7912
      %v7914 = vpop.f32.mrf.mxu0
      %v7915 = vpop.f32.mrf.mxu0
      %v7916 = vadd.f32 0.0, %v7915
      %v7917 = vpop.f32.mrf.mxu0
      %7918 = vmatprep.mubr.bf16.mxu0 0
      %7919 = vmatmul.mubr.bf16.gmra.mxu0 %v7763
      %v7920 = vpop.f32.mrf.mxu0
      %v7921 = vadd.f32 0.0, %v7920
      %v7922 = vpop.f32.mrf.mxu0
      %v7923 = vpop.f32.mrf.mxu0
      %v7924 = vadd.f32 0.0, %v7923
      %v7925 = vpop.f32.mrf.mxu0
      %7926 = vmatprep.mubr.bf16.mxu0 0
      %7927 = vmatmul.mubr.bf16.gmra.mxu0 %v7764
      %v7928 = vpop.f32.mrf.mxu0
      %v7929 = vadd.f32 0.0, %v7928
      %v7930 = vpop.f32.mrf.mxu0
      %v7931 = vpop.f32.mrf.mxu0
      %v7932 = vadd.f32 0.0, %v7931
      %v7933 = vpop.f32.mrf.mxu0
      %7934 = vmatprep.mubr.bf16.mxu0 0
      %7935 = vmatmul.mubr.bf16.gmra.mxu0 %v7765
      %v7936 = vpop.f32.mrf.mxu0
      %v7937 = vadd.f32 0.0, %v7936
      %v7938 = vpop.f32.mrf.mxu0
      %v7939 = vpop.f32.mrf.mxu0
      %v7940 = vadd.f32 0.0, %v7939
      %v7941 = vpop.f32.mrf.mxu0
      %7942 = vmatprep.mubr.bf16.mxu0 0
      %7943 = vmatmul.mubr.bf16.gmra.mxu0 %v7766
      %v7944 = vpop.f32.mrf.mxu0
      %v7945 = vadd.f32 0.0, %v7944
      %v7946 = vpop.f32.mrf.mxu0
      %v7947 = vpop.f32.mrf.mxu0
      %v7948 = vadd.f32 0.0, %v7947
      %v7949 = vpop.f32.mrf.mxu0
      %7950 = vmatprep.mubr.bf16.mxu0 0
      %7951 = vmatmul.mubr.bf16.gmra.mxu0 %v7767
      %v7952 = vpop.f32.mrf.mxu0
      %v7953 = vadd.f32 0.0, %v7952
      %v7954 = vpop.f32.mrf.mxu0
      %v7955 = vpop.f32.mrf.mxu0
      %v7956 = vadd.f32 0.0, %v7955
      %v7957 = vpop.f32.mrf.mxu0
      %7958 = vmatprep.mubr.bf16.mxu0 0
      %7959 = vmatmul.mubr.bf16.gmra.mxu0 %v7768
      %v7960 = vpop.f32.mrf.mxu0
      %v7961 = vadd.f32 0.0, %v7960
      %v7962 = vpop.f32.mrf.mxu0
      %v7963 = vpop.f32.mrf.mxu0
      %v7964 = vadd.f32 0.0, %v7963
      %v7965 = vpop.f32.mrf.mxu0
      %7966 = vmatprep.mubr.bf16.mxu0 0
      %7967 = vmatmul.mubr.bf16.gmra.mxu0 %v7769
      %v7968 = vpop.f32.mrf.mxu0
      %v7969 = vadd.f32 0.0, %v7968
      %v7970 = vpop.f32.mrf.mxu0
      %v7971 = vpop.f32.mrf.mxu0
      %v7972 = vadd.f32 0.0, %v7971
      %v7973 = vpop.f32.mrf.mxu0
      %7974 = vmatprep.mubr.bf16.mxu0 0
      %7975 = vmatmul.mubr.bf16.gmra.mxu0 %v7770
      %v7976 = vpop.f32.mrf.mxu0
      %v7977 = vadd.f32 0.0, %v7976
      %v7978 = vpop.f32.mrf.mxu0
      %v7979 = vpop.f32.mrf.mxu0
      %v7980 = vadd.f32 0.0, %v7979
      %v7981 = vpop.f32.mrf.mxu0
      %7982 = vmatprep.mubr.bf16.mxu0 0
      %7983 = vmatmul.mubr.bf16.gmra.mxu0 %v7771
      %v7984 = vpop.f32.mrf.mxu0
      %v7985 = vadd.f32 0.0, %v7984
      %v7986 = vpop.f32.mrf.mxu0
      %v7987 = vpop.f32.mrf.mxu0
      %v7988 = vadd.f32 0.0, %v7987
      %v7989 = vpop.f32.mrf.mxu0
      %7990 = vmatprep.mubr.bf16.mxu0 0
      %7991 = vmatmul.mubr.bf16.gmra.mxu0 %v7772
      %v7992 = vpop.f32.mrf.mxu0
      %v7993 = vadd.f32 0.0, %v7992
      %v7994 = vpop.f32.mrf.mxu0
      %v7995 = vpop.f32.mrf.mxu0
      %v7996 = vadd.f32 0.0, %v7995
      %v7997 = vpop.f32.mrf.mxu0
      %7998 = vdwg.mxu0
      %v7999 = vadd.f32 %v7693, %v7873
      %v8000 = vadd.f32 %v7694, %v7876
      %v8001 = vadd.f32 %v7695, %v7881
      %v8002 = vadd.f32 %v7696, %v7884
      %v8003 = vadd.f32 %v7697, %v7889
      %v8004 = vadd.f32 %v7698, %v7892
      %v8005 = vadd.f32 %v7699, %v7897
      %v8006 = vadd.f32 %v7700, %v7900
      %v8007 = vadd.f32 %v7701, %v7905
      %v8008 = vadd.f32 %v7702, %v7908
      %v8009 = vadd.f32 %v7703, %v7913
      %v8010 = vadd.f32 %v7704, %v7916
      %v8011 = vadd.f32 %v7705, %v7921
      %v8012 = vadd.f32 %v7706, %v7924
      %v8013 = vadd.f32 %v7707, %v7929
      %v8014 = vadd.f32 %v7708, %v7932
      %v8015 = vadd.f32 %v7709, %v7937
      %v8016 = vadd.f32 %v7710, %v7940
      %v8017 = vadd.f32 %v7711, %v7945
      %v8018 = vadd.f32 %v7712, %v7948
      %v8019 = vadd.f32 %v7713, %v7953
      %v8020 = vadd.f32 %v7714, %v7956
      %v8021 = vadd.f32 %v7715, %v7961
      %v8022 = vadd.f32 %v7716, %v7964
      %v8023 = vadd.f32 %v7717, %v7969
      %v8024 = vadd.f32 %v7718, %v7972
      %v8025 = vadd.f32 %v7719, %v7977
      %v8026 = vadd.f32 %v7720, %v7980
      %v8027 = vadd.f32 %v7721, %v7985
      %v8028 = vadd.f32 %v7722, %v7988
      %v8029 = vadd.f32 %v7723, %v7993
      %v8030 = vadd.f32 %v7724, %v7996
      %s8031 = scalar_lea.vmem [#allocation4], 48
      %v8032 = vld [vmem:[%s8031] sm:$0xff]
      %v8033 = vld [vmem:[%s8031 + $0x8] sm:$0xff]
      %v8034 = vld [vmem:[%s8031 + $0x18] sm:$0xff]
      %v8035 = vld [vmem:[%s8031 + $0x20] sm:$0xff]
      %v8036 = vld [vmem:[%s8031 + $0x30] sm:$0xff]
      %v8037 = vld [vmem:[%s8031 + $0x38] sm:$0xff]
      %v8038 = vld [vmem:[%s8031 + $0x48] sm:$0xff]
      %v8039 = vld [vmem:[%s8031 + $0x50] sm:$0xff]
      %v8040 = vld [vmem:[%s8031 + $0x60] sm:$0xff]
      %v8041 = vld [vmem:[%s8031 + $0x68] sm:$0xff]
      %v8042 = vld [vmem:[%s8031 + $0x78] sm:$0xff]
      %v8043 = vld [vmem:[%s8031 + $0x80] sm:$0xff]
      %v8044 = vld [vmem:[%s8031 + $0x90] sm:$0xff]
      %v8045 = vld [vmem:[%s8031 + $0x98] sm:$0xff]
      %v8046 = vld [vmem:[%s8031 + $0xa8] sm:$0xff]
      %v8047 = vld [vmem:[%s8031 + $0xb0] sm:$0xff]
      %v8048 = vld [vmem:[%s8031 + $0xc0] sm:$0xff]
      %v8049 = vld [vmem:[%s8031 + $0xc8] sm:$0xff]
      %v8050 = vld [vmem:[%s8031 + $0xd8] sm:$0xff]
      %v8051 = vld [vmem:[%s8031 + $0xe0] sm:$0xff]
      %v8052 = vld [vmem:[%s8031 + $0xf0] sm:$0xff]
      %v8053 = vld [vmem:[%s8031 + $0xf8] sm:$0xff]
      %v8054 = vld [vmem:[%s8031 + $0x108] sm:$0xff]
      %v8055 = vld [vmem:[%s8031 + $0x110] sm:$0xff]
      %v8056 = vld [vmem:[%s8031 + $0x120] sm:$0xff]
      %v8057 = vld [vmem:[%s8031 + $0x128] sm:$0xff]
      %v8058 = vld [vmem:[%s8031 + $0x138] sm:$0xff]
      %v8059 = vld [vmem:[%s8031 + $0x140] sm:$0xff]
      %v8060 = vld [vmem:[%s8031 + $0x150] sm:$0xff]
      %v8061 = vld [vmem:[%s8031 + $0x158] sm:$0xff]
      %v8062 = vld [vmem:[%s8031 + $0x168] sm:$0xff]
      %v8063 = vld [vmem:[%s8031 + $0x170] sm:$0xff]
      %v8064 = vpack.c.bf16 %v8033, %v8032
      %v8065 = vpack.c.bf16 %v8035, %v8034
      %v8066 = vpack.c.bf16 %v8037, %v8036
      %v8067 = vpack.c.bf16 %v8039, %v8038
      %v8068 = vpack.c.bf16 %v8041, %v8040
      %v8069 = vpack.c.bf16 %v8043, %v8042
      %v8070 = vpack.c.bf16 %v8045, %v8044
      %v8071 = vpack.c.bf16 %v8047, %v8046
      %v8072 = vpack.c.bf16 %v8049, %v8048
      %v8073 = vpack.c.bf16 %v8051, %v8050
      %v8074 = vpack.c.bf16 %v8053, %v8052
      %v8075 = vpack.c.bf16 %v8055, %v8054
      %v8076 = vpack.c.bf16 %v8057, %v8056
      %v8077 = vpack.c.bf16 %v8059, %v8058
      %v8078 = vpack.c.bf16 %v8061, %v8060
      %v8079 = vpack.c.bf16 %v8063, %v8062
      %s8080 = scalar_lea.vmem %s3, 384
      %v8081 = vld [vmem:[%s8080] sm:$0xf]
      %v8082 = vld [vmem:[%s8080 + $0x4] sm:$0xf]
      %v8083 = vld [vmem:[%s8080 + $0x8] sm:$0xf]
      %v8084 = vld [vmem:[%s8080 + $0xc] sm:$0xf]
      %v8085 = vld [vmem:[%s8080 + $0x10] sm:$0xf]
      %v8086 = vld [vmem:[%s8080 + $0x14] sm:$0xf]
      %v8087 = vld [vmem:[%s8080 + $0x18] sm:$0xf]
      %v8088 = vld [vmem:[%s8080 + $0x1c] sm:$0xf]
      %v8089 = vld [vmem:[%s8080 + $0x20] sm:$0xf]
      %v8090 = vld [vmem:[%s8080 + $0x24] sm:$0xf]
      %v8091 = vld [vmem:[%s8080 + $0x28] sm:$0xf]
      %v8092 = vld [vmem:[%s8080 + $0x2c] sm:$0xf]
      %v8093 = vld [vmem:[%s8080 + $0x30] sm:$0xf]
      %v8094 = vld [vmem:[%s8080 + $0x34] sm:$0xf]
      %v8095 = vld [vmem:[%s8080 + $0x38] sm:$0xf]
      %v8096 = vld [vmem:[%s8080 + $0x3c] sm:$0xf]
      %v8113 = vunpack.c.l.b16 %v8081
      %v8114 = vunpack.c.l.b16 %v8082
      %v8115 = vunpack.c.l.b16 %v8083
      %v8116 = vunpack.c.l.b16 %v8084
      %v8117 = vunpack.c.l.b16 %v8085
      %v8118 = vunpack.c.l.b16 %v8086
      %v8119 = vunpack.c.l.b16 %v8087
      %v8120 = vunpack.c.l.b16 %v8088
      %v8121 = vunpack.c.l.b16 %v8089
      %v8122 = vunpack.c.l.b16 %v8090
      %v8123 = vunpack.c.l.b16 %v8091
      %v8124 = vunpack.c.l.b16 %v8092
      %v8125 = vunpack.c.l.b16 %v8093
      %v8126 = vunpack.c.l.b16 %v8094
      %v8127 = vunpack.c.l.b16 %v8095
      %v8128 = vunpack.c.l.b16 %v8096
      %v8129 = vpack.c.b16 %v8114, %v8113
      %v8130 = vpack.c.b16 %v8116, %v8115
      %v8131 = vpack.c.b16 %v8118, %v8117
      %v8132 = vpack.c.b16 %v8120, %v8119
      %v8133 = vpack.c.b16 %v8122, %v8121
      %v8134 = vpack.c.b16 %v8124, %v8123
      %v8135 = vpack.c.b16 %v8126, %v8125
      %v8136 = vpack.c.b16 %v8128, %v8127
      %8145 = vmatprep.subr.bf16.mxu0 0
      %8146 = vmatpush1.bf16.msra.mxu0 %v8136
      %8147 = vmatprep.subr.bf16.mxu0 0
      %8148 = vmatpush1.bf16.msra.mxu0 %v8135
      %8149 = vmatprep.subr.bf16.mxu0 0
      %8150 = vmatpush1.bf16.msra.mxu0 %v8134
      %8151 = vmatprep.subr.bf16.mxu0 0
      %8152 = vmatpush1.bf16.msra.mxu0 %v8133
      %8153 = vmatprep.subr.bf16.mxu0 0
      %8154 = vmatpush1.bf16.msra.mxu0 %v8132
      %8155 = vmatprep.subr.bf16.mxu0 0
      %8156 = vmatpush1.bf16.msra.mxu0 %v8131
      %8157 = vmatprep.subr.bf16.mxu0 0
      %8158 = vmatpush1.bf16.msra.mxu0 %v8130
      %8159 = vmatprep.subr.bf16.mxu0 0
      %8160 = vmatpush1.bf16.msra.mxu0 %v8129
      %8161 = vmatprep.subr.bf16.mxu0 0
      %8162 = vmatpush2.bf16.msra.mxu0 0
      %8163 = vmatprep.subr.bf16.mxu0 0
      %8164 = vmatpush2.bf16.msra.mxu0 0
      %8165 = vmatprep.subr.bf16.mxu0 0
      %8166 = vmatpush2.bf16.msra.mxu0 0
      %8167 = vmatprep.subr.bf16.mxu0 0
      %8168 = vmatpush2.bf16.msra.mxu0 0
      %8169 = vmatprep.subr.bf16.mxu0 0
      %8170 = vmatpush2.bf16.msra.mxu0 0
      %8171 = vmatprep.subr.bf16.mxu0 0
      %8172 = vmatpush2.bf16.msra.mxu0 0
      %8173 = vmatprep.subr.bf16.mxu0 0
      %8174 = vmatpush2.bf16.msra.mxu0 0
      %8175 = vmatprep.subr.bf16.mxu0 0
      %8176 = vmatpush2.bf16.msra.mxu0 0
      %8177 = vmatprep.mubr.bf16.mxu0 0
      %8178 = vmatmul.mubr.bf16.gmra.mxu0 %v8064
      %v8179 = vpop.f32.mrf.mxu0
      %v8180 = vadd.f32 0.0, %v8179
      %v8181 = vpop.f32.mrf.mxu0
      %v8182 = vpop.f32.mrf.mxu0
      %v8183 = vadd.f32 0.0, %v8182
      %v8184 = vpop.f32.mrf.mxu0
      %8185 = vmatprep.mubr.bf16.mxu0 0
      %8186 = vmatmul.mubr.bf16.gmra.mxu0 %v8065
      %v8187 = vpop.f32.mrf.mxu0
      %v8188 = vadd.f32 0.0, %v8187
      %v8189 = vpop.f32.mrf.mxu0
      %v8190 = vpop.f32.mrf.mxu0
      %v8191 = vadd.f32 0.0, %v8190
      %v8192 = vpop.f32.mrf.mxu0
      %8193 = vmatprep.mubr.bf16.mxu0 0
      %8194 = vmatmul.mubr.bf16.gmra.mxu0 %v8066
      %v8195 = vpop.f32.mrf.mxu0
      %v8196 = vadd.f32 0.0, %v8195
      %v8197 = vpop.f32.mrf.mxu0
      %v8198 = vpop.f32.mrf.mxu0
      %v8199 = vadd.f32 0.0, %v8198
      %v8200 = vpop.f32.mrf.mxu0
      %8201 = vmatprep.mubr.bf16.mxu0 0
      %8202 = vmatmul.mubr.bf16.gmra.mxu0 %v8067
      %v8203 = vpop.f32.mrf.mxu0
      %v8204 = vadd.f32 0.0, %v8203
      %v8205 = vpop.f32.mrf.mxu0
      %v8206 = vpop.f32.mrf.mxu0
      %v8207 = vadd.f32 0.0, %v8206
      %v8208 = vpop.f32.mrf.mxu0
      %8209 = vmatprep.mubr.bf16.mxu0 0
      %8210 = vmatmul.mubr.bf16.gmra.mxu0 %v8068
      %v8211 = vpop.f32.mrf.mxu0
      %v8212 = vadd.f32 0.0, %v8211
      %v8213 = vpop.f32.mrf.mxu0
      %v8214 = vpop.f32.mrf.mxu0
      %v8215 = vadd.f32 0.0, %v8214
      %v8216 = vpop.f32.mrf.mxu0
      %8217 = vmatprep.mubr.bf16.mxu0 0
      %8218 = vmatmul.mubr.bf16.gmra.mxu0 %v8069
      %v8219 = vpop.f32.mrf.mxu0
      %v8220 = vadd.f32 0.0, %v8219
      %v8221 = vpop.f32.mrf.mxu0
      %v8222 = vpop.f32.mrf.mxu0
      %v8223 = vadd.f32 0.0, %v8222
      %v8224 = vpop.f32.mrf.mxu0
      %8225 = vmatprep.mubr.bf16.mxu0 0
      %8226 = vmatmul.mubr.bf16.gmra.mxu0 %v8070
      %v8227 = vpop.f32.mrf.mxu0
      %v8228 = vadd.f32 0.0, %v8227
      %v8229 = vpop.f32.mrf.mxu0
      %v8230 = vpop.f32.mrf.mxu0
      %v8231 = vadd.f32 0.0, %v8230
      %v8232 = vpop.f32.mrf.mxu0
      %8233 = vmatprep.mubr.bf16.mxu0 0
      %8234 = vmatmul.mubr.bf16.gmra.mxu0 %v8071
      %v8235 = vpop.f32.mrf.mxu0
      %v8236 = vadd.f32 0.0, %v8235
      %v8237 = vpop.f32.mrf.mxu0
      %v8238 = vpop.f32.mrf.mxu0
      %v8239 = vadd.f32 0.0, %v8238
      %v8240 = vpop.f32.mrf.mxu0
      %8241 = vmatprep.mubr.bf16.mxu0 0
      %8242 = vmatmul.mubr.bf16.gmra.mxu0 %v8072
      %v8243 = vpop.f32.mrf.mxu0
      %v8244 = vadd.f32 0.0, %v8243
      %v8245 = vpop.f32.mrf.mxu0
      %v8246 = vpop.f32.mrf.mxu0
      %v8247 = vadd.f32 0.0, %v8246
      %v8248 = vpop.f32.mrf.mxu0
      %8249 = vmatprep.mubr.bf16.mxu0 0
      %8250 = vmatmul.mubr.bf16.gmra.mxu0 %v8073
      %v8251 = vpop.f32.mrf.mxu0
      %v8252 = vadd.f32 0.0, %v8251
      %v8253 = vpop.f32.mrf.mxu0
      %v8254 = vpop.f32.mrf.mxu0
      %v8255 = vadd.f32 0.0, %v8254
      %v8256 = vpop.f32.mrf.mxu0
      %8257 = vmatprep.mubr.bf16.mxu0 0
      %8258 = vmatmul.mubr.bf16.gmra.mxu0 %v8074
      %v8259 = vpop.f32.mrf.mxu0
      %v8260 = vadd.f32 0.0, %v8259
      %v8261 = vpop.f32.mrf.mxu0
      %v8262 = vpop.f32.mrf.mxu0
      %v8263 = vadd.f32 0.0, %v8262
      %v8264 = vpop.f32.mrf.mxu0
      %8265 = vmatprep.mubr.bf16.mxu0 0
      %8266 = vmatmul.mubr.bf16.gmra.mxu0 %v8075
      %v8267 = vpop.f32.mrf.mxu0
      %v8268 = vadd.f32 0.0, %v8267
      %v8269 = vpop.f32.mrf.mxu0
      %v8270 = vpop.f32.mrf.mxu0
      %v8271 = vadd.f32 0.0, %v8270
      %v8272 = vpop.f32.mrf.mxu0
      %8273 = vmatprep.mubr.bf16.mxu0 0
      %8274 = vmatmul.mubr.bf16.gmra.mxu0 %v8076
      %v8275 = vpop.f32.mrf.mxu0
      %v8276 = vadd.f32 0.0, %v8275
      %v8277 = vpop.f32.mrf.mxu0
      %v8278 = vpop.f32.mrf.mxu0
      %v8279 = vadd.f32 0.0, %v8278
      %v8280 = vpop.f32.mrf.mxu0
      %8281 = vmatprep.mubr.bf16.mxu0 0
      %8282 = vmatmul.mubr.bf16.gmra.mxu0 %v8077
      %v8283 = vpop.f32.mrf.mxu0
      %v8284 = vadd.f32 0.0, %v8283
      %v8285 = vpop.f32.mrf.mxu0
      %v8286 = vpop.f32.mrf.mxu0
      %v8287 = vadd.f32 0.0, %v8286
      %v8288 = vpop.f32.mrf.mxu0
      %8289 = vmatprep.mubr.bf16.mxu0 0
      %8290 = vmatmul.mubr.bf16.gmra.mxu0 %v8078
      %v8291 = vpop.f32.mrf.mxu0
      %v8292 = vadd.f32 0.0, %v8291
      %v8293 = vpop.f32.mrf.mxu0
      %v8294 = vpop.f32.mrf.mxu0
      %v8295 = vadd.f32 0.0, %v8294
      %v8296 = vpop.f32.mrf.mxu0
      %8297 = vmatprep.mubr.bf16.mxu0 0
      %8298 = vmatmul.mubr.bf16.gmra.mxu0 %v8079
      %v8299 = vpop.f32.mrf.mxu0
      %v8300 = vadd.f32 0.0, %v8299
      %v8301 = vpop.f32.mrf.mxu0
      %v8302 = vpop.f32.mrf.mxu0
      %v8303 = vadd.f32 0.0, %v8302
      %v8304 = vpop.f32.mrf.mxu0
      %8305 = vdwg.mxu0
      %v8306 = vadd.f32 %v7999, %v8180
      %v8307 = vadd.f32 %v8000, %v8183
      %v8308 = vadd.f32 %v8001, %v8188
      %v8309 = vadd.f32 %v8002, %v8191
      %v8310 = vadd.f32 %v8003, %v8196
      %v8311 = vadd.f32 %v8004, %v8199
      %v8312 = vadd.f32 %v8005, %v8204
      %v8313 = vadd.f32 %v8006, %v8207
      %v8314 = vadd.f32 %v8007, %v8212
      %v8315 = vadd.f32 %v8008, %v8215
      %v8316 = vadd.f32 %v8009, %v8220
      %v8317 = vadd.f32 %v8010, %v8223
      %v8318 = vadd.f32 %v8011, %v8228
      %v8319 = vadd.f32 %v8012, %v8231
      %v8320 = vadd.f32 %v8013, %v8236
      %v8321 = vadd.f32 %v8014, %v8239
      %v8322 = vadd.f32 %v8015, %v8244
      %v8323 = vadd.f32 %v8016, %v8247
      %v8324 = vadd.f32 %v8017, %v8252
      %v8325 = vadd.f32 %v8018, %v8255
      %v8326 = vadd.f32 %v8019, %v8260
      %v8327 = vadd.f32 %v8020, %v8263
      %v8328 = vadd.f32 %v8021, %v8268
      %v8329 = vadd.f32 %v8022, %v8271
      %v8330 = vadd.f32 %v8023, %v8276
      %v8331 = vadd.f32 %v8024, %v8279
      %v8332 = vadd.f32 %v8025, %v8284
      %v8333 = vadd.f32 %v8026, %v8287
      %v8334 = vadd.f32 %v8027, %v8292
      %v8335 = vadd.f32 %v8028, %v8295
      %v8336 = vadd.f32 %v8029, %v8300
      %v8337 = vadd.f32 %v8030, %v8303
      %v8338 = vld [vmem:[%s8031 + $0x1] sm:$0xff]
      %v8339 = vld [vmem:[%s8031 + $0x9] sm:$0xff]
      %v8340 = vld [vmem:[%s8031 + $0x19] sm:$0xff]
      %v8341 = vld [vmem:[%s8031 + $0x21] sm:$0xff]
      %v8342 = vld [vmem:[%s8031 + $0x31] sm:$0xff]
      %v8343 = vld [vmem:[%s8031 + $0x39] sm:$0xff]
      %v8344 = vld [vmem:[%s8031 + $0x49] sm:$0xff]
      %v8345 = vld [vmem:[%s8031 + $0x51] sm:$0xff]
      %v8346 = vld [vmem:[%s8031 + $0x61] sm:$0xff]
      %v8347 = vld [vmem:[%s8031 + $0x69] sm:$0xff]
      %v8348 = vld [vmem:[%s8031 + $0x79] sm:$0xff]
      %v8349 = vld [vmem:[%s8031 + $0x81] sm:$0xff]
      %v8350 = vld [vmem:[%s8031 + $0x91] sm:$0xff]
      %v8351 = vld [vmem:[%s8031 + $0x99] sm:$0xff]
      %v8352 = vld [vmem:[%s8031 + $0xa9] sm:$0xff]
      %v8353 = vld [vmem:[%s8031 + $0xb1] sm:$0xff]
      %v8354 = vld [vmem:[%s8031 + $0xc1] sm:$0xff]
      %v8355 = vld [vmem:[%s8031 + $0xc9] sm:$0xff]
      %v8356 = vld [vmem:[%s8031 + $0xd9] sm:$0xff]
      %v8357 = vld [vmem:[%s8031 + $0xe1] sm:$0xff]
      %v8358 = vld [vmem:[%s8031 + $0xf1] sm:$0xff]
      %v8359 = vld [vmem:[%s8031 + $0xf9] sm:$0xff]
      %v8360 = vld [vmem:[%s8031 + $0x109] sm:$0xff]
      %v8361 = vld [vmem:[%s8031 + $0x111] sm:$0xff]
      %v8362 = vld [vmem:[%s8031 + $0x121] sm:$0xff]
      %v8363 = vld [vmem:[%s8031 + $0x129] sm:$0xff]
      %v8364 = vld [vmem:[%s8031 + $0x139] sm:$0xff]
      %v8365 = vld [vmem:[%s8031 + $0x141] sm:$0xff]
      %v8366 = vld [vmem:[%s8031 + $0x151] sm:$0xff]
      %v8367 = vld [vmem:[%s8031 + $0x159] sm:$0xff]
      %v8368 = vld [vmem:[%s8031 + $0x169] sm:$0xff]
      %v8369 = vld [vmem:[%s8031 + $0x171] sm:$0xff]
      %v8370 = vpack.c.bf16 %v8339, %v8338
      %v8371 = vpack.c.bf16 %v8341, %v8340
      %v8372 = vpack.c.bf16 %v8343, %v8342
      %v8373 = vpack.c.bf16 %v8345, %v8344
      %v8374 = vpack.c.bf16 %v8347, %v8346
      %v8375 = vpack.c.bf16 %v8349, %v8348
      %v8376 = vpack.c.bf16 %v8351, %v8350
      %v8377 = vpack.c.bf16 %v8353, %v8352
      %v8378 = vpack.c.bf16 %v8355, %v8354
      %v8379 = vpack.c.bf16 %v8357, %v8356
      %v8380 = vpack.c.bf16 %v8359, %v8358
      %v8381 = vpack.c.bf16 %v8361, %v8360
      %v8382 = vpack.c.bf16 %v8363, %v8362
      %v8383 = vpack.c.bf16 %v8365, %v8364
      %v8384 = vpack.c.bf16 %v8367, %v8366
      %v8385 = vpack.c.bf16 %v8369, %v8368
      %s8386 = scalar_lea.vmem %s3, 448
      %v8387 = vld [vmem:[%s8386] sm:$0xf]
      %v8388 = vld [vmem:[%s8386 + $0x4] sm:$0xf]
      %v8389 = vld [vmem:[%s8386 + $0x8] sm:$0xf]
      %v8390 = vld [vmem:[%s8386 + $0xc] sm:$0xf]
      %v8391 = vld [vmem:[%s8386 + $0x10] sm:$0xf]
      %v8392 = vld [vmem:[%s8386 + $0x14] sm:$0xf]
      %v8393 = vld [vmem:[%s8386 + $0x18] sm:$0xf]
      %v8394 = vld [vmem:[%s8386 + $0x1c] sm:$0xf]
      %v8395 = vld [vmem:[%s8386 + $0x20] sm:$0xf]
      %v8396 = vld [vmem:[%s8386 + $0x24] sm:$0xf]
      %v8397 = vld [vmem:[%s8386 + $0x28] sm:$0xf]
      %v8398 = vld [vmem:[%s8386 + $0x2c] sm:$0xf]
      %v8399 = vld [vmem:[%s8386 + $0x30] sm:$0xf]
      %v8400 = vld [vmem:[%s8386 + $0x34] sm:$0xf]
      %v8401 = vld [vmem:[%s8386 + $0x38] sm:$0xf]
      %v8402 = vld [vmem:[%s8386 + $0x3c] sm:$0xf]
      %v8419 = vunpack.c.l.b16 %v8387
      %v8420 = vunpack.c.l.b16 %v8388
      %v8421 = vunpack.c.l.b16 %v8389
      %v8422 = vunpack.c.l.b16 %v8390
      %v8423 = vunpack.c.l.b16 %v8391
      %v8424 = vunpack.c.l.b16 %v8392
      %v8425 = vunpack.c.l.b16 %v8393
      %v8426 = vunpack.c.l.b16 %v8394
      %v8427 = vunpack.c.l.b16 %v8395
      %v8428 = vunpack.c.l.b16 %v8396
      %v8429 = vunpack.c.l.b16 %v8397
      %v8430 = vunpack.c.l.b16 %v8398
      %v8431 = vunpack.c.l.b16 %v8399
      %v8432 = vunpack.c.l.b16 %v8400
      %v8433 = vunpack.c.l.b16 %v8401
      %v8434 = vunpack.c.l.b16 %v8402
      %v8435 = vpack.c.b16 %v8420, %v8419
      %v8436 = vpack.c.b16 %v8422, %v8421
      %v8437 = vpack.c.b16 %v8424, %v8423
      %v8438 = vpack.c.b16 %v8426, %v8425
      %v8439 = vpack.c.b16 %v8428, %v8427
      %v8440 = vpack.c.b16 %v8430, %v8429
      %v8441 = vpack.c.b16 %v8432, %v8431
      %v8442 = vpack.c.b16 %v8434, %v8433
      %8451 = vmatprep.subr.bf16.mxu0 0
      %8452 = vmatpush1.bf16.msra.mxu0 %v8442
      %8453 = vmatprep.subr.bf16.mxu0 0
      %8454 = vmatpush1.bf16.msra.mxu0 %v8441
      %8455 = vmatprep.subr.bf16.mxu0 0
      %8456 = vmatpush1.bf16.msra.mxu0 %v8440
      %8457 = vmatprep.subr.bf16.mxu0 0
      %8458 = vmatpush1.bf16.msra.mxu0 %v8439
      %8459 = vmatprep.subr.bf16.mxu0 0
      %8460 = vmatpush1.bf16.msra.mxu0 %v8438
      %8461 = vmatprep.subr.bf16.mxu0 0
      %8462 = vmatpush1.bf16.msra.mxu0 %v8437
      %8463 = vmatprep.subr.bf16.mxu0 0
      %8464 = vmatpush1.bf16.msra.mxu0 %v8436
      %8465 = vmatprep.subr.bf16.mxu0 0
      %8466 = vmatpush1.bf16.msra.mxu0 %v8435
      %8467 = vmatprep.subr.bf16.mxu0 0
      %8468 = vmatpush2.bf16.msra.mxu0 0
      %8469 = vmatprep.subr.bf16.mxu0 0
      %8470 = vmatpush2.bf16.msra.mxu0 0
      %8471 = vmatprep.subr.bf16.mxu0 0
      %8472 = vmatpush2.bf16.msra.mxu0 0
      %8473 = vmatprep.subr.bf16.mxu0 0
      %8474 = vmatpush2.bf16.msra.mxu0 0
      %8475 = vmatprep.subr.bf16.mxu0 0
      %8476 = vmatpush2.bf16.msra.mxu0 0
      %8477 = vmatprep.subr.bf16.mxu0 0
      %8478 = vmatpush2.bf16.msra.mxu0 0
      %8479 = vmatprep.subr.bf16.mxu0 0
      %8480 = vmatpush2.bf16.msra.mxu0 0
      %8481 = vmatprep.subr.bf16.mxu0 0
      %8482 = vmatpush2.bf16.msra.mxu0 0
      %8483 = vmatprep.mubr.bf16.mxu0 0
      %8484 = vmatmul.mubr.bf16.gmra.mxu0 %v8370
      %v8485 = vpop.f32.mrf.mxu0
      %v8486 = vadd.f32 0.0, %v8485
      %v8487 = vpop.f32.mrf.mxu0
      %v8488 = vpop.f32.mrf.mxu0
      %v8489 = vadd.f32 0.0, %v8488
      %v8490 = vpop.f32.mrf.mxu0
      %8491 = vmatprep.mubr.bf16.mxu0 0
      %8492 = vmatmul.mubr.bf16.gmra.mxu0 %v8371
      %v8493 = vpop.f32.mrf.mxu0
      %v8494 = vadd.f32 0.0, %v8493
      %v8495 = vpop.f32.mrf.mxu0
      %v8496 = vpop.f32.mrf.mxu0
      %v8497 = vadd.f32 0.0, %v8496
      %v8498 = vpop.f32.mrf.mxu0
      %8499 = vmatprep.mubr.bf16.mxu0 0
      %8500 = vmatmul.mubr.bf16.gmra.mxu0 %v8372
      %v8501 = vpop.f32.mrf.mxu0
      %v8502 = vadd.f32 0.0, %v8501
      %v8503 = vpop.f32.mrf.mxu0
      %v8504 = vpop.f32.mrf.mxu0
      %v8505 = vadd.f32 0.0, %v8504
      %v8506 = vpop.f32.mrf.mxu0
      %8507 = vmatprep.mubr.bf16.mxu0 0
      %8508 = vmatmul.mubr.bf16.gmra.mxu0 %v8373
      %v8509 = vpop.f32.mrf.mxu0
      %v8510 = vadd.f32 0.0, %v8509
      %v8511 = vpop.f32.mrf.mxu0
      %v8512 = vpop.f32.mrf.mxu0
      %v8513 = vadd.f32 0.0, %v8512
      %v8514 = vpop.f32.mrf.mxu0
      %8515 = vmatprep.mubr.bf16.mxu0 0
      %8516 = vmatmul.mubr.bf16.gmra.mxu0 %v8374
      %v8517 = vpop.f32.mrf.mxu0
      %v8518 = vadd.f32 0.0, %v8517
      %v8519 = vpop.f32.mrf.mxu0
      %v8520 = vpop.f32.mrf.mxu0
      %v8521 = vadd.f32 0.0, %v8520
      %v8522 = vpop.f32.mrf.mxu0
      %8523 = vmatprep.mubr.bf16.mxu0 0
      %8524 = vmatmul.mubr.bf16.gmra.mxu0 %v8375
      %v8525 = vpop.f32.mrf.mxu0
      %v8526 = vadd.f32 0.0, %v8525
      %v8527 = vpop.f32.mrf.mxu0
      %v8528 = vpop.f32.mrf.mxu0
      %v8529 = vadd.f32 0.0, %v8528
      %v8530 = vpop.f32.mrf.mxu0
      %8531 = vmatprep.mubr.bf16.mxu0 0
      %8532 = vmatmul.mubr.bf16.gmra.mxu0 %v8376
      %v8533 = vpop.f32.mrf.mxu0
      %v8534 = vadd.f32 0.0, %v8533
      %v8535 = vpop.f32.mrf.mxu0
      %v8536 = vpop.f32.mrf.mxu0
      %v8537 = vadd.f32 0.0, %v8536
      %v8538 = vpop.f32.mrf.mxu0
      %8539 = vmatprep.mubr.bf16.mxu0 0
      %8540 = vmatmul.mubr.bf16.gmra.mxu0 %v8377
      %v8541 = vpop.f32.mrf.mxu0
      %v8542 = vadd.f32 0.0, %v8541
      %v8543 = vpop.f32.mrf.mxu0
      %v8544 = vpop.f32.mrf.mxu0
      %v8545 = vadd.f32 0.0, %v8544
      %v8546 = vpop.f32.mrf.mxu0
      %8547 = vmatprep.mubr.bf16.mxu0 0
      %8548 = vmatmul.mubr.bf16.gmra.mxu0 %v8378
      %v8549 = vpop.f32.mrf.mxu0
      %v8550 = vadd.f32 0.0, %v8549
      %v8551 = vpop.f32.mrf.mxu0
      %v8552 = vpop.f32.mrf.mxu0
      %v8553 = vadd.f32 0.0, %v8552
      %v8554 = vpop.f32.mrf.mxu0
      %8555 = vmatprep.mubr.bf16.mxu0 0
      %8556 = vmatmul.mubr.bf16.gmra.mxu0 %v8379
      %v8557 = vpop.f32.mrf.mxu0
      %v8558 = vadd.f32 0.0, %v8557
      %v8559 = vpop.f32.mrf.mxu0
      %v8560 = vpop.f32.mrf.mxu0
      %v8561 = vadd.f32 0.0, %v8560
      %v8562 = vpop.f32.mrf.mxu0
      %8563 = vmatprep.mubr.bf16.mxu0 0
      %8564 = vmatmul.mubr.bf16.gmra.mxu0 %v8380
      %v8565 = vpop.f32.mrf.mxu0
      %v8566 = vadd.f32 0.0, %v8565
      %v8567 = vpop.f32.mrf.mxu0
      %v8568 = vpop.f32.mrf.mxu0
      %v8569 = vadd.f32 0.0, %v8568
      %v8570 = vpop.f32.mrf.mxu0
      %8571 = vmatprep.mubr.bf16.mxu0 0
      %8572 = vmatmul.mubr.bf16.gmra.mxu0 %v8381
      %v8573 = vpop.f32.mrf.mxu0
      %v8574 = vadd.f32 0.0, %v8573
      %v8575 = vpop.f32.mrf.mxu0
      %v8576 = vpop.f32.mrf.mxu0
      %v8577 = vadd.f32 0.0, %v8576
      %v8578 = vpop.f32.mrf.mxu0
      %8579 = vmatprep.mubr.bf16.mxu0 0
      %8580 = vmatmul.mubr.bf16.gmra.mxu0 %v8382
      %v8581 = vpop.f32.mrf.mxu0
      %v8582 = vadd.f32 0.0, %v8581
      %v8583 = vpop.f32.mrf.mxu0
      %v8584 = vpop.f32.mrf.mxu0
      %v8585 = vadd.f32 0.0, %v8584
      %v8586 = vpop.f32.mrf.mxu0
      %8587 = vmatprep.mubr.bf16.mxu0 0
      %8588 = vmatmul.mubr.bf16.gmra.mxu0 %v8383
      %v8589 = vpop.f32.mrf.mxu0
      %v8590 = vadd.f32 0.0, %v8589
      %v8591 = vpop.f32.mrf.mxu0
      %v8592 = vpop.f32.mrf.mxu0
      %v8593 = vadd.f32 0.0, %v8592
      %v8594 = vpop.f32.mrf.mxu0
      %8595 = vmatprep.mubr.bf16.mxu0 0
      %8596 = vmatmul.mubr.bf16.gmra.mxu0 %v8384
      %v8597 = vpop.f32.mrf.mxu0
      %v8598 = vadd.f32 0.0, %v8597
      %v8599 = vpop.f32.mrf.mxu0
      %v8600 = vpop.f32.mrf.mxu0
      %v8601 = vadd.f32 0.0, %v8600
      %v8602 = vpop.f32.mrf.mxu0
      %8603 = vmatprep.mubr.bf16.mxu0 0
      %8604 = vmatmul.mubr.bf16.gmra.mxu0 %v8385
      %v8605 = vpop.f32.mrf.mxu0
      %v8606 = vadd.f32 0.0, %v8605
      %v8607 = vpop.f32.mrf.mxu0
      %v8608 = vpop.f32.mrf.mxu0
      %v8609 = vadd.f32 0.0, %v8608
      %v8610 = vpop.f32.mrf.mxu0
      %8611 = vdwg.mxu0
      %v8612 = vadd.f32 %v8306, %v8486
      %v8613 = vadd.f32 %v8307, %v8489
      %v8614 = vadd.f32 %v8308, %v8494
      %v8615 = vadd.f32 %v8309, %v8497
      %v8616 = vadd.f32 %v8310, %v8502
      %v8617 = vadd.f32 %v8311, %v8505
      %v8618 = vadd.f32 %v8312, %v8510
      %v8619 = vadd.f32 %v8313, %v8513
      %v8620 = vadd.f32 %v8314, %v8518
      %v8621 = vadd.f32 %v8315, %v8521
      %v8622 = vadd.f32 %v8316, %v8526
      %v8623 = vadd.f32 %v8317, %v8529
      %v8624 = vadd.f32 %v8318, %v8534
      %v8625 = vadd.f32 %v8319, %v8537
      %v8626 = vadd.f32 %v8320, %v8542
      %v8627 = vadd.f32 %v8321, %v8545
      %v8628 = vadd.f32 %v8322, %v8550
      %v8629 = vadd.f32 %v8323, %v8553
      %v8630 = vadd.f32 %v8324, %v8558
      %v8631 = vadd.f32 %v8325, %v8561
      %v8632 = vadd.f32 %v8326, %v8566
      %v8633 = vadd.f32 %v8327, %v8569
      %v8634 = vadd.f32 %v8328, %v8574
      %v8635 = vadd.f32 %v8329, %v8577
      %v8636 = vadd.f32 %v8330, %v8582
      %v8637 = vadd.f32 %v8331, %v8585
      %v8638 = vadd.f32 %v8332, %v8590
      %v8639 = vadd.f32 %v8333, %v8593
      %v8640 = vadd.f32 %v8334, %v8598
      %v8641 = vadd.f32 %v8335, %v8601
      %v8642 = vadd.f32 %v8336, %v8606
      %v8643 = vadd.f32 %v8337, %v8609
      %v8644 = vld [vmem:[%s8031 + $0x2] sm:$0xff]
      %v8645 = vld [vmem:[%s8031 + $0xa] sm:$0xff]
      %v8646 = vld [vmem:[%s8031 + $0x1a] sm:$0xff]
      %v8647 = vld [vmem:[%s8031 + $0x22] sm:$0xff]
      %v8648 = vld [vmem:[%s8031 + $0x32] sm:$0xff]
      %v8649 = vld [vmem:[%s8031 + $0x3a] sm:$0xff]
      %v8650 = vld [vmem:[%s8031 + $0x4a] sm:$0xff]
      %v8651 = vld [vmem:[%s8031 + $0x52] sm:$0xff]
      %v8652 = vld [vmem:[%s8031 + $0x62] sm:$0xff]
      %v8653 = vld [vmem:[%s8031 + $0x6a] sm:$0xff]
      %v8654 = vld [vmem:[%s8031 + $0x7a] sm:$0xff]
      %v8655 = vld [vmem:[%s8031 + $0x82] sm:$0xff]
      %v8656 = vld [vmem:[%s8031 + $0x92] sm:$0xff]
      %v8657 = vld [vmem:[%s8031 + $0x9a] sm:$0xff]
      %v8658 = vld [vmem:[%s8031 + $0xaa] sm:$0xff]
      %v8659 = vld [vmem:[%s8031 + $0xb2] sm:$0xff]
      %v8660 = vld [vmem:[%s8031 + $0xc2] sm:$0xff]
      %v8661 = vld [vmem:[%s8031 + $0xca] sm:$0xff]
      %v8662 = vld [vmem:[%s8031 + $0xda] sm:$0xff]
      %v8663 = vld [vmem:[%s8031 + $0xe2] sm:$0xff]
      %v8664 = vld [vmem:[%s8031 + $0xf2] sm:$0xff]
      %v8665 = vld [vmem:[%s8031 + $0xfa] sm:$0xff]
      %v8666 = vld [vmem:[%s8031 + $0x10a] sm:$0xff]
      %v8667 = vld [vmem:[%s8031 + $0x112] sm:$0xff]
      %v8668 = vld [vmem:[%s8031 + $0x122] sm:$0xff]
      %v8669 = vld [vmem:[%s8031 + $0x12a] sm:$0xff]
      %v8670 = vld [vmem:[%s8031 + $0x13a] sm:$0xff]
      %v8671 = vld [vmem:[%s8031 + $0x142] sm:$0xff]
      %v8672 = vld [vmem:[%s8031 + $0x152] sm:$0xff]
      %v8673 = vld [vmem:[%s8031 + $0x15a] sm:$0xff]
      %v8674 = vld [vmem:[%s8031 + $0x16a] sm:$0xff]
      %v8675 = vld [vmem:[%s8031 + $0x172] sm:$0xff]
      %v8676 = vpack.c.bf16 %v8645, %v8644
      %v8677 = vpack.c.bf16 %v8647, %v8646
      %v8678 = vpack.c.bf16 %v8649, %v8648
      %v8679 = vpack.c.bf16 %v8651, %v8650
      %v8680 = vpack.c.bf16 %v8653, %v8652
      %v8681 = vpack.c.bf16 %v8655, %v8654
      %v8682 = vpack.c.bf16 %v8657, %v8656
      %v8683 = vpack.c.bf16 %v8659, %v8658
      %v8684 = vpack.c.bf16 %v8661, %v8660
      %v8685 = vpack.c.bf16 %v8663, %v8662
      %v8686 = vpack.c.bf16 %v8665, %v8664
      %v8687 = vpack.c.bf16 %v8667, %v8666
      %v8688 = vpack.c.bf16 %v8669, %v8668
      %v8689 = vpack.c.bf16 %v8671, %v8670
      %v8690 = vpack.c.bf16 %v8673, %v8672
      %v8691 = vpack.c.bf16 %v8675, %v8674
      %s8692 = scalar_lea.vmem %s3, 512
      %v8693 = vld [vmem:[%s8692] sm:$0xf]
      %v8694 = vld [vmem:[%s8692 + $0x4] sm:$0xf]
      %v8695 = vld [vmem:[%s8692 + $0x8] sm:$0xf]
      %v8696 = vld [vmem:[%s8692 + $0xc] sm:$0xf]
      %v8697 = vld [vmem:[%s8692 + $0x10] sm:$0xf]
      %v8698 = vld [vmem:[%s8692 + $0x14] sm:$0xf]
      %v8699 = vld [vmem:[%s8692 + $0x18] sm:$0xf]
      %v8700 = vld [vmem:[%s8692 + $0x1c] sm:$0xf]
      %v8701 = vld [vmem:[%s8692 + $0x20] sm:$0xf]
      %v8702 = vld [vmem:[%s8692 + $0x24] sm:$0xf]
      %v8703 = vld [vmem:[%s8692 + $0x28] sm:$0xf]
      %v8704 = vld [vmem:[%s8692 + $0x2c] sm:$0xf]
      %v8705 = vld [vmem:[%s8692 + $0x30] sm:$0xf]
      %v8706 = vld [vmem:[%s8692 + $0x34] sm:$0xf]
      %v8707 = vld [vmem:[%s8692 + $0x38] sm:$0xf]
      %v8708 = vld [vmem:[%s8692 + $0x3c] sm:$0xf]
      %v8725 = vunpack.c.l.b16 %v8693
      %v8726 = vunpack.c.l.b16 %v8694
      %v8727 = vunpack.c.l.b16 %v8695
      %v8728 = vunpack.c.l.b16 %v8696
      %v8729 = vunpack.c.l.b16 %v8697
      %v8730 = vunpack.c.l.b16 %v8698
      %v8731 = vunpack.c.l.b16 %v8699
      %v8732 = vunpack.c.l.b16 %v8700
      %v8733 = vunpack.c.l.b16 %v8701
      %v8734 = vunpack.c.l.b16 %v8702
      %v8735 = vunpack.c.l.b16 %v8703
      %v8736 = vunpack.c.l.b16 %v8704
      %v8737 = vunpack.c.l.b16 %v8705
      %v8738 = vunpack.c.l.b16 %v8706
      %v8739 = vunpack.c.l.b16 %v8707
      %v8740 = vunpack.c.l.b16 %v8708
      %v8741 = vpack.c.b16 %v8726, %v8725
      %v8742 = vpack.c.b16 %v8728, %v8727
      %v8743 = vpack.c.b16 %v8730, %v8729
      %v8744 = vpack.c.b16 %v8732, %v8731
      %v8745 = vpack.c.b16 %v8734, %v8733
      %v8746 = vpack.c.b16 %v8736, %v8735
      %v8747 = vpack.c.b16 %v8738, %v8737
      %v8748 = vpack.c.b16 %v8740, %v8739
      %8757 = vmatprep.subr.bf16.mxu0 0
      %8758 = vmatpush1.bf16.msra.mxu0 %v8748
      %8759 = vmatprep.subr.bf16.mxu0 0
      %8760 = vmatpush1.bf16.msra.mxu0 %v8747
      %8761 = vmatprep.subr.bf16.mxu0 0
      %8762 = vmatpush1.bf16.msra.mxu0 %v8746
      %8763 = vmatprep.subr.bf16.mxu0 0
      %8764 = vmatpush1.bf16.msra.mxu0 %v8745
      %8765 = vmatprep.subr.bf16.mxu0 0
      %8766 = vmatpush1.bf16.msra.mxu0 %v8744
      %8767 = vmatprep.subr.bf16.mxu0 0
      %8768 = vmatpush1.bf16.msra.mxu0 %v8743
      %8769 = vmatprep.subr.bf16.mxu0 0
      %8770 = vmatpush1.bf16.msra.mxu0 %v8742
      %8771 = vmatprep.subr.bf16.mxu0 0
      %8772 = vmatpush1.bf16.msra.mxu0 %v8741
      %8773 = vmatprep.subr.bf16.mxu0 0
      %8774 = vmatpush2.bf16.msra.mxu0 0
      %8775 = vmatprep.subr.bf16.mxu0 0
      %8776 = vmatpush2.bf16.msra.mxu0 0
      %8777 = vmatprep.subr.bf16.mxu0 0
      %8778 = vmatpush2.bf16.msra.mxu0 0
      %8779 = vmatprep.subr.bf16.mxu0 0
      %8780 = vmatpush2.bf16.msra.mxu0 0
      %8781 = vmatprep.subr.bf16.mxu0 0
      %8782 = vmatpush2.bf16.msra.mxu0 0
      %8783 = vmatprep.subr.bf16.mxu0 0
      %8784 = vmatpush2.bf16.msra.mxu0 0
      %8785 = vmatprep.subr.bf16.mxu0 0
      %8786 = vmatpush2.bf16.msra.mxu0 0
      %8787 = vmatprep.subr.bf16.mxu0 0
      %8788 = vmatpush2.bf16.msra.mxu0 0
      %8789 = vmatprep.mubr.bf16.mxu0 0
      %8790 = vmatmul.mubr.bf16.gmra.mxu0 %v8676
      %v8791 = vpop.f32.mrf.mxu0
      %v8792 = vadd.f32 0.0, %v8791
      %v8793 = vpop.f32.mrf.mxu0
      %v8794 = vpop.f32.mrf.mxu0
      %v8795 = vadd.f32 0.0, %v8794
      %v8796 = vpop.f32.mrf.mxu0
      %8797 = vmatprep.mubr.bf16.mxu0 0
      %8798 = vmatmul.mubr.bf16.gmra.mxu0 %v8677
      %v8799 = vpop.f32.mrf.mxu0
      %v8800 = vadd.f32 0.0, %v8799
      %v8801 = vpop.f32.mrf.mxu0
      %v8802 = vpop.f32.mrf.mxu0
      %v8803 = vadd.f32 0.0, %v8802
      %v8804 = vpop.f32.mrf.mxu0
      %8805 = vmatprep.mubr.bf16.mxu0 0
      %8806 = vmatmul.mubr.bf16.gmra.mxu0 %v8678
      %v8807 = vpop.f32.mrf.mxu0
      %v8808 = vadd.f32 0.0, %v8807
      %v8809 = vpop.f32.mrf.mxu0
      %v8810 = vpop.f32.mrf.mxu0
      %v8811 = vadd.f32 0.0, %v8810
      %v8812 = vpop.f32.mrf.mxu0
      %8813 = vmatprep.mubr.bf16.mxu0 0
      %8814 = vmatmul.mubr.bf16.gmra.mxu0 %v8679
      %v8815 = vpop.f32.mrf.mxu0
      %v8816 = vadd.f32 0.0, %v8815
      %v8817 = vpop.f32.mrf.mxu0
      %v8818 = vpop.f32.mrf.mxu0
      %v8819 = vadd.f32 0.0, %v8818
      %v8820 = vpop.f32.mrf.mxu0
      %8821 = vmatprep.mubr.bf16.mxu0 0
      %8822 = vmatmul.mubr.bf16.gmra.mxu0 %v8680
      %v8823 = vpop.f32.mrf.mxu0
      %v8824 = vadd.f32 0.0, %v8823
      %v8825 = vpop.f32.mrf.mxu0
      %v8826 = vpop.f32.mrf.mxu0
      %v8827 = vadd.f32 0.0, %v8826
      %v8828 = vpop.f32.mrf.mxu0
      %8829 = vmatprep.mubr.bf16.mxu0 0
      %8830 = vmatmul.mubr.bf16.gmra.mxu0 %v8681
      %v8831 = vpop.f32.mrf.mxu0
      %v8832 = vadd.f32 0.0, %v8831
      %v8833 = vpop.f32.mrf.mxu0
      %v8834 = vpop.f32.mrf.mxu0
      %v8835 = vadd.f32 0.0, %v8834
      %v8836 = vpop.f32.mrf.mxu0
      %8837 = vmatprep.mubr.bf16.mxu0 0
      %8838 = vmatmul.mubr.bf16.gmra.mxu0 %v8682
      %v8839 = vpop.f32.mrf.mxu0
      %v8840 = vadd.f32 0.0, %v8839
      %v8841 = vpop.f32.mrf.mxu0
      %v8842 = vpop.f32.mrf.mxu0
      %v8843 = vadd.f32 0.0, %v8842
      %v8844 = vpop.f32.mrf.mxu0
      %8845 = vmatprep.mubr.bf16.mxu0 0
      %8846 = vmatmul.mubr.bf16.gmra.mxu0 %v8683
      %v8847 = vpop.f32.mrf.mxu0
      %v8848 = vadd.f32 0.0, %v8847
      %v8849 = vpop.f32.mrf.mxu0
      %v8850 = vpop.f32.mrf.mxu0
      %v8851 = vadd.f32 0.0, %v8850
      %v8852 = vpop.f32.mrf.mxu0
      %8853 = vmatprep.mubr.bf16.mxu0 0
      %8854 = vmatmul.mubr.bf16.gmra.mxu0 %v8684
      %v8855 = vpop.f32.mrf.mxu0
      %v8856 = vadd.f32 0.0, %v8855
      %v8857 = vpop.f32.mrf.mxu0
      %v8858 = vpop.f32.mrf.mxu0
      %v8859 = vadd.f32 0.0, %v8858
      %v8860 = vpop.f32.mrf.mxu0
      %8861 = vmatprep.mubr.bf16.mxu0 0
      %8862 = vmatmul.mubr.bf16.gmra.mxu0 %v8685
      %v8863 = vpop.f32.mrf.mxu0
      %v8864 = vadd.f32 0.0, %v8863
      %v8865 = vpop.f32.mrf.mxu0
      %v8866 = vpop.f32.mrf.mxu0
      %v8867 = vadd.f32 0.0, %v8866
      %v8868 = vpop.f32.mrf.mxu0
      %8869 = vmatprep.mubr.bf16.mxu0 0
      %8870 = vmatmul.mubr.bf16.gmra.mxu0 %v8686
      %v8871 = vpop.f32.mrf.mxu0
      %v8872 = vadd.f32 0.0, %v8871
      %v8873 = vpop.f32.mrf.mxu0
      %v8874 = vpop.f32.mrf.mxu0
      %v8875 = vadd.f32 0.0, %v8874
      %v8876 = vpop.f32.mrf.mxu0
      %8877 = vmatprep.mubr.bf16.mxu0 0
      %8878 = vmatmul.mubr.bf16.gmra.mxu0 %v8687
      %v8879 = vpop.f32.mrf.mxu0
      %v8880 = vadd.f32 0.0, %v8879
      %v8881 = vpop.f32.mrf.mxu0
      %v8882 = vpop.f32.mrf.mxu0
      %v8883 = vadd.f32 0.0, %v8882
      %v8884 = vpop.f32.mrf.mxu0
      %8885 = vmatprep.mubr.bf16.mxu0 0
      %8886 = vmatmul.mubr.bf16.gmra.mxu0 %v8688
      %v8887 = vpop.f32.mrf.mxu0
      %v8888 = vadd.f32 0.0, %v8887
      %v8889 = vpop.f32.mrf.mxu0
      %v8890 = vpop.f32.mrf.mxu0
      %v8891 = vadd.f32 0.0, %v8890
      %v8892 = vpop.f32.mrf.mxu0
      %8893 = vmatprep.mubr.bf16.mxu0 0
      %8894 = vmatmul.mubr.bf16.gmra.mxu0 %v8689
      %v8895 = vpop.f32.mrf.mxu0
      %v8896 = vadd.f32 0.0, %v8895
      %v8897 = vpop.f32.mrf.mxu0
      %v8898 = vpop.f32.mrf.mxu0
      %v8899 = vadd.f32 0.0, %v8898
      %v8900 = vpop.f32.mrf.mxu0
      %8901 = vmatprep.mubr.bf16.mxu0 0
      %8902 = vmatmul.mubr.bf16.gmra.mxu0 %v8690
      %v8903 = vpop.f32.mrf.mxu0
      %v8904 = vadd.f32 0.0, %v8903
      %v8905 = vpop.f32.mrf.mxu0
      %v8906 = vpop.f32.mrf.mxu0
      %v8907 = vadd.f32 0.0, %v8906
      %v8908 = vpop.f32.mrf.mxu0
      %8909 = vmatprep.mubr.bf16.mxu0 0
      %8910 = vmatmul.mubr.bf16.gmra.mxu0 %v8691
      %v8911 = vpop.f32.mrf.mxu0
      %v8912 = vadd.f32 0.0, %v8911
      %v8913 = vpop.f32.mrf.mxu0
      %v8914 = vpop.f32.mrf.mxu0
      %v8915 = vadd.f32 0.0, %v8914
      %v8916 = vpop.f32.mrf.mxu0
      %8917 = vdwg.mxu0
      %v8918 = vadd.f32 %v8612, %v8792
      %v8919 = vadd.f32 %v8613, %v8795
      %v8920 = vadd.f32 %v8614, %v8800
      %v8921 = vadd.f32 %v8615, %v8803
      %v8922 = vadd.f32 %v8616, %v8808
      %v8923 = vadd.f32 %v8617, %v8811
      %v8924 = vadd.f32 %v8618, %v8816
      %v8925 = vadd.f32 %v8619, %v8819
      %v8926 = vadd.f32 %v8620, %v8824
      %v8927 = vadd.f32 %v8621, %v8827
      %v8928 = vadd.f32 %v8622, %v8832
      %v8929 = vadd.f32 %v8623, %v8835
      %v8930 = vadd.f32 %v8624, %v8840
      %v8931 = vadd.f32 %v8625, %v8843
      %v8932 = vadd.f32 %v8626, %v8848
      %v8933 = vadd.f32 %v8627, %v8851
      %v8934 = vadd.f32 %v8628, %v8856
      %v8935 = vadd.f32 %v8629, %v8859
      %v8936 = vadd.f32 %v8630, %v8864
      %v8937 = vadd.f32 %v8631, %v8867
      %v8938 = vadd.f32 %v8632, %v8872
      %v8939 = vadd.f32 %v8633, %v8875
      %v8940 = vadd.f32 %v8634, %v8880
      %v8941 = vadd.f32 %v8635, %v8883
      %v8942 = vadd.f32 %v8636, %v8888
      %v8943 = vadd.f32 %v8637, %v8891
      %v8944 = vadd.f32 %v8638, %v8896
      %v8945 = vadd.f32 %v8639, %v8899
      %v8946 = vadd.f32 %v8640, %v8904
      %v8947 = vadd.f32 %v8641, %v8907
      %v8948 = vadd.f32 %v8642, %v8912
      %v8949 = vadd.f32 %v8643, %v8915
      %v8950 = vld [vmem:[%s7] sm:$0x1]
      %v8951 = vlaneseq
      %v8952 = vshrl.u32 %v8951, 7
      %v8953 = vsub.s32 0, %v8952
      %v8954 = vrot.slane %v8950, %v8953
      %v8955 = vmul.f32 %v8918, %v8954
      %v8956 = vmul.f32 %v8919, %v8954
      %v8957 = vmul.f32 %v8920, %v8954
      %v8958 = vmul.f32 %v8921, %v8954
      %v8959 = vmul.f32 %v8922, %v8954
      %v8960 = vmul.f32 %v8923, %v8954
      %v8961 = vmul.f32 %v8924, %v8954
      %v8962 = vmul.f32 %v8925, %v8954
      %v8963 = vmul.f32 %v8926, %v8954
      %v8964 = vmul.f32 %v8927, %v8954
      %v8965 = vmul.f32 %v8928, %v8954
      %v8966 = vmul.f32 %v8929, %v8954
      %v8967 = vmul.f32 %v8930, %v8954
      %v8968 = vmul.f32 %v8931, %v8954
      %v8969 = vmul.f32 %v8932, %v8954
      %v8970 = vmul.f32 %v8933, %v8954
      %v8971 = vmul.f32 %v8934, %v8954
      %v8972 = vmul.f32 %v8935, %v8954
      %v8973 = vmul.f32 %v8936, %v8954
      %v8974 = vmul.f32 %v8937, %v8954
      %v8975 = vmul.f32 %v8938, %v8954
      %v8976 = vmul.f32 %v8939, %v8954
      %v8977 = vmul.f32 %v8940, %v8954
      %v8978 = vmul.f32 %v8941, %v8954
      %v8979 = vmul.f32 %v8942, %v8954
      %v8980 = vmul.f32 %v8943, %v8954
      %v8981 = vmul.f32 %v8944, %v8954
      %v8982 = vmul.f32 %v8945, %v8954
      %v8983 = vmul.f32 %v8946, %v8954
      %v8984 = vmul.f32 %v8947, %v8954
      %v8985 = vmul.f32 %v8948, %v8954
      %v8986 = vmul.f32 %v8949, %v8954
      %v8987 = vld [vmem:[%s7 + $0x1] sm:$0x1]
      %v8988 = vlaneseq
      %v8989 = vshrl.u32 %v8988, 7
      %v8990 = vsub.s32 0, %v8989
      %v8991 = vrot.slane %v8987, %v8990
      %v8992 = vadd.f32 %v8955, %v8991
      %v8993 = vadd.f32 %v8956, %v8991
      %v8994 = vadd.f32 %v8957, %v8991
      %v8995 = vadd.f32 %v8958, %v8991
      %v8996 = vadd.f32 %v8959, %v8991
      %v8997 = vadd.f32 %v8960, %v8991
      %v8998 = vadd.f32 %v8961, %v8991
      %v8999 = vadd.f32 %v8962, %v8991
      %v9000 = vadd.f32 %v8963, %v8991
      %v9001 = vadd.f32 %v8964, %v8991
      %v9002 = vadd.f32 %v8965, %v8991
      %v9003 = vadd.f32 %v8966, %v8991
      %v9004 = vadd.f32 %v8967, %v8991
      %v9005 = vadd.f32 %v8968, %v8991
      %v9006 = vadd.f32 %v8969, %v8991
      %v9007 = vadd.f32 %v8970, %v8991
      %v9008 = vadd.f32 %v8971, %v8991
      %v9009 = vadd.f32 %v8972, %v8991
      %v9010 = vadd.f32 %v8973, %v8991
      %v9011 = vadd.f32 %v8974, %v8991
      %v9012 = vadd.f32 %v8975, %v8991
      %v9013 = vadd.f32 %v8976, %v8991
      %v9014 = vadd.f32 %v8977, %v8991
      %v9015 = vadd.f32 %v8978, %v8991
      %v9016 = vadd.f32 %v8979, %v8991
      %v9017 = vadd.f32 %v8980, %v8991
      %v9018 = vadd.f32 %v8981, %v8991
      %v9019 = vadd.f32 %v8982, %v8991
      %v9020 = vadd.f32 %v8983, %v8991
      %v9021 = vadd.f32 %v8984, %v8991
      %v9022 = vadd.f32 %v8985, %v8991
      %v9023 = vadd.f32 %v8986, %v8991
      %v9024 = vmax.f32 %v8992, 0.0
      %v9025 = vmax.f32 %v8993, 0.0
      %v9026 = vmax.f32 %v8994, 0.0
      %v9027 = vmax.f32 %v8995, 0.0
      %v9028 = vmax.f32 %v8996, 0.0
      %v9029 = vmax.f32 %v8997, 0.0
      %v9030 = vmax.f32 %v8998, 0.0
      %v9031 = vmax.f32 %v8999, 0.0
      %v9032 = vmax.f32 %v9000, 0.0
      %v9033 = vmax.f32 %v9001, 0.0
      %v9034 = vmax.f32 %v9002, 0.0
      %v9035 = vmax.f32 %v9003, 0.0
      %v9036 = vmax.f32 %v9004, 0.0
      %v9037 = vmax.f32 %v9005, 0.0
      %v9038 = vmax.f32 %v9006, 0.0
      %v9039 = vmax.f32 %v9007, 0.0
      %v9040 = vmax.f32 %v9008, 0.0
      %v9041 = vmax.f32 %v9009, 0.0
      %v9042 = vmax.f32 %v9010, 0.0
      %v9043 = vmax.f32 %v9011, 0.0
      %v9044 = vmax.f32 %v9012, 0.0
      %v9045 = vmax.f32 %v9013, 0.0
      %v9046 = vmax.f32 %v9014, 0.0
      %v9047 = vmax.f32 %v9015, 0.0
      %v9048 = vmax.f32 %v9016, 0.0
      %v9049 = vmax.f32 %v9017, 0.0
      %v9050 = vmax.f32 %v9018, 0.0
      %v9051 = vmax.f32 %v9019, 0.0
      %v9052 = vmax.f32 %v9020, 0.0
      %v9053 = vmax.f32 %v9021, 0.0
      %v9054 = vmax.f32 %v9022, 0.0
      %v9055 = vmax.f32 %v9023, 0.0
      %v9056 = vpack.c.bf16 %v9025, %v9024
      %v9057 = vpack.c.bf16 %v9027, %v9026
      %v9058 = vpack.c.bf16 %v9029, %v9028
      %v9059 = vpack.c.bf16 %v9031, %v9030
      %v9060 = vpack.c.bf16 %v9033, %v9032
      %v9061 = vpack.c.bf16 %v9035, %v9034
      %v9062 = vpack.c.bf16 %v9037, %v9036
      %v9063 = vpack.c.bf16 %v9039, %v9038
      %v9064 = vpack.c.bf16 %v9041, %v9040
      %v9065 = vpack.c.bf16 %v9043, %v9042
      %v9066 = vpack.c.bf16 %v9045, %v9044
      %v9067 = vpack.c.bf16 %v9047, %v9046
      %v9068 = vpack.c.bf16 %v9049, %v9048
      %v9069 = vpack.c.bf16 %v9051, %v9050
      %v9070 = vpack.c.bf16 %v9053, %v9052
      %v9071 = vpack.c.bf16 %v9055, %v9054
      %v9072 = vld [vmem:[%s4] sm:$0xf]
      %v9073 = vld [vmem:[%s4 + $0x4] sm:$0xf]
      %v9074 = vld [vmem:[%s4 + $0x8] sm:$0xf]
      %v9075 = vld [vmem:[%s4 + $0xc] sm:$0xf]
      %v9076 = vld [vmem:[%s4 + $0x10] sm:$0xf]
      %v9077 = vld [vmem:[%s4 + $0x14] sm:$0xf]
      %v9078 = vld [vmem:[%s4 + $0x18] sm:$0xf]
      %v9079 = vld [vmem:[%s4 + $0x1c] sm:$0xf]
      %v9080 = vld [vmem:[%s4 + $0x20] sm:$0xf]
      %v9081 = vld [vmem:[%s4 + $0x24] sm:$0xf]
      %v9082 = vld [vmem:[%s4 + $0x28] sm:$0xf]
      %v9083 = vld [vmem:[%s4 + $0x2c] sm:$0xf]
      %v9084 = vld [vmem:[%s4 + $0x30] sm:$0xf]
      %v9085 = vld [vmem:[%s4 + $0x34] sm:$0xf]
      %v9086 = vld [vmem:[%s4 + $0x38] sm:$0xf]
      %v9087 = vld [vmem:[%s4 + $0x3c] sm:$0xf]
      %v9088 = vld [vmem:[%s8] sm:$0x1]
      %v9090 = vlaneseq
      %v9091 = vshrl.u32 %v9090, 7
      %v9092 = vsub.s32 0, %v9091
      %v9093 = vrot.slane %v9088, %v9092
      %v9111 = vunpack.c.l.b16 %v9072
      %v9112 = vunpack.c.l.b16 %v9073
      %v9113 = vunpack.c.l.b16 %v9074
      %v9114 = vunpack.c.l.b16 %v9075
      %v9115 = vunpack.c.l.b16 %v9076
      %v9116 = vunpack.c.l.b16 %v9077
      %v9117 = vunpack.c.l.b16 %v9078
      %v9118 = vunpack.c.l.b16 %v9079
      %v9119 = vunpack.c.l.b16 %v9080
      %v9120 = vunpack.c.l.b16 %v9081
      %v9121 = vunpack.c.l.b16 %v9082
      %v9122 = vunpack.c.l.b16 %v9083
      %v9123 = vunpack.c.l.b16 %v9084
      %v9124 = vunpack.c.l.b16 %v9085
      %v9125 = vunpack.c.l.b16 %v9086
      %v9126 = vunpack.c.l.b16 %v9087
      %v9127 = vpack.c.b16 %v9112, %v9111
      %v9128 = vpack.c.b16 %v9114, %v9113
      %v9129 = vpack.c.b16 %v9116, %v9115
      %v9130 = vpack.c.b16 %v9118, %v9117
      %v9131 = vpack.c.b16 %v9120, %v9119
      %v9132 = vpack.c.b16 %v9122, %v9121
      %v9133 = vpack.c.b16 %v9124, %v9123
      %v9134 = vpack.c.b16 %v9126, %v9125
      %9143 = vmatprep.subr.bf16.mxu0 0
      %9144 = vmatpush1.bf16.msra.mxu0 %v9134
      %9145 = vmatprep.subr.bf16.mxu0 0
      %9146 = vmatpush1.bf16.msra.mxu0 %v9133
      %9147 = vmatprep.subr.bf16.mxu0 0
      %9148 = vmatpush1.bf16.msra.mxu0 %v9132
      %9149 = vmatprep.subr.bf16.mxu0 0
      %9150 = vmatpush1.bf16.msra.mxu0 %v9131
      %9151 = vmatprep.subr.bf16.mxu0 0
      %9152 = vmatpush1.bf16.msra.mxu0 %v9130
      %9153 = vmatprep.subr.bf16.mxu0 0
      %9154 = vmatpush1.bf16.msra.mxu0 %v9129
      %9155 = vmatprep.subr.bf16.mxu0 0
      %9156 = vmatpush1.bf16.msra.mxu0 %v9128
      %9157 = vmatprep.subr.bf16.mxu0 0
      %9158 = vmatpush1.bf16.msra.mxu0 %v9127
      %9159 = vmatprep.subr.bf16.mxu0 0
      %9160 = vmatpush2.bf16.msra.mxu0 0
      %9161 = vmatprep.subr.bf16.mxu0 0
      %9162 = vmatpush2.bf16.msra.mxu0 0
      %9163 = vmatprep.subr.bf16.mxu0 0
      %9164 = vmatpush2.bf16.msra.mxu0 0
      %9165 = vmatprep.subr.bf16.mxu0 0
      %9166 = vmatpush2.bf16.msra.mxu0 0
      %9167 = vmatprep.subr.bf16.mxu0 0
      %9168 = vmatpush2.bf16.msra.mxu0 0
      %9169 = vmatprep.subr.bf16.mxu0 0
      %9170 = vmatpush2.bf16.msra.mxu0 0
      %9171 = vmatprep.subr.bf16.mxu0 0
      %9172 = vmatpush2.bf16.msra.mxu0 0
      %9173 = vmatprep.subr.bf16.mxu0 0
      %9174 = vmatpush2.bf16.msra.mxu0 0
      %9175 = vmatprep.mubr.bf16.mxu0 0
      %9176 = vmatmul.mubr.bf16.gmra.mxu0 %v9056
      %v9177 = vpop.f32.mrf.mxu0
      %v9178 = vadd.f32 %v9093, %v9177
      %v9179 = vpop.f32.mrf.mxu0
      %v9180 = vpop.f32.mrf.mxu0
      %v9181 = vadd.f32 %v9093, %v9180
      %v9182 = vpop.f32.mrf.mxu0
      %9183 = vmatprep.mubr.bf16.mxu0 0
      %9184 = vmatmul.mubr.bf16.gmra.mxu0 %v9057
      %v9185 = vpop.f32.mrf.mxu0
      %v9186 = vadd.f32 %v9093, %v9185
      %v9187 = vpop.f32.mrf.mxu0
      %v9188 = vpop.f32.mrf.mxu0
      %v9189 = vadd.f32 %v9093, %v9188
      %v9190 = vpop.f32.mrf.mxu0
      %9191 = vmatprep.mubr.bf16.mxu0 0
      %9192 = vmatmul.mubr.bf16.gmra.mxu0 %v9058
      %v9193 = vpop.f32.mrf.mxu0
      %v9194 = vadd.f32 %v9093, %v9193
      %v9195 = vpop.f32.mrf.mxu0
      %v9196 = vpop.f32.mrf.mxu0
      %v9197 = vadd.f32 %v9093, %v9196
      %v9198 = vpop.f32.mrf.mxu0
      %9199 = vmatprep.mubr.bf16.mxu0 0
      %9200 = vmatmul.mubr.bf16.gmra.mxu0 %v9059
      %v9201 = vpop.f32.mrf.mxu0
      %v9202 = vadd.f32 %v9093, %v9201
      %v9203 = vpop.f32.mrf.mxu0
      %v9204 = vpop.f32.mrf.mxu0
      %v9205 = vadd.f32 %v9093, %v9204
      %v9206 = vpop.f32.mrf.mxu0
      %9207 = vmatprep.mubr.bf16.mxu0 0
      %9208 = vmatmul.mubr.bf16.gmra.mxu0 %v9060
      %v9209 = vpop.f32.mrf.mxu0
      %v9210 = vadd.f32 %v9093, %v9209
      %v9211 = vpop.f32.mrf.mxu0
      %v9212 = vpop.f32.mrf.mxu0
      %v9213 = vadd.f32 %v9093, %v9212
      %v9214 = vpop.f32.mrf.mxu0
      %9215 = vmatprep.mubr.bf16.mxu0 0
      %9216 = vmatmul.mubr.bf16.gmra.mxu0 %v9061
      %v9217 = vpop.f32.mrf.mxu0
      %v9218 = vadd.f32 %v9093, %v9217
      %v9219 = vpop.f32.mrf.mxu0
      %v9220 = vpop.f32.mrf.mxu0
      %v9221 = vadd.f32 %v9093, %v9220
      %v9222 = vpop.f32.mrf.mxu0
      %9223 = vmatprep.mubr.bf16.mxu0 0
      %9224 = vmatmul.mubr.bf16.gmra.mxu0 %v9062
      %v9225 = vpop.f32.mrf.mxu0
      %v9226 = vadd.f32 %v9093, %v9225
      %v9227 = vpop.f32.mrf.mxu0
      %v9228 = vpop.f32.mrf.mxu0
      %v9229 = vadd.f32 %v9093, %v9228
      %v9230 = vpop.f32.mrf.mxu0
      %9231 = vmatprep.mubr.bf16.mxu0 0
      %9232 = vmatmul.mubr.bf16.gmra.mxu0 %v9063
      %v9233 = vpop.f32.mrf.mxu0
      %v9234 = vadd.f32 %v9093, %v9233
      %v9235 = vpop.f32.mrf.mxu0
      %v9236 = vpop.f32.mrf.mxu0
      %v9237 = vadd.f32 %v9093, %v9236
      %v9238 = vpop.f32.mrf.mxu0
      %9239 = vmatprep.mubr.bf16.mxu0 0
      %9240 = vmatmul.mubr.bf16.gmra.mxu0 %v9064
      %v9241 = vpop.f32.mrf.mxu0
      %v9242 = vadd.f32 %v9093, %v9241
      %v9243 = vpop.f32.mrf.mxu0
      %v9244 = vpop.f32.mrf.mxu0
      %v9245 = vadd.f32 %v9093, %v9244
      %v9246 = vpop.f32.mrf.mxu0
      %9247 = vmatprep.mubr.bf16.mxu0 0
      %9248 = vmatmul.mubr.bf16.gmra.mxu0 %v9065
      %v9249 = vpop.f32.mrf.mxu0
      %v9250 = vadd.f32 %v9093, %v9249
      %v9251 = vpop.f32.mrf.mxu0
      %v9252 = vpop.f32.mrf.mxu0
      %v9253 = vadd.f32 %v9093, %v9252
      %v9254 = vpop.f32.mrf.mxu0
      %9255 = vmatprep.mubr.bf16.mxu0 0
      %9256 = vmatmul.mubr.bf16.gmra.mxu0 %v9066
      %v9257 = vpop.f32.mrf.mxu0
      %v9258 = vadd.f32 %v9093, %v9257
      %v9259 = vpop.f32.mrf.mxu0
      %v9260 = vpop.f32.mrf.mxu0
      %v9261 = vadd.f32 %v9093, %v9260
      %v9262 = vpop.f32.mrf.mxu0
      %9263 = vmatprep.mubr.bf16.mxu0 0
      %9264 = vmatmul.mubr.bf16.gmra.mxu0 %v9067
      %v9265 = vpop.f32.mrf.mxu0
      %v9266 = vadd.f32 %v9093, %v9265
      %v9267 = vpop.f32.mrf.mxu0
      %v9268 = vpop.f32.mrf.mxu0
      %v9269 = vadd.f32 %v9093, %v9268
      %v9270 = vpop.f32.mrf.mxu0
      %9271 = vmatprep.mubr.bf16.mxu0 0
      %9272 = vmatmul.mubr.bf16.gmra.mxu0 %v9068
      %v9273 = vpop.f32.mrf.mxu0
      %v9274 = vadd.f32 %v9093, %v9273
      %v9275 = vpop.f32.mrf.mxu0
      %v9276 = vpop.f32.mrf.mxu0
      %v9277 = vadd.f32 %v9093, %v9276
      %v9278 = vpop.f32.mrf.mxu0
      %9279 = vmatprep.mubr.bf16.mxu0 0
      %9280 = vmatmul.mubr.bf16.gmra.mxu0 %v9069
      %v9281 = vpop.f32.mrf.mxu0
      %v9282 = vadd.f32 %v9093, %v9281
      %v9283 = vpop.f32.mrf.mxu0
      %v9284 = vpop.f32.mrf.mxu0
      %v9285 = vadd.f32 %v9093, %v9284
      %v9286 = vpop.f32.mrf.mxu0
      %9287 = vmatprep.mubr.bf16.mxu0 0
      %9288 = vmatmul.mubr.bf16.gmra.mxu0 %v9070
      %v9289 = vpop.f32.mrf.mxu0
      %v9290 = vadd.f32 %v9093, %v9289
      %v9291 = vpop.f32.mrf.mxu0
      %v9292 = vpop.f32.mrf.mxu0
      %v9293 = vadd.f32 %v9093, %v9292
      %v9294 = vpop.f32.mrf.mxu0
      %9295 = vmatprep.mubr.bf16.mxu0 0
      %9296 = vmatmul.mubr.bf16.gmra.mxu0 %v9071
      %v9297 = vpop.f32.mrf.mxu0
      %v9298 = vadd.f32 %v9093, %v9297
      %v9299 = vpop.f32.mrf.mxu0
      %v9300 = vpop.f32.mrf.mxu0
      %v9301 = vadd.f32 %v9093, %v9300
      %v9302 = vpop.f32.mrf.mxu0
      %9303 = vdwg.mxu0
      %9304 = vst [vmem:[%s332] sm:$0xff] %v9178
      %9305 = vst [vmem:[%s332 + $0x8] sm:$0xff] %v9181
      %9306 = vst [vmem:[%s332 + $0x10] sm:$0xff] %v9186
      %9307 = vst [vmem:[%s332 + $0x18] sm:$0xff] %v9189
      %9308 = vst [vmem:[%s332 + $0x20] sm:$0xff] %v9194
      %9309 = vst [vmem:[%s332 + $0x28] sm:$0xff] %v9197
      %9310 = vst [vmem:[%s332 + $0x30] sm:$0xff] %v9202
      %9311 = vst [vmem:[%s332 + $0x38] sm:$0xff] %v9205
      %9312 = vst [vmem:[%s332 + $0x40] sm:$0xff] %v9210
      %9313 = vst [vmem:[%s332 + $0x48] sm:$0xff] %v9213
      %9314 = vst [vmem:[%s332 + $0x50] sm:$0xff] %v9218
      %9315 = vst [vmem:[%s332 + $0x58] sm:$0xff] %v9221
      %9316 = vst [vmem:[%s332 + $0x60] sm:$0xff] %v9226
      %9317 = vst [vmem:[%s332 + $0x68] sm:$0xff] %v9229
      %9318 = vst [vmem:[%s332 + $0x70] sm:$0xff] %v9234
      %9319 = vst [vmem:[%s332 + $0x78] sm:$0xff] %v9237
      %9320 = vst [vmem:[%s332 + $0x80] sm:$0xff] %v9242
      %9321 = vst [vmem:[%s332 + $0x88] sm:$0xff] %v9245
      %9322 = vst [vmem:[%s332 + $0x90] sm:$0xff] %v9250
      %9323 = vst [vmem:[%s332 + $0x98] sm:$0xff] %v9253
      %9324 = vst [vmem:[%s332 + $0xa0] sm:$0xff] %v9258
      %9325 = vst [vmem:[%s332 + $0xa8] sm:$0xff] %v9261
      %9326 = vst [vmem:[%s332 + $0xb0] sm:$0xff] %v9266
      %9327 = vst [vmem:[%s332 + $0xb8] sm:$0xff] %v9269
      %9328 = vst [vmem:[%s332 + $0xc0] sm:$0xff] %v9274
      %9329 = vst [vmem:[%s332 + $0xc8] sm:$0xff] %v9277
      %9330 = vst [vmem:[%s332 + $0xd0] sm:$0xff] %v9282
      %9331 = vst [vmem:[%s332 + $0xd8] sm:$0xff] %v9285
      %9332 = vst [vmem:[%s332 + $0xe0] sm:$0xff] %v9290
      %9333 = vst [vmem:[%s332 + $0xe8] sm:$0xff] %v9293
      %9334 = vst [vmem:[%s332 + $0xf0] sm:$0xff] %v9298
      %9335 = vst [vmem:[%s332 + $0xf8] sm:$0xff] %v9301
      %p9336 = scmp.lt.s32.totalorder %s20, 1
      %s9337 = scalar_select %p9336, %s20, 1
      %s9338 = smul.addr %s9337, 32
      %s9339 = smul.addr %s9338, 8
      %s9340 = scalar_lea.vmem %s9, %s9339
      // Predicated region
      $region57: #{module_placement_cnn_forward.1} parent=55 // pred_check
        %p9341 = pneg %p232
      $region58: #{module_placement_cnn_forward.1} parent=55 // pred_check_branch
        %9343 = sbr.rel (%p9341) target = $region60
      $region59: #{module_placement_cnn_forward.1} parent=55 // pred_region
        _
      $region60: #{module_placement_cnn_forward.1} parent=55 // pred_fallthru
        _
    $region56: #{module_placement_cnn_forward.1} parent=5 // pred_fallthru
      _
    %p9344 = scmp.le.s32.totalorder 2, %s15
    // Predicated region
    $region61: #{module_placement_cnn_forward.1} parent=5 // pred_check
      %p9345 = pneg %p9344
    $region62: #{module_placement_cnn_forward.1} parent=5 // pred_check_branch
      %9347 = sbr.rel (%p9345) target = $region64
    $region63: #{module_placement_cnn_forward.1} parent=5 // pred_region
      %s9348 = ssub.s32 %s15, 2
      // Predicated region
      $region65: #{module_placement_cnn_forward.1} parent=63 // pred_check
        %p9349 = pneg %p238
      $region66: #{module_placement_cnn_forward.1} parent=63 // pred_check_branch
        %9351 = sbr.rel (%p9349) target = $region68
      $region67: #{module_placement_cnn_forward.1} parent=63 // pred_region
        %p9352 = scmp.lt.s32.totalorder %s21, 1
        %s9353 = scalar_select %p9352, %s21, 1
        %s9354 = smul.addr %s9353, 32
        %s9355 = smul.addr %s9354, 8
        %s9356 = scalar_lea.vmem %s9, %s9355
      $region68: #{module_placement_cnn_forward.1} parent=63 // pred_fallthru
        _
    $region64: #{module_placement_cnn_forward.1} parent=5 // pred_fallthru
      _
  $region6: #{module_placement_cnn_forward.1} parent=0 // loop_footer
    %s19 = sadd.s32 1, %s15
  $region7: #{module_placement_cnn_forward.1} parent=0 // loop_footer_branch
    %14 = sbr.rel target = $region3
  $region8: #{module_placement_cnn_forward.1} parent=0 // loop_exit
    _

</llo_original>
